<compile_context>
chip_gen: v7x
topology: tpu7x:2x2x1
jax: 0.10.0
libtpu: 0.0.40
codegen_flags: <defaults>
</compile_context>

<pallas_src>
import jax
import jax.numpy as jnp
from jax import lax
from jax.experimental import pallas as pl
from jax.experimental.pallas import tpu as pltpu

LATENT_DIM = 100
LATENT_PAD = 128           # zero-padded K for layer 1 (lane aligned)
HIDDEN = (128, 256, 512, 1024)
OUT_DIM = 784
OUT_PAD = 896              # 7 * 128 -> lane-dense unmasked output stores
BN_EPS = 1e-5
LEAKY_SLOPE = 0.2


def _leaky_relu(x):
    # max(x, 0.2*x) == LeakyReLU(0.2) for slope < 1; one mul + one max on VPU.
    return jnp.maximum(x, LEAKY_SLOPE * x)


def _bn_leaky(x, gamma, beta):
    """Training-mode BatchNorm1d folded into per-feature scale/shift + LeakyReLU.

    y = x * scale + shift with scale = gamma * rsqrt(var + eps),
    shift = beta - mean * scale.  Per-element work is 2 VPU ops instead of 4;
    the rsqrt runs on [1, F] only.  Variance clamped >= 0 against cancellation
    in the single-pass mean(x^2) - mean^2 formula.
    """
    mean = jnp.mean(x, axis=0, keepdims=True)
    mean_sq = jnp.mean(x * x, axis=0, keepdims=True)
    var = jnp.maximum(mean_sq - mean * mean, 0.0)
    scale = gamma * lax.rsqrt(var + BN_EPS)
    shift = beta - mean * scale
    return _leaky_relu(x * scale + shift)


def generator_kernel(
    # auto-DMA'd (VMEM) inputs
    z_ref,
    w1_ref, b1_ref,
    w2_ref, g2_ref, be2_ref,
    g3_ref, be3_ref,
    g4_ref, be4_ref,
    b5_ref,
    # manually prefetched (HBM) inputs
    w3_hbm, w4_hbm, w5_hbm,
    # output
    out_ref,
    # scratch
    w3_buf, w4_buf, w5_buf, sem,
):
    # Kick off the late-layer weight DMAs so they overlap layers 1-2 compute.
    cp3 = pltpu.make_async_copy(w3_hbm, w3_buf, sem.at[0])
    cp4 = pltpu.make_async_copy(w4_hbm, w4_buf, sem.at[1])
    cp5 = pltpu.make_async_copy(w5_hbm, w5_buf, sem.at[2])
    cp3.start()
    cp4.start()
    cp5.start()

    # Layer 1: Linear(latent_pad, 128) + LeakyReLU  (z already bf16, K padded)
    h = jnp.dot(z_ref[...], w1_ref[...], preferred_element_type=jnp.float32)
    h = _leaky_relu(h + b1_ref[...])

    # Layer 2: Linear(128, 256) + BN(train) + LeakyReLU
    # (Linear bias omitted: training-mode BN cancels per-feature constants.)
    h = jnp.dot(h.astype(jnp.bfloat16), w2_ref[...],
                preferred_element_type=jnp.float32)
    h = _bn_leaky(h, g2_ref[...], be2_ref[...])

    # Layer 3: Linear(256, 512) + BN(train) + LeakyReLU
    cp3.wait()
    h = jnp.dot(h.astype(jnp.bfloat16), w3_buf[...],
                preferred_element_type=jnp.float32)
    h = _bn_leaky(h, g3_ref[...], be3_ref[...])

    # Layer 4: Linear(512, 1024) + BN(train) + LeakyReLU
    cp4.wait()
    h = jnp.dot(h.astype(jnp.bfloat16), w4_buf[...],
                preferred_element_type=jnp.float32)
    h = _bn_leaky(h, g4_ref[...], be4_ref[...])

    # Layer 5: Linear(1024, 784 padded to 896) + Tanh
    cp5.wait()
    h = jnp.dot(h.astype(jnp.bfloat16), w5_buf[...],
                preferred_element_type=jnp.float32)
    out_ref[...] = jnp.tanh(h + b5_ref[...])


def _full_spec(shape):
    # Whole array as one VMEM block (block == full array shape, so the (8,128)
    # constraint is satisfied even for the [1, F] bias/BN rows).
    return pl.BlockSpec(shape, lambda: tuple(0 for _ in shape))


@jax.jit
def generator_forward(z, params):
    # params is the PyTorch-equivalent parameter tuple; the biases of the
    # Linear layers feeding BatchNorm (b2, b3, b4) are dropped here because
    # training-mode BN cancels them exactly.
    (w1, b1,
     w2, _b2, g2, be2,
     w3, _b3, g3, be3,
     w4, _b4, g4, be4,
     w5, b5) = params
    B = z.shape[0]

    # bf16 z + zero-pad the latent dim to 128 (aligned MXU K for layer 1).
    z_p = jnp.pad(z.astype(jnp.bfloat16),
                  ((0, 0), (0, LATENT_PAD - z.shape[1])))

    vmem_args = (z_p, w1, b1, w2, g2, be2, g3, be3, g4, be4, b5)
    hbm_args = (w3, w4, w5)

    out = pl.pallas_call(
        generator_kernel,
        out_shape=jax.ShapeDtypeStruct((B, OUT_PAD), jnp.float32),
        in_specs=[_full_spec(a.shape) for a in vmem_args]
                 + [pl.BlockSpec(memory_space=pl.ANY) for _ in hbm_args],
        out_specs=_full_spec((B, OUT_PAD)),
        scratch_shapes=[
            pltpu.VMEM(w3.shape, jnp.bfloat16),
            pltpu.VMEM(w4.shape, jnp.bfloat16),
            pltpu.VMEM(w5.shape, jnp.bfloat16),
            pltpu.SemaphoreType.DMA((3,)),
        ],
        compiler_params=pltpu.CompilerParams(vmem_limit_bytes=32 << 20),
    )(*vmem_args, *hbm_args)

    # Drop the zero-padded output columns (896 -> 784).
    return out[:, :OUT_DIM]


def init_params(key):
    """Build the PyTorch-equivalent Generator parameters in kernel layout.

    Each Linear weight is stored [in, out] (transpose of nn.Linear.weight) and
    cast to bfloat16; biases / BN affine params stay float32 with shape
    [1, out].  Layer-1 input rows are zero-padded 100 -> 128 and layer-5
    output columns zero-padded 784 -> 896 (padding is exact: padded entries
    are zero, so the un-padded outputs are unchanged).
    """
    dims = (LATENT_DIM,) + HIDDEN + (OUT_DIM,)
    n_layers = len(dims) - 1
    keys = jax.random.split(key, 2 * n_layers)
    params = []
    ki = 0
    for li in range(n_layers):
        fan_in, fan_out = dims[li], dims[li + 1]
        bound = 1.0 / jnp.sqrt(jnp.float32(fan_in))
        w = jax.random.uniform(keys[ki], (fan_in, fan_out), jnp.float32,
                               minval=-bound, maxval=bound)
        ki += 1
        b = jax.random.uniform(keys[ki], (1, fan_out), jnp.float32,
                               minval=-bound, maxval=bound)
        ki += 1
        if li == 0:                       # pad K: 100 -> 128
            w = jnp.pad(w, ((0, LATENT_PAD - fan_in), (0, 0)))
        if li == n_layers - 1:            # pad N: 784 -> 896
            w = jnp.pad(w, ((0, 0), (0, OUT_PAD - fan_out)))
            b = jnp.pad(b, ((0, 0), (0, OUT_PAD - fan_out)))
        params.append(w.astype(jnp.bfloat16))   # MXU operand -> bf16
        params.append(b)                        # bias stays f32
        # BatchNorm affine params for layers 2..4 (gamma=1, beta=0)
        if 0 < li < n_layers - 1:
            params.append(jnp.ones((1, fan_out), jnp.float32))
            params.append(jnp.zeros((1, fan_out), jnp.float32))
    return tuple(params)


if __name__ == "__main__":
    key = jax.random.PRNGKey(0)
    k_z, k_p = jax.random.split(key)

    # Batch of 256: one full M pass of the v6e/v7x 256x256 MXU and a multiple
    # of the sublane tile; BN statistics are over this whole batch.
    B = 256
    z = jax.random.normal(k_z, (B, LATENT_DIM), jnp.float32)
    params = init_params(k_p)

    out = generator_forward(z, params)
    jax.block_until_ready(out)

    assert out.shape == (B, OUT_DIM), out.shape
    assert out.dtype == jnp.float32
    assert bool(jnp.all(jnp.isfinite(out)))
    assert bool(jnp.all(jnp.abs(out) <= 1.0))  # tanh output range
    print("KERNEL_OK")
</pallas_src>

<mosaic_0001>
module attributes {stable_mosaic.version = 11 : i64} {
  func.func @generator_kernel(%arg0: memref<256x128xbf16, #tpu.memory_space<vmem>>, %arg1: memref<128x128xbf16, #tpu.memory_space<vmem>>, %arg2: memref<1x128xf32, #tpu.memory_space<vmem>>, %arg3: memref<128x256xbf16, #tpu.memory_space<vmem>>, %arg4: memref<1x256xf32, #tpu.memory_space<vmem>>, %arg5: memref<1x256xf32, #tpu.memory_space<vmem>>, %arg6: memref<1x512xf32, #tpu.memory_space<vmem>>, %arg7: memref<1x512xf32, #tpu.memory_space<vmem>>, %arg8: memref<1x1024xf32, #tpu.memory_space<vmem>>, %arg9: memref<1x1024xf32, #tpu.memory_space<vmem>>, %arg10: memref<1x896xf32, #tpu.memory_space<vmem>>, %arg11: memref<256x512xbf16, #tpu.memory_space<any>>, %arg12: memref<512x1024xbf16, #tpu.memory_space<any>>, %arg13: memref<1024x896xbf16, #tpu.memory_space<any>>, %arg14: memref<256x896xf32, #tpu.memory_space<vmem>>, %arg15: memref<256x512xbf16, #tpu.memory_space<vmem>>, %arg16: memref<512x1024xbf16, #tpu.memory_space<vmem>>, %arg17: memref<1024x896xbf16, #tpu.memory_space<vmem>>, %arg18: memref<3x!tpu.dma_semaphore, #tpu.memory_space<semaphore_mem>>) attributes {dimension_semantics = [], scalar_prefetch = 0 : i64, scratch_operands = 4 : i64, tpu.core_type = #tpu.core_type<tc>} {
    %c0_i32 = arith.constant 0 : i32
    %0 = tpu.memref_slice %arg18[%c0_i32] : memref<3x!tpu.dma_semaphore, #tpu.memory_space<semaphore_mem>> -> memref<1x!tpu.dma_semaphore, #tpu.memory_space<semaphore_mem>>
    %1 = tpu.memref_squeeze %0 : memref<1x!tpu.dma_semaphore, #tpu.memory_space<semaphore_mem>> -> memref<!tpu.dma_semaphore, #tpu.memory_space<semaphore_mem>>
    tpu.enqueue_dma source(%arg11 : memref<256x512xbf16, #tpu.memory_space<any>>) target(%arg15 : memref<256x512xbf16, #tpu.memory_space<vmem>>) target_semaphore(%1 : memref<!tpu.dma_semaphore, #tpu.memory_space<semaphore_mem>>)
    %c1_i32 = arith.constant 1 : i32
    %2 = tpu.memref_slice %arg18[%c1_i32] : memref<3x!tpu.dma_semaphore, #tpu.memory_space<semaphore_mem>> -> memref<1x!tpu.dma_semaphore, #tpu.memory_space<semaphore_mem>>
    %3 = tpu.memref_squeeze %2 : memref<1x!tpu.dma_semaphore, #tpu.memory_space<semaphore_mem>> -> memref<!tpu.dma_semaphore, #tpu.memory_space<semaphore_mem>>
    tpu.enqueue_dma source(%arg12 : memref<512x1024xbf16, #tpu.memory_space<any>>) target(%arg16 : memref<512x1024xbf16, #tpu.memory_space<vmem>>) target_semaphore(%3 : memref<!tpu.dma_semaphore, #tpu.memory_space<semaphore_mem>>)
    %c2_i32 = arith.constant 2 : i32
    %4 = tpu.memref_slice %arg18[%c2_i32] : memref<3x!tpu.dma_semaphore, #tpu.memory_space<semaphore_mem>> -> memref<1x!tpu.dma_semaphore, #tpu.memory_space<semaphore_mem>>
    %5 = tpu.memref_squeeze %4 : memref<1x!tpu.dma_semaphore, #tpu.memory_space<semaphore_mem>> -> memref<!tpu.dma_semaphore, #tpu.memory_space<semaphore_mem>>
    tpu.enqueue_dma source(%arg13 : memref<1024x896xbf16, #tpu.memory_space<any>>) target(%arg17 : memref<1024x896xbf16, #tpu.memory_space<vmem>>) target_semaphore(%5 : memref<!tpu.dma_semaphore, #tpu.memory_space<semaphore_mem>>)
    %c0 = arith.constant 0 : index
    %c0_0 = arith.constant 0 : index
    %6 = vector.load %arg0[%c0, %c0_0] : memref<256x128xbf16, #tpu.memory_space<vmem>>, vector<256x128xbf16>
    %c0_1 = arith.constant 0 : index
    %c0_2 = arith.constant 0 : index
    %7 = vector.load %arg1[%c0_1, %c0_2] : memref<128x128xbf16, #tpu.memory_space<vmem>>, vector<128x128xbf16>
    %cst = arith.constant dense<0.000000e+00> : vector<256x128xf32>
    %8 = tpu.matmul %6, %7, %cst {dimension_numbers = #tpu.dot_dimension_numbers<[1], [0], [0], [1], [0, 0, 1, 1], [], []>} : vector<256x128xbf16>, vector<128x128xbf16>, vector<256x128xf32> -> vector<256x128xf32>
    %c0_3 = arith.constant 0 : index
    %c0_4 = arith.constant 0 : index
    %9 = vector.load %arg2[%c0_3, %c0_4] : memref<1x128xf32, #tpu.memory_space<vmem>>, vector<1x128xf32>
    %10 = vector.broadcast %9 : vector<1x128xf32> to vector<256x128xf32>
    %11 = arith.addf %8, %10 : vector<256x128xf32>
    %cst_5 = arith.constant 2.000000e-01 : f32
    %12 = vector.broadcast %cst_5 : f32 to vector<256x128xf32>
    %13 = arith.mulf %12, %11 : vector<256x128xf32>
    %14 = arith.maximumf %11, %13 : vector<256x128xf32>
    %15 = arith.truncf %14 : vector<256x128xf32> to vector<256x128xbf16>
    %c0_6 = arith.constant 0 : index
    %c0_7 = arith.constant 0 : index
    %16 = vector.load %arg3[%c0_6, %c0_7] : memref<128x256xbf16, #tpu.memory_space<vmem>>, vector<128x256xbf16>
    %cst_8 = arith.constant dense<0.000000e+00> : vector<256x256xf32>
    %17 = tpu.matmul %15, %16, %cst_8 {dimension_numbers = #tpu.dot_dimension_numbers<[1], [0], [0], [1], [0, 0, 1, 1], [], []>} : vector<256x128xbf16>, vector<128x256xbf16>, vector<256x256xf32> -> vector<256x256xf32>
    %c0_9 = arith.constant 0 : index
    %c0_10 = arith.constant 0 : index
    %18 = vector.load %arg4[%c0_9, %c0_10] : memref<1x256xf32, #tpu.memory_space<vmem>>, vector<1x256xf32>
    %c0_11 = arith.constant 0 : index
    %c0_12 = arith.constant 0 : index
    %19 = vector.load %arg5[%c0_11, %c0_12] : memref<1x256xf32, #tpu.memory_space<vmem>>, vector<1x256xf32>
    %cst_13 = arith.constant dense<0.000000e+00> : vector<256xf32>
    %20 = vector.multi_reduction <add>, %17, %cst_13 [0] : vector<256x256xf32> to vector<256xf32>
    %21 = vector.shape_cast %20 : vector<256xf32> to vector<1x256xf32>
    %cst_14 = arith.constant 2.560000e+02 : f32
    %22 = vector.broadcast %cst_14 : f32 to vector<1x256xf32>
    %23 = arith.divf %21, %22 : vector<1x256xf32>
    %24 = arith.mulf %17, %17 : vector<256x256xf32>
    %cst_15 = arith.constant dense<0.000000e+00> : vector<256xf32>
    %25 = vector.multi_reduction <add>, %24, %cst_15 [0] : vector<256x256xf32> to vector<256xf32>
    %26 = vector.shape_cast %25 : vector<256xf32> to vector<1x256xf32>
    %cst_16 = arith.constant 2.560000e+02 : f32
    %27 = vector.broadcast %cst_16 : f32 to vector<1x256xf32>
    %28 = arith.divf %26, %27 : vector<1x256xf32>
    %29 = arith.mulf %23, %23 : vector<1x256xf32>
    %30 = arith.subf %28, %29 : vector<1x256xf32>
    %cst_17 = arith.constant 0.000000e+00 : f32
    %31 = vector.broadcast %cst_17 : f32 to vector<1x256xf32>
    %32 = arith.maximumf %30, %31 : vector<1x256xf32>
    %cst_18 = arith.constant 9.99999974E-6 : f32
    %33 = vector.broadcast %cst_18 : f32 to vector<1x256xf32>
    %34 = arith.addf %32, %33 : vector<1x256xf32>
    %35 = math.rsqrt %34 : vector<1x256xf32>
    %36 = arith.mulf %18, %35 : vector<1x256xf32>
    %37 = arith.mulf %23, %36 : vector<1x256xf32>
    %38 = arith.subf %19, %37 : vector<1x256xf32>
    %39 = vector.broadcast %36 : vector<1x256xf32> to vector<256x256xf32>
    %40 = arith.mulf %17, %39 : vector<256x256xf32>
    %41 = vector.broadcast %38 : vector<1x256xf32> to vector<256x256xf32>
    %42 = arith.addf %40, %41 : vector<256x256xf32>
    %cst_19 = arith.constant 2.000000e-01 : f32
    %43 = vector.broadcast %cst_19 : f32 to vector<256x256xf32>
    %44 = arith.mulf %43, %42 : vector<256x256xf32>
    %45 = arith.maximumf %42, %44 : vector<256x256xf32>
    %c0_i32_20 = arith.constant 0 : i32
    %46 = tpu.memref_slice %arg18[%c0_i32_20] : memref<3x!tpu.dma_semaphore, #tpu.memory_space<semaphore_mem>> -> memref<1x!tpu.dma_semaphore, #tpu.memory_space<semaphore_mem>>
    %47 = tpu.memref_squeeze %46 : memref<1x!tpu.dma_semaphore, #tpu.memory_space<semaphore_mem>> -> memref<!tpu.dma_semaphore, #tpu.memory_space<semaphore_mem>>
    tpu.wait_dma2 semaphore(%47 : memref<!tpu.dma_semaphore, #tpu.memory_space<semaphore_mem>>) src(%arg11 : memref<256x512xbf16, #tpu.memory_space<any>>) dst(%arg15 : memref<256x512xbf16, #tpu.memory_space<vmem>>)
    %48 = arith.truncf %45 : vector<256x256xf32> to vector<256x256xbf16>
    %c0_21 = arith.constant 0 : index
    %c0_22 = arith.constant 0 : index
    %49 = vector.load %arg15[%c0_21, %c0_22] : memref<256x512xbf16, #tpu.memory_space<vmem>>, vector<256x512xbf16>
    %cst_23 = arith.constant dense<0.000000e+00> : vector<256x512xf32>
    %50 = tpu.matmul %48, %49, %cst_23 {dimension_numbers = #tpu.dot_dimension_numbers<[1], [0], [0], [1], [0, 0, 1, 1], [], []>} : vector<256x256xbf16>, vector<256x512xbf16>, vector<256x512xf32> -> vector<256x512xf32>
    %c0_24 = arith.constant 0 : index
    %c0_25 = arith.constant 0 : index
    %51 = vector.load %arg6[%c0_24, %c0_25] : memref<1x512xf32, #tpu.memory_space<vmem>>, vector<1x512xf32>
    %c0_26 = arith.constant 0 : index
    %c0_27 = arith.constant 0 : index
    %52 = vector.load %arg7[%c0_26, %c0_27] : memref<1x512xf32, #tpu.memory_space<vmem>>, vector<1x512xf32>
    %cst_28 = arith.constant dense<0.000000e+00> : vector<512xf32>
    %53 = vector.multi_reduction <add>, %50, %cst_28 [0] : vector<256x512xf32> to vector<512xf32>
    %54 = vector.shape_cast %53 : vector<512xf32> to vector<1x512xf32>
    %cst_29 = arith.constant 2.560000e+02 : f32
    %55 = vector.broadcast %cst_29 : f32 to vector<1x512xf32>
    %56 = arith.divf %54, %55 : vector<1x512xf32>
    %57 = arith.mulf %50, %50 : vector<256x512xf32>
    %cst_30 = arith.constant dense<0.000000e+00> : vector<512xf32>
    %58 = vector.multi_reduction <add>, %57, %cst_30 [0] : vector<256x512xf32> to vector<512xf32>
    %59 = vector.shape_cast %58 : vector<512xf32> to vector<1x512xf32>
    %cst_31 = arith.constant 2.560000e+02 : f32
    %60 = vector.broadcast %cst_31 : f32 to vector<1x512xf32>
    %61 = arith.divf %59, %60 : vector<1x512xf32>
    %62 = arith.mulf %56, %56 : vector<1x512xf32>
    %63 = arith.subf %61, %62 : vector<1x512xf32>
    %cst_32 = arith.constant 0.000000e+00 : f32
    %64 = vector.broadcast %cst_32 : f32 to vector<1x512xf32>
    %65 = arith.maximumf %63, %64 : vector<1x512xf32>
    %cst_33 = arith.constant 9.99999974E-6 : f32
    %66 = vector.broadcast %cst_33 : f32 to vector<1x512xf32>
    %67 = arith.addf %65, %66 : vector<1x512xf32>
    %68 = math.rsqrt %67 : vector<1x512xf32>
    %69 = arith.mulf %51, %68 : vector<1x512xf32>
    %70 = arith.mulf %56, %69 : vector<1x512xf32>
    %71 = arith.subf %52, %70 : vector<1x512xf32>
    %72 = vector.broadcast %69 : vector<1x512xf32> to vector<256x512xf32>
    %73 = arith.mulf %50, %72 : vector<256x512xf32>
    %74 = vector.broadcast %71 : vector<1x512xf32> to vector<256x512xf32>
    %75 = arith.addf %73, %74 : vector<256x512xf32>
    %cst_34 = arith.constant 2.000000e-01 : f32
    %76 = vector.broadcast %cst_34 : f32 to vector<256x512xf32>
    %77 = arith.mulf %76, %75 : vector<256x512xf32>
    %78 = arith.maximumf %75, %77 : vector<256x512xf32>
    %c1_i32_35 = arith.constant 1 : i32
    %79 = tpu.memref_slice %arg18[%c1_i32_35] : memref<3x!tpu.dma_semaphore, #tpu.memory_space<semaphore_mem>> -> memref<1x!tpu.dma_semaphore, #tpu.memory_space<semaphore_mem>>
    %80 = tpu.memref_squeeze %79 : memref<1x!tpu.dma_semaphore, #tpu.memory_space<semaphore_mem>> -> memref<!tpu.dma_semaphore, #tpu.memory_space<semaphore_mem>>
    tpu.wait_dma2 semaphore(%80 : memref<!tpu.dma_semaphore, #tpu.memory_space<semaphore_mem>>) src(%arg12 : memref<512x1024xbf16, #tpu.memory_space<any>>) dst(%arg16 : memref<512x1024xbf16, #tpu.memory_space<vmem>>)
    %81 = arith.truncf %78 : vector<256x512xf32> to vector<256x512xbf16>
    %c0_36 = arith.constant 0 : index
    %c0_37 = arith.constant 0 : index
    %82 = vector.load %arg16[%c0_36, %c0_37] : memref<512x1024xbf16, #tpu.memory_space<vmem>>, vector<512x1024xbf16>
    %cst_38 = arith.constant dense<0.000000e+00> : vector<256x1024xf32>
    %83 = tpu.matmul %81, %82, %cst_38 {dimension_numbers = #tpu.dot_dimension_numbers<[1], [0], [0], [1], [0, 0, 1, 1], [], []>} : vector<256x512xbf16>, vector<512x1024xbf16>, vector<256x1024xf32> -> vector<256x1024xf32>
    %c0_39 = arith.constant 0 : index
    %c0_40 = arith.constant 0 : index
    %84 = vector.load %arg8[%c0_39, %c0_40] : memref<1x1024xf32, #tpu.memory_space<vmem>>, vector<1x1024xf32>
    %c0_41 = arith.constant 0 : index
    %c0_42 = arith.constant 0 : index
    %85 = vector.load %arg9[%c0_41, %c0_42] : memref<1x1024xf32, #tpu.memory_space<vmem>>, vector<1x1024xf32>
    %cst_43 = arith.constant dense<0.000000e+00> : vector<1024xf32>
    %86 = vector.multi_reduction <add>, %83, %cst_43 [0] : vector<256x1024xf32> to vector<1024xf32>
    %87 = vector.shape_cast %86 : vector<1024xf32> to vector<1x1024xf32>
    %cst_44 = arith.constant 2.560000e+02 : f32
    %88 = vector.broadcast %cst_44 : f32 to vector<1x1024xf32>
    %89 = arith.divf %87, %88 : vector<1x1024xf32>
    %90 = arith.mulf %83, %83 : vector<256x1024xf32>
    %cst_45 = arith.constant dense<0.000000e+00> : vector<1024xf32>
    %91 = vector.multi_reduction <add>, %90, %cst_45 [0] : vector<256x1024xf32> to vector<1024xf32>
    %92 = vector.shape_cast %91 : vector<1024xf32> to vector<1x1024xf32>
    %cst_46 = arith.constant 2.560000e+02 : f32
    %93 = vector.broadcast %cst_46 : f32 to vector<1x1024xf32>
    %94 = arith.divf %92, %93 : vector<1x1024xf32>
    %95 = arith.mulf %89, %89 : vector<1x1024xf32>
    %96 = arith.subf %94, %95 : vector<1x1024xf32>
    %cst_47 = arith.constant 0.000000e+00 : f32
    %97 = vector.broadcast %cst_47 : f32 to vector<1x1024xf32>
    %98 = arith.maximumf %96, %97 : vector<1x1024xf32>
    %cst_48 = arith.constant 9.99999974E-6 : f32
    %99 = vector.broadcast %cst_48 : f32 to vector<1x1024xf32>
    %100 = arith.addf %98, %99 : vector<1x1024xf32>
    %101 = math.rsqrt %100 : vector<1x1024xf32>
    %102 = arith.mulf %84, %101 : vector<1x1024xf32>
    %103 = arith.mulf %89, %102 : vector<1x1024xf32>
    %104 = arith.subf %85, %103 : vector<1x1024xf32>
    %105 = vector.broadcast %102 : vector<1x1024xf32> to vector<256x1024xf32>
    %106 = arith.mulf %83, %105 : vector<256x1024xf32>
    %107 = vector.broadcast %104 : vector<1x1024xf32> to vector<256x1024xf32>
    %108 = arith.addf %106, %107 : vector<256x1024xf32>
    %cst_49 = arith.constant 2.000000e-01 : f32
    %109 = vector.broadcast %cst_49 : f32 to vector<256x1024xf32>
    %110 = arith.mulf %109, %108 : vector<256x1024xf32>
    %111 = arith.maximumf %108, %110 : vector<256x1024xf32>
    %c2_i32_50 = arith.constant 2 : i32
    %112 = tpu.memref_slice %arg18[%c2_i32_50] : memref<3x!tpu.dma_semaphore, #tpu.memory_space<semaphore_mem>> -> memref<1x!tpu.dma_semaphore, #tpu.memory_space<semaphore_mem>>
    %113 = tpu.memref_squeeze %112 : memref<1x!tpu.dma_semaphore, #tpu.memory_space<semaphore_mem>> -> memref<!tpu.dma_semaphore, #tpu.memory_space<semaphore_mem>>
    tpu.wait_dma2 semaphore(%113 : memref<!tpu.dma_semaphore, #tpu.memory_space<semaphore_mem>>) src(%arg13 : memref<1024x896xbf16, #tpu.memory_space<any>>) dst(%arg17 : memref<1024x896xbf16, #tpu.memory_space<vmem>>)
    %114 = arith.truncf %111 : vector<256x1024xf32> to vector<256x1024xbf16>
    %c0_51 = arith.constant 0 : index
    %c0_52 = arith.constant 0 : index
    %115 = vector.load %arg17[%c0_51, %c0_52] : memref<1024x896xbf16, #tpu.memory_space<vmem>>, vector<1024x896xbf16>
    %cst_53 = arith.constant dense<0.000000e+00> : vector<256x896xf32>
    %116 = tpu.matmul %114, %115, %cst_53 {dimension_numbers = #tpu.dot_dimension_numbers<[1], [0], [0], [1], [0, 0, 1, 1], [], []>} : vector<256x1024xbf16>, vector<1024x896xbf16>, vector<256x896xf32> -> vector<256x896xf32>
    %c0_54 = arith.constant 0 : index
    %c0_55 = arith.constant 0 : index
    %117 = vector.load %arg10[%c0_54, %c0_55] : memref<1x896xf32, #tpu.memory_space<vmem>>, vector<1x896xf32>
    %118 = vector.broadcast %117 : vector<1x896xf32> to vector<256x896xf32>
    %119 = arith.addf %116, %118 : vector<256x896xf32>
    %120 = math.tanh %119 : vector<256x896xf32>
    %c0_56 = arith.constant 0 : index
    %c0_57 = arith.constant 0 : index
    %121 = vector.load %arg14[%c0_56, %c0_57] : memref<256x896xf32, #tpu.memory_space<vmem>>, vector<256x896xf32>
    tpu.vector_store %arg14[%c0_56, %c0_57], %120 {strides = array<i32>} : memref<256x896xf32, #tpu.memory_space<vmem>>, vector<256x896xf32>,
    return
  }
}

</mosaic_0001>

<llo_original>
// kernel: generator_forward.1
$region0: #{generator_forward.1}
  #allocation0 [shape = 'u32[]', space=smem, size = 0x4, offset = 0x4, fixed_abs, tag = 'smem constant byte address 0x4 - core index']
  #allocation1 [shape = 'u32[144,128]{1,0:T(1,128)}', space=vmem, size = 0x12000, scoped, tag = 'internal scratch']
  #allocation2 [shape = 'bf16[256,512]{1,0:T(16,128)(2,1)}', space=vmem, size = 0x40000, scoped, tag = 'scratch operand']
  #allocation3 [shape = 'bf16[512,1024]{1,0:T(16,128)(2,1)}', space=vmem, size = 0x100000, scoped, tag = 'scratch operand']
  #allocation4 [shape = 'bf16[1024,896]{1,0:T(16,128)(2,1)}', space=vmem, size = 0x1c0000, scoped, tag = 'scratch operand']
  #allocation5 [shape = 's32[3]{0}', space=sflag, size = 0xc, scoped, tag = 'scratch operand']
  #allocation22 [shape = 's32[]', space=sflag, size = 0x4, offset = 0, fixed_abs, tag = 'sflag constant byte address 0x0 - dummy sync flag']
  #allocation24 [shape = 's32[]', space=sflag, size = 0x4, offset = 0, fixed_abs, tag = 'sflag constant byte address 0x0 - dummy sync flag']
  #allocation26 [shape = 's32[]', space=sflag, size = 0x4, offset = 0, fixed_abs, tag = 'sflag constant byte address 0x0 - dummy sync flag']
  %s0 = inlined_call_operand.vmem [shape: bf16[256,128], index: 0, kind: input, shape index: {}]
  %s1 = inlined_call_operand.hbm [shape: bf16[128,128], index: 1, kind: input, shape index: {}]
  %s2 = inlined_call_operand.hbm [shape: f32[1,128], index: 2, kind: input, shape index: {}]
  %s3 = inlined_call_operand.hbm [shape: bf16[128,256], index: 3, kind: input, shape index: {}]
  %s4 = inlined_call_operand.hbm [shape: f32[1,256], index: 4, kind: input, shape index: {}]
  %s5 = inlined_call_operand.hbm [shape: f32[1,256], index: 5, kind: input, shape index: {}]
  %s6 = inlined_call_operand.hbm [shape: f32[1,512], index: 6, kind: input, shape index: {}]
  %s7 = inlined_call_operand.hbm [shape: f32[1,512], index: 7, kind: input, shape index: {}]
  %s8 = inlined_call_operand.hbm [shape: f32[1,1024], index: 8, kind: input, shape index: {}]
  %s9 = inlined_call_operand.hbm [shape: f32[1,1024], index: 9, kind: input, shape index: {}]
  %s10 = inlined_call_operand.hbm [shape: f32[1,896], index: 10, kind: input, shape index: {}]
  %s11 = inlined_call_operand.hbm [shape: bf16[256,512], index: 11, kind: input, shape index: {}]
  %s12 = inlined_call_operand.hbm [shape: bf16[512,1024], index: 12, kind: input, shape index: {}]
  %s13 = inlined_call_operand.hbm [shape: bf16[1024,896], index: 13, kind: input, shape index: {}]
  %s14 = inlined_call_operand.vmem [shape: f32[256,896], index: 14, kind: output, shape index: {}]
  %s15 = sld [smem:[#allocation0]]
  $region94: #{generator_forward.1} parent=0
    _
  %s17 = ssub.s32 1, %s15
  %s18 = scalar_select 0, %s17, %s15
  $region1: #{generator_forward.1} parent=0
    #allocation6 [shape = 'u8[32768]{0}', space=vmem, size = 0x8000, scoped, tag = 'input window, operand 1, single buffered']
    #allocation7 [shape = 's32[1]{0}', space=sflag, size = 0x4, scoped, tag = 'scoped memory for generator_forward.1']
    #allocation8 [shape = 'u8[512]{0}', space=vmem, size = 0x400, scoped, tag = 'input window, operand 2, single buffered']
    #allocation9 [shape = 's32[1]{0}', space=sflag, size = 0x4, scoped, tag = 'scoped memory for generator_forward.1']
    #allocation10 [shape = 'u8[65536]{0}', space=vmem, size = 0x10000, scoped, tag = 'input window, operand 3, single buffered']
    #allocation11 [shape = 'u8[1024]{0}', space=vmem, size = 0x400, scoped, tag = 'input window, operand 4, single buffered']
    #allocation12 [shape = 's32[1]{0}', space=sflag, size = 0x4, scoped, tag = 'scoped memory for generator_forward.1']
    #allocation13 [shape = 'u8[1024]{0}', space=vmem, size = 0x400, scoped, tag = 'input window, operand 5, single buffered']
    #allocation14 [shape = 'u8[2048]{0}', space=vmem, size = 0x800, scoped, tag = 'input window, operand 6, single buffered']
    #allocation15 [shape = 's32[1]{0}', space=sflag, size = 0x4, scoped, tag = 'scoped memory for generator_forward.1']
    #allocation16 [shape = 'u8[2048]{0}', space=vmem, size = 0x800, scoped, tag = 'input window, operand 7, single buffered']
    #allocation17 [shape = 'u8[4096]{0}', space=vmem, size = 0x1000, scoped, tag = 'input window, operand 8, single buffered']
    #allocation18 [shape = 's32[1]{0}', space=sflag, size = 0x4, scoped, tag = 'scoped memory for generator_forward.1']
    #allocation19 [shape = 'u8[4096]{0}', space=vmem, size = 0x1000, scoped, tag = 'input window, operand 9, single buffered']
    #allocation20 [shape = 'u8[3584]{0}', space=vmem, size = 0x1000, scoped, tag = 'input window, operand 10, single buffered']
    #allocation21 [shape = 's32[1]{0}', space=sflag, size = 0x4, scoped, tag = 'scoped memory for generator_forward.1']
    #allocation23 [shape = 'u32[9]{0}', space=smem, size = 0x24, scoped, tag = 'DMA stride descriptor']
    #allocation25 [shape = 'u32[9]{0}', space=smem, size = 0x24, scoped, tag = 'DMA stride descriptor']
    #allocation27 [shape = 'u32[9]{0}', space=smem, size = 0x24, scoped, tag = 'DMA stride descriptor']
    %19 = vsyncpa [#allocation7], 0
    %20 = vsyncpa [#allocation9], 0
    %21 = vsyncpa [#allocation12], 0
    %22 = vsyncpa [#allocation15], 0
    %23 = vsyncpa [#allocation18], 0
    %24 = vsyncpa [#allocation21], 0
    // Predicated region
    $region2: #{generator_forward.1} parent=1 // pred_check
      _
    $region3: #{generator_forward.1} parent=1 // pred_check_branch
      %26 = sbr.rel (0) target = $region5
    $region4: #{generator_forward.1} parent=1 // pred_region
      _
    $region5: #{generator_forward.1} parent=1 // pred_fallthru
      _
    // Predicated region
    $region6: #{generator_forward.1} parent=1 // pred_check
      _
    $region7: #{generator_forward.1} parent=1 // pred_check_branch
      %28 = sbr.rel (0) target = $region9
    $region8: #{generator_forward.1} parent=1 // pred_region
      %s30 = ssub.s32 1024, 1024
      %31 = vsyncadd [#allocation7], %s30
      %s32 = sshll.u32 [#allocation6], 4
      %s33 = int_to_ptr.vmem [resolvable:$true] %s32
      %38 = dma.hbm_to_vmem [thread:$0]  %s1, 1024, %s33, [#allocation7], 64, 64, 4
    $region9: #{generator_forward.1} parent=1 // pred_fallthru
      _
    // Predicated region
    $region10: #{generator_forward.1} parent=1 // pred_check
      _
    $region11: #{generator_forward.1} parent=1 // pred_check_branch
      %40 = sbr.rel (0) target = $region13
    $region12: #{generator_forward.1} parent=1 // pred_region
      %s42 = ssub.s32 16, 16
      %43 = vsyncadd [#allocation9], %s42
      %s45 = sshll.u32 [#allocation8], 4
      %s46 = int_to_ptr.vmem [resolvable:$true] %s45
      %48 = dma.hbm_to_vmem [thread:$0]  %s2, 16, %s46, [#allocation9]
    $region13: #{generator_forward.1} parent=1 // pred_fallthru
      _
    // Predicated region
    $region14: #{generator_forward.1} parent=1 // pred_check
      _
    $region15: #{generator_forward.1} parent=1 // pred_check_branch
      %50 = sbr.rel (0) target = $region17
    $region16: #{generator_forward.1} parent=1 // pred_region
      %s52 = ssub.s32 2048, 2048
      %53 = vsyncadd [#allocation9], %s52
      %s54 = sshll.u32 [#allocation10], 4
      %s55 = int_to_ptr.vmem [resolvable:$true] %s54
      %60 = dma.hbm_to_vmem [thread:$0]  %s3, 2048, %s55, [#allocation9], 128, 128, 8
    $region17: #{generator_forward.1} parent=1 // pred_fallthru
      _
    // Predicated region
    $region18: #{generator_forward.1} parent=1 // pred_check
      _
    $region19: #{generator_forward.1} parent=1 // pred_check_branch
      %62 = sbr.rel (0) target = $region21
    $region20: #{generator_forward.1} parent=1 // pred_region
      %s64 = ssub.s32 32, 32
      %65 = vsyncadd [#allocation12], %s64
      %s67 = sshll.u32 [#allocation11], 4
      %s68 = int_to_ptr.vmem [resolvable:$true] %s67
      %70 = dma.hbm_to_vmem [thread:$0]  %s4, 32, %s68, [#allocation12]
    $region21: #{generator_forward.1} parent=1 // pred_fallthru
      _
    // Predicated region
    $region22: #{generator_forward.1} parent=1 // pred_check
      _
    $region23: #{generator_forward.1} parent=1 // pred_check_branch
      %72 = sbr.rel (0) target = $region25
    $region24: #{generator_forward.1} parent=1 // pred_region
      %s74 = ssub.s32 32, 32
      %75 = vsyncadd [#allocation12], %s74
      %s77 = sshll.u32 [#allocation13], 4
      %s78 = int_to_ptr.vmem [resolvable:$true] %s77
      %80 = dma.hbm_to_vmem [thread:$0]  %s5, 32, %s78, [#allocation12]
    $region25: #{generator_forward.1} parent=1 // pred_fallthru
      _
    // Predicated region
    $region26: #{generator_forward.1} parent=1 // pred_check
      _
    $region27: #{generator_forward.1} parent=1 // pred_check_branch
      %82 = sbr.rel (0) target = $region29
    $region28: #{generator_forward.1} parent=1 // pred_region
      %s84 = ssub.s32 64, 64
      %85 = vsyncadd [#allocation15], %s84
      %s87 = sshll.u32 [#allocation14], 4
      %s88 = int_to_ptr.vmem [resolvable:$true] %s87
      %90 = dma.hbm_to_vmem [thread:$0]  %s6, 64, %s88, [#allocation15]
    $region29: #{generator_forward.1} parent=1 // pred_fallthru
      _
    // Predicated region
    $region30: #{generator_forward.1} parent=1 // pred_check
      _
    $region31: #{generator_forward.1} parent=1 // pred_check_branch
      %92 = sbr.rel (0) target = $region33
    $region32: #{generator_forward.1} parent=1 // pred_region
      %s94 = ssub.s32 64, 64
      %95 = vsyncadd [#allocation15], %s94
      %s97 = sshll.u32 [#allocation16], 4
      %s98 = int_to_ptr.vmem [resolvable:$true] %s97
      %100 = dma.hbm_to_vmem [thread:$0]  %s7, 64, %s98, [#allocation15]
    $region33: #{generator_forward.1} parent=1 // pred_fallthru
      _
    // Predicated region
    $region34: #{generator_forward.1} parent=1 // pred_check
      _
    $region35: #{generator_forward.1} parent=1 // pred_check_branch
      %102 = sbr.rel (0) target = $region37
    $region36: #{generator_forward.1} parent=1 // pred_region
      %s104 = ssub.s32 128, 128
      %105 = vsyncadd [#allocation18], %s104
      %s107 = sshll.u32 [#allocation17], 4
      %s108 = int_to_ptr.vmem [resolvable:$true] %s107
      %110 = dma.hbm_to_vmem [thread:$0]  %s8, 128, %s108, [#allocation18]
    $region37: #{generator_forward.1} parent=1 // pred_fallthru
      _
    // Predicated region
    $region38: #{generator_forward.1} parent=1 // pred_check
      _
    $region39: #{generator_forward.1} parent=1 // pred_check_branch
      %112 = sbr.rel (0) target = $region41
    $region40: #{generator_forward.1} parent=1 // pred_region
      %s114 = ssub.s32 128, 128
      %115 = vsyncadd [#allocation18], %s114
      %s117 = sshll.u32 [#allocation19], 4
      %s118 = int_to_ptr.vmem [resolvable:$true] %s117
      %120 = dma.hbm_to_vmem [thread:$0]  %s9, 128, %s118, [#allocation18]
    $region41: #{generator_forward.1} parent=1 // pred_fallthru
      _
    // Predicated region
    $region42: #{generator_forward.1} parent=1 // pred_check
      _
    $region43: #{generator_forward.1} parent=1 // pred_check_branch
      %122 = sbr.rel (0) target = $region45
    $region44: #{generator_forward.1} parent=1 // pred_region
      %s124 = ssub.s32 112, 112
      %125 = vsyncadd [#allocation21], %s124
      %s127 = sshll.u32 [#allocation20], 4
      %s128 = int_to_ptr.vmem [resolvable:$true] %s127
      %130 = dma.hbm_to_vmem [thread:$0]  %s10, 112, %s128, [#allocation21]
    $region45: #{generator_forward.1} parent=1 // pred_fallthru
      _
    // Predicated region
    $region46: #{generator_forward.1} parent=1 // pred_check
      _
    $region47: #{generator_forward.1} parent=1 // pred_check_branch
      %132 = sbr.rel (0) target = $region49
    $region48: #{generator_forward.1} parent=1 // pred_region
      %133 = dma.done [#allocation7], 1024
    $region49: #{generator_forward.1} parent=1 // pred_fallthru
      _
    // Predicated region
    $region50: #{generator_forward.1} parent=1 // pred_check
      _
    $region51: #{generator_forward.1} parent=1 // pred_check_branch
      %135 = sbr.rel (0) target = $region53
    $region52: #{generator_forward.1} parent=1 // pred_region
      %136 = dma.done [#allocation9], 16
    $region53: #{generator_forward.1} parent=1 // pred_fallthru
      _
    // Predicated region
    $region54: #{generator_forward.1} parent=1 // pred_check
      _
    $region55: #{generator_forward.1} parent=1 // pred_check_branch
      %138 = sbr.rel (0) target = $region57
    $region56: #{generator_forward.1} parent=1 // pred_region
      %139 = dma.done [#allocation9], 2048
    $region57: #{generator_forward.1} parent=1 // pred_fallthru
      _
    // Predicated region
    $region58: #{generator_forward.1} parent=1 // pred_check
      _
    $region59: #{generator_forward.1} parent=1 // pred_check_branch
      %141 = sbr.rel (0) target = $region61
    $region60: #{generator_forward.1} parent=1 // pred_region
      %142 = dma.done [#allocation12], 32
    $region61: #{generator_forward.1} parent=1 // pred_fallthru
      _
    // Predicated region
    $region62: #{generator_forward.1} parent=1 // pred_check
      _
    $region63: #{generator_forward.1} parent=1 // pred_check_branch
      %144 = sbr.rel (0) target = $region65
    $region64: #{generator_forward.1} parent=1 // pred_region
      %145 = dma.done [#allocation12], 32
    $region65: #{generator_forward.1} parent=1 // pred_fallthru
      _
    // Predicated region
    $region66: #{generator_forward.1} parent=1 // pred_check
      _
    $region67: #{generator_forward.1} parent=1 // pred_check_branch
      %147 = sbr.rel (0) target = $region69
    $region68: #{generator_forward.1} parent=1 // pred_region
      %148 = dma.done [#allocation15], 64
    $region69: #{generator_forward.1} parent=1 // pred_fallthru
      _
    // Predicated region
    $region70: #{generator_forward.1} parent=1 // pred_check
      _
    $region71: #{generator_forward.1} parent=1 // pred_check_branch
      %150 = sbr.rel (0) target = $region73
    $region72: #{generator_forward.1} parent=1 // pred_region
      %151 = dma.done [#allocation15], 64
    $region73: #{generator_forward.1} parent=1 // pred_fallthru
      _
    // Predicated region
    $region74: #{generator_forward.1} parent=1 // pred_check
      _
    $region75: #{generator_forward.1} parent=1 // pred_check_branch
      %153 = sbr.rel (0) target = $region77
    $region76: #{generator_forward.1} parent=1 // pred_region
      %154 = dma.done [#allocation18], 128
    $region77: #{generator_forward.1} parent=1 // pred_fallthru
      _
    // Predicated region
    $region78: #{generator_forward.1} parent=1 // pred_check
      _
    $region79: #{generator_forward.1} parent=1 // pred_check_branch
      %156 = sbr.rel (0) target = $region81
    $region80: #{generator_forward.1} parent=1 // pred_region
      %157 = dma.done [#allocation18], 128
    $region81: #{generator_forward.1} parent=1 // pred_fallthru
      _
    // Predicated region
    $region82: #{generator_forward.1} parent=1 // pred_check
      _
    $region83: #{generator_forward.1} parent=1 // pred_check_branch
      %159 = sbr.rel (0) target = $region85
    $region84: #{generator_forward.1} parent=1 // pred_region
      %160 = dma.done [#allocation21], 112
    $region85: #{generator_forward.1} parent=1 // pred_fallthru
      _
    %s163 = sshll.u32 1, 14
    %s164 = sxor.u32 4294967295, %s163
    %s166 = sld [smem:[#allocation0]]
    %s167 = sadd.s32 2, %s166
    %s169 = sshll.u32 7, 26
    %s170 = sxor.u32 4294967295, %s169
    %s171 = sand.u32 0, %s170
    %s172 = sshll.u32 %s167, 26
    %s173 = sor.u32 %s171, %s172
    %s174 = sshll.u32 [#allocation2], 4
    %s175 = int_to_ptr.vmem [resolvable:$true] %s174
    %178 = sst [smem:[#allocation23]] 512
    %s179 = scalar_lea.smem [#allocation23], 1
    %180 = sst [smem:[%s179]] 512
    %s181 = scalar_lea.smem [#allocation23], 2
    %182 = sst [smem:[%s181]] 4
    %s183 = scalar_lea.smem [#allocation23], 3
    %184 = sst [smem:[%s183]] 64
    %s185 = scalar_lea.smem [#allocation23], 4
    %186 = sst [smem:[%s185]] 128
    %s187 = scalar_lea.smem [#allocation23], 5
    %188 = sst [smem:[%s187]] 2
    %s189 = scalar_lea.smem [#allocation23], 6
    %190 = sst [smem:[%s189]] 256
    %s191 = scalar_lea.smem [#allocation23], 7
    %192 = sst [smem:[%s191]] 64
    %s193 = scalar_lea.smem [#allocation23], 8
    %194 = sst [smem:[%s193]] 4
    %196 = dma.general %s11, 8192, %s175, [#allocation5], [#allocation22], [#allocation23], %s173, 0
    %s197 = scalar_lea.sflag [#allocation5], 1
    %s199 = sshll.u32 1, 14
    %s200 = sxor.u32 4294967295, %s199
    %s202 = sadd.s32 2, %s166
    %s204 = sshll.u32 7, 26
    %s205 = sxor.u32 4294967295, %s204
    %s206 = sand.u32 0, %s205
    %s207 = sshll.u32 %s202, 26
    %s208 = sor.u32 %s206, %s207
    %s209 = sshll.u32 [#allocation3], 4
    %s210 = int_to_ptr.vmem [resolvable:$true] %s209
    %213 = sst [smem:[#allocation25]] 1024
    %s214 = scalar_lea.smem [#allocation25], 1
    %215 = sst [smem:[%s214]] 1024
    %s216 = scalar_lea.smem [#allocation25], 2
    %217 = sst [smem:[%s216]] 8
    %s218 = scalar_lea.smem [#allocation25], 3
    %219 = sst [smem:[%s218]] 64
    %s220 = scalar_lea.smem [#allocation25], 4
    %221 = sst [smem:[%s220]] 128
    %s222 = scalar_lea.smem [#allocation25], 5
    %223 = sst [smem:[%s222]] 2
    %s224 = scalar_lea.smem [#allocation25], 6
    %225 = sst [smem:[%s224]] 512
    %s226 = scalar_lea.smem [#allocation25], 7
    %227 = sst [smem:[%s226]] 64
    %s228 = scalar_lea.smem [#allocation25], 8
    %229 = sst [smem:[%s228]] 4
    %231 = dma.general %s12, 32768, %s210, %s197, [#allocation24], [#allocation25], %s208, 0
    %s232 = scalar_lea.sflag [#allocation5], 2
    %s234 = sshll.u32 1, 14
    %s235 = sxor.u32 4294967295, %s234
    %s237 = sadd.s32 2, %s166
    %s239 = sshll.u32 7, 26
    %s240 = sxor.u32 4294967295, %s239
    %s241 = sand.u32 0, %s240
    %s242 = sshll.u32 %s237, 26
    %s243 = sor.u32 %s241, %s242
    %s244 = sshll.u32 [#allocation4], 4
    %s245 = int_to_ptr.vmem [resolvable:$true] %s244
    %248 = sst [smem:[#allocation27]] 896
    %s249 = scalar_lea.smem [#allocation27], 1
    %250 = sst [smem:[%s249]] 896
    %s251 = scalar_lea.smem [#allocation27], 2
    %252 = sst [smem:[%s251]] 7
    %s253 = scalar_lea.smem [#allocation27], 3
    %254 = sst [smem:[%s253]] 64
    %s255 = scalar_lea.smem [#allocation27], 4
    %256 = sst [smem:[%s255]] 128
    %s257 = scalar_lea.smem [#allocation27], 5
    %258 = sst [smem:[%s257]] 2
    %s259 = scalar_lea.smem [#allocation27], 6
    %260 = sst [smem:[%s259]] 448
    %s261 = scalar_lea.smem [#allocation27], 7
    %262 = sst [smem:[%s261]] 64
    %s263 = scalar_lea.smem [#allocation27], 8
    %264 = sst [smem:[%s263]] 4
    %266 = dma.general %s13, 57344, %s245, %s232, [#allocation26], [#allocation27], %s243, 0
    %v267 = vld [vmem:[%s0] sm:$0xf]
    %v268 = vld [vmem:[%s0 + $0x4] sm:$0xf]
    %v269 = vld [vmem:[%s0 + $0x8] sm:$0xf]
    %v270 = vld [vmem:[%s0 + $0xc] sm:$0xf]
    %v271 = vld [vmem:[%s0 + $0x10] sm:$0xf]
    %v272 = vld [vmem:[%s0 + $0x14] sm:$0xf]
    %v273 = vld [vmem:[%s0 + $0x18] sm:$0xf]
    %v274 = vld [vmem:[%s0 + $0x1c] sm:$0xf]
    %v275 = vld [vmem:[%s0 + $0x20] sm:$0xf]
    %v276 = vld [vmem:[%s0 + $0x24] sm:$0xf]
    %v277 = vld [vmem:[%s0 + $0x28] sm:$0xf]
    %v278 = vld [vmem:[%s0 + $0x2c] sm:$0xf]
    %v279 = vld [vmem:[%s0 + $0x30] sm:$0xf]
    %v280 = vld [vmem:[%s0 + $0x34] sm:$0xf]
    %v281 = vld [vmem:[%s0 + $0x38] sm:$0xf]
    %v282 = vld [vmem:[%s0 + $0x3c] sm:$0xf]
    %v283 = vld [vmem:[%s0 + $0x40] sm:$0xf]
    %v284 = vld [vmem:[%s0 + $0x44] sm:$0xf]
    %v285 = vld [vmem:[%s0 + $0x48] sm:$0xf]
    %v286 = vld [vmem:[%s0 + $0x4c] sm:$0xf]
    %v287 = vld [vmem:[%s0 + $0x50] sm:$0xf]
    %v288 = vld [vmem:[%s0 + $0x54] sm:$0xf]
    %v289 = vld [vmem:[%s0 + $0x58] sm:$0xf]
    %v290 = vld [vmem:[%s0 + $0x5c] sm:$0xf]
    %v291 = vld [vmem:[%s0 + $0x60] sm:$0xf]
    %v292 = vld [vmem:[%s0 + $0x64] sm:$0xf]
    %v293 = vld [vmem:[%s0 + $0x68] sm:$0xf]
    %v294 = vld [vmem:[%s0 + $0x6c] sm:$0xf]
    %v295 = vld [vmem:[%s0 + $0x70] sm:$0xf]
    %v296 = vld [vmem:[%s0 + $0x74] sm:$0xf]
    %v297 = vld [vmem:[%s0 + $0x78] sm:$0xf]
    %v298 = vld [vmem:[%s0 + $0x7c] sm:$0xf]
    %v299 = vld [vmem:[#allocation6] sm:$0xf]
    %v300 = vld [vmem:[#allocation6 + $0x4] sm:$0xf]
    %v301 = vld [vmem:[#allocation6 + $0x8] sm:$0xf]
    %v302 = vld [vmem:[#allocation6 + $0xc] sm:$0xf]
    %v303 = vld [vmem:[#allocation6 + $0x10] sm:$0xf]
    %v304 = vld [vmem:[#allocation6 + $0x14] sm:$0xf]
    %v305 = vld [vmem:[#allocation6 + $0x18] sm:$0xf]
    %v306 = vld [vmem:[#allocation6 + $0x1c] sm:$0xf]
    %v307 = vld [vmem:[#allocation6 + $0x20] sm:$0xf]
    %v308 = vld [vmem:[#allocation6 + $0x24] sm:$0xf]
    %v309 = vld [vmem:[#allocation6 + $0x28] sm:$0xf]
    %v310 = vld [vmem:[#allocation6 + $0x2c] sm:$0xf]
    %v311 = vld [vmem:[#allocation6 + $0x30] sm:$0xf]
    %v312 = vld [vmem:[#allocation6 + $0x34] sm:$0xf]
    %v313 = vld [vmem:[#allocation6 + $0x38] sm:$0xf]
    %v314 = vld [vmem:[#allocation6 + $0x3c] sm:$0xf]
    %v315 = vld [vmem:[#allocation8] sm:$0x1]
    %v317 = vlaneseq
    %v318 = vshrl.u32 %v317, 7
    %v319 = vsub.s32 0, %v318
    %v320 = vrot.slane %v315, %v319
    %v354 = vunpack.c.l.b16 %v267
    %v355 = vunpack.c.l.b16 %v268
    %v356 = vunpack.c.l.b16 %v269
    %v357 = vunpack.c.l.b16 %v270
    %v358 = vunpack.c.l.b16 %v271
    %v359 = vunpack.c.l.b16 %v272
    %v360 = vunpack.c.l.b16 %v273
    %v361 = vunpack.c.l.b16 %v274
    %v362 = vunpack.c.l.b16 %v275
    %v363 = vunpack.c.l.b16 %v276
    %v364 = vunpack.c.l.b16 %v277
    %v365 = vunpack.c.l.b16 %v278
    %v366 = vunpack.c.l.b16 %v279
    %v367 = vunpack.c.l.b16 %v280
    %v368 = vunpack.c.l.b16 %v281
    %v369 = vunpack.c.l.b16 %v282
    %v370 = vunpack.c.l.b16 %v283
    %v371 = vunpack.c.l.b16 %v284
    %v372 = vunpack.c.l.b16 %v285
    %v373 = vunpack.c.l.b16 %v286
    %v374 = vunpack.c.l.b16 %v287
    %v375 = vunpack.c.l.b16 %v288
    %v376 = vunpack.c.l.b16 %v289
    %v377 = vunpack.c.l.b16 %v290
    %v378 = vunpack.c.l.b16 %v291
    %v379 = vunpack.c.l.b16 %v292
    %v380 = vunpack.c.l.b16 %v293
    %v381 = vunpack.c.l.b16 %v294
    %v382 = vunpack.c.l.b16 %v295
    %v383 = vunpack.c.l.b16 %v296
    %v384 = vunpack.c.l.b16 %v297
    %v385 = vunpack.c.l.b16 %v298
    %v386 = vpack.c.b16 %v355, %v354
    %v387 = vpack.c.b16 %v357, %v356
    %v388 = vpack.c.b16 %v359, %v358
    %v389 = vpack.c.b16 %v361, %v360
    %v390 = vpack.c.b16 %v363, %v362
    %v391 = vpack.c.b16 %v365, %v364
    %v392 = vpack.c.b16 %v367, %v366
    %v393 = vpack.c.b16 %v369, %v368
    %v394 = vpack.c.b16 %v371, %v370
    %v395 = vpack.c.b16 %v373, %v372
    %v396 = vpack.c.b16 %v375, %v374
    %v397 = vpack.c.b16 %v377, %v376
    %v398 = vpack.c.b16 %v379, %v378
    %v399 = vpack.c.b16 %v381, %v380
    %v400 = vpack.c.b16 %v383, %v382
    %v401 = vpack.c.b16 %v385, %v384
    %v434 = vunpack.c.l.b16 %v299
    %v435 = vunpack.c.l.b16 %v300
    %v436 = vunpack.c.l.b16 %v301
    %v437 = vunpack.c.l.b16 %v302
    %v438 = vunpack.c.l.b16 %v303
    %v439 = vunpack.c.l.b16 %v304
    %v440 = vunpack.c.l.b16 %v305
    %v441 = vunpack.c.l.b16 %v306
    %v442 = vunpack.c.l.b16 %v307
    %v443 = vunpack.c.l.b16 %v308
    %v444 = vunpack.c.l.b16 %v309
    %v445 = vunpack.c.l.b16 %v310
    %v446 = vunpack.c.l.b16 %v311
    %v447 = vunpack.c.l.b16 %v312
    %v448 = vunpack.c.l.b16 %v313
    %v449 = vunpack.c.l.b16 %v314
    %v450 = vpack.c.b16 %v435, %v434
    %v451 = vpack.c.b16 %v437, %v436
    %v452 = vpack.c.b16 %v439, %v438
    %v453 = vpack.c.b16 %v441, %v440
    %v454 = vpack.c.b16 %v443, %v442
    %v455 = vpack.c.b16 %v445, %v444
    %v456 = vpack.c.b16 %v447, %v446
    %v457 = vpack.c.b16 %v449, %v448
    %466 = vmatprep.subr.bf16.mxu0 0
    %467 = vmatpush1.bf16.msra.mxu0 %v450
    %468 = vmatprep.subr.bf16.mxu0 0
    %469 = vmatpush1.bf16.msra.mxu0 %v451
    %470 = vmatprep.subr.bf16.mxu0 0
    %471 = vmatpush1.bf16.msra.mxu0 %v452
    %472 = vmatprep.subr.bf16.mxu0 0
    %473 = vmatpush1.bf16.msra.mxu0 %v453
    %474 = vmatprep.subr.bf16.mxu0 0
    %475 = vmatpush1.bf16.msra.mxu0 %v454
    %476 = vmatprep.subr.bf16.mxu0 0
    %477 = vmatpush1.bf16.msra.mxu0 %v455
    %478 = vmatprep.subr.bf16.mxu0 0
    %479 = vmatpush1.bf16.msra.mxu0 %v456
    %480 = vmatprep.subr.bf16.mxu0 0
    %481 = vmatpush1.bf16.msra.mxu0 %v457
    %482 = vmatprep.subr.bf16.mxu0 0
    %483 = vmatpush1.bf16.msra.mxu0 0
    %484 = vmatprep.subr.bf16.mxu0 0
    %485 = vmatpush1.bf16.msra.mxu0 0
    %486 = vmatprep.subr.bf16.mxu0 0
    %487 = vmatpush1.bf16.msra.mxu0 0
    %488 = vmatprep.subr.bf16.mxu0 0
    %489 = vmatpush1.bf16.msra.mxu0 0
    %490 = vmatprep.subr.bf16.mxu0 0
    %491 = vmatpush1.bf16.msra.mxu0 0
    %492 = vmatprep.subr.bf16.mxu0 0
    %493 = vmatpush1.bf16.msra.mxu0 0
    %494 = vmatprep.subr.bf16.mxu0 0
    %495 = vmatpush1.bf16.msra.mxu0 0
    %496 = vmatprep.subr.bf16.mxu0 0
    %497 = vmatpush1.bf16.msra.mxu0 0
    %498 = vmatprep.mubr.bf16.mxu0 0
    %499 = vmatmul.mubr.bf16.gmra.mrb[0].mxu0 %v386
    %v500 = vpop.f32.mrb[0].mxu0
    %v501 = vadd.f32 %v320, %v500
    %v502 = vpop.f32.mrb[0].mxu0
    %v503 = vpop.f32.mrb[0].mxu0
    %v504 = vadd.f32 %v320, %v503
    %v505 = vpop.f32.mrb[0].mxu0
    %506 = vmatprep.mubr.bf16.mxu0 0
    %507 = vmatmul.mubr.bf16.gmra.mrb[0].mxu0 %v387
    %v508 = vpop.f32.mrb[0].mxu0
    %v509 = vadd.f32 %v320, %v508
    %v510 = vpop.f32.mrb[0].mxu0
    %v511 = vpop.f32.mrb[0].mxu0
    %v512 = vadd.f32 %v320, %v511
    %v513 = vpop.f32.mrb[0].mxu0
    %514 = vmatprep.mubr.bf16.mxu0 0
    %515 = vmatmul.mubr.bf16.gmra.mrb[0].mxu0 %v388
    %v516 = vpop.f32.mrb[0].mxu0
    %v517 = vadd.f32 %v320, %v516
    %v518 = vpop.f32.mrb[0].mxu0
    %v519 = vpop.f32.mrb[0].mxu0
    %v520 = vadd.f32 %v320, %v519
    %v521 = vpop.f32.mrb[0].mxu0
    %522 = vmatprep.mubr.bf16.mxu0 0
    %523 = vmatmul.mubr.bf16.gmra.mrb[0].mxu0 %v389
    %v524 = vpop.f32.mrb[0].mxu0
    %v525 = vadd.f32 %v320, %v524
    %v526 = vpop.f32.mrb[0].mxu0
    %v527 = vpop.f32.mrb[0].mxu0
    %v528 = vadd.f32 %v320, %v527
    %v529 = vpop.f32.mrb[0].mxu0
    %530 = vmatprep.mubr.bf16.mxu0 0
    %531 = vmatmul.mubr.bf16.gmra.mrb[0].mxu0 %v390
    %v532 = vpop.f32.mrb[0].mxu0
    %v533 = vadd.f32 %v320, %v532
    %v534 = vpop.f32.mrb[0].mxu0
    %v535 = vpop.f32.mrb[0].mxu0
    %v536 = vadd.f32 %v320, %v535
    %v537 = vpop.f32.mrb[0].mxu0
    %538 = vmatprep.mubr.bf16.mxu0 0
    %539 = vmatmul.mubr.bf16.gmra.mrb[0].mxu0 %v391
    %v540 = vpop.f32.mrb[0].mxu0
    %v541 = vadd.f32 %v320, %v540
    %v542 = vpop.f32.mrb[0].mxu0
    %v543 = vpop.f32.mrb[0].mxu0
    %v544 = vadd.f32 %v320, %v543
    %v545 = vpop.f32.mrb[0].mxu0
    %546 = vmatprep.mubr.bf16.mxu0 0
    %547 = vmatmul.mubr.bf16.gmra.mrb[0].mxu0 %v392
    %v548 = vpop.f32.mrb[0].mxu0
    %v549 = vadd.f32 %v320, %v548
    %v550 = vpop.f32.mrb[0].mxu0
    %v551 = vpop.f32.mrb[0].mxu0
    %v552 = vadd.f32 %v320, %v551
    %v553 = vpop.f32.mrb[0].mxu0
    %554 = vmatprep.mubr.bf16.mxu0 0
    %555 = vmatmul.mubr.bf16.gmra.mrb[0].mxu0 %v393
    %v556 = vpop.f32.mrb[0].mxu0
    %v557 = vadd.f32 %v320, %v556
    %v558 = vpop.f32.mrb[0].mxu0
    %v559 = vpop.f32.mrb[0].mxu0
    %v560 = vadd.f32 %v320, %v559
    %v561 = vpop.f32.mrb[0].mxu0
    %562 = vmatprep.mubr.bf16.mxu0 0
    %563 = vmatmul.mubr.bf16.gmra.mrb[0].mxu0 %v394
    %v564 = vpop.f32.mrb[0].mxu0
    %v565 = vadd.f32 %v320, %v564
    %v566 = vpop.f32.mrb[0].mxu0
    %v567 = vpop.f32.mrb[0].mxu0
    %v568 = vadd.f32 %v320, %v567
    %v569 = vpop.f32.mrb[0].mxu0
    %570 = vmatprep.mubr.bf16.mxu0 0
    %571 = vmatmul.mubr.bf16.gmra.mrb[0].mxu0 %v395
    %v572 = vpop.f32.mrb[0].mxu0
    %v573 = vadd.f32 %v320, %v572
    %v574 = vpop.f32.mrb[0].mxu0
    %v575 = vpop.f32.mrb[0].mxu0
    %v576 = vadd.f32 %v320, %v575
    %v577 = vpop.f32.mrb[0].mxu0
    %578 = vmatprep.mubr.bf16.mxu0 0
    %579 = vmatmul.mubr.bf16.gmra.mrb[0].mxu0 %v396
    %v580 = vpop.f32.mrb[0].mxu0
    %v581 = vadd.f32 %v320, %v580
    %v582 = vpop.f32.mrb[0].mxu0
    %v583 = vpop.f32.mrb[0].mxu0
    %v584 = vadd.f32 %v320, %v583
    %v585 = vpop.f32.mrb[0].mxu0
    %586 = vmatprep.mubr.bf16.mxu0 0
    %587 = vmatmul.mubr.bf16.gmra.mrb[0].mxu0 %v397
    %v588 = vpop.f32.mrb[0].mxu0
    %v589 = vadd.f32 %v320, %v588
    %v590 = vpop.f32.mrb[0].mxu0
    %v591 = vpop.f32.mrb[0].mxu0
    %v592 = vadd.f32 %v320, %v591
    %v593 = vpop.f32.mrb[0].mxu0
    %594 = vmatprep.mubr.bf16.mxu0 0
    %595 = vmatmul.mubr.bf16.gmra.mrb[0].mxu0 %v398
    %v596 = vpop.f32.mrb[0].mxu0
    %v597 = vadd.f32 %v320, %v596
    %v598 = vpop.f32.mrb[0].mxu0
    %v599 = vpop.f32.mrb[0].mxu0
    %v600 = vadd.f32 %v320, %v599
    %v601 = vpop.f32.mrb[0].mxu0
    %602 = vmatprep.mubr.bf16.mxu0 0
    %603 = vmatmul.mubr.bf16.gmra.mrb[0].mxu0 %v399
    %v604 = vpop.f32.mrb[0].mxu0
    %v605 = vadd.f32 %v320, %v604
    %v606 = vpop.f32.mrb[0].mxu0
    %v607 = vpop.f32.mrb[0].mxu0
    %v608 = vadd.f32 %v320, %v607
    %v609 = vpop.f32.mrb[0].mxu0
    %610 = vmatprep.mubr.bf16.mxu0 0
    %611 = vmatmul.mubr.bf16.gmra.mrb[0].mxu0 %v400
    %v612 = vpop.f32.mrb[0].mxu0
    %v613 = vadd.f32 %v320, %v612
    %v614 = vpop.f32.mrb[0].mxu0
    %v615 = vpop.f32.mrb[0].mxu0
    %v616 = vadd.f32 %v320, %v615
    %v617 = vpop.f32.mrb[0].mxu0
    %618 = vmatprep.mubr.bf16.mxu0 0
    %619 = vmatmul.mubr.bf16.gmra.mrb[0].mxu0 %v401
    %v620 = vpop.f32.mrb[0].mxu0
    %v621 = vadd.f32 %v320, %v620
    %v622 = vpop.f32.mrb[0].mxu0
    %v623 = vpop.f32.mrb[0].mxu0
    %v624 = vadd.f32 %v320, %v623
    %v625 = vpop.f32.mrb[0].mxu0
    %626 = vdwg.mxu0
    %v627 = vmul.f32 %v501, 0.2
    %v628 = vmul.f32 %v504, 0.2
    %v629 = vmul.f32 %v509, 0.2
    %v630 = vmul.f32 %v512, 0.2
    %v631 = vmul.f32 %v517, 0.2
    %v632 = vmul.f32 %v520, 0.2
    %v633 = vmul.f32 %v525, 0.2
    %v634 = vmul.f32 %v528, 0.2
    %v635 = vmul.f32 %v533, 0.2
    %v636 = vmul.f32 %v536, 0.2
    %v637 = vmul.f32 %v541, 0.2
    %v638 = vmul.f32 %v544, 0.2
    %v639 = vmul.f32 %v549, 0.2
    %v640 = vmul.f32 %v552, 0.2
    %v641 = vmul.f32 %v557, 0.2
    %v642 = vmul.f32 %v560, 0.2
    %v643 = vmul.f32 %v565, 0.2
    %v644 = vmul.f32 %v568, 0.2
    %v645 = vmul.f32 %v573, 0.2
    %v646 = vmul.f32 %v576, 0.2
    %v647 = vmul.f32 %v581, 0.2
    %v648 = vmul.f32 %v584, 0.2
    %v649 = vmul.f32 %v589, 0.2
    %v650 = vmul.f32 %v592, 0.2
    %v651 = vmul.f32 %v597, 0.2
    %v652 = vmul.f32 %v600, 0.2
    %v653 = vmul.f32 %v605, 0.2
    %v654 = vmul.f32 %v608, 0.2
    %v655 = vmul.f32 %v613, 0.2
    %v656 = vmul.f32 %v616, 0.2
    %v657 = vmul.f32 %v621, 0.2
    %v658 = vmul.f32 %v624, 0.2
    %v659 = vmax.f32 %v501, %v627
    %v660 = vmax.f32 %v504, %v628
    %v661 = vmax.f32 %v509, %v629
    %v662 = vmax.f32 %v512, %v630
    %v663 = vmax.f32 %v517, %v631
    %v664 = vmax.f32 %v520, %v632
    %v665 = vmax.f32 %v525, %v633
    %v666 = vmax.f32 %v528, %v634
    %v667 = vmax.f32 %v533, %v635
    %v668 = vmax.f32 %v536, %v636
    %v669 = vmax.f32 %v541, %v637
    %v670 = vmax.f32 %v544, %v638
    %v671 = vmax.f32 %v549, %v639
    %v672 = vmax.f32 %v552, %v640
    %v673 = vmax.f32 %v557, %v641
    %v674 = vmax.f32 %v560, %v642
    %v675 = vmax.f32 %v565, %v643
    %v676 = vmax.f32 %v568, %v644
    %v677 = vmax.f32 %v573, %v645
    %v678 = vmax.f32 %v576, %v646
    %v679 = vmax.f32 %v581, %v647
    %v680 = vmax.f32 %v584, %v648
    %v681 = vmax.f32 %v589, %v649
    %v682 = vmax.f32 %v592, %v650
    %v683 = vmax.f32 %v597, %v651
    %v684 = vmax.f32 %v600, %v652
    %v685 = vmax.f32 %v605, %v653
    %v686 = vmax.f32 %v608, %v654
    %v687 = vmax.f32 %v613, %v655
    %v688 = vmax.f32 %v616, %v656
    %v689 = vmax.f32 %v621, %v657
    %v690 = vmax.f32 %v624, %v658
    %v691 = vpack.c.bf16 %v660, %v659
    %v692 = vpack.c.bf16 %v662, %v661
    %v693 = vpack.c.bf16 %v664, %v663
    %v694 = vpack.c.bf16 %v666, %v665
    %v695 = vpack.c.bf16 %v668, %v667
    %v696 = vpack.c.bf16 %v670, %v669
    %v697 = vpack.c.bf16 %v672, %v671
    %v698 = vpack.c.bf16 %v674, %v673
    %v699 = vpack.c.bf16 %v676, %v675
    %v700 = vpack.c.bf16 %v678, %v677
    %v701 = vpack.c.bf16 %v680, %v679
    %v702 = vpack.c.bf16 %v682, %v681
    %v703 = vpack.c.bf16 %v684, %v683
    %v704 = vpack.c.bf16 %v686, %v685
    %v705 = vpack.c.bf16 %v688, %v687
    %v706 = vpack.c.bf16 %v690, %v689
    %v707 = vld [vmem:[#allocation10] sm:$0xff]
    %v708 = vld [vmem:[#allocation10 + $0x8] sm:$0xff]
    %v709 = vld [vmem:[#allocation10 + $0x10] sm:$0xff]
    %v710 = vld [vmem:[#allocation10 + $0x18] sm:$0xff]
    %v711 = vld [vmem:[#allocation10 + $0x20] sm:$0xff]
    %v712 = vld [vmem:[#allocation10 + $0x28] sm:$0xff]
    %v713 = vld [vmem:[#allocation10 + $0x30] sm:$0xff]
    %v714 = vld [vmem:[#allocation10 + $0x38] sm:$0xff]
    %v715 = vld [vmem:[#allocation10 + $0x40] sm:$0xff]
    %v716 = vld [vmem:[#allocation10 + $0x48] sm:$0xff]
    %v717 = vld [vmem:[#allocation10 + $0x50] sm:$0xff]
    %v718 = vld [vmem:[#allocation10 + $0x58] sm:$0xff]
    %v719 = vld [vmem:[#allocation10 + $0x60] sm:$0xff]
    %v720 = vld [vmem:[#allocation10 + $0x68] sm:$0xff]
    %v721 = vld [vmem:[#allocation10 + $0x70] sm:$0xff]
    %v722 = vld [vmem:[#allocation10 + $0x78] sm:$0xff]
    %v739 = vunpack.c.l.b16 %v707
    %v740 = vunpack.c.h.b16 %v707
    %v741 = vunpack.c.l.b16 %v708
    %v742 = vunpack.c.h.b16 %v708
    %v743 = vunpack.c.l.b16 %v709
    %v744 = vunpack.c.h.b16 %v709
    %v745 = vunpack.c.l.b16 %v710
    %v746 = vunpack.c.h.b16 %v710
    %v747 = vunpack.c.l.b16 %v711
    %v748 = vunpack.c.h.b16 %v711
    %v749 = vunpack.c.l.b16 %v712
    %v750 = vunpack.c.h.b16 %v712
    %v751 = vunpack.c.l.b16 %v713
    %v752 = vunpack.c.h.b16 %v713
    %v753 = vunpack.c.l.b16 %v714
    %v754 = vunpack.c.h.b16 %v714
    %v755 = vunpack.c.l.b16 %v715
    %v756 = vunpack.c.h.b16 %v715
    %v757 = vunpack.c.l.b16 %v716
    %v758 = vunpack.c.h.b16 %v716
    %v759 = vunpack.c.l.b16 %v717
    %v760 = vunpack.c.h.b16 %v717
    %v761 = vunpack.c.l.b16 %v718
    %v762 = vunpack.c.h.b16 %v718
    %v763 = vunpack.c.l.b16 %v719
    %v764 = vunpack.c.h.b16 %v719
    %v765 = vunpack.c.l.b16 %v720
    %v766 = vunpack.c.h.b16 %v720
    %v767 = vunpack.c.l.b16 %v721
    %v768 = vunpack.c.h.b16 %v721
    %v769 = vunpack.c.l.b16 %v722
    %v770 = vunpack.c.h.b16 %v722
    %v771 = vpack.c.b16 %v741, %v739
    %v772 = vpack.c.b16 %v742, %v740
    %v773 = vpack.c.b16 %v745, %v743
    %v774 = vpack.c.b16 %v746, %v744
    %v775 = vpack.c.b16 %v749, %v747
    %v776 = vpack.c.b16 %v750, %v748
    %v777 = vpack.c.b16 %v753, %v751
    %v778 = vpack.c.b16 %v754, %v752
    %v779 = vpack.c.b16 %v757, %v755
    %v780 = vpack.c.b16 %v758, %v756
    %v781 = vpack.c.b16 %v761, %v759
    %v782 = vpack.c.b16 %v762, %v760
    %v783 = vpack.c.b16 %v765, %v763
    %v784 = vpack.c.b16 %v766, %v764
    %v785 = vpack.c.b16 %v769, %v767
    %v786 = vpack.c.b16 %v770, %v768
    %803 = vmatprep.subr.bf16.mxu0 %v772
    %804 = vmatpush1.bf16.msra.mxu0 %v771
    %805 = vmatprep.subr.bf16.mxu0 %v774
    %806 = vmatpush1.bf16.msra.mxu0 %v773
    %807 = vmatprep.subr.bf16.mxu0 %v776
    %808 = vmatpush1.bf16.msra.mxu0 %v775
    %809 = vmatprep.subr.bf16.mxu0 %v778
    %810 = vmatpush1.bf16.msra.mxu0 %v777
    %811 = vmatprep.subr.bf16.mxu0 %v780
    %812 = vmatpush1.bf16.msra.mxu0 %v779
    %813 = vmatprep.subr.bf16.mxu0 %v782
    %814 = vmatpush1.bf16.msra.mxu0 %v781
    %815 = vmatprep.subr.bf16.mxu0 %v784
    %816 = vmatpush1.bf16.msra.mxu0 %v783
    %817 = vmatprep.subr.bf16.mxu0 %v786
    %818 = vmatpush1.bf16.msra.mxu0 %v785
    %819 = vmatprep.subr.bf16.mxu0 0
    %820 = vmatpush1.bf16.msra.mxu0 0
    %821 = vmatprep.subr.bf16.mxu0 0
    %822 = vmatpush1.bf16.msra.mxu0 0
    %823 = vmatprep.subr.bf16.mxu0 0
    %824 = vmatpush1.bf16.msra.mxu0 0
    %825 = vmatprep.subr.bf16.mxu0 0
    %826 = vmatpush1.bf16.msra.mxu0 0
    %827 = vmatprep.subr.bf16.mxu0 0
    %828 = vmatpush1.bf16.msra.mxu0 0
    %829 = vmatprep.subr.bf16.mxu0 0
    %830 = vmatpush1.bf16.msra.mxu0 0
    %831 = vmatprep.subr.bf16.mxu0 0
    %832 = vmatpush1.bf16.msra.mxu0 0
    %833 = vmatprep.subr.bf16.mxu0 0
    %834 = vmatpush1.bf16.msra.mxu0 0
    %835 = vmatprep.mubr.bf16.mxu0 0
    %836 = vmatmul.mubr.bf16.gmra.mrb[0].mxu0 %v691
    %v837 = vpop.f32.mrb[0].mxu0
    %v838 = vadd.f32 0.0, %v837
    %v839 = vpop.f32.mrb[0].mxu0
    %v840 = vadd.f32 0.0, %v839
    %v841 = vpop.f32.mrb[0].mxu0
    %v842 = vadd.f32 0.0, %v841
    %v843 = vpop.f32.mrb[0].mxu0
    %v844 = vadd.f32 0.0, %v843
    %845 = vmatprep.mubr.bf16.mxu0 0
    %846 = vmatmul.mubr.bf16.gmra.mrb[0].mxu0 %v692
    %v847 = vpop.f32.mrb[0].mxu0
    %v848 = vadd.f32 0.0, %v847
    %v849 = vpop.f32.mrb[0].mxu0
    %v850 = vadd.f32 0.0, %v849
    %v851 = vpop.f32.mrb[0].mxu0
    %v852 = vadd.f32 0.0, %v851
    %v853 = vpop.f32.mrb[0].mxu0
    %v854 = vadd.f32 0.0, %v853
    %855 = vmatprep.mubr.bf16.mxu0 0
    %856 = vmatmul.mubr.bf16.gmra.mrb[0].mxu0 %v693
    %v857 = vpop.f32.mrb[0].mxu0
    %v858 = vadd.f32 0.0, %v857
    %v859 = vpop.f32.mrb[0].mxu0
    %v860 = vadd.f32 0.0, %v859
    %v861 = vpop.f32.mrb[0].mxu0
    %v862 = vadd.f32 0.0, %v861
    %v863 = vpop.f32.mrb[0].mxu0
    %v864 = vadd.f32 0.0, %v863
    %865 = vmatprep.mubr.bf16.mxu0 0
    %866 = vmatmul.mubr.bf16.gmra.mrb[0].mxu0 %v694
    %v867 = vpop.f32.mrb[0].mxu0
    %v868 = vadd.f32 0.0, %v867
    %v869 = vpop.f32.mrb[0].mxu0
    %v870 = vadd.f32 0.0, %v869
    %v871 = vpop.f32.mrb[0].mxu0
    %v872 = vadd.f32 0.0, %v871
    %v873 = vpop.f32.mrb[0].mxu0
    %v874 = vadd.f32 0.0, %v873
    %875 = vmatprep.mubr.bf16.mxu0 0
    %876 = vmatmul.mubr.bf16.gmra.mrb[0].mxu0 %v695
    %v877 = vpop.f32.mrb[0].mxu0
    %v878 = vadd.f32 0.0, %v877
    %v879 = vpop.f32.mrb[0].mxu0
    %v880 = vadd.f32 0.0, %v879
    %v881 = vpop.f32.mrb[0].mxu0
    %v882 = vadd.f32 0.0, %v881
    %v883 = vpop.f32.mrb[0].mxu0
    %v884 = vadd.f32 0.0, %v883
    %885 = vmatprep.mubr.bf16.mxu0 0
    %886 = vmatmul.mubr.bf16.gmra.mrb[0].mxu0 %v696
    %v887 = vpop.f32.mrb[0].mxu0
    %v888 = vadd.f32 0.0, %v887
    %v889 = vpop.f32.mrb[0].mxu0
    %v890 = vadd.f32 0.0, %v889
    %v891 = vpop.f32.mrb[0].mxu0
    %v892 = vadd.f32 0.0, %v891
    %v893 = vpop.f32.mrb[0].mxu0
    %v894 = vadd.f32 0.0, %v893
    %895 = vmatprep.mubr.bf16.mxu0 0
    %896 = vmatmul.mubr.bf16.gmra.mrb[0].mxu0 %v697
    %v897 = vpop.f32.mrb[0].mxu0
    %v898 = vadd.f32 0.0, %v897
    %v899 = vpop.f32.mrb[0].mxu0
    %v900 = vadd.f32 0.0, %v899
    %v901 = vpop.f32.mrb[0].mxu0
    %v902 = vadd.f32 0.0, %v901
    %v903 = vpop.f32.mrb[0].mxu0
    %v904 = vadd.f32 0.0, %v903
    %905 = vmatprep.mubr.bf16.mxu0 0
    %906 = vmatmul.mubr.bf16.gmra.mrb[0].mxu0 %v698
    %v907 = vpop.f32.mrb[0].mxu0
    %v908 = vadd.f32 0.0, %v907
    %v909 = vpop.f32.mrb[0].mxu0
    %v910 = vadd.f32 0.0, %v909
    %v911 = vpop.f32.mrb[0].mxu0
    %v912 = vadd.f32 0.0, %v911
    %v913 = vpop.f32.mrb[0].mxu0
    %v914 = vadd.f32 0.0, %v913
    %915 = vmatprep.mubr.bf16.mxu0 0
    %916 = vmatmul.mubr.bf16.gmra.mrb[0].mxu0 %v699
    %v917 = vpop.f32.mrb[0].mxu0
    %v918 = vadd.f32 0.0, %v917
    %v919 = vpop.f32.mrb[0].mxu0
    %v920 = vadd.f32 0.0, %v919
    %v921 = vpop.f32.mrb[0].mxu0
    %v922 = vadd.f32 0.0, %v921
    %v923 = vpop.f32.mrb[0].mxu0
    %v924 = vadd.f32 0.0, %v923
    %925 = vmatprep.mubr.bf16.mxu0 0
    %926 = vmatmul.mubr.bf16.gmra.mrb[0].mxu0 %v700
    %v927 = vpop.f32.mrb[0].mxu0
    %v928 = vadd.f32 0.0, %v927
    %v929 = vpop.f32.mrb[0].mxu0
    %v930 = vadd.f32 0.0, %v929
    %v931 = vpop.f32.mrb[0].mxu0
    %v932 = vadd.f32 0.0, %v931
    %v933 = vpop.f32.mrb[0].mxu0
    %v934 = vadd.f32 0.0, %v933
    %935 = vmatprep.mubr.bf16.mxu0 0
    %936 = vmatmul.mubr.bf16.gmra.mrb[0].mxu0 %v701
    %v937 = vpop.f32.mrb[0].mxu0
    %v938 = vadd.f32 0.0, %v937
    %v939 = vpop.f32.mrb[0].mxu0
    %v940 = vadd.f32 0.0, %v939
    %v941 = vpop.f32.mrb[0].mxu0
    %v942 = vadd.f32 0.0, %v941
    %v943 = vpop.f32.mrb[0].mxu0
    %v944 = vadd.f32 0.0, %v943
    %945 = vmatprep.mubr.bf16.mxu0 0
    %946 = vmatmul.mubr.bf16.gmra.mrb[0].mxu0 %v702
    %v947 = vpop.f32.mrb[0].mxu0
    %v948 = vadd.f32 0.0, %v947
    %v949 = vpop.f32.mrb[0].mxu0
    %v950 = vadd.f32 0.0, %v949
    %v951 = vpop.f32.mrb[0].mxu0
    %v952 = vadd.f32 0.0, %v951
    %v953 = vpop.f32.mrb[0].mxu0
    %v954 = vadd.f32 0.0, %v953
    %955 = vmatprep.mubr.bf16.mxu0 0
    %956 = vmatmul.mubr.bf16.gmra.mrb[0].mxu0 %v703
    %v957 = vpop.f32.mrb[0].mxu0
    %v958 = vadd.f32 0.0, %v957
    %v959 = vpop.f32.mrb[0].mxu0
    %v960 = vadd.f32 0.0, %v959
    %v961 = vpop.f32.mrb[0].mxu0
    %v962 = vadd.f32 0.0, %v961
    %v963 = vpop.f32.mrb[0].mxu0
    %v964 = vadd.f32 0.0, %v963
    %965 = vmatprep.mubr.bf16.mxu0 0
    %966 = vmatmul.mubr.bf16.gmra.mrb[0].mxu0 %v704
    %v967 = vpop.f32.mrb[0].mxu0
    %v968 = vadd.f32 0.0, %v967
    %v969 = vpop.f32.mrb[0].mxu0
    %v970 = vadd.f32 0.0, %v969
    %v971 = vpop.f32.mrb[0].mxu0
    %v972 = vadd.f32 0.0, %v971
    %v973 = vpop.f32.mrb[0].mxu0
    %v974 = vadd.f32 0.0, %v973
    %975 = vmatprep.mubr.bf16.mxu0 0
    %976 = vmatmul.mubr.bf16.gmra.mrb[0].mxu0 %v705
    %v977 = vpop.f32.mrb[0].mxu0
    %v978 = vadd.f32 0.0, %v977
    %v979 = vpop.f32.mrb[0].mxu0
    %v980 = vadd.f32 0.0, %v979
    %v981 = vpop.f32.mrb[0].mxu0
    %v982 = vadd.f32 0.0, %v981
    %v983 = vpop.f32.mrb[0].mxu0
    %v984 = vadd.f32 0.0, %v983
    %985 = vmatprep.mubr.bf16.mxu0 0
    %986 = vmatmul.mubr.bf16.gmra.mrb[0].mxu0 %v706
    %v987 = vpop.f32.mrb[0].mxu0
    %v988 = vadd.f32 0.0, %v987
    %v989 = vpop.f32.mrb[0].mxu0
    %v990 = vadd.f32 0.0, %v989
    %v991 = vpop.f32.mrb[0].mxu0
    %v992 = vadd.f32 0.0, %v991
    %v993 = vpop.f32.mrb[0].mxu0
    %v994 = vadd.f32 0.0, %v993
    %995 = vdwg.mxu0
    %v996 = vld [vmem:[#allocation11] sm:$0x3]
    %v997 = vld [vmem:[#allocation13] sm:$0x3]
    %v998 = vadd.f32 %v838, %v842
    %v999 = vadd.f32 %v998, %v848
    %v1000 = vadd.f32 %v999, %v852
    %v1001 = vadd.f32 %v1000, %v858
    %v1002 = vadd.f32 %v1001, %v862
    %v1003 = vadd.f32 %v1002, %v868
    %v1004 = vadd.f32 %v1003, %v872
    %v1005 = vadd.f32 %v1004, %v878
    %v1006 = vadd.f32 %v1005, %v882
    %v1007 = vadd.f32 %v1006, %v888
    %v1008 = vadd.f32 %v1007, %v892
    %v1009 = vadd.f32 %v1008, %v898
    %v1010 = vadd.f32 %v1009, %v902
    %v1011 = vadd.f32 %v1010, %v908
    %v1012 = vadd.f32 %v1011, %v912
    %v1013 = vadd.f32 %v1012, %v918
    %v1014 = vadd.f32 %v1013, %v922
    %v1015 = vadd.f32 %v1014, %v928
    %v1016 = vadd.f32 %v1015, %v932
    %v1017 = vadd.f32 %v1016, %v938
    %v1018 = vadd.f32 %v1017, %v942
    %v1019 = vadd.f32 %v1018, %v948
    %v1020 = vadd.f32 %v1019, %v952
    %v1021 = vadd.f32 %v1020, %v958
    %v1022 = vadd.f32 %v1021, %v962
    %v1023 = vadd.f32 %v1022, %v968
    %v1024 = vadd.f32 %v1023, %v972
    %v1025 = vadd.f32 %v1024, %v978
    %v1026 = vadd.f32 %v1025, %v982
    %v1027 = vadd.f32 %v1026, %v988
    %v1028 = vadd.f32 %v1027, %v992
    %v1029 = vrot.slane %v1028, 4
    %v1030 = vadd.f32 %v1028, %v1029
    %v1031 = vrot.slane %v1030, 2
    %v1032 = vadd.f32 %v1030, %v1031
    %v1033 = vrot.slane %v1032, 1
    %v1034 = vadd.f32 %v1032, %v1033
    %v1035 = vadd.f32 %v840, %v844
    %v1036 = vadd.f32 %v1035, %v850
    %v1037 = vadd.f32 %v1036, %v854
    %v1038 = vadd.f32 %v1037, %v860
    %v1039 = vadd.f32 %v1038, %v864
    %v1040 = vadd.f32 %v1039, %v870
    %v1041 = vadd.f32 %v1040, %v874
    %v1042 = vadd.f32 %v1041, %v880
    %v1043 = vadd.f32 %v1042, %v884
    %v1044 = vadd.f32 %v1043, %v890
    %v1045 = vadd.f32 %v1044, %v894
    %v1046 = vadd.f32 %v1045, %v900
    %v1047 = vadd.f32 %v1046, %v904
    %v1048 = vadd.f32 %v1047, %v910
    %v1049 = vadd.f32 %v1048, %v914
    %v1050 = vadd.f32 %v1049, %v920
    %v1051 = vadd.f32 %v1050, %v924
    %v1052 = vadd.f32 %v1051, %v930
    %v1053 = vadd.f32 %v1052, %v934
    %v1054 = vadd.f32 %v1053, %v940
    %v1055 = vadd.f32 %v1054, %v944
    %v1056 = vadd.f32 %v1055, %v950
    %v1057 = vadd.f32 %v1056, %v954
    %v1058 = vadd.f32 %v1057, %v960
    %v1059 = vadd.f32 %v1058, %v964
    %v1060 = vadd.f32 %v1059, %v970
    %v1061 = vadd.f32 %v1060, %v974
    %v1062 = vadd.f32 %v1061, %v980
    %v1063 = vadd.f32 %v1062, %v984
    %v1064 = vadd.f32 %v1063, %v990
    %v1065 = vadd.f32 %v1064, %v994
    %v1066 = vrot.slane %v1065, 4
    %v1067 = vadd.f32 %v1065, %v1066
    %v1068 = vrot.slane %v1067, 2
    %v1069 = vadd.f32 %v1067, %v1068
    %v1070 = vrot.slane %v1069, 1
    %v1071 = vadd.f32 %v1069, %v1070
    %v1072 = vrcp.pop 256.0
    %v1073 = vmul.f32 %v1034, %v1072
    %v1074 = vmul.f32 %v1071, %v1072
    %v1075 = vmul.f32 %v838, %v838
    %v1076 = vmul.f32 %v840, %v840
    %v1077 = vmul.f32 %v842, %v842
    %v1078 = vmul.f32 %v844, %v844
    %v1079 = vmul.f32 %v848, %v848
    %v1080 = vmul.f32 %v850, %v850
    %v1081 = vmul.f32 %v852, %v852
    %v1082 = vmul.f32 %v854, %v854
    %v1083 = vmul.f32 %v858, %v858
    %v1084 = vmul.f32 %v860, %v860
    %v1085 = vmul.f32 %v862, %v862
    %v1086 = vmul.f32 %v864, %v864
    %v1087 = vmul.f32 %v868, %v868
    %v1088 = vmul.f32 %v870, %v870
    %v1089 = vmul.f32 %v872, %v872
    %v1090 = vmul.f32 %v874, %v874
    %v1091 = vmul.f32 %v878, %v878
    %v1092 = vmul.f32 %v880, %v880
    %v1093 = vmul.f32 %v882, %v882
    %v1094 = vmul.f32 %v884, %v884
    %v1095 = vmul.f32 %v888, %v888
    %v1096 = vmul.f32 %v890, %v890
    %v1097 = vmul.f32 %v892, %v892
    %v1098 = vmul.f32 %v894, %v894
    %v1099 = vmul.f32 %v898, %v898
    %v1100 = vmul.f32 %v900, %v900
    %v1101 = vmul.f32 %v902, %v902
    %v1102 = vmul.f32 %v904, %v904
    %v1103 = vmul.f32 %v908, %v908
    %v1104 = vmul.f32 %v910, %v910
    %v1105 = vmul.f32 %v912, %v912
    %v1106 = vmul.f32 %v914, %v914
    %v1107 = vmul.f32 %v918, %v918
    %v1108 = vmul.f32 %v920, %v920
    %v1109 = vmul.f32 %v922, %v922
    %v1110 = vmul.f32 %v924, %v924
    %v1111 = vmul.f32 %v928, %v928
    %v1112 = vmul.f32 %v930, %v930
    %v1113 = vmul.f32 %v932, %v932
    %v1114 = vmul.f32 %v934, %v934
    %v1115 = vmul.f32 %v938, %v938
    %v1116 = vmul.f32 %v940, %v940
    %v1117 = vmul.f32 %v942, %v942
    %v1118 = vmul.f32 %v944, %v944
    %v1119 = vmul.f32 %v948, %v948
    %v1120 = vmul.f32 %v950, %v950
    %v1121 = vmul.f32 %v952, %v952
    %v1122 = vmul.f32 %v954, %v954
    %v1123 = vmul.f32 %v958, %v958
    %v1124 = vmul.f32 %v960, %v960
    %v1125 = vmul.f32 %v962, %v962
    %v1126 = vmul.f32 %v964, %v964
    %v1127 = vmul.f32 %v968, %v968
    %v1128 = vmul.f32 %v970, %v970
    %v1129 = vmul.f32 %v972, %v972
    %v1130 = vmul.f32 %v974, %v974
    %v1131 = vmul.f32 %v978, %v978
    %v1132 = vmul.f32 %v980, %v980
    %v1133 = vmul.f32 %v982, %v982
    %v1134 = vmul.f32 %v984, %v984
    %v1135 = vmul.f32 %v988, %v988
    %v1136 = vmul.f32 %v990, %v990
    %v1137 = vmul.f32 %v992, %v992
    %v1138 = vmul.f32 %v994, %v994
    %v1139 = vadd.f32 %v1075, %v1077
    %v1140 = vadd.f32 %v1139, %v1079
    %v1141 = vadd.f32 %v1140, %v1081
    %v1142 = vadd.f32 %v1141, %v1083
    %v1143 = vadd.f32 %v1142, %v1085
    %v1144 = vadd.f32 %v1143, %v1087
    %v1145 = vadd.f32 %v1144, %v1089
    %v1146 = vadd.f32 %v1145, %v1091
    %v1147 = vadd.f32 %v1146, %v1093
    %v1148 = vadd.f32 %v1147, %v1095
    %v1149 = vadd.f32 %v1148, %v1097
    %v1150 = vadd.f32 %v1149, %v1099
    %v1151 = vadd.f32 %v1150, %v1101
    %v1152 = vadd.f32 %v1151, %v1103
    %v1153 = vadd.f32 %v1152, %v1105
    %v1154 = vadd.f32 %v1153, %v1107
    %v1155 = vadd.f32 %v1154, %v1109
    %v1156 = vadd.f32 %v1155, %v1111
    %v1157 = vadd.f32 %v1156, %v1113
    %v1158 = vadd.f32 %v1157, %v1115
    %v1159 = vadd.f32 %v1158, %v1117
    %v1160 = vadd.f32 %v1159, %v1119
    %v1161 = vadd.f32 %v1160, %v1121
    %v1162 = vadd.f32 %v1161, %v1123
    %v1163 = vadd.f32 %v1162, %v1125
    %v1164 = vadd.f32 %v1163, %v1127
    %v1165 = vadd.f32 %v1164, %v1129
    %v1166 = vadd.f32 %v1165, %v1131
    %v1167 = vadd.f32 %v1166, %v1133
    %v1168 = vadd.f32 %v1167, %v1135
    %v1169 = vadd.f32 %v1168, %v1137
    %v1170 = vrot.slane %v1169, 4
    %v1171 = vadd.f32 %v1169, %v1170
    %v1172 = vrot.slane %v1171, 2
    %v1173 = vadd.f32 %v1171, %v1172
    %v1174 = vrot.slane %v1173, 1
    %v1175 = vadd.f32 %v1173, %v1174
    %v1176 = vadd.f32 %v1076, %v1078
    %v1177 = vadd.f32 %v1176, %v1080
    %v1178 = vadd.f32 %v1177, %v1082
    %v1179 = vadd.f32 %v1178, %v1084
    %v1180 = vadd.f32 %v1179, %v1086
    %v1181 = vadd.f32 %v1180, %v1088
    %v1182 = vadd.f32 %v1181, %v1090
    %v1183 = vadd.f32 %v1182, %v1092
    %v1184 = vadd.f32 %v1183, %v1094
    %v1185 = vadd.f32 %v1184, %v1096
    %v1186 = vadd.f32 %v1185, %v1098
    %v1187 = vadd.f32 %v1186, %v1100
    %v1188 = vadd.f32 %v1187, %v1102
    %v1189 = vadd.f32 %v1188, %v1104
    %v1190 = vadd.f32 %v1189, %v1106
    %v1191 = vadd.f32 %v1190, %v1108
    %v1192 = vadd.f32 %v1191, %v1110
    %v1193 = vadd.f32 %v1192, %v1112
    %v1194 = vadd.f32 %v1193, %v1114
    %v1195 = vadd.f32 %v1194, %v1116
    %v1196 = vadd.f32 %v1195, %v1118
    %v1197 = vadd.f32 %v1196, %v1120
    %v1198 = vadd.f32 %v1197, %v1122
    %v1199 = vadd.f32 %v1198, %v1124
    %v1200 = vadd.f32 %v1199, %v1126
    %v1201 = vadd.f32 %v1200, %v1128
    %v1202 = vadd.f32 %v1201, %v1130
    %v1203 = vadd.f32 %v1202, %v1132
    %v1204 = vadd.f32 %v1203, %v1134
    %v1205 = vadd.f32 %v1204, %v1136
    %v1206 = vadd.f32 %v1205, %v1138
    %v1207 = vrot.slane %v1206, 4
    %v1208 = vadd.f32 %v1206, %v1207
    %v1209 = vrot.slane %v1208, 2
    %v1210 = vadd.f32 %v1208, %v1209
    %v1211 = vrot.slane %v1210, 1
    %v1212 = vadd.f32 %v1210, %v1211
    %v1213 = vmul.f32 %v1175, %v1072
    %v1214 = vmul.f32 %v1212, %v1072
    %v1215 = vmul.f32 %v1073, %v1073
    %v1216 = vmul.f32 %v1074, %v1074
    %v1217 = vsub.f32 %v1213, %v1215
    %v1218 = vsub.f32 %v1214, %v1216
    %v1219 = vmax.f32 %v1217, 0.0
    %v1220 = vmax.f32 %v1218, 0.0
    %v1221 = vadd.f32 %v1219, 1e-05
    %v1222 = vadd.f32 %v1220, 1e-05
    %v1223 = vrsqrt.pop %v1221
    %v1224 = vrsqrt.pop %v1222
    %v1227 = vcombine.low %v1223, %v1224
    %v1229 = vunpack.c.l.s4 1966171168
    %v1230 = vunpack.c.0.s8 %v1229
    %v1231 = vlaneseq
    %v1232 = vshrl.u32 %v1231, 7
    %v1233 = vsub.s32 %v1230, %v1232
    %v1234 = vrot.slane %v1227, %v1233
    %v1236 = vunpack.c.l.s4 1966171168
    %v1237 = vunpack.c.0.s8 %v1236
    %v1238 = vlaneseq
    %v1239 = vshrl.u32 %v1238, 7
    %v1240 = vsub.s32 %v1237, %v1239
    %v1241 = vrot.slane %v1234, %v1240
    %v1243 = vmul.f32 %v996, %v1241
    %v1245 = vlaneseq
    %v1246 = vshrl.u32 %v1245, 7
    %v1247 = vsub.s32 0, %v1246
    %v1248 = vrot.slane %v1243, %v1247
    %v1249 = vlaneseq
    %v1250 = vshrl.u32 %v1249, 7
    %v1251 = vsub.s32 1, %v1250
    %v1252 = vrot.slane %v1243, %v1251
    %v1255 = vmul.f32 %v1073, %v1248
    %v1256 = vmul.f32 %v1074, %v1252
    %v1259 = vcombine.low %v1255, %v1256
    %v1261 = vunpack.c.l.s4 1966171168
    %v1262 = vunpack.c.0.s8 %v1261
    %v1263 = vlaneseq
    %v1264 = vshrl.u32 %v1263, 7
    %v1265 = vsub.s32 %v1262, %v1264
    %v1266 = vrot.slane %v1259, %v1265
    %v1268 = vunpack.c.l.s4 1966171168
    %v1269 = vunpack.c.0.s8 %v1268
    %v1270 = vlaneseq
    %v1271 = vshrl.u32 %v1270, 7
    %v1272 = vsub.s32 %v1269, %v1271
    %v1273 = vrot.slane %v1266, %v1272
    %v1275 = vsub.f32 %v997, %v1273
    %v1276 = vmul.f32 %v838, %v1248
    %v1277 = vmul.f32 %v840, %v1252
    %v1278 = vmul.f32 %v842, %v1248
    %v1279 = vmul.f32 %v844, %v1252
    %v1280 = vmul.f32 %v848, %v1248
    %v1281 = vmul.f32 %v850, %v1252
    %v1282 = vmul.f32 %v852, %v1248
    %v1283 = vmul.f32 %v854, %v1252
    %v1284 = vmul.f32 %v858, %v1248
    %v1285 = vmul.f32 %v860, %v1252
    %v1286 = vmul.f32 %v862, %v1248
    %v1287 = vmul.f32 %v864, %v1252
    %v1288 = vmul.f32 %v868, %v1248
    %v1289 = vmul.f32 %v870, %v1252
    %v1290 = vmul.f32 %v872, %v1248
    %v1291 = vmul.f32 %v874, %v1252
    %v1292 = vmul.f32 %v878, %v1248
    %v1293 = vmul.f32 %v880, %v1252
    %v1294 = vmul.f32 %v882, %v1248
    %v1295 = vmul.f32 %v884, %v1252
    %v1296 = vmul.f32 %v888, %v1248
    %v1297 = vmul.f32 %v890, %v1252
    %v1298 = vmul.f32 %v892, %v1248
    %v1299 = vmul.f32 %v894, %v1252
    %v1300 = vmul.f32 %v898, %v1248
    %v1301 = vmul.f32 %v900, %v1252
    %v1302 = vmul.f32 %v902, %v1248
    %v1303 = vmul.f32 %v904, %v1252
    %v1304 = vmul.f32 %v908, %v1248
    %v1305 = vmul.f32 %v910, %v1252
    %v1306 = vmul.f32 %v912, %v1248
    %v1307 = vmul.f32 %v914, %v1252
    %v1308 = vmul.f32 %v918, %v1248
    %v1309 = vmul.f32 %v920, %v1252
    %v1310 = vmul.f32 %v922, %v1248
    %v1311 = vmul.f32 %v924, %v1252
    %v1312 = vmul.f32 %v928, %v1248
    %v1313 = vmul.f32 %v930, %v1252
    %v1314 = vmul.f32 %v932, %v1248
    %v1315 = vmul.f32 %v934, %v1252
    %v1316 = vmul.f32 %v938, %v1248
    %v1317 = vmul.f32 %v940, %v1252
    %v1318 = vmul.f32 %v942, %v1248
    %v1319 = vmul.f32 %v944, %v1252
    %v1320 = vmul.f32 %v948, %v1248
    %v1321 = vmul.f32 %v950, %v1252
    %v1322 = vmul.f32 %v952, %v1248
    %v1323 = vmul.f32 %v954, %v1252
    %v1324 = vmul.f32 %v958, %v1248
    %v1325 = vmul.f32 %v960, %v1252
    %v1326 = vmul.f32 %v962, %v1248
    %v1327 = vmul.f32 %v964, %v1252
    %v1328 = vmul.f32 %v968, %v1248
    %v1329 = vmul.f32 %v970, %v1252
    %v1330 = vmul.f32 %v972, %v1248
    %v1331 = vmul.f32 %v974, %v1252
    %v1332 = vmul.f32 %v978, %v1248
    %v1333 = vmul.f32 %v980, %v1252
    %v1334 = vmul.f32 %v982, %v1248
    %v1335 = vmul.f32 %v984, %v1252
    %v1336 = vmul.f32 %v988, %v1248
    %v1337 = vmul.f32 %v990, %v1252
    %v1338 = vmul.f32 %v992, %v1248
    %v1339 = vmul.f32 %v994, %v1252
    %v1341 = vlaneseq
    %v1342 = vshrl.u32 %v1341, 7
    %v1343 = vsub.s32 0, %v1342
    %v1344 = vrot.slane %v1275, %v1343
    %v1345 = vlaneseq
    %v1346 = vshrl.u32 %v1345, 7
    %v1347 = vsub.s32 1, %v1346
    %v1348 = vrot.slane %v1275, %v1347
    %v1351 = vadd.f32 %v1276, %v1344
    %v1352 = vadd.f32 %v1277, %v1348
    %v1353 = vadd.f32 %v1278, %v1344
    %v1354 = vadd.f32 %v1279, %v1348
    %v1355 = vadd.f32 %v1280, %v1344
    %v1356 = vadd.f32 %v1281, %v1348
    %v1357 = vadd.f32 %v1282, %v1344
    %v1358 = vadd.f32 %v1283, %v1348
    %v1359 = vadd.f32 %v1284, %v1344
    %v1360 = vadd.f32 %v1285, %v1348
    %v1361 = vadd.f32 %v1286, %v1344
    %v1362 = vadd.f32 %v1287, %v1348
    %v1363 = vadd.f32 %v1288, %v1344
    %v1364 = vadd.f32 %v1289, %v1348
    %v1365 = vadd.f32 %v1290, %v1344
    %v1366 = vadd.f32 %v1291, %v1348
    %v1367 = vadd.f32 %v1292, %v1344
    %v1368 = vadd.f32 %v1293, %v1348
    %v1369 = vadd.f32 %v1294, %v1344
    %v1370 = vadd.f32 %v1295, %v1348
    %v1371 = vadd.f32 %v1296, %v1344
    %v1372 = vadd.f32 %v1297, %v1348
    %v1373 = vadd.f32 %v1298, %v1344
    %v1374 = vadd.f32 %v1299, %v1348
    %v1375 = vadd.f32 %v1300, %v1344
    %v1376 = vadd.f32 %v1301, %v1348
    %v1377 = vadd.f32 %v1302, %v1344
    %v1378 = vadd.f32 %v1303, %v1348
    %v1379 = vadd.f32 %v1304, %v1344
    %v1380 = vadd.f32 %v1305, %v1348
    %v1381 = vadd.f32 %v1306, %v1344
    %v1382 = vadd.f32 %v1307, %v1348
    %v1383 = vadd.f32 %v1308, %v1344
    %v1384 = vadd.f32 %v1309, %v1348
    %v1385 = vadd.f32 %v1310, %v1344
    %v1386 = vadd.f32 %v1311, %v1348
    %v1387 = vadd.f32 %v1312, %v1344
    %v1388 = vadd.f32 %v1313, %v1348
    %v1389 = vadd.f32 %v1314, %v1344
    %v1390 = vadd.f32 %v1315, %v1348
    %v1391 = vadd.f32 %v1316, %v1344
    %v1392 = vadd.f32 %v1317, %v1348
    %v1393 = vadd.f32 %v1318, %v1344
    %v1394 = vadd.f32 %v1319, %v1348
    %v1395 = vadd.f32 %v1320, %v1344
    %v1396 = vadd.f32 %v1321, %v1348
    %v1397 = vadd.f32 %v1322, %v1344
    %v1398 = vadd.f32 %v1323, %v1348
    %v1399 = vadd.f32 %v1324, %v1344
    %v1400 = vadd.f32 %v1325, %v1348
    %v1401 = vadd.f32 %v1326, %v1344
    %v1402 = vadd.f32 %v1327, %v1348
    %v1403 = vadd.f32 %v1328, %v1344
    %v1404 = vadd.f32 %v1329, %v1348
    %v1405 = vadd.f32 %v1330, %v1344
    %v1406 = vadd.f32 %v1331, %v1348
    %v1407 = vadd.f32 %v1332, %v1344
    %v1408 = vadd.f32 %v1333, %v1348
    %v1409 = vadd.f32 %v1334, %v1344
    %v1410 = vadd.f32 %v1335, %v1348
    %v1411 = vadd.f32 %v1336, %v1344
    %v1412 = vadd.f32 %v1337, %v1348
    %v1413 = vadd.f32 %v1338, %v1344
    %v1414 = vadd.f32 %v1339, %v1348
    %v1415 = vmul.f32 %v1351, 0.2
    %v1416 = vmul.f32 %v1352, 0.2
    %v1417 = vmul.f32 %v1353, 0.2
    %v1418 = vmul.f32 %v1354, 0.2
    %v1419 = vmul.f32 %v1355, 0.2
    %v1420 = vmul.f32 %v1356, 0.2
    %v1421 = vmul.f32 %v1357, 0.2
    %v1422 = vmul.f32 %v1358, 0.2
    %v1423 = vmul.f32 %v1359, 0.2
    %v1424 = vmul.f32 %v1360, 0.2
    %v1425 = vmul.f32 %v1361, 0.2
    %v1426 = vmul.f32 %v1362, 0.2
    %v1427 = vmul.f32 %v1363, 0.2
    %v1428 = vmul.f32 %v1364, 0.2
    %v1429 = vmul.f32 %v1365, 0.2
    %v1430 = vmul.f32 %v1366, 0.2
    %v1431 = vmul.f32 %v1367, 0.2
    %v1432 = vmul.f32 %v1368, 0.2
    %v1433 = vmul.f32 %v1369, 0.2
    %v1434 = vmul.f32 %v1370, 0.2
    %v1435 = vmul.f32 %v1371, 0.2
    %v1436 = vmul.f32 %v1372, 0.2
    %v1437 = vmul.f32 %v1373, 0.2
    %v1438 = vmul.f32 %v1374, 0.2
    %v1439 = vmul.f32 %v1375, 0.2
    %v1440 = vmul.f32 %v1376, 0.2
    %v1441 = vmul.f32 %v1377, 0.2
    %v1442 = vmul.f32 %v1378, 0.2
    %v1443 = vmul.f32 %v1379, 0.2
    %v1444 = vmul.f32 %v1380, 0.2
    %v1445 = vmul.f32 %v1381, 0.2
    %v1446 = vmul.f32 %v1382, 0.2
    %v1447 = vmul.f32 %v1383, 0.2
    %v1448 = vmul.f32 %v1384, 0.2
    %v1449 = vmul.f32 %v1385, 0.2
    %v1450 = vmul.f32 %v1386, 0.2
    %v1451 = vmul.f32 %v1387, 0.2
    %v1452 = vmul.f32 %v1388, 0.2
    %v1453 = vmul.f32 %v1389, 0.2
    %v1454 = vmul.f32 %v1390, 0.2
    %v1455 = vmul.f32 %v1391, 0.2
    %v1456 = vmul.f32 %v1392, 0.2
    %v1457 = vmul.f32 %v1393, 0.2
    %v1458 = vmul.f32 %v1394, 0.2
    %v1459 = vmul.f32 %v1395, 0.2
    %v1460 = vmul.f32 %v1396, 0.2
    %v1461 = vmul.f32 %v1397, 0.2
    %v1462 = vmul.f32 %v1398, 0.2
    %v1463 = vmul.f32 %v1399, 0.2
    %v1464 = vmul.f32 %v1400, 0.2
    %v1465 = vmul.f32 %v1401, 0.2
    %v1466 = vmul.f32 %v1402, 0.2
    %v1467 = vmul.f32 %v1403, 0.2
    %v1468 = vmul.f32 %v1404, 0.2
    %v1469 = vmul.f32 %v1405, 0.2
    %v1470 = vmul.f32 %v1406, 0.2
    %v1471 = vmul.f32 %v1407, 0.2
    %v1472 = vmul.f32 %v1408, 0.2
    %v1473 = vmul.f32 %v1409, 0.2
    %v1474 = vmul.f32 %v1410, 0.2
    %v1475 = vmul.f32 %v1411, 0.2
    %v1476 = vmul.f32 %v1412, 0.2
    %v1477 = vmul.f32 %v1413, 0.2
    %v1478 = vmul.f32 %v1414, 0.2
    %v1479 = vmax.f32 %v1351, %v1415
    %v1480 = vmax.f32 %v1352, %v1416
    %v1481 = vmax.f32 %v1353, %v1417
    %v1482 = vmax.f32 %v1354, %v1418
    %v1483 = vmax.f32 %v1355, %v1419
    %v1484 = vmax.f32 %v1356, %v1420
    %v1485 = vmax.f32 %v1357, %v1421
    %v1486 = vmax.f32 %v1358, %v1422
    %v1487 = vmax.f32 %v1359, %v1423
    %v1488 = vmax.f32 %v1360, %v1424
    %v1489 = vmax.f32 %v1361, %v1425
    %v1490 = vmax.f32 %v1362, %v1426
    %v1491 = vmax.f32 %v1363, %v1427
    %v1492 = vmax.f32 %v1364, %v1428
    %v1493 = vmax.f32 %v1365, %v1429
    %v1494 = vmax.f32 %v1366, %v1430
    %v1495 = vmax.f32 %v1367, %v1431
    %v1496 = vmax.f32 %v1368, %v1432
    %v1497 = vmax.f32 %v1369, %v1433
    %v1498 = vmax.f32 %v1370, %v1434
    %v1499 = vmax.f32 %v1371, %v1435
    %v1500 = vmax.f32 %v1372, %v1436
    %v1501 = vmax.f32 %v1373, %v1437
    %v1502 = vmax.f32 %v1374, %v1438
    %v1503 = vmax.f32 %v1375, %v1439
    %v1504 = vmax.f32 %v1376, %v1440
    %v1505 = vmax.f32 %v1377, %v1441
    %v1506 = vmax.f32 %v1378, %v1442
    %v1507 = vmax.f32 %v1379, %v1443
    %v1508 = vmax.f32 %v1380, %v1444
    %v1509 = vmax.f32 %v1381, %v1445
    %v1510 = vmax.f32 %v1382, %v1446
    %v1511 = vmax.f32 %v1383, %v1447
    %v1512 = vmax.f32 %v1384, %v1448
    %v1513 = vmax.f32 %v1385, %v1449
    %v1514 = vmax.f32 %v1386, %v1450
    %v1515 = vmax.f32 %v1387, %v1451
    %v1516 = vmax.f32 %v1388, %v1452
    %v1517 = vmax.f32 %v1389, %v1453
    %v1518 = vmax.f32 %v1390, %v1454
    %v1519 = vmax.f32 %v1391, %v1455
    %v1520 = vmax.f32 %v1392, %v1456
    %v1521 = vmax.f32 %v1393, %v1457
    %v1522 = vmax.f32 %v1394, %v1458
    %v1523 = vmax.f32 %v1395, %v1459
    %v1524 = vmax.f32 %v1396, %v1460
    %v1525 = vmax.f32 %v1397, %v1461
    %v1526 = vmax.f32 %v1398, %v1462
    %v1527 = vmax.f32 %v1399, %v1463
    %v1528 = vmax.f32 %v1400, %v1464
    %v1529 = vmax.f32 %v1401, %v1465
    %v1530 = vmax.f32 %v1402, %v1466
    %v1531 = vmax.f32 %v1403, %v1467
    %v1532 = vmax.f32 %v1404, %v1468
    %v1533 = vmax.f32 %v1405, %v1469
    %v1534 = vmax.f32 %v1406, %v1470
    %v1535 = vmax.f32 %v1407, %v1471
    %v1536 = vmax.f32 %v1408, %v1472
    %v1537 = vmax.f32 %v1409, %v1473
    %v1538 = vmax.f32 %v1410, %v1474
    %v1539 = vmax.f32 %v1411, %v1475
    %v1540 = vmax.f32 %v1412, %v1476
    %v1541 = vmax.f32 %v1413, %v1477
    %v1542 = vmax.f32 %v1414, %v1478
    %s1543 = smul.u32 4, 32
    %s1544 = smul.u32 %s1543, 4
    %s1545 = sshll.u32 %s1544, 4
    %1546 = dma.done [#allocation5], %s1545
    %v1547 = vpack.c.bf16 %v1481, %v1479
    %v1548 = vpack.c.bf16 %v1482, %v1480
    %v1549 = vpack.c.bf16 %v1485, %v1483
    %v1550 = vpack.c.bf16 %v1486, %v1484
    %v1551 = vpack.c.bf16 %v1489, %v1487
    %v1552 = vpack.c.bf16 %v1490, %v1488
    %v1553 = vpack.c.bf16 %v1493, %v1491
    %v1554 = vpack.c.bf16 %v1494, %v1492
    %v1555 = vpack.c.bf16 %v1497, %v1495
    %v1556 = vpack.c.bf16 %v1498, %v1496
    %v1557 = vpack.c.bf16 %v1501, %v1499
    %v1558 = vpack.c.bf16 %v1502, %v1500
    %v1559 = vpack.c.bf16 %v1505, %v1503
    %v1560 = vpack.c.bf16 %v1506, %v1504
    %v1561 = vpack.c.bf16 %v1509, %v1507
    %v1562 = vpack.c.bf16 %v1510, %v1508
    %v1563 = vpack.c.bf16 %v1513, %v1511
    %v1564 = vpack.c.bf16 %v1514, %v1512
    %v1565 = vpack.c.bf16 %v1517, %v1515
    %v1566 = vpack.c.bf16 %v1518, %v1516
    %v1567 = vpack.c.bf16 %v1521, %v1519
    %v1568 = vpack.c.bf16 %v1522, %v1520
    %v1569 = vpack.c.bf16 %v1525, %v1523
    %v1570 = vpack.c.bf16 %v1526, %v1524
    %v1571 = vpack.c.bf16 %v1529, %v1527
    %v1572 = vpack.c.bf16 %v1530, %v1528
    %v1573 = vpack.c.bf16 %v1533, %v1531
    %v1574 = vpack.c.bf16 %v1534, %v1532
    %v1575 = vpack.c.bf16 %v1537, %v1535
    %v1576 = vpack.c.bf16 %v1538, %v1536
    %v1577 = vpack.c.bf16 %v1541, %v1539
    %v1578 = vpack.c.bf16 %v1542, %v1540
    %v1579 = vld [vmem:[#allocation2] sm:$0xff]
    %v1580 = vld [vmem:[#allocation2 + $0x8] sm:$0xff]
    %v1581 = vld [vmem:[#allocation2 + $0x10] sm:$0xff]
    %v1582 = vld [vmem:[#allocation2 + $0x18] sm:$0xff]
    %v1583 = vld [vmem:[#allocation2 + $0x20] sm:$0xff]
    %v1584 = vld [vmem:[#allocation2 + $0x28] sm:$0xff]
    %v1585 = vld [vmem:[#allocation2 + $0x30] sm:$0xff]
    %v1586 = vld [vmem:[#allocation2 + $0x38] sm:$0xff]
    %v1587 = vld [vmem:[#allocation2 + $0x40] sm:$0xff]
    %v1588 = vld [vmem:[#allocation2 + $0x48] sm:$0xff]
    %v1589 = vld [vmem:[#allocation2 + $0x50] sm:$0xff]
    %v1590 = vld [vmem:[#allocation2 + $0x58] sm:$0xff]
    %v1591 = vld [vmem:[#allocation2 + $0x60] sm:$0xff]
    %v1592 = vld [vmem:[#allocation2 + $0x68] sm:$0xff]
    %v1593 = vld [vmem:[#allocation2 + $0x70] sm:$0xff]
    %v1594 = vld [vmem:[#allocation2 + $0x78] sm:$0xff]
    %v1595 = vld [vmem:[#allocation2 + $0x80] sm:$0xff]
    %v1596 = vld [vmem:[#allocation2 + $0x88] sm:$0xff]
    %v1597 = vld [vmem:[#allocation2 + $0x90] sm:$0xff]
    %v1598 = vld [vmem:[#allocation2 + $0x98] sm:$0xff]
    %v1599 = vld [vmem:[#allocation2 + $0xa0] sm:$0xff]
    %v1600 = vld [vmem:[#allocation2 + $0xa8] sm:$0xff]
    %v1601 = vld [vmem:[#allocation2 + $0xb0] sm:$0xff]
    %v1602 = vld [vmem:[#allocation2 + $0xb8] sm:$0xff]
    %v1603 = vld [vmem:[#allocation2 + $0xc0] sm:$0xff]
    %v1604 = vld [vmem:[#allocation2 + $0xc8] sm:$0xff]
    %v1605 = vld [vmem:[#allocation2 + $0xd0] sm:$0xff]
    %v1606 = vld [vmem:[#allocation2 + $0xd8] sm:$0xff]
    %v1607 = vld [vmem:[#allocation2 + $0xe0] sm:$0xff]
    %v1608 = vld [vmem:[#allocation2 + $0xe8] sm:$0xff]
    %v1609 = vld [vmem:[#allocation2 + $0xf0] sm:$0xff]
    %v1610 = vld [vmem:[#allocation2 + $0xf8] sm:$0xff]
    %v1611 = vld [vmem:[#allocation2 + $0x100] sm:$0xff]
    %v1612 = vld [vmem:[#allocation2 + $0x108] sm:$0xff]
    %v1613 = vld [vmem:[#allocation2 + $0x110] sm:$0xff]
    %v1614 = vld [vmem:[#allocation2 + $0x118] sm:$0xff]
    %v1615 = vld [vmem:[#allocation2 + $0x120] sm:$0xff]
    %v1616 = vld [vmem:[#allocation2 + $0x128] sm:$0xff]
    %v1617 = vld [vmem:[#allocation2 + $0x130] sm:$0xff]
    %v1618 = vld [vmem:[#allocation2 + $0x138] sm:$0xff]
    %v1619 = vld [vmem:[#allocation2 + $0x140] sm:$0xff]
    %v1620 = vld [vmem:[#allocation2 + $0x148] sm:$0xff]
    %v1621 = vld [vmem:[#allocation2 + $0x150] sm:$0xff]
    %v1622 = vld [vmem:[#allocation2 + $0x158] sm:$0xff]
    %v1623 = vld [vmem:[#allocation2 + $0x160] sm:$0xff]
    %v1624 = vld [vmem:[#allocation2 + $0x168] sm:$0xff]
    %v1625 = vld [vmem:[#allocation2 + $0x170] sm:$0xff]
    %v1626 = vld [vmem:[#allocation2 + $0x178] sm:$0xff]
    %v1627 = vld [vmem:[#allocation2 + $0x180] sm:$0xff]
    %v1628 = vld [vmem:[#allocation2 + $0x188] sm:$0xff]
    %v1629 = vld [vmem:[#allocation2 + $0x190] sm:$0xff]
    %v1630 = vld [vmem:[#allocation2 + $0x198] sm:$0xff]
    %v1631 = vld [vmem:[#allocation2 + $0x1a0] sm:$0xff]
    %v1632 = vld [vmem:[#allocation2 + $0x1a8] sm:$0xff]
    %v1633 = vld [vmem:[#allocation2 + $0x1b0] sm:$0xff]
    %v1634 = vld [vmem:[#allocation2 + $0x1b8] sm:$0xff]
    %v1635 = vld [vmem:[#allocation2 + $0x1c0] sm:$0xff]
    %v1636 = vld [vmem:[#allocation2 + $0x1c8] sm:$0xff]
    %v1637 = vld [vmem:[#allocation2 + $0x1d0] sm:$0xff]
    %v1638 = vld [vmem:[#allocation2 + $0x1d8] sm:$0xff]
    %v1639 = vld [vmem:[#allocation2 + $0x1e0] sm:$0xff]
    %v1640 = vld [vmem:[#allocation2 + $0x1e8] sm:$0xff]
    %v1641 = vld [vmem:[#allocation2 + $0x1f0] sm:$0xff]
    %v1642 = vld [vmem:[#allocation2 + $0x1f8] sm:$0xff]
    %1643 = vmatprep.subr.bf16.mxu0 %v1580
    %1644 = vmatpush1.bf16.msra.mxu0 %v1579
    %1645 = vmatprep.subr.bf16.mxu0 %v1584
    %1646 = vmatpush1.bf16.msra.mxu0 %v1583
    %1647 = vmatprep.subr.bf16.mxu0 %v1588
    %1648 = vmatpush1.bf16.msra.mxu0 %v1587
    %1649 = vmatprep.subr.bf16.mxu0 %v1592
    %1650 = vmatpush1.bf16.msra.mxu0 %v1591
    %1651 = vmatprep.subr.bf16.mxu0 %v1596
    %1652 = vmatpush1.bf16.msra.mxu0 %v1595
    %1653 = vmatprep.subr.bf16.mxu0 %v1600
    %1654 = vmatpush1.bf16.msra.mxu0 %v1599
    %1655 = vmatprep.subr.bf16.mxu0 %v1604
    %1656 = vmatpush1.bf16.msra.mxu0 %v1603
    %1657 = vmatprep.subr.bf16.mxu0 %v1608
    %1658 = vmatpush1.bf16.msra.mxu0 %v1607
    %1659 = vmatprep.subr.bf16.mxu0 %v1612
    %1660 = vmatpush1.bf16.msra.mxu0 %v1611
    %1661 = vmatprep.subr.bf16.mxu0 %v1616
    %1662 = vmatpush1.bf16.msra.mxu0 %v1615
    %1663 = vmatprep.subr.bf16.mxu0 %v1620
    %1664 = vmatpush1.bf16.msra.mxu0 %v1619
    %1665 = vmatprep.subr.bf16.mxu0 %v1624
    %1666 = vmatpush1.bf16.msra.mxu0 %v1623
    %1667 = vmatprep.subr.bf16.mxu0 %v1628
    %1668 = vmatpush1.bf16.msra.mxu0 %v1627
    %1669 = vmatprep.subr.bf16.mxu0 %v1632
    %1670 = vmatpush1.bf16.msra.mxu0 %v1631
    %1671 = vmatprep.subr.bf16.mxu0 %v1636
    %1672 = vmatpush1.bf16.msra.mxu0 %v1635
    %1673 = vmatprep.subr.bf16.mxu0 %v1640
    %1674 = vmatpush1.bf16.msra.mxu0 %v1639
    %1675 = vmatprep.mubr.bf16.mxu0 %v1548
    %1676 = vmatmul.mubr.bf16.gmra.mrb[0].mxu0 %v1547
    %v1677 = vpop.f32.mrb[0].mxu0
    %v1678 = vadd.f32 0.0, %v1677
    %v1679 = vpop.f32.mrb[0].mxu0
    %v1680 = vadd.f32 0.0, %v1679
    %v1681 = vpop.f32.mrb[0].mxu0
    %v1682 = vadd.f32 0.0, %v1681
    %v1683 = vpop.f32.mrb[0].mxu0
    %v1684 = vadd.f32 0.0, %v1683
    %1685 = vmatprep.mubr.bf16.mxu0 %v1550
    %1686 = vmatmul.mubr.bf16.gmra.mrb[0].mxu0 %v1549
    %v1687 = vpop.f32.mrb[0].mxu0
    %v1688 = vadd.f32 0.0, %v1687
    %v1689 = vpop.f32.mrb[0].mxu0
    %v1690 = vadd.f32 0.0, %v1689
    %v1691 = vpop.f32.mrb[0].mxu0
    %v1692 = vadd.f32 0.0, %v1691
    %v1693 = vpop.f32.mrb[0].mxu0
    %v1694 = vadd.f32 0.0, %v1693
    %1695 = vmatprep.mubr.bf16.mxu0 %v1552
    %1696 = vmatmul.mubr.bf16.gmra.mrb[0].mxu0 %v1551
    %v1697 = vpop.f32.mrb[0].mxu0
    %v1698 = vadd.f32 0.0, %v1697
    %v1699 = vpop.f32.mrb[0].mxu0
    %v1700 = vadd.f32 0.0, %v1699
    %v1701 = vpop.f32.mrb[0].mxu0
    %v1702 = vadd.f32 0.0, %v1701
    %v1703 = vpop.f32.mrb[0].mxu0
    %v1704 = vadd.f32 0.0, %v1703
    %1705 = vmatprep.mubr.bf16.mxu0 %v1554
    %1706 = vmatmul.mubr.bf16.gmra.mrb[0].mxu0 %v1553
    %v1707 = vpop.f32.mrb[0].mxu0
    %v1708 = vadd.f32 0.0, %v1707
    %v1709 = vpop.f32.mrb[0].mxu0
    %v1710 = vadd.f32 0.0, %v1709
    %v1711 = vpop.f32.mrb[0].mxu0
    %v1712 = vadd.f32 0.0, %v1711
    %v1713 = vpop.f32.mrb[0].mxu0
    %v1714 = vadd.f32 0.0, %v1713
    %1715 = vmatprep.mubr.bf16.mxu0 %v1556
    %1716 = vmatmul.mubr.bf16.gmra.mrb[0].mxu0 %v1555
    %v1717 = vpop.f32.mrb[0].mxu0
    %v1718 = vadd.f32 0.0, %v1717
    %v1719 = vpop.f32.mrb[0].mxu0
    %v1720 = vadd.f32 0.0, %v1719
    %v1721 = vpop.f32.mrb[0].mxu0
    %v1722 = vadd.f32 0.0, %v1721
    %v1723 = vpop.f32.mrb[0].mxu0
    %v1724 = vadd.f32 0.0, %v1723
    %1725 = vmatprep.mubr.bf16.mxu0 %v1558
    %1726 = vmatmul.mubr.bf16.gmra.mrb[0].mxu0 %v1557
    %v1727 = vpop.f32.mrb[0].mxu0
    %v1728 = vadd.f32 0.0, %v1727
    %v1729 = vpop.f32.mrb[0].mxu0
    %v1730 = vadd.f32 0.0, %v1729
    %v1731 = vpop.f32.mrb[0].mxu0
    %v1732 = vadd.f32 0.0, %v1731
    %v1733 = vpop.f32.mrb[0].mxu0
    %v1734 = vadd.f32 0.0, %v1733
    %1735 = vmatprep.mubr.bf16.mxu0 %v1560
    %1736 = vmatmul.mubr.bf16.gmra.mrb[0].mxu0 %v1559
    %v1737 = vpop.f32.mrb[0].mxu0
    %v1738 = vadd.f32 0.0, %v1737
    %v1739 = vpop.f32.mrb[0].mxu0
    %v1740 = vadd.f32 0.0, %v1739
    %v1741 = vpop.f32.mrb[0].mxu0
    %v1742 = vadd.f32 0.0, %v1741
    %v1743 = vpop.f32.mrb[0].mxu0
    %v1744 = vadd.f32 0.0, %v1743
    %1745 = vmatprep.mubr.bf16.mxu0 %v1562
    %1746 = vmatmul.mubr.bf16.gmra.mrb[0].mxu0 %v1561
    %v1747 = vpop.f32.mrb[0].mxu0
    %v1748 = vadd.f32 0.0, %v1747
    %v1749 = vpop.f32.mrb[0].mxu0
    %v1750 = vadd.f32 0.0, %v1749
    %v1751 = vpop.f32.mrb[0].mxu0
    %v1752 = vadd.f32 0.0, %v1751
    %v1753 = vpop.f32.mrb[0].mxu0
    %v1754 = vadd.f32 0.0, %v1753
    %1755 = vmatprep.mubr.bf16.mxu0 %v1564
    %1756 = vmatmul.mubr.bf16.gmra.mrb[0].mxu0 %v1563
    %v1757 = vpop.f32.mrb[0].mxu0
    %v1758 = vadd.f32 0.0, %v1757
    %v1759 = vpop.f32.mrb[0].mxu0
    %v1760 = vadd.f32 0.0, %v1759
    %v1761 = vpop.f32.mrb[0].mxu0
    %v1762 = vadd.f32 0.0, %v1761
    %v1763 = vpop.f32.mrb[0].mxu0
    %v1764 = vadd.f32 0.0, %v1763
    %1765 = vmatprep.mubr.bf16.mxu0 %v1566
    %1766 = vmatmul.mubr.bf16.gmra.mrb[0].mxu0 %v1565
    %v1767 = vpop.f32.mrb[0].mxu0
    %v1768 = vadd.f32 0.0, %v1767
    %v1769 = vpop.f32.mrb[0].mxu0
    %v1770 = vadd.f32 0.0, %v1769
    %v1771 = vpop.f32.mrb[0].mxu0
    %v1772 = vadd.f32 0.0, %v1771
    %v1773 = vpop.f32.mrb[0].mxu0
    %v1774 = vadd.f32 0.0, %v1773
    %1775 = vmatprep.mubr.bf16.mxu0 %v1568
    %1776 = vmatmul.mubr.bf16.gmra.mrb[0].mxu0 %v1567
    %v1777 = vpop.f32.mrb[0].mxu0
    %v1778 = vadd.f32 0.0, %v1777
    %v1779 = vpop.f32.mrb[0].mxu0
    %v1780 = vadd.f32 0.0, %v1779
    %v1781 = vpop.f32.mrb[0].mxu0
    %v1782 = vadd.f32 0.0, %v1781
    %v1783 = vpop.f32.mrb[0].mxu0
    %v1784 = vadd.f32 0.0, %v1783
    %1785 = vmatprep.mubr.bf16.mxu0 %v1570
    %1786 = vmatmul.mubr.bf16.gmra.mrb[0].mxu0 %v1569
    %v1787 = vpop.f32.mrb[0].mxu0
    %v1788 = vadd.f32 0.0, %v1787
    %v1789 = vpop.f32.mrb[0].mxu0
    %v1790 = vadd.f32 0.0, %v1789
    %v1791 = vpop.f32.mrb[0].mxu0
    %v1792 = vadd.f32 0.0, %v1791
    %v1793 = vpop.f32.mrb[0].mxu0
    %v1794 = vadd.f32 0.0, %v1793
    %1795 = vmatprep.mubr.bf16.mxu0 %v1572
    %1796 = vmatmul.mubr.bf16.gmra.mrb[0].mxu0 %v1571
    %v1797 = vpop.f32.mrb[0].mxu0
    %v1798 = vadd.f32 0.0, %v1797
    %v1799 = vpop.f32.mrb[0].mxu0
    %v1800 = vadd.f32 0.0, %v1799
    %v1801 = vpop.f32.mrb[0].mxu0
    %v1802 = vadd.f32 0.0, %v1801
    %v1803 = vpop.f32.mrb[0].mxu0
    %v1804 = vadd.f32 0.0, %v1803
    %1805 = vmatprep.mubr.bf16.mxu0 %v1574
    %1806 = vmatmul.mubr.bf16.gmra.mrb[0].mxu0 %v1573
    %v1807 = vpop.f32.mrb[0].mxu0
    %v1808 = vadd.f32 0.0, %v1807
    %v1809 = vpop.f32.mrb[0].mxu0
    %v1810 = vadd.f32 0.0, %v1809
    %v1811 = vpop.f32.mrb[0].mxu0
    %v1812 = vadd.f32 0.0, %v1811
    %v1813 = vpop.f32.mrb[0].mxu0
    %v1814 = vadd.f32 0.0, %v1813
    %1815 = vmatprep.mubr.bf16.mxu0 %v1576
    %1816 = vmatmul.mubr.bf16.gmra.mrb[0].mxu0 %v1575
    %v1817 = vpop.f32.mrb[0].mxu0
    %v1818 = vadd.f32 0.0, %v1817
    %v1819 = vpop.f32.mrb[0].mxu0
    %v1820 = vadd.f32 0.0, %v1819
    %v1821 = vpop.f32.mrb[0].mxu0
    %v1822 = vadd.f32 0.0, %v1821
    %v1823 = vpop.f32.mrb[0].mxu0
    %v1824 = vadd.f32 0.0, %v1823
    %1825 = vmatprep.mubr.bf16.mxu0 %v1578
    %1826 = vmatmul.mubr.bf16.gmra.mrb[0].mxu0 %v1577
    %v1827 = vpop.f32.mrb[0].mxu0
    %v1828 = vadd.f32 0.0, %v1827
    %v1829 = vpop.f32.mrb[0].mxu0
    %v1830 = vadd.f32 0.0, %v1829
    %v1831 = vpop.f32.mrb[0].mxu0
    %v1832 = vadd.f32 0.0, %v1831
    %v1833 = vpop.f32.mrb[0].mxu0
    %v1834 = vadd.f32 0.0, %v1833
    %1835 = vdwg.mxu0
    %1836 = vmatprep.subr.bf16.mxu0 %v1582
    %1837 = vmatpush1.bf16.msra.mxu0 %v1581
    %1838 = vmatprep.subr.bf16.mxu0 %v1586
    %1839 = vmatpush1.bf16.msra.mxu0 %v1585
    %1840 = vmatprep.subr.bf16.mxu0 %v1590
    %1841 = vmatpush1.bf16.msra.mxu0 %v1589
    %1842 = vmatprep.subr.bf16.mxu0 %v1594
    %1843 = vmatpush1.bf16.msra.mxu0 %v1593
    %1844 = vmatprep.subr.bf16.mxu0 %v1598
    %1845 = vmatpush1.bf16.msra.mxu0 %v1597
    %1846 = vmatprep.subr.bf16.mxu0 %v1602
    %1847 = vmatpush1.bf16.msra.mxu0 %v1601
    %1848 = vmatprep.subr.bf16.mxu0 %v1606
    %1849 = vmatpush1.bf16.msra.mxu0 %v1605
    %1850 = vmatprep.subr.bf16.mxu0 %v1610
    %1851 = vmatpush1.bf16.msra.mxu0 %v1609
    %1852 = vmatprep.subr.bf16.mxu0 %v1614
    %1853 = vmatpush1.bf16.msra.mxu0 %v1613
    %1854 = vmatprep.subr.bf16.mxu0 %v1618
    %1855 = vmatpush1.bf16.msra.mxu0 %v1617
    %1856 = vmatprep.subr.bf16.mxu0 %v1622
    %1857 = vmatpush1.bf16.msra.mxu0 %v1621
    %1858 = vmatprep.subr.bf16.mxu0 %v1626
    %1859 = vmatpush1.bf16.msra.mxu0 %v1625
    %1860 = vmatprep.subr.bf16.mxu0 %v1630
    %1861 = vmatpush1.bf16.msra.mxu0 %v1629
    %1862 = vmatprep.subr.bf16.mxu0 %v1634
    %1863 = vmatpush1.bf16.msra.mxu0 %v1633
    %1864 = vmatprep.subr.bf16.mxu0 %v1638
    %1865 = vmatpush1.bf16.msra.mxu0 %v1637
    %1866 = vmatprep.subr.bf16.mxu0 %v1642
    %1867 = vmatpush1.bf16.msra.mxu0 %v1641
    %1868 = vmatprep.mubr.bf16.mxu0 %v1548
    %1869 = vmatmul.mubr.bf16.gmra.mrb[0].mxu0 %v1547
    %v1870 = vpop.f32.mrb[0].mxu0
    %v1871 = vadd.f32 0.0, %v1870
    %v1872 = vpop.f32.mrb[0].mxu0
    %v1873 = vadd.f32 0.0, %v1872
    %v1874 = vpop.f32.mrb[0].mxu0
    %v1875 = vadd.f32 0.0, %v1874
    %v1876 = vpop.f32.mrb[0].mxu0
    %v1877 = vadd.f32 0.0, %v1876
    %1878 = vmatprep.mubr.bf16.mxu0 %v1550
    %1879 = vmatmul.mubr.bf16.gmra.mrb[0].mxu0 %v1549
    %v1880 = vpop.f32.mrb[0].mxu0
    %v1881 = vadd.f32 0.0, %v1880
    %v1882 = vpop.f32.mrb[0].mxu0
    %v1883 = vadd.f32 0.0, %v1882
    %v1884 = vpop.f32.mrb[0].mxu0
    %v1885 = vadd.f32 0.0, %v1884
    %v1886 = vpop.f32.mrb[0].mxu0
    %v1887 = vadd.f32 0.0, %v1886
    %1888 = vmatprep.mubr.bf16.mxu0 %v1552
    %1889 = vmatmul.mubr.bf16.gmra.mrb[0].mxu0 %v1551
    %v1890 = vpop.f32.mrb[0].mxu0
    %v1891 = vadd.f32 0.0, %v1890
    %v1892 = vpop.f32.mrb[0].mxu0
    %v1893 = vadd.f32 0.0, %v1892
    %v1894 = vpop.f32.mrb[0].mxu0
    %v1895 = vadd.f32 0.0, %v1894
    %v1896 = vpop.f32.mrb[0].mxu0
    %v1897 = vadd.f32 0.0, %v1896
    %1898 = vmatprep.mubr.bf16.mxu0 %v1554
    %1899 = vmatmul.mubr.bf16.gmra.mrb[0].mxu0 %v1553
    %v1900 = vpop.f32.mrb[0].mxu0
    %v1901 = vadd.f32 0.0, %v1900
    %v1902 = vpop.f32.mrb[0].mxu0
    %v1903 = vadd.f32 0.0, %v1902
    %v1904 = vpop.f32.mrb[0].mxu0
    %v1905 = vadd.f32 0.0, %v1904
    %v1906 = vpop.f32.mrb[0].mxu0
    %v1907 = vadd.f32 0.0, %v1906
    %1908 = vmatprep.mubr.bf16.mxu0 %v1556
    %1909 = vmatmul.mubr.bf16.gmra.mrb[0].mxu0 %v1555
    %v1910 = vpop.f32.mrb[0].mxu0
    %v1911 = vadd.f32 0.0, %v1910
    %v1912 = vpop.f32.mrb[0].mxu0
    %v1913 = vadd.f32 0.0, %v1912
    %v1914 = vpop.f32.mrb[0].mxu0
    %v1915 = vadd.f32 0.0, %v1914
    %v1916 = vpop.f32.mrb[0].mxu0
    %v1917 = vadd.f32 0.0, %v1916
    %1918 = vmatprep.mubr.bf16.mxu0 %v1558
    %1919 = vmatmul.mubr.bf16.gmra.mrb[0].mxu0 %v1557
    %v1920 = vpop.f32.mrb[0].mxu0
    %v1921 = vadd.f32 0.0, %v1920
    %v1922 = vpop.f32.mrb[0].mxu0
    %v1923 = vadd.f32 0.0, %v1922
    %v1924 = vpop.f32.mrb[0].mxu0
    %v1925 = vadd.f32 0.0, %v1924
    %v1926 = vpop.f32.mrb[0].mxu0
    %v1927 = vadd.f32 0.0, %v1926
    %1928 = vmatprep.mubr.bf16.mxu0 %v1560
    %1929 = vmatmul.mubr.bf16.gmra.mrb[0].mxu0 %v1559
    %v1930 = vpop.f32.mrb[0].mxu0
    %v1931 = vadd.f32 0.0, %v1930
    %v1932 = vpop.f32.mrb[0].mxu0
    %v1933 = vadd.f32 0.0, %v1932
    %v1934 = vpop.f32.mrb[0].mxu0
    %v1935 = vadd.f32 0.0, %v1934
    %v1936 = vpop.f32.mrb[0].mxu0
    %v1937 = vadd.f32 0.0, %v1936
    %1938 = vmatprep.mubr.bf16.mxu0 %v1562
    %1939 = vmatmul.mubr.bf16.gmra.mrb[0].mxu0 %v1561
    %v1940 = vpop.f32.mrb[0].mxu0
    %v1941 = vadd.f32 0.0, %v1940
    %v1942 = vpop.f32.mrb[0].mxu0
    %v1943 = vadd.f32 0.0, %v1942
    %v1944 = vpop.f32.mrb[0].mxu0
    %v1945 = vadd.f32 0.0, %v1944
    %v1946 = vpop.f32.mrb[0].mxu0
    %v1947 = vadd.f32 0.0, %v1946
    %1948 = vmatprep.mubr.bf16.mxu0 %v1564
    %1949 = vmatmul.mubr.bf16.gmra.mrb[0].mxu0 %v1563
    %v1950 = vpop.f32.mrb[0].mxu0
    %v1951 = vadd.f32 0.0, %v1950
    %v1952 = vpop.f32.mrb[0].mxu0
    %v1953 = vadd.f32 0.0, %v1952
    %v1954 = vpop.f32.mrb[0].mxu0
    %v1955 = vadd.f32 0.0, %v1954
    %v1956 = vpop.f32.mrb[0].mxu0
    %v1957 = vadd.f32 0.0, %v1956
    %1958 = vmatprep.mubr.bf16.mxu0 %v1566
    %1959 = vmatmul.mubr.bf16.gmra.mrb[0].mxu0 %v1565
    %v1960 = vpop.f32.mrb[0].mxu0
    %v1961 = vadd.f32 0.0, %v1960
    %v1962 = vpop.f32.mrb[0].mxu0
    %v1963 = vadd.f32 0.0, %v1962
    %v1964 = vpop.f32.mrb[0].mxu0
    %v1965 = vadd.f32 0.0, %v1964
    %v1966 = vpop.f32.mrb[0].mxu0
    %v1967 = vadd.f32 0.0, %v1966
    %1968 = vmatprep.mubr.bf16.mxu0 %v1568
    %1969 = vmatmul.mubr.bf16.gmra.mrb[0].mxu0 %v1567
    %v1970 = vpop.f32.mrb[0].mxu0
    %v1971 = vadd.f32 0.0, %v1970
    %v1972 = vpop.f32.mrb[0].mxu0
    %v1973 = vadd.f32 0.0, %v1972
    %v1974 = vpop.f32.mrb[0].mxu0
    %v1975 = vadd.f32 0.0, %v1974
    %v1976 = vpop.f32.mrb[0].mxu0
    %v1977 = vadd.f32 0.0, %v1976
    %1978 = vmatprep.mubr.bf16.mxu0 %v1570
    %1979 = vmatmul.mubr.bf16.gmra.mrb[0].mxu0 %v1569
    %v1980 = vpop.f32.mrb[0].mxu0
    %v1981 = vadd.f32 0.0, %v1980
    %v1982 = vpop.f32.mrb[0].mxu0
    %v1983 = vadd.f32 0.0, %v1982
    %v1984 = vpop.f32.mrb[0].mxu0
    %v1985 = vadd.f32 0.0, %v1984
    %v1986 = vpop.f32.mrb[0].mxu0
    %v1987 = vadd.f32 0.0, %v1986
    %1988 = vmatprep.mubr.bf16.mxu0 %v1572
    %1989 = vmatmul.mubr.bf16.gmra.mrb[0].mxu0 %v1571
    %v1990 = vpop.f32.mrb[0].mxu0
    %v1991 = vadd.f32 0.0, %v1990
    %v1992 = vpop.f32.mrb[0].mxu0
    %v1993 = vadd.f32 0.0, %v1992
    %v1994 = vpop.f32.mrb[0].mxu0
    %v1995 = vadd.f32 0.0, %v1994
    %v1996 = vpop.f32.mrb[0].mxu0
    %v1997 = vadd.f32 0.0, %v1996
    %1998 = vmatprep.mubr.bf16.mxu0 %v1574
    %1999 = vmatmul.mubr.bf16.gmra.mrb[0].mxu0 %v1573
    %v2000 = vpop.f32.mrb[0].mxu0
    %v2001 = vadd.f32 0.0, %v2000
    %v2002 = vpop.f32.mrb[0].mxu0
    %v2003 = vadd.f32 0.0, %v2002
    %v2004 = vpop.f32.mrb[0].mxu0
    %v2005 = vadd.f32 0.0, %v2004
    %v2006 = vpop.f32.mrb[0].mxu0
    %v2007 = vadd.f32 0.0, %v2006
    %2008 = vmatprep.mubr.bf16.mxu0 %v1576
    %2009 = vmatmul.mubr.bf16.gmra.mrb[0].mxu0 %v1575
    %v2010 = vpop.f32.mrb[0].mxu0
    %v2011 = vadd.f32 0.0, %v2010
    %v2012 = vpop.f32.mrb[0].mxu0
    %v2013 = vadd.f32 0.0, %v2012
    %v2014 = vpop.f32.mrb[0].mxu0
    %v2015 = vadd.f32 0.0, %v2014
    %v2016 = vpop.f32.mrb[0].mxu0
    %v2017 = vadd.f32 0.0, %v2016
    %2018 = vmatprep.mubr.bf16.mxu0 %v1578
    %2019 = vmatmul.mubr.bf16.gmra.mrb[0].mxu0 %v1577
    %v2020 = vpop.f32.mrb[0].mxu0
    %v2021 = vadd.f32 0.0, %v2020
    %v2022 = vpop.f32.mrb[0].mxu0
    %v2023 = vadd.f32 0.0, %v2022
    %v2024 = vpop.f32.mrb[0].mxu0
    %v2025 = vadd.f32 0.0, %v2024
    %v2026 = vpop.f32.mrb[0].mxu0
    %v2027 = vadd.f32 0.0, %v2026
    %2028 = vdwg.mxu0
    %v2029 = vld [vmem:[#allocation14] sm:$0xf]
    %v2030 = vld [vmem:[#allocation16] sm:$0xf]
    %v2031 = vadd.f32 %v1678, %v1682
    %v2032 = vadd.f32 %v2031, %v1688
    %v2033 = vadd.f32 %v2032, %v1692
    %v2034 = vadd.f32 %v2033, %v1698
    %v2035 = vadd.f32 %v2034, %v1702
    %v2036 = vadd.f32 %v2035, %v1708
    %v2037 = vadd.f32 %v2036, %v1712
    %v2038 = vadd.f32 %v2037, %v1718
    %v2039 = vadd.f32 %v2038, %v1722
    %v2040 = vadd.f32 %v2039, %v1728
    %v2041 = vadd.f32 %v2040, %v1732
    %v2042 = vadd.f32 %v2041, %v1738
    %v2043 = vadd.f32 %v2042, %v1742
    %v2044 = vadd.f32 %v2043, %v1748
    %v2045 = vadd.f32 %v2044, %v1752
    %v2046 = vadd.f32 %v2045, %v1758
    %v2047 = vadd.f32 %v2046, %v1762
    %v2048 = vadd.f32 %v2047, %v1768
    %v2049 = vadd.f32 %v2048, %v1772
    %v2050 = vadd.f32 %v2049, %v1778
    %v2051 = vadd.f32 %v2050, %v1782
    %v2052 = vadd.f32 %v2051, %v1788
    %v2053 = vadd.f32 %v2052, %v1792
    %v2054 = vadd.f32 %v2053, %v1798
    %v2055 = vadd.f32 %v2054, %v1802
    %v2056 = vadd.f32 %v2055, %v1808
    %v2057 = vadd.f32 %v2056, %v1812
    %v2058 = vadd.f32 %v2057, %v1818
    %v2059 = vadd.f32 %v2058, %v1822
    %v2060 = vadd.f32 %v2059, %v1828
    %v2061 = vadd.f32 %v2060, %v1832
    %v2062 = vrot.slane %v2061, 4
    %v2063 = vadd.f32 %v2061, %v2062
    %v2064 = vrot.slane %v2063, 2
    %v2065 = vadd.f32 %v2063, %v2064
    %v2066 = vrot.slane %v2065, 1
    %v2067 = vadd.f32 %v2065, %v2066
    %v2068 = vadd.f32 %v1680, %v1684
    %v2069 = vadd.f32 %v2068, %v1690
    %v2070 = vadd.f32 %v2069, %v1694
    %v2071 = vadd.f32 %v2070, %v1700
    %v2072 = vadd.f32 %v2071, %v1704
    %v2073 = vadd.f32 %v2072, %v1710
    %v2074 = vadd.f32 %v2073, %v1714
    %v2075 = vadd.f32 %v2074, %v1720
    %v2076 = vadd.f32 %v2075, %v1724
    %v2077 = vadd.f32 %v2076, %v1730
    %v2078 = vadd.f32 %v2077, %v1734
    %v2079 = vadd.f32 %v2078, %v1740
    %v2080 = vadd.f32 %v2079, %v1744
    %v2081 = vadd.f32 %v2080, %v1750
    %v2082 = vadd.f32 %v2081, %v1754
    %v2083 = vadd.f32 %v2082, %v1760
    %v2084 = vadd.f32 %v2083, %v1764
    %v2085 = vadd.f32 %v2084, %v1770
    %v2086 = vadd.f32 %v2085, %v1774
    %v2087 = vadd.f32 %v2086, %v1780
    %v2088 = vadd.f32 %v2087, %v1784
    %v2089 = vadd.f32 %v2088, %v1790
    %v2090 = vadd.f32 %v2089, %v1794
    %v2091 = vadd.f32 %v2090, %v1800
    %v2092 = vadd.f32 %v2091, %v1804
    %v2093 = vadd.f32 %v2092, %v1810
    %v2094 = vadd.f32 %v2093, %v1814
    %v2095 = vadd.f32 %v2094, %v1820
    %v2096 = vadd.f32 %v2095, %v1824
    %v2097 = vadd.f32 %v2096, %v1830
    %v2098 = vadd.f32 %v2097, %v1834
    %v2099 = vrot.slane %v2098, 4
    %v2100 = vadd.f32 %v2098, %v2099
    %v2101 = vrot.slane %v2100, 2
    %v2102 = vadd.f32 %v2100, %v2101
    %v2103 = vrot.slane %v2102, 1
    %v2104 = vadd.f32 %v2102, %v2103
    %v2105 = vadd.f32 %v1871, %v1875
    %v2106 = vadd.f32 %v2105, %v1881
    %v2107 = vadd.f32 %v2106, %v1885
    %v2108 = vadd.f32 %v2107, %v1891
    %v2109 = vadd.f32 %v2108, %v1895
    %v2110 = vadd.f32 %v2109, %v1901
    %v2111 = vadd.f32 %v2110, %v1905
    %v2112 = vadd.f32 %v2111, %v1911
    %v2113 = vadd.f32 %v2112, %v1915
    %v2114 = vadd.f32 %v2113, %v1921
    %v2115 = vadd.f32 %v2114, %v1925
    %v2116 = vadd.f32 %v2115, %v1931
    %v2117 = vadd.f32 %v2116, %v1935
    %v2118 = vadd.f32 %v2117, %v1941
    %v2119 = vadd.f32 %v2118, %v1945
    %v2120 = vadd.f32 %v2119, %v1951
    %v2121 = vadd.f32 %v2120, %v1955
    %v2122 = vadd.f32 %v2121, %v1961
    %v2123 = vadd.f32 %v2122, %v1965
    %v2124 = vadd.f32 %v2123, %v1971
    %v2125 = vadd.f32 %v2124, %v1975
    %v2126 = vadd.f32 %v2125, %v1981
    %v2127 = vadd.f32 %v2126, %v1985
    %v2128 = vadd.f32 %v2127, %v1991
    %v2129 = vadd.f32 %v2128, %v1995
    %v2130 = vadd.f32 %v2129, %v2001
    %v2131 = vadd.f32 %v2130, %v2005
    %v2132 = vadd.f32 %v2131, %v2011
    %v2133 = vadd.f32 %v2132, %v2015
    %v2134 = vadd.f32 %v2133, %v2021
    %v2135 = vadd.f32 %v2134, %v2025
    %v2136 = vrot.slane %v2135, 4
    %v2137 = vadd.f32 %v2135, %v2136
    %v2138 = vrot.slane %v2137, 2
    %v2139 = vadd.f32 %v2137, %v2138
    %v2140 = vrot.slane %v2139, 1
    %v2141 = vadd.f32 %v2139, %v2140
    %v2142 = vadd.f32 %v1873, %v1877
    %v2143 = vadd.f32 %v2142, %v1883
    %v2144 = vadd.f32 %v2143, %v1887
    %v2145 = vadd.f32 %v2144, %v1893
    %v2146 = vadd.f32 %v2145, %v1897
    %v2147 = vadd.f32 %v2146, %v1903
    %v2148 = vadd.f32 %v2147, %v1907
    %v2149 = vadd.f32 %v2148, %v1913
    %v2150 = vadd.f32 %v2149, %v1917
    %v2151 = vadd.f32 %v2150, %v1923
    %v2152 = vadd.f32 %v2151, %v1927
    %v2153 = vadd.f32 %v2152, %v1933
    %v2154 = vadd.f32 %v2153, %v1937
    %v2155 = vadd.f32 %v2154, %v1943
    %v2156 = vadd.f32 %v2155, %v1947
    %v2157 = vadd.f32 %v2156, %v1953
    %v2158 = vadd.f32 %v2157, %v1957
    %v2159 = vadd.f32 %v2158, %v1963
    %v2160 = vadd.f32 %v2159, %v1967
    %v2161 = vadd.f32 %v2160, %v1973
    %v2162 = vadd.f32 %v2161, %v1977
    %v2163 = vadd.f32 %v2162, %v1983
    %v2164 = vadd.f32 %v2163, %v1987
    %v2165 = vadd.f32 %v2164, %v1993
    %v2166 = vadd.f32 %v2165, %v1997
    %v2167 = vadd.f32 %v2166, %v2003
    %v2168 = vadd.f32 %v2167, %v2007
    %v2169 = vadd.f32 %v2168, %v2013
    %v2170 = vadd.f32 %v2169, %v2017
    %v2171 = vadd.f32 %v2170, %v2023
    %v2172 = vadd.f32 %v2171, %v2027
    %v2173 = vrot.slane %v2172, 4
    %v2174 = vadd.f32 %v2172, %v2173
    %v2175 = vrot.slane %v2174, 2
    %v2176 = vadd.f32 %v2174, %v2175
    %v2177 = vrot.slane %v2176, 1
    %v2178 = vadd.f32 %v2176, %v2177
    %v2179 = vmul.f32 %v2067, %v1072
    %v2180 = vmul.f32 %v2104, %v1072
    %v2181 = vmul.f32 %v2141, %v1072
    %v2182 = vmul.f32 %v2178, %v1072
    %v2183 = vmul.f32 %v1678, %v1678
    %v2184 = vmul.f32 %v1680, %v1680
    %v2185 = vmul.f32 %v1871, %v1871
    %v2186 = vmul.f32 %v1873, %v1873
    %v2187 = vmul.f32 %v1682, %v1682
    %v2188 = vmul.f32 %v1684, %v1684
    %v2189 = vmul.f32 %v1875, %v1875
    %v2190 = vmul.f32 %v1877, %v1877
    %v2191 = vmul.f32 %v1688, %v1688
    %v2192 = vmul.f32 %v1690, %v1690
    %v2193 = vmul.f32 %v1881, %v1881
    %v2194 = vmul.f32 %v1883, %v1883
    %v2195 = vmul.f32 %v1692, %v1692
    %v2196 = vmul.f32 %v1694, %v1694
    %v2197 = vmul.f32 %v1885, %v1885
    %v2198 = vmul.f32 %v1887, %v1887
    %v2199 = vmul.f32 %v1698, %v1698
    %v2200 = vmul.f32 %v1700, %v1700
    %v2201 = vmul.f32 %v1891, %v1891
    %v2202 = vmul.f32 %v1893, %v1893
    %v2203 = vmul.f32 %v1702, %v1702
    %v2204 = vmul.f32 %v1704, %v1704
    %v2205 = vmul.f32 %v1895, %v1895
    %v2206 = vmul.f32 %v1897, %v1897
    %v2207 = vmul.f32 %v1708, %v1708
    %v2208 = vmul.f32 %v1710, %v1710
    %v2209 = vmul.f32 %v1901, %v1901
    %v2210 = vmul.f32 %v1903, %v1903
    %v2211 = vmul.f32 %v1712, %v1712
    %v2212 = vmul.f32 %v1714, %v1714
    %v2213 = vmul.f32 %v1905, %v1905
    %v2214 = vmul.f32 %v1907, %v1907
    %v2215 = vmul.f32 %v1718, %v1718
    %v2216 = vmul.f32 %v1720, %v1720
    %v2217 = vmul.f32 %v1911, %v1911
    %v2218 = vmul.f32 %v1913, %v1913
    %v2219 = vmul.f32 %v1722, %v1722
    %v2220 = vmul.f32 %v1724, %v1724
    %v2221 = vmul.f32 %v1915, %v1915
    %v2222 = vmul.f32 %v1917, %v1917
    %v2223 = vmul.f32 %v1728, %v1728
    %v2224 = vmul.f32 %v1730, %v1730
    %v2225 = vmul.f32 %v1921, %v1921
    %v2226 = vmul.f32 %v1923, %v1923
    %v2227 = vmul.f32 %v1732, %v1732
    %v2228 = vmul.f32 %v1734, %v1734
    %v2229 = vmul.f32 %v1925, %v1925
    %v2230 = vmul.f32 %v1927, %v1927
    %v2231 = vmul.f32 %v1738, %v1738
    %v2232 = vmul.f32 %v1740, %v1740
    %v2233 = vmul.f32 %v1931, %v1931
    %v2234 = vmul.f32 %v1933, %v1933
    %v2235 = vmul.f32 %v1742, %v1742
    %v2236 = vmul.f32 %v1744, %v1744
    %v2237 = vmul.f32 %v1935, %v1935
    %v2238 = vmul.f32 %v1937, %v1937
    %v2239 = vmul.f32 %v1748, %v1748
    %v2240 = vmul.f32 %v1750, %v1750
    %v2241 = vmul.f32 %v1941, %v1941
    %v2242 = vmul.f32 %v1943, %v1943
    %v2243 = vmul.f32 %v1752, %v1752
    %v2244 = vmul.f32 %v1754, %v1754
    %v2245 = vmul.f32 %v1945, %v1945
    %v2246 = vmul.f32 %v1947, %v1947
    %v2247 = vmul.f32 %v1758, %v1758
    %v2248 = vmul.f32 %v1760, %v1760
    %v2249 = vmul.f32 %v1951, %v1951
    %v2250 = vmul.f32 %v1953, %v1953
    %v2251 = vmul.f32 %v1762, %v1762
    %v2252 = vmul.f32 %v1764, %v1764
    %v2253 = vmul.f32 %v1955, %v1955
    %v2254 = vmul.f32 %v1957, %v1957
    %v2255 = vmul.f32 %v1768, %v1768
    %v2256 = vmul.f32 %v1770, %v1770
    %v2257 = vmul.f32 %v1961, %v1961
    %v2258 = vmul.f32 %v1963, %v1963
    %v2259 = vmul.f32 %v1772, %v1772
    %v2260 = vmul.f32 %v1774, %v1774
    %v2261 = vmul.f32 %v1965, %v1965
    %v2262 = vmul.f32 %v1967, %v1967
    %v2263 = vmul.f32 %v1778, %v1778
    %v2264 = vmul.f32 %v1780, %v1780
    %v2265 = vmul.f32 %v1971, %v1971
    %v2266 = vmul.f32 %v1973, %v1973
    %v2267 = vmul.f32 %v1782, %v1782
    %v2268 = vmul.f32 %v1784, %v1784
    %v2269 = vmul.f32 %v1975, %v1975
    %v2270 = vmul.f32 %v1977, %v1977
    %v2271 = vmul.f32 %v1788, %v1788
    %v2272 = vmul.f32 %v1790, %v1790
    %v2273 = vmul.f32 %v1981, %v1981
    %v2274 = vmul.f32 %v1983, %v1983
    %v2275 = vmul.f32 %v1792, %v1792
    %v2276 = vmul.f32 %v1794, %v1794
    %v2277 = vmul.f32 %v1985, %v1985
    %v2278 = vmul.f32 %v1987, %v1987
    %v2279 = vmul.f32 %v1798, %v1798
    %v2280 = vmul.f32 %v1800, %v1800
    %v2281 = vmul.f32 %v1991, %v1991
    %v2282 = vmul.f32 %v1993, %v1993
    %v2283 = vmul.f32 %v1802, %v1802
    %v2284 = vmul.f32 %v1804, %v1804
    %v2285 = vmul.f32 %v1995, %v1995
    %v2286 = vmul.f32 %v1997, %v1997
    %v2287 = vmul.f32 %v1808, %v1808
    %v2288 = vmul.f32 %v1810, %v1810
    %v2289 = vmul.f32 %v2001, %v2001
    %v2290 = vmul.f32 %v2003, %v2003
    %v2291 = vmul.f32 %v1812, %v1812
    %v2292 = vmul.f32 %v1814, %v1814
    %v2293 = vmul.f32 %v2005, %v2005
    %v2294 = vmul.f32 %v2007, %v2007
    %v2295 = vmul.f32 %v1818, %v1818
    %v2296 = vmul.f32 %v1820, %v1820
    %v2297 = vmul.f32 %v2011, %v2011
    %v2298 = vmul.f32 %v2013, %v2013
    %v2299 = vmul.f32 %v1822, %v1822
    %v2300 = vmul.f32 %v1824, %v1824
    %v2301 = vmul.f32 %v2015, %v2015
    %v2302 = vmul.f32 %v2017, %v2017
    %v2303 = vmul.f32 %v1828, %v1828
    %v2304 = vmul.f32 %v1830, %v1830
    %v2305 = vmul.f32 %v2021, %v2021
    %v2306 = vmul.f32 %v2023, %v2023
    %v2307 = vmul.f32 %v1832, %v1832
    %v2308 = vmul.f32 %v1834, %v1834
    %v2309 = vmul.f32 %v2025, %v2025
    %v2310 = vmul.f32 %v2027, %v2027
    %v2311 = vadd.f32 %v2183, %v2187
    %v2312 = vadd.f32 %v2311, %v2191
    %v2313 = vadd.f32 %v2312, %v2195
    %v2314 = vadd.f32 %v2313, %v2199
    %v2315 = vadd.f32 %v2314, %v2203
    %v2316 = vadd.f32 %v2315, %v2207
    %v2317 = vadd.f32 %v2316, %v2211
    %v2318 = vadd.f32 %v2317, %v2215
    %v2319 = vadd.f32 %v2318, %v2219
    %v2320 = vadd.f32 %v2319, %v2223
    %v2321 = vadd.f32 %v2320, %v2227
    %v2322 = vadd.f32 %v2321, %v2231
    %v2323 = vadd.f32 %v2322, %v2235
    %v2324 = vadd.f32 %v2323, %v2239
    %v2325 = vadd.f32 %v2324, %v2243
    %v2326 = vadd.f32 %v2325, %v2247
    %v2327 = vadd.f32 %v2326, %v2251
    %v2328 = vadd.f32 %v2327, %v2255
    %v2329 = vadd.f32 %v2328, %v2259
    %v2330 = vadd.f32 %v2329, %v2263
    %v2331 = vadd.f32 %v2330, %v2267
    %v2332 = vadd.f32 %v2331, %v2271
    %v2333 = vadd.f32 %v2332, %v2275
    %v2334 = vadd.f32 %v2333, %v2279
    %v2335 = vadd.f32 %v2334, %v2283
    %v2336 = vadd.f32 %v2335, %v2287
    %v2337 = vadd.f32 %v2336, %v2291
    %v2338 = vadd.f32 %v2337, %v2295
    %v2339 = vadd.f32 %v2338, %v2299
    %v2340 = vadd.f32 %v2339, %v2303
    %v2341 = vadd.f32 %v2340, %v2307
    %v2342 = vrot.slane %v2341, 4
    %v2343 = vadd.f32 %v2341, %v2342
    %v2344 = vrot.slane %v2343, 2
    %v2345 = vadd.f32 %v2343, %v2344
    %v2346 = vrot.slane %v2345, 1
    %v2347 = vadd.f32 %v2345, %v2346
    %v2348 = vadd.f32 %v2184, %v2188
    %v2349 = vadd.f32 %v2348, %v2192
    %v2350 = vadd.f32 %v2349, %v2196
    %v2351 = vadd.f32 %v2350, %v2200
    %v2352 = vadd.f32 %v2351, %v2204
    %v2353 = vadd.f32 %v2352, %v2208
    %v2354 = vadd.f32 %v2353, %v2212
    %v2355 = vadd.f32 %v2354, %v2216
    %v2356 = vadd.f32 %v2355, %v2220
    %v2357 = vadd.f32 %v2356, %v2224
    %v2358 = vadd.f32 %v2357, %v2228
    %v2359 = vadd.f32 %v2358, %v2232
    %v2360 = vadd.f32 %v2359, %v2236
    %v2361 = vadd.f32 %v2360, %v2240
    %v2362 = vadd.f32 %v2361, %v2244
    %v2363 = vadd.f32 %v2362, %v2248
    %v2364 = vadd.f32 %v2363, %v2252
    %v2365 = vadd.f32 %v2364, %v2256
    %v2366 = vadd.f32 %v2365, %v2260
    %v2367 = vadd.f32 %v2366, %v2264
    %v2368 = vadd.f32 %v2367, %v2268
    %v2369 = vadd.f32 %v2368, %v2272
    %v2370 = vadd.f32 %v2369, %v2276
    %v2371 = vadd.f32 %v2370, %v2280
    %v2372 = vadd.f32 %v2371, %v2284
    %v2373 = vadd.f32 %v2372, %v2288
    %v2374 = vadd.f32 %v2373, %v2292
    %v2375 = vadd.f32 %v2374, %v2296
    %v2376 = vadd.f32 %v2375, %v2300
    %v2377 = vadd.f32 %v2376, %v2304
    %v2378 = vadd.f32 %v2377, %v2308
    %v2379 = vrot.slane %v2378, 4
    %v2380 = vadd.f32 %v2378, %v2379
    %v2381 = vrot.slane %v2380, 2
    %v2382 = vadd.f32 %v2380, %v2381
    %v2383 = vrot.slane %v2382, 1
    %v2384 = vadd.f32 %v2382, %v2383
    %v2385 = vadd.f32 %v2185, %v2189
    %v2386 = vadd.f32 %v2385, %v2193
    %v2387 = vadd.f32 %v2386, %v2197
    %v2388 = vadd.f32 %v2387, %v2201
    %v2389 = vadd.f32 %v2388, %v2205
    %v2390 = vadd.f32 %v2389, %v2209
    %v2391 = vadd.f32 %v2390, %v2213
    %v2392 = vadd.f32 %v2391, %v2217
    %v2393 = vadd.f32 %v2392, %v2221
    %v2394 = vadd.f32 %v2393, %v2225
    %v2395 = vadd.f32 %v2394, %v2229
    %v2396 = vadd.f32 %v2395, %v2233
    %v2397 = vadd.f32 %v2396, %v2237
    %v2398 = vadd.f32 %v2397, %v2241
    %v2399 = vadd.f32 %v2398, %v2245
    %v2400 = vadd.f32 %v2399, %v2249
    %v2401 = vadd.f32 %v2400, %v2253
    %v2402 = vadd.f32 %v2401, %v2257
    %v2403 = vadd.f32 %v2402, %v2261
    %v2404 = vadd.f32 %v2403, %v2265
    %v2405 = vadd.f32 %v2404, %v2269
    %v2406 = vadd.f32 %v2405, %v2273
    %v2407 = vadd.f32 %v2406, %v2277
    %v2408 = vadd.f32 %v2407, %v2281
    %v2409 = vadd.f32 %v2408, %v2285
    %v2410 = vadd.f32 %v2409, %v2289
    %v2411 = vadd.f32 %v2410, %v2293
    %v2412 = vadd.f32 %v2411, %v2297
    %v2413 = vadd.f32 %v2412, %v2301
    %v2414 = vadd.f32 %v2413, %v2305
    %v2415 = vadd.f32 %v2414, %v2309
    %v2416 = vrot.slane %v2415, 4
    %v2417 = vadd.f32 %v2415, %v2416
    %v2418 = vrot.slane %v2417, 2
    %v2419 = vadd.f32 %v2417, %v2418
    %v2420 = vrot.slane %v2419, 1
    %v2421 = vadd.f32 %v2419, %v2420
    %v2422 = vadd.f32 %v2186, %v2190
    %v2423 = vadd.f32 %v2422, %v2194
    %v2424 = vadd.f32 %v2423, %v2198
    %v2425 = vadd.f32 %v2424, %v2202
    %v2426 = vadd.f32 %v2425, %v2206
    %v2427 = vadd.f32 %v2426, %v2210
    %v2428 = vadd.f32 %v2427, %v2214
    %v2429 = vadd.f32 %v2428, %v2218
    %v2430 = vadd.f32 %v2429, %v2222
    %v2431 = vadd.f32 %v2430, %v2226
    %v2432 = vadd.f32 %v2431, %v2230
    %v2433 = vadd.f32 %v2432, %v2234
    %v2434 = vadd.f32 %v2433, %v2238
    %v2435 = vadd.f32 %v2434, %v2242
    %v2436 = vadd.f32 %v2435, %v2246
    %v2437 = vadd.f32 %v2436, %v2250
    %v2438 = vadd.f32 %v2437, %v2254
    %v2439 = vadd.f32 %v2438, %v2258
    %v2440 = vadd.f32 %v2439, %v2262
    %v2441 = vadd.f32 %v2440, %v2266
    %v2442 = vadd.f32 %v2441, %v2270
    %v2443 = vadd.f32 %v2442, %v2274
    %v2444 = vadd.f32 %v2443, %v2278
    %v2445 = vadd.f32 %v2444, %v2282
    %v2446 = vadd.f32 %v2445, %v2286
    %v2447 = vadd.f32 %v2446, %v2290
    %v2448 = vadd.f32 %v2447, %v2294
    %v2449 = vadd.f32 %v2448, %v2298
    %v2450 = vadd.f32 %v2449, %v2302
    %v2451 = vadd.f32 %v2450, %v2306
    %v2452 = vadd.f32 %v2451, %v2310
    %v2453 = vrot.slane %v2452, 4
    %v2454 = vadd.f32 %v2452, %v2453
    %v2455 = vrot.slane %v2454, 2
    %v2456 = vadd.f32 %v2454, %v2455
    %v2457 = vrot.slane %v2456, 1
    %v2458 = vadd.f32 %v2456, %v2457
    %v2459 = vmul.f32 %v2347, %v1072
    %v2460 = vmul.f32 %v2384, %v1072
    %v2461 = vmul.f32 %v2421, %v1072
    %v2462 = vmul.f32 %v2458, %v1072
    %v2463 = vmul.f32 %v2179, %v2179
    %v2464 = vmul.f32 %v2180, %v2180
    %v2465 = vmul.f32 %v2181, %v2181
    %v2466 = vmul.f32 %v2182, %v2182
    %v2467 = vsub.f32 %v2459, %v2463
    %v2468 = vsub.f32 %v2460, %v2464
    %v2469 = vsub.f32 %v2461, %v2465
    %v2470 = vsub.f32 %v2462, %v2466
    %v2471 = vmax.f32 %v2467, 0.0
    %v2472 = vmax.f32 %v2468, 0.0
    %v2473 = vmax.f32 %v2469, 0.0
    %v2474 = vmax.f32 %v2470, 0.0
    %v2475 = vadd.f32 %v2471, 1e-05
    %v2476 = vadd.f32 %v2472, 1e-05
    %v2477 = vadd.f32 %v2473, 1e-05
    %v2478 = vadd.f32 %v2474, 1e-05
    %v2479 = vrsqrt.pop %v2475
    %v2480 = vrsqrt.pop %v2476
    %v2481 = vrsqrt.pop %v2477
    %v2482 = vrsqrt.pop %v2478
    %v2487 = vcombine.low %v2479, %v2480
    %v2488 = vcombine.low %v2481, %v2482
    %v2490 = vunpack.c.l.s4 1966171168
    %v2491 = vunpack.c.0.s8 %v2490
    %v2492 = vlaneseq
    %v2493 = vshrl.u32 %v2492, 7
    %v2494 = vsub.s32 %v2491, %v2493
    %v2495 = vrot.slane %v2487, %v2494
    %v2497 = vunpack.c.l.s4 1966171168
    %v2498 = vunpack.c.0.s8 %v2497
    %v2499 = vlaneseq
    %v2500 = vshrl.u32 %v2499, 7
    %v2501 = vsub.s32 %v2498, %v2500
    %v2502 = vrot.slane %v2488, %v2501
    %v2503 = vcombine.low %v2495, %v2502
    %v2505 = vunpack.c.l.s4 1966171168
    %v2506 = vunpack.c.0.s8 %v2505
    %v2507 = vlaneseq
    %v2508 = vshrl.u32 %v2507, 7
    %v2509 = vsub.s32 %v2506, %v2508
    %v2510 = vrot.slane %v2503, %v2509
    %v2512 = vmul.f32 %v2029, %v2510
    %v2514 = vlaneseq
    %v2515 = vshrl.u32 %v2514, 7
    %v2516 = vsub.s32 0, %v2515
    %v2517 = vrot.slane %v2512, %v2516
    %v2518 = vlaneseq
    %v2519 = vshrl.u32 %v2518, 7
    %v2520 = vsub.s32 1, %v2519
    %v2521 = vrot.slane %v2512, %v2520
    %v2522 = vlaneseq
    %v2523 = vshrl.u32 %v2522, 7
    %v2524 = vsub.s32 2, %v2523
    %v2525 = vrot.slane %v2512, %v2524
    %v2526 = vlaneseq
    %v2527 = vshrl.u32 %v2526, 7
    %v2528 = vsub.s32 3, %v2527
    %v2529 = vrot.slane %v2512, %v2528
    %v2534 = vmul.f32 %v2179, %v2517
    %v2535 = vmul.f32 %v2180, %v2521
    %v2536 = vmul.f32 %v2181, %v2525
    %v2537 = vmul.f32 %v2182, %v2529
    %v2542 = vcombine.low %v2534, %v2535
    %v2543 = vcombine.low %v2536, %v2537
    %v2545 = vunpack.c.l.s4 1966171168
    %v2546 = vunpack.c.0.s8 %v2545
    %v2547 = vlaneseq
    %v2548 = vshrl.u32 %v2547, 7
    %v2549 = vsub.s32 %v2546, %v2548
    %v2550 = vrot.slane %v2542, %v2549
    %v2552 = vunpack.c.l.s4 1966171168
    %v2553 = vunpack.c.0.s8 %v2552
    %v2554 = vlaneseq
    %v2555 = vshrl.u32 %v2554, 7
    %v2556 = vsub.s32 %v2553, %v2555
    %v2557 = vrot.slane %v2543, %v2556
    %v2558 = vcombine.low %v2550, %v2557
    %v2560 = vunpack.c.l.s4 1966171168
    %v2561 = vunpack.c.0.s8 %v2560
    %v2562 = vlaneseq
    %v2563 = vshrl.u32 %v2562, 7
    %v2564 = vsub.s32 %v2561, %v2563
    %v2565 = vrot.slane %v2558, %v2564
    %v2567 = vsub.f32 %v2030, %v2565
    %v2568 = vmul.f32 %v1678, %v2517
    %v2569 = vmul.f32 %v1680, %v2521
    %v2570 = vmul.f32 %v1871, %v2525
    %v2571 = vmul.f32 %v1873, %v2529
    %v2572 = vmul.f32 %v1682, %v2517
    %v2573 = vmul.f32 %v1684, %v2521
    %v2574 = vmul.f32 %v1875, %v2525
    %v2575 = vmul.f32 %v1877, %v2529
    %v2576 = vmul.f32 %v1688, %v2517
    %v2577 = vmul.f32 %v1690, %v2521
    %v2578 = vmul.f32 %v1881, %v2525
    %v2579 = vmul.f32 %v1883, %v2529
    %v2580 = vmul.f32 %v1692, %v2517
    %v2581 = vmul.f32 %v1694, %v2521
    %v2582 = vmul.f32 %v1885, %v2525
    %v2583 = vmul.f32 %v1887, %v2529
    %v2584 = vmul.f32 %v1698, %v2517
    %v2585 = vmul.f32 %v1700, %v2521
    %v2586 = vmul.f32 %v1891, %v2525
    %v2587 = vmul.f32 %v1893, %v2529
    %v2588 = vmul.f32 %v1702, %v2517
    %v2589 = vmul.f32 %v1704, %v2521
    %v2590 = vmul.f32 %v1895, %v2525
    %v2591 = vmul.f32 %v1897, %v2529
    %v2592 = vmul.f32 %v1708, %v2517
    %v2593 = vmul.f32 %v1710, %v2521
    %v2594 = vmul.f32 %v1901, %v2525
    %v2595 = vmul.f32 %v1903, %v2529
    %v2596 = vmul.f32 %v1712, %v2517
    %v2597 = vmul.f32 %v1714, %v2521
    %v2598 = vmul.f32 %v1905, %v2525
    %v2599 = vmul.f32 %v1907, %v2529
    %v2600 = vmul.f32 %v1718, %v2517
    %v2601 = vmul.f32 %v1720, %v2521
    %v2602 = vmul.f32 %v1911, %v2525
    %v2603 = vmul.f32 %v1913, %v2529
    %v2604 = vmul.f32 %v1722, %v2517
    %v2605 = vmul.f32 %v1724, %v2521
    %v2606 = vmul.f32 %v1915, %v2525
    %v2607 = vmul.f32 %v1917, %v2529
    %v2608 = vmul.f32 %v1728, %v2517
    %v2609 = vmul.f32 %v1730, %v2521
    %v2610 = vmul.f32 %v1921, %v2525
    %v2611 = vmul.f32 %v1923, %v2529
    %v2612 = vmul.f32 %v1732, %v2517
    %v2613 = vmul.f32 %v1734, %v2521
    %v2614 = vmul.f32 %v1925, %v2525
    %v2615 = vmul.f32 %v1927, %v2529
    %v2616 = vmul.f32 %v1738, %v2517
    %v2617 = vmul.f32 %v1740, %v2521
    %v2618 = vmul.f32 %v1931, %v2525
    %v2619 = vmul.f32 %v1933, %v2529
    %v2620 = vmul.f32 %v1742, %v2517
    %v2621 = vmul.f32 %v1744, %v2521
    %v2622 = vmul.f32 %v1935, %v2525
    %v2623 = vmul.f32 %v1937, %v2529
    %v2624 = vmul.f32 %v1748, %v2517
    %v2625 = vmul.f32 %v1750, %v2521
    %v2626 = vmul.f32 %v1941, %v2525
    %v2627 = vmul.f32 %v1943, %v2529
    %v2628 = vmul.f32 %v1752, %v2517
    %v2629 = vmul.f32 %v1754, %v2521
    %v2630 = vmul.f32 %v1945, %v2525
    %v2631 = vmul.f32 %v1947, %v2529
    %v2632 = vmul.f32 %v1758, %v2517
    %v2633 = vmul.f32 %v1760, %v2521
    %v2634 = vmul.f32 %v1951, %v2525
    %v2635 = vmul.f32 %v1953, %v2529
    %v2636 = vmul.f32 %v1762, %v2517
    %v2637 = vmul.f32 %v1764, %v2521
    %v2638 = vmul.f32 %v1955, %v2525
    %v2639 = vmul.f32 %v1957, %v2529
    %v2640 = vmul.f32 %v1768, %v2517
    %v2641 = vmul.f32 %v1770, %v2521
    %v2642 = vmul.f32 %v1961, %v2525
    %v2643 = vmul.f32 %v1963, %v2529
    %v2644 = vmul.f32 %v1772, %v2517
    %v2645 = vmul.f32 %v1774, %v2521
    %v2646 = vmul.f32 %v1965, %v2525
    %v2647 = vmul.f32 %v1967, %v2529
    %v2648 = vmul.f32 %v1778, %v2517
    %v2649 = vmul.f32 %v1780, %v2521
    %v2650 = vmul.f32 %v1971, %v2525
    %v2651 = vmul.f32 %v1973, %v2529
    %v2652 = vmul.f32 %v1782, %v2517
    %v2653 = vmul.f32 %v1784, %v2521
    %v2654 = vmul.f32 %v1975, %v2525
    %v2655 = vmul.f32 %v1977, %v2529
    %v2656 = vmul.f32 %v1788, %v2517
    %v2657 = vmul.f32 %v1790, %v2521
    %v2658 = vmul.f32 %v1981, %v2525
    %v2659 = vmul.f32 %v1983, %v2529
    %v2660 = vmul.f32 %v1792, %v2517
    %v2661 = vmul.f32 %v1794, %v2521
    %v2662 = vmul.f32 %v1985, %v2525
    %v2663 = vmul.f32 %v1987, %v2529
    %v2664 = vmul.f32 %v1798, %v2517
    %v2665 = vmul.f32 %v1800, %v2521
    %v2666 = vmul.f32 %v1991, %v2525
    %v2667 = vmul.f32 %v1993, %v2529
    %v2668 = vmul.f32 %v1802, %v2517
    %v2669 = vmul.f32 %v1804, %v2521
    %v2670 = vmul.f32 %v1995, %v2525
    %v2671 = vmul.f32 %v1997, %v2529
    %v2672 = vmul.f32 %v1808, %v2517
    %v2673 = vmul.f32 %v1810, %v2521
    %v2674 = vmul.f32 %v2001, %v2525
    %v2675 = vmul.f32 %v2003, %v2529
    %v2676 = vmul.f32 %v1812, %v2517
    %v2677 = vmul.f32 %v1814, %v2521
    %v2678 = vmul.f32 %v2005, %v2525
    %v2679 = vmul.f32 %v2007, %v2529
    %v2680 = vmul.f32 %v1818, %v2517
    %v2681 = vmul.f32 %v1820, %v2521
    %v2682 = vmul.f32 %v2011, %v2525
    %v2683 = vmul.f32 %v2013, %v2529
    %v2684 = vmul.f32 %v1822, %v2517
    %v2685 = vmul.f32 %v1824, %v2521
    %v2686 = vmul.f32 %v2015, %v2525
    %v2687 = vmul.f32 %v2017, %v2529
    %v2688 = vmul.f32 %v1828, %v2517
    %v2689 = vmul.f32 %v1830, %v2521
    %v2690 = vmul.f32 %v2021, %v2525
    %v2691 = vmul.f32 %v2023, %v2529
    %v2692 = vmul.f32 %v1832, %v2517
    %v2693 = vmul.f32 %v1834, %v2521
    %v2694 = vmul.f32 %v2025, %v2525
    %v2695 = vmul.f32 %v2027, %v2529
    %v2697 = vlaneseq
    %v2698 = vshrl.u32 %v2697, 7
    %v2699 = vsub.s32 0, %v2698
    %v2700 = vrot.slane %v2567, %v2699
    %v2701 = vlaneseq
    %v2702 = vshrl.u32 %v2701, 7
    %v2703 = vsub.s32 1, %v2702
    %v2704 = vrot.slane %v2567, %v2703
    %v2705 = vlaneseq
    %v2706 = vshrl.u32 %v2705, 7
    %v2707 = vsub.s32 2, %v2706
    %v2708 = vrot.slane %v2567, %v2707
    %v2709 = vlaneseq
    %v2710 = vshrl.u32 %v2709, 7
    %v2711 = vsub.s32 3, %v2710
    %v2712 = vrot.slane %v2567, %v2711
    %v2717 = vadd.f32 %v2568, %v2700
    %v2718 = vadd.f32 %v2569, %v2704
    %v2719 = vadd.f32 %v2570, %v2708
    %v2720 = vadd.f32 %v2571, %v2712
    %v2721 = vadd.f32 %v2572, %v2700
    %v2722 = vadd.f32 %v2573, %v2704
    %v2723 = vadd.f32 %v2574, %v2708
    %v2724 = vadd.f32 %v2575, %v2712
    %v2725 = vadd.f32 %v2576, %v2700
    %v2726 = vadd.f32 %v2577, %v2704
    %v2727 = vadd.f32 %v2578, %v2708
    %v2728 = vadd.f32 %v2579, %v2712
    %v2729 = vadd.f32 %v2580, %v2700
    %v2730 = vadd.f32 %v2581, %v2704
    %v2731 = vadd.f32 %v2582, %v2708
    %v2732 = vadd.f32 %v2583, %v2712
    %v2733 = vadd.f32 %v2584, %v2700
    %v2734 = vadd.f32 %v2585, %v2704
    %v2735 = vadd.f32 %v2586, %v2708
    %v2736 = vadd.f32 %v2587, %v2712
    %v2737 = vadd.f32 %v2588, %v2700
    %v2738 = vadd.f32 %v2589, %v2704
    %v2739 = vadd.f32 %v2590, %v2708
    %v2740 = vadd.f32 %v2591, %v2712
    %v2741 = vadd.f32 %v2592, %v2700
    %v2742 = vadd.f32 %v2593, %v2704
    %v2743 = vadd.f32 %v2594, %v2708
    %v2744 = vadd.f32 %v2595, %v2712
    %v2745 = vadd.f32 %v2596, %v2700
    %v2746 = vadd.f32 %v2597, %v2704
    %v2747 = vadd.f32 %v2598, %v2708
    %v2748 = vadd.f32 %v2599, %v2712
    %v2749 = vadd.f32 %v2600, %v2700
    %v2750 = vadd.f32 %v2601, %v2704
    %v2751 = vadd.f32 %v2602, %v2708
    %v2752 = vadd.f32 %v2603, %v2712
    %v2753 = vadd.f32 %v2604, %v2700
    %v2754 = vadd.f32 %v2605, %v2704
    %v2755 = vadd.f32 %v2606, %v2708
    %v2756 = vadd.f32 %v2607, %v2712
    %v2757 = vadd.f32 %v2608, %v2700
    %v2758 = vadd.f32 %v2609, %v2704
    %v2759 = vadd.f32 %v2610, %v2708
    %v2760 = vadd.f32 %v2611, %v2712
    %v2761 = vadd.f32 %v2612, %v2700
    %v2762 = vadd.f32 %v2613, %v2704
    %v2763 = vadd.f32 %v2614, %v2708
    %v2764 = vadd.f32 %v2615, %v2712
    %v2765 = vadd.f32 %v2616, %v2700
    %v2766 = vadd.f32 %v2617, %v2704
    %v2767 = vadd.f32 %v2618, %v2708
    %v2768 = vadd.f32 %v2619, %v2712
    %v2769 = vadd.f32 %v2620, %v2700
    %v2770 = vadd.f32 %v2621, %v2704
    %v2771 = vadd.f32 %v2622, %v2708
    %v2772 = vadd.f32 %v2623, %v2712
    %v2773 = vadd.f32 %v2624, %v2700
    %v2774 = vadd.f32 %v2625, %v2704
    %v2775 = vadd.f32 %v2626, %v2708
    %v2776 = vadd.f32 %v2627, %v2712
    %v2777 = vadd.f32 %v2628, %v2700
    %v2778 = vadd.f32 %v2629, %v2704
    %v2779 = vadd.f32 %v2630, %v2708
    %v2780 = vadd.f32 %v2631, %v2712
    %v2781 = vadd.f32 %v2632, %v2700
    %v2782 = vadd.f32 %v2633, %v2704
    %v2783 = vadd.f32 %v2634, %v2708
    %v2784 = vadd.f32 %v2635, %v2712
    %v2785 = vadd.f32 %v2636, %v2700
    %v2786 = vadd.f32 %v2637, %v2704
    %v2787 = vadd.f32 %v2638, %v2708
    %v2788 = vadd.f32 %v2639, %v2712
    %v2789 = vadd.f32 %v2640, %v2700
    %v2790 = vadd.f32 %v2641, %v2704
    %v2791 = vadd.f32 %v2642, %v2708
    %v2792 = vadd.f32 %v2643, %v2712
    %v2793 = vadd.f32 %v2644, %v2700
    %v2794 = vadd.f32 %v2645, %v2704
    %v2795 = vadd.f32 %v2646, %v2708
    %v2796 = vadd.f32 %v2647, %v2712
    %v2797 = vadd.f32 %v2648, %v2700
    %v2798 = vadd.f32 %v2649, %v2704
    %v2799 = vadd.f32 %v2650, %v2708
    %v2800 = vadd.f32 %v2651, %v2712
    %v2801 = vadd.f32 %v2652, %v2700
    %v2802 = vadd.f32 %v2653, %v2704
    %v2803 = vadd.f32 %v2654, %v2708
    %v2804 = vadd.f32 %v2655, %v2712
    %v2805 = vadd.f32 %v2656, %v2700
    %v2806 = vadd.f32 %v2657, %v2704
    %v2807 = vadd.f32 %v2658, %v2708
    %v2808 = vadd.f32 %v2659, %v2712
    %v2809 = vadd.f32 %v2660, %v2700
    %v2810 = vadd.f32 %v2661, %v2704
    %v2811 = vadd.f32 %v2662, %v2708
    %v2812 = vadd.f32 %v2663, %v2712
    %v2813 = vadd.f32 %v2664, %v2700
    %v2814 = vadd.f32 %v2665, %v2704
    %v2815 = vadd.f32 %v2666, %v2708
    %v2816 = vadd.f32 %v2667, %v2712
    %v2817 = vadd.f32 %v2668, %v2700
    %v2818 = vadd.f32 %v2669, %v2704
    %v2819 = vadd.f32 %v2670, %v2708
    %v2820 = vadd.f32 %v2671, %v2712
    %v2821 = vadd.f32 %v2672, %v2700
    %v2822 = vadd.f32 %v2673, %v2704
    %v2823 = vadd.f32 %v2674, %v2708
    %v2824 = vadd.f32 %v2675, %v2712
    %v2825 = vadd.f32 %v2676, %v2700
    %v2826 = vadd.f32 %v2677, %v2704
    %v2827 = vadd.f32 %v2678, %v2708
    %v2828 = vadd.f32 %v2679, %v2712
    %v2829 = vadd.f32 %v2680, %v2700
    %v2830 = vadd.f32 %v2681, %v2704
    %v2831 = vadd.f32 %v2682, %v2708
    %v2832 = vadd.f32 %v2683, %v2712
    %v2833 = vadd.f32 %v2684, %v2700
    %v2834 = vadd.f32 %v2685, %v2704
    %v2835 = vadd.f32 %v2686, %v2708
    %v2836 = vadd.f32 %v2687, %v2712
    %v2837 = vadd.f32 %v2688, %v2700
    %v2838 = vadd.f32 %v2689, %v2704
    %v2839 = vadd.f32 %v2690, %v2708
    %v2840 = vadd.f32 %v2691, %v2712
    %v2841 = vadd.f32 %v2692, %v2700
    %v2842 = vadd.f32 %v2693, %v2704
    %v2843 = vadd.f32 %v2694, %v2708
    %v2844 = vadd.f32 %v2695, %v2712
    %v2845 = vmul.f32 %v2717, 0.2
    %v2846 = vmul.f32 %v2718, 0.2
    %v2847 = vmul.f32 %v2719, 0.2
    %v2848 = vmul.f32 %v2720, 0.2
    %v2849 = vmul.f32 %v2721, 0.2
    %v2850 = vmul.f32 %v2722, 0.2
    %v2851 = vmul.f32 %v2723, 0.2
    %v2852 = vmul.f32 %v2724, 0.2
    %v2853 = vmul.f32 %v2725, 0.2
    %v2854 = vmul.f32 %v2726, 0.2
    %v2855 = vmul.f32 %v2727, 0.2
    %v2856 = vmul.f32 %v2728, 0.2
    %v2857 = vmul.f32 %v2729, 0.2
    %v2858 = vmul.f32 %v2730, 0.2
    %v2859 = vmul.f32 %v2731, 0.2
    %v2860 = vmul.f32 %v2732, 0.2
    %v2861 = vmul.f32 %v2733, 0.2
    %v2862 = vmul.f32 %v2734, 0.2
    %v2863 = vmul.f32 %v2735, 0.2
    %v2864 = vmul.f32 %v2736, 0.2
    %v2865 = vmul.f32 %v2737, 0.2
    %v2866 = vmul.f32 %v2738, 0.2
    %v2867 = vmul.f32 %v2739, 0.2
    %v2868 = vmul.f32 %v2740, 0.2
    %v2869 = vmul.f32 %v2741, 0.2
    %v2870 = vmul.f32 %v2742, 0.2
    %v2871 = vmul.f32 %v2743, 0.2
    %v2872 = vmul.f32 %v2744, 0.2
    %v2873 = vmul.f32 %v2745, 0.2
    %v2874 = vmul.f32 %v2746, 0.2
    %v2875 = vmul.f32 %v2747, 0.2
    %v2876 = vmul.f32 %v2748, 0.2
    %v2877 = vmul.f32 %v2749, 0.2
    %v2878 = vmul.f32 %v2750, 0.2
    %v2879 = vmul.f32 %v2751, 0.2
    %v2880 = vmul.f32 %v2752, 0.2
    %v2881 = vmul.f32 %v2753, 0.2
    %v2882 = vmul.f32 %v2754, 0.2
    %v2883 = vmul.f32 %v2755, 0.2
    %v2884 = vmul.f32 %v2756, 0.2
    %v2885 = vmul.f32 %v2757, 0.2
    %v2886 = vmul.f32 %v2758, 0.2
    %v2887 = vmul.f32 %v2759, 0.2
    %v2888 = vmul.f32 %v2760, 0.2
    %v2889 = vmul.f32 %v2761, 0.2
    %v2890 = vmul.f32 %v2762, 0.2
    %v2891 = vmul.f32 %v2763, 0.2
    %v2892 = vmul.f32 %v2764, 0.2
    %v2893 = vmul.f32 %v2765, 0.2
    %v2894 = vmul.f32 %v2766, 0.2
    %v2895 = vmul.f32 %v2767, 0.2
    %v2896 = vmul.f32 %v2768, 0.2
    %v2897 = vmul.f32 %v2769, 0.2
    %v2898 = vmul.f32 %v2770, 0.2
    %v2899 = vmul.f32 %v2771, 0.2
    %v2900 = vmul.f32 %v2772, 0.2
    %v2901 = vmul.f32 %v2773, 0.2
    %v2902 = vmul.f32 %v2774, 0.2
    %v2903 = vmul.f32 %v2775, 0.2
    %v2904 = vmul.f32 %v2776, 0.2
    %v2905 = vmul.f32 %v2777, 0.2
    %v2906 = vmul.f32 %v2778, 0.2
    %v2907 = vmul.f32 %v2779, 0.2
    %v2908 = vmul.f32 %v2780, 0.2
    %v2909 = vmul.f32 %v2781, 0.2
    %v2910 = vmul.f32 %v2782, 0.2
    %v2911 = vmul.f32 %v2783, 0.2
    %v2912 = vmul.f32 %v2784, 0.2
    %v2913 = vmul.f32 %v2785, 0.2
    %v2914 = vmul.f32 %v2786, 0.2
    %v2915 = vmul.f32 %v2787, 0.2
    %v2916 = vmul.f32 %v2788, 0.2
    %v2917 = vmul.f32 %v2789, 0.2
    %v2918 = vmul.f32 %v2790, 0.2
    %v2919 = vmul.f32 %v2791, 0.2
    %v2920 = vmul.f32 %v2792, 0.2
    %v2921 = vmul.f32 %v2793, 0.2
    %v2922 = vmul.f32 %v2794, 0.2
    %v2923 = vmul.f32 %v2795, 0.2
    %v2924 = vmul.f32 %v2796, 0.2
    %v2925 = vmul.f32 %v2797, 0.2
    %v2926 = vmul.f32 %v2798, 0.2
    %v2927 = vmul.f32 %v2799, 0.2
    %v2928 = vmul.f32 %v2800, 0.2
    %v2929 = vmul.f32 %v2801, 0.2
    %v2930 = vmul.f32 %v2802, 0.2
    %v2931 = vmul.f32 %v2803, 0.2
    %v2932 = vmul.f32 %v2804, 0.2
    %v2933 = vmul.f32 %v2805, 0.2
    %v2934 = vmul.f32 %v2806, 0.2
    %v2935 = vmul.f32 %v2807, 0.2
    %v2936 = vmul.f32 %v2808, 0.2
    %v2937 = vmul.f32 %v2809, 0.2
    %v2938 = vmul.f32 %v2810, 0.2
    %v2939 = vmul.f32 %v2811, 0.2
    %v2940 = vmul.f32 %v2812, 0.2
    %v2941 = vmul.f32 %v2813, 0.2
    %v2942 = vmul.f32 %v2814, 0.2
    %v2943 = vmul.f32 %v2815, 0.2
    %v2944 = vmul.f32 %v2816, 0.2
    %v2945 = vmul.f32 %v2817, 0.2
    %v2946 = vmul.f32 %v2818, 0.2
    %v2947 = vmul.f32 %v2819, 0.2
    %v2948 = vmul.f32 %v2820, 0.2
    %v2949 = vmul.f32 %v2821, 0.2
    %v2950 = vmul.f32 %v2822, 0.2
    %v2951 = vmul.f32 %v2823, 0.2
    %v2952 = vmul.f32 %v2824, 0.2
    %v2953 = vmul.f32 %v2825, 0.2
    %v2954 = vmul.f32 %v2826, 0.2
    %v2955 = vmul.f32 %v2827, 0.2
    %v2956 = vmul.f32 %v2828, 0.2
    %v2957 = vmul.f32 %v2829, 0.2
    %v2958 = vmul.f32 %v2830, 0.2
    %v2959 = vmul.f32 %v2831, 0.2
    %v2960 = vmul.f32 %v2832, 0.2
    %v2961 = vmul.f32 %v2833, 0.2
    %v2962 = vmul.f32 %v2834, 0.2
    %v2963 = vmul.f32 %v2835, 0.2
    %v2964 = vmul.f32 %v2836, 0.2
    %v2965 = vmul.f32 %v2837, 0.2
    %v2966 = vmul.f32 %v2838, 0.2
    %v2967 = vmul.f32 %v2839, 0.2
    %v2968 = vmul.f32 %v2840, 0.2
    %v2969 = vmul.f32 %v2841, 0.2
    %v2970 = vmul.f32 %v2842, 0.2
    %v2971 = vmul.f32 %v2843, 0.2
    %v2972 = vmul.f32 %v2844, 0.2
    %v2973 = vmax.f32 %v2717, %v2845
    %v2974 = vmax.f32 %v2718, %v2846
    %v2975 = vmax.f32 %v2719, %v2847
    %v2976 = vmax.f32 %v2720, %v2848
    %v2977 = vmax.f32 %v2721, %v2849
    %v2978 = vmax.f32 %v2722, %v2850
    %v2979 = vmax.f32 %v2723, %v2851
    %v2980 = vmax.f32 %v2724, %v2852
    %v2981 = vmax.f32 %v2725, %v2853
    %v2982 = vmax.f32 %v2726, %v2854
    %v2983 = vmax.f32 %v2727, %v2855
    %v2984 = vmax.f32 %v2728, %v2856
    %v2985 = vmax.f32 %v2729, %v2857
    %v2986 = vmax.f32 %v2730, %v2858
    %v2987 = vmax.f32 %v2731, %v2859
    %v2988 = vmax.f32 %v2732, %v2860
    %v2989 = vmax.f32 %v2733, %v2861
    %v2990 = vmax.f32 %v2734, %v2862
    %v2991 = vmax.f32 %v2735, %v2863
    %v2992 = vmax.f32 %v2736, %v2864
    %v2993 = vmax.f32 %v2737, %v2865
    %v2994 = vmax.f32 %v2738, %v2866
    %v2995 = vmax.f32 %v2739, %v2867
    %v2996 = vmax.f32 %v2740, %v2868
    %v2997 = vmax.f32 %v2741, %v2869
    %v2998 = vmax.f32 %v2742, %v2870
    %v2999 = vmax.f32 %v2743, %v2871
    %v3000 = vmax.f32 %v2744, %v2872
    %v3001 = vmax.f32 %v2745, %v2873
    %v3002 = vmax.f32 %v2746, %v2874
    %v3003 = vmax.f32 %v2747, %v2875
    %v3004 = vmax.f32 %v2748, %v2876
    %v3005 = vmax.f32 %v2749, %v2877
    %v3006 = vmax.f32 %v2750, %v2878
    %v3007 = vmax.f32 %v2751, %v2879
    %v3008 = vmax.f32 %v2752, %v2880
    %v3009 = vmax.f32 %v2753, %v2881
    %v3010 = vmax.f32 %v2754, %v2882
    %v3011 = vmax.f32 %v2755, %v2883
    %v3012 = vmax.f32 %v2756, %v2884
    %v3013 = vmax.f32 %v2757, %v2885
    %v3014 = vmax.f32 %v2758, %v2886
    %v3015 = vmax.f32 %v2759, %v2887
    %v3016 = vmax.f32 %v2760, %v2888
    %v3017 = vmax.f32 %v2761, %v2889
    %v3018 = vmax.f32 %v2762, %v2890
    %v3019 = vmax.f32 %v2763, %v2891
    %v3020 = vmax.f32 %v2764, %v2892
    %v3021 = vmax.f32 %v2765, %v2893
    %v3022 = vmax.f32 %v2766, %v2894
    %v3023 = vmax.f32 %v2767, %v2895
    %v3024 = vmax.f32 %v2768, %v2896
    %v3025 = vmax.f32 %v2769, %v2897
    %v3026 = vmax.f32 %v2770, %v2898
    %v3027 = vmax.f32 %v2771, %v2899
    %v3028 = vmax.f32 %v2772, %v2900
    %v3029 = vmax.f32 %v2773, %v2901
    %v3030 = vmax.f32 %v2774, %v2902
    %v3031 = vmax.f32 %v2775, %v2903
    %v3032 = vmax.f32 %v2776, %v2904
    %v3033 = vmax.f32 %v2777, %v2905
    %v3034 = vmax.f32 %v2778, %v2906
    %v3035 = vmax.f32 %v2779, %v2907
    %v3036 = vmax.f32 %v2780, %v2908
    %v3037 = vmax.f32 %v2781, %v2909
    %v3038 = vmax.f32 %v2782, %v2910
    %v3039 = vmax.f32 %v2783, %v2911
    %v3040 = vmax.f32 %v2784, %v2912
    %v3041 = vmax.f32 %v2785, %v2913
    %v3042 = vmax.f32 %v2786, %v2914
    %v3043 = vmax.f32 %v2787, %v2915
    %v3044 = vmax.f32 %v2788, %v2916
    %v3045 = vmax.f32 %v2789, %v2917
    %v3046 = vmax.f32 %v2790, %v2918
    %v3047 = vmax.f32 %v2791, %v2919
    %v3048 = vmax.f32 %v2792, %v2920
    %v3049 = vmax.f32 %v2793, %v2921
    %v3050 = vmax.f32 %v2794, %v2922
    %v3051 = vmax.f32 %v2795, %v2923
    %v3052 = vmax.f32 %v2796, %v2924
    %v3053 = vmax.f32 %v2797, %v2925
    %v3054 = vmax.f32 %v2798, %v2926
    %v3055 = vmax.f32 %v2799, %v2927
    %v3056 = vmax.f32 %v2800, %v2928
    %v3057 = vmax.f32 %v2801, %v2929
    %v3058 = vmax.f32 %v2802, %v2930
    %v3059 = vmax.f32 %v2803, %v2931
    %v3060 = vmax.f32 %v2804, %v2932
    %v3061 = vmax.f32 %v2805, %v2933
    %v3062 = vmax.f32 %v2806, %v2934
    %v3063 = vmax.f32 %v2807, %v2935
    %v3064 = vmax.f32 %v2808, %v2936
    %v3065 = vmax.f32 %v2809, %v2937
    %v3066 = vmax.f32 %v2810, %v2938
    %v3067 = vmax.f32 %v2811, %v2939
    %v3068 = vmax.f32 %v2812, %v2940
    %v3069 = vmax.f32 %v2813, %v2941
    %v3070 = vmax.f32 %v2814, %v2942
    %v3071 = vmax.f32 %v2815, %v2943
    %v3072 = vmax.f32 %v2816, %v2944
    %v3073 = vmax.f32 %v2817, %v2945
    %v3074 = vmax.f32 %v2818, %v2946
    %v3075 = vmax.f32 %v2819, %v2947
    %v3076 = vmax.f32 %v2820, %v2948
    %v3077 = vmax.f32 %v2821, %v2949
    %v3078 = vmax.f32 %v2822, %v2950
    %v3079 = vmax.f32 %v2823, %v2951
    %v3080 = vmax.f32 %v2824, %v2952
    %v3081 = vmax.f32 %v2825, %v2953
    %v3082 = vmax.f32 %v2826, %v2954
    %v3083 = vmax.f32 %v2827, %v2955
    %v3084 = vmax.f32 %v2828, %v2956
    %v3085 = vmax.f32 %v2829, %v2957
    %v3086 = vmax.f32 %v2830, %v2958
    %v3087 = vmax.f32 %v2831, %v2959
    %v3088 = vmax.f32 %v2832, %v2960
    %v3089 = vmax.f32 %v2833, %v2961
    %v3090 = vmax.f32 %v2834, %v2962
    %v3091 = vmax.f32 %v2835, %v2963
    %v3092 = vmax.f32 %v2836, %v2964
    %v3093 = vmax.f32 %v2837, %v2965
    %v3094 = vmax.f32 %v2838, %v2966
    %v3095 = vmax.f32 %v2839, %v2967
    %v3096 = vmax.f32 %v2840, %v2968
    %v3097 = vmax.f32 %v2841, %v2969
    %v3098 = vmax.f32 %v2842, %v2970
    %v3099 = vmax.f32 %v2843, %v2971
    %v3100 = vmax.f32 %v2844, %v2972
    %s3101 = smul.u32 4, 64
    %s3102 = smul.u32 %s3101, 8
    %s3103 = sshll.u32 %s3102, 4
    %3104 = dma.done %s197, %s3103
    %v3105 = vpack.c.bf16 %v2977, %v2973
    %v3106 = vpack.c.bf16 %v2978, %v2974
    %v3107 = vpack.c.bf16 %v2979, %v2975
    %v3108 = vpack.c.bf16 %v2980, %v2976
    %v3109 = vpack.c.bf16 %v2985, %v2981
    %v3110 = vpack.c.bf16 %v2986, %v2982
    %v3111 = vpack.c.bf16 %v2987, %v2983
    %v3112 = vpack.c.bf16 %v2988, %v2984
    %v3113 = vpack.c.bf16 %v2993, %v2989
    %v3114 = vpack.c.bf16 %v2994, %v2990
    %v3115 = vpack.c.bf16 %v2995, %v2991
    %v3116 = vpack.c.bf16 %v2996, %v2992
    %v3117 = vpack.c.bf16 %v3001, %v2997
    %v3118 = vpack.c.bf16 %v3002, %v2998
    %v3119 = vpack.c.bf16 %v3003, %v2999
    %v3120 = vpack.c.bf16 %v3004, %v3000
    %v3121 = vpack.c.bf16 %v3009, %v3005
    %v3122 = vpack.c.bf16 %v3010, %v3006
    %v3123 = vpack.c.bf16 %v3011, %v3007
    %v3124 = vpack.c.bf16 %v3012, %v3008
    %v3125 = vpack.c.bf16 %v3017, %v3013
    %v3126 = vpack.c.bf16 %v3018, %v3014
    %v3127 = vpack.c.bf16 %v3019, %v3015
    %v3128 = vpack.c.bf16 %v3020, %v3016
    %v3129 = vpack.c.bf16 %v3025, %v3021
    %v3130 = vpack.c.bf16 %v3026, %v3022
    %v3131 = vpack.c.bf16 %v3027, %v3023
    %v3132 = vpack.c.bf16 %v3028, %v3024
    %v3133 = vpack.c.bf16 %v3033, %v3029
    %v3134 = vpack.c.bf16 %v3034, %v3030
    %v3135 = vpack.c.bf16 %v3035, %v3031
    %v3136 = vpack.c.bf16 %v3036, %v3032
    %v3137 = vpack.c.bf16 %v3041, %v3037
    %v3138 = vpack.c.bf16 %v3042, %v3038
    %v3139 = vpack.c.bf16 %v3043, %v3039
    %v3140 = vpack.c.bf16 %v3044, %v3040
    %v3141 = vpack.c.bf16 %v3049, %v3045
    %v3142 = vpack.c.bf16 %v3050, %v3046
    %v3143 = vpack.c.bf16 %v3051, %v3047
    %v3144 = vpack.c.bf16 %v3052, %v3048
    %v3145 = vpack.c.bf16 %v3057, %v3053
    %v3146 = vpack.c.bf16 %v3058, %v3054
    %v3147 = vpack.c.bf16 %v3059, %v3055
    %v3148 = vpack.c.bf16 %v3060, %v3056
    %v3149 = vpack.c.bf16 %v3065, %v3061
    %v3150 = vpack.c.bf16 %v3066, %v3062
    %v3151 = vpack.c.bf16 %v3067, %v3063
    %v3152 = vpack.c.bf16 %v3068, %v3064
    %v3153 = vpack.c.bf16 %v3073, %v3069
    %v3154 = vpack.c.bf16 %v3074, %v3070
    %v3155 = vpack.c.bf16 %v3075, %v3071
    %v3156 = vpack.c.bf16 %v3076, %v3072
    %v3157 = vpack.c.bf16 %v3081, %v3077
    %v3158 = vpack.c.bf16 %v3082, %v3078
    %v3159 = vpack.c.bf16 %v3083, %v3079
    %v3160 = vpack.c.bf16 %v3084, %v3080
    %v3161 = vpack.c.bf16 %v3089, %v3085
    %v3162 = vpack.c.bf16 %v3090, %v3086
    %v3163 = vpack.c.bf16 %v3091, %v3087
    %v3164 = vpack.c.bf16 %v3092, %v3088
    %v3165 = vpack.c.bf16 %v3097, %v3093
    %v3166 = vpack.c.bf16 %v3098, %v3094
    %v3167 = vpack.c.bf16 %v3099, %v3095
    %v3168 = vpack.c.bf16 %v3100, %v3096
    %v3169 = vld [vmem:[#allocation3] sm:$0xff]
    %v3170 = vld [vmem:[#allocation3 + $0x8] sm:$0xff]
    %v3171 = vld [vmem:[#allocation3 + $0x10] sm:$0xff]
    %v3172 = vld [vmem:[#allocation3 + $0x18] sm:$0xff]
    %v3173 = vld [vmem:[#allocation3 + $0x20] sm:$0xff]
    %v3174 = vld [vmem:[#allocation3 + $0x28] sm:$0xff]
    %v3175 = vld [vmem:[#allocation3 + $0x30] sm:$0xff]
    %v3176 = vld [vmem:[#allocation3 + $0x38] sm:$0xff]
    %v3177 = vld [vmem:[#allocation3 + $0x40] sm:$0xff]
    %v3178 = vld [vmem:[#allocation3 + $0x48] sm:$0xff]
    %v3179 = vld [vmem:[#allocation3 + $0x50] sm:$0xff]
    %v3180 = vld [vmem:[#allocation3 + $0x58] sm:$0xff]
    %v3181 = vld [vmem:[#allocation3 + $0x60] sm:$0xff]
    %v3182 = vld [vmem:[#allocation3 + $0x68] sm:$0xff]
    %v3183 = vld [vmem:[#allocation3 + $0x70] sm:$0xff]
    %v3184 = vld [vmem:[#allocation3 + $0x78] sm:$0xff]
    %v3185 = vld [vmem:[#allocation3 + $0x80] sm:$0xff]
    %v3186 = vld [vmem:[#allocation3 + $0x88] sm:$0xff]
    %v3187 = vld [vmem:[#allocation3 + $0x90] sm:$0xff]
    %v3188 = vld [vmem:[#allocation3 + $0x98] sm:$0xff]
    %v3189 = vld [vmem:[#allocation3 + $0xa0] sm:$0xff]
    %v3190 = vld [vmem:[#allocation3 + $0xa8] sm:$0xff]
    %v3191 = vld [vmem:[#allocation3 + $0xb0] sm:$0xff]
    %v3192 = vld [vmem:[#allocation3 + $0xb8] sm:$0xff]
    %v3193 = vld [vmem:[#allocation3 + $0xc0] sm:$0xff]
    %v3194 = vld [vmem:[#allocation3 + $0xc8] sm:$0xff]
    %v3195 = vld [vmem:[#allocation3 + $0xd0] sm:$0xff]
    %v3196 = vld [vmem:[#allocation3 + $0xd8] sm:$0xff]
    %v3197 = vld [vmem:[#allocation3 + $0xe0] sm:$0xff]
    %v3198 = vld [vmem:[#allocation3 + $0xe8] sm:$0xff]
    %v3199 = vld [vmem:[#allocation3 + $0xf0] sm:$0xff]
    %v3200 = vld [vmem:[#allocation3 + $0xf8] sm:$0xff]
    %v3201 = vld [vmem:[#allocation3 + $0x100] sm:$0xff]
    %v3202 = vld [vmem:[#allocation3 + $0x108] sm:$0xff]
    %v3203 = vld [vmem:[#allocation3 + $0x110] sm:$0xff]
    %v3204 = vld [vmem:[#allocation3 + $0x118] sm:$0xff]
    %v3205 = vld [vmem:[#allocation3 + $0x120] sm:$0xff]
    %v3206 = vld [vmem:[#allocation3 + $0x128] sm:$0xff]
    %v3207 = vld [vmem:[#allocation3 + $0x130] sm:$0xff]
    %v3208 = vld [vmem:[#allocation3 + $0x138] sm:$0xff]
    %v3209 = vld [vmem:[#allocation3 + $0x140] sm:$0xff]
    %v3210 = vld [vmem:[#allocation3 + $0x148] sm:$0xff]
    %v3211 = vld [vmem:[#allocation3 + $0x150] sm:$0xff]
    %v3212 = vld [vmem:[#allocation3 + $0x158] sm:$0xff]
    %v3213 = vld [vmem:[#allocation3 + $0x160] sm:$0xff]
    %v3214 = vld [vmem:[#allocation3 + $0x168] sm:$0xff]
    %v3215 = vld [vmem:[#allocation3 + $0x170] sm:$0xff]
    %v3216 = vld [vmem:[#allocation3 + $0x178] sm:$0xff]
    %v3217 = vld [vmem:[#allocation3 + $0x180] sm:$0xff]
    %v3218 = vld [vmem:[#allocation3 + $0x188] sm:$0xff]
    %v3219 = vld [vmem:[#allocation3 + $0x190] sm:$0xff]
    %v3220 = vld [vmem:[#allocation3 + $0x198] sm:$0xff]
    %v3221 = vld [vmem:[#allocation3 + $0x1a0] sm:$0xff]
    %v3222 = vld [vmem:[#allocation3 + $0x1a8] sm:$0xff]
    %v3223 = vld [vmem:[#allocation3 + $0x1b0] sm:$0xff]
    %v3224 = vld [vmem:[#allocation3 + $0x1b8] sm:$0xff]
    %v3225 = vld [vmem:[#allocation3 + $0x1c0] sm:$0xff]
    %v3226 = vld [vmem:[#allocation3 + $0x1c8] sm:$0xff]
    %v3227 = vld [vmem:[#allocation3 + $0x1d0] sm:$0xff]
    %v3228 = vld [vmem:[#allocation3 + $0x1d8] sm:$0xff]
    %v3229 = vld [vmem:[#allocation3 + $0x1e0] sm:$0xff]
    %v3230 = vld [vmem:[#allocation3 + $0x1e8] sm:$0xff]
    %v3231 = vld [vmem:[#allocation3 + $0x1f0] sm:$0xff]
    %v3232 = vld [vmem:[#allocation3 + $0x1f8] sm:$0xff]
    %v3233 = vld [vmem:[#allocation3 + $0x200] sm:$0xff]
    %v3234 = vld [vmem:[#allocation3 + $0x208] sm:$0xff]
    %v3235 = vld [vmem:[#allocation3 + $0x210] sm:$0xff]
    %v3236 = vld [vmem:[#allocation3 + $0x218] sm:$0xff]
    %v3237 = vld [vmem:[#allocation3 + $0x220] sm:$0xff]
    %v3238 = vld [vmem:[#allocation3 + $0x228] sm:$0xff]
    %v3239 = vld [vmem:[#allocation3 + $0x230] sm:$0xff]
    %v3240 = vld [vmem:[#allocation3 + $0x238] sm:$0xff]
    %v3241 = vld [vmem:[#allocation3 + $0x240] sm:$0xff]
    %v3242 = vld [vmem:[#allocation3 + $0x248] sm:$0xff]
    %v3243 = vld [vmem:[#allocation3 + $0x250] sm:$0xff]
    %v3244 = vld [vmem:[#allocation3 + $0x258] sm:$0xff]
    %v3245 = vld [vmem:[#allocation3 + $0x260] sm:$0xff]
    %v3246 = vld [vmem:[#allocation3 + $0x268] sm:$0xff]
    %v3247 = vld [vmem:[#allocation3 + $0x270] sm:$0xff]
    %v3248 = vld [vmem:[#allocation3 + $0x278] sm:$0xff]
    %v3249 = vld [vmem:[#allocation3 + $0x280] sm:$0xff]
    %v3250 = vld [vmem:[#allocation3 + $0x288] sm:$0xff]
    %v3251 = vld [vmem:[#allocation3 + $0x290] sm:$0xff]
    %v3252 = vld [vmem:[#allocation3 + $0x298] sm:$0xff]
    %v3253 = vld [vmem:[#allocation3 + $0x2a0] sm:$0xff]
    %v3254 = vld [vmem:[#allocation3 + $0x2a8] sm:$0xff]
    %v3255 = vld [vmem:[#allocation3 + $0x2b0] sm:$0xff]
    %v3256 = vld [vmem:[#allocation3 + $0x2b8] sm:$0xff]
    %v3257 = vld [vmem:[#allocation3 + $0x2c0] sm:$0xff]
    %v3258 = vld [vmem:[#allocation3 + $0x2c8] sm:$0xff]
    %v3259 = vld [vmem:[#allocation3 + $0x2d0] sm:$0xff]
    %v3260 = vld [vmem:[#allocation3 + $0x2d8] sm:$0xff]
    %v3261 = vld [vmem:[#allocation3 + $0x2e0] sm:$0xff]
    %v3262 = vld [vmem:[#allocation3 + $0x2e8] sm:$0xff]
    %v3263 = vld [vmem:[#allocation3 + $0x2f0] sm:$0xff]
    %v3264 = vld [vmem:[#allocation3 + $0x2f8] sm:$0xff]
    %v3265 = vld [vmem:[#allocation3 + $0x300] sm:$0xff]
    %v3266 = vld [vmem:[#allocation3 + $0x308] sm:$0xff]
    %v3267 = vld [vmem:[#allocation3 + $0x310] sm:$0xff]
    %v3268 = vld [vmem:[#allocation3 + $0x318] sm:$0xff]
    %v3269 = vld [vmem:[#allocation3 + $0x320] sm:$0xff]
    %v3270 = vld [vmem:[#allocation3 + $0x328] sm:$0xff]
    %v3271 = vld [vmem:[#allocation3 + $0x330] sm:$0xff]
    %v3272 = vld [vmem:[#allocation3 + $0x338] sm:$0xff]
    %v3273 = vld [vmem:[#allocation3 + $0x340] sm:$0xff]
    %v3274 = vld [vmem:[#allocation3 + $0x348] sm:$0xff]
    %v3275 = vld [vmem:[#allocation3 + $0x350] sm:$0xff]
    %v3276 = vld [vmem:[#allocation3 + $0x358] sm:$0xff]
    %v3277 = vld [vmem:[#allocation3 + $0x360] sm:$0xff]
    %v3278 = vld [vmem:[#allocation3 + $0x368] sm:$0xff]
    %v3279 = vld [vmem:[#allocation3 + $0x370] sm:$0xff]
    %v3280 = vld [vmem:[#allocation3 + $0x378] sm:$0xff]
    %v3281 = vld [vmem:[#allocation3 + $0x380] sm:$0xff]
    %v3282 = vld [vmem:[#allocation3 + $0x388] sm:$0xff]
    %v3283 = vld [vmem:[#allocation3 + $0x390] sm:$0xff]
    %v3284 = vld [vmem:[#allocation3 + $0x398] sm:$0xff]
    %v3285 = vld [vmem:[#allocation3 + $0x3a0] sm:$0xff]
    %v3286 = vld [vmem:[#allocation3 + $0x3a8] sm:$0xff]
    %v3287 = vld [vmem:[#allocation3 + $0x3b0] sm:$0xff]
    %v3288 = vld [vmem:[#allocation3 + $0x3b8] sm:$0xff]
    %v3289 = vld [vmem:[#allocation3 + $0x3c0] sm:$0xff]
    %v3290 = vld [vmem:[#allocation3 + $0x3c8] sm:$0xff]
    %v3291 = vld [vmem:[#allocation3 + $0x3d0] sm:$0xff]
    %v3292 = vld [vmem:[#allocation3 + $0x3d8] sm:$0xff]
    %v3293 = vld [vmem:[#allocation3 + $0x3e0] sm:$0xff]
    %v3294 = vld [vmem:[#allocation3 + $0x3e8] sm:$0xff]
    %v3295 = vld [vmem:[#allocation3 + $0x3f0] sm:$0xff]
    %v3296 = vld [vmem:[#allocation3 + $0x3f8] sm:$0xff]
    %v3297 = vld [vmem:[#allocation3 + $0x400] sm:$0xff]
    %v3298 = vld [vmem:[#allocation3 + $0x408] sm:$0xff]
    %v3299 = vld [vmem:[#allocation3 + $0x410] sm:$0xff]
    %v3300 = vld [vmem:[#allocation3 + $0x418] sm:$0xff]
    %v3301 = vld [vmem:[#allocation3 + $0x420] sm:$0xff]
    %v3302 = vld [vmem:[#allocation3 + $0x428] sm:$0xff]
    %v3303 = vld [vmem:[#allocation3 + $0x430] sm:$0xff]
    %v3304 = vld [vmem:[#allocation3 + $0x438] sm:$0xff]
    %v3305 = vld [vmem:[#allocation3 + $0x440] sm:$0xff]
    %v3306 = vld [vmem:[#allocation3 + $0x448] sm:$0xff]
    %v3307 = vld [vmem:[#allocation3 + $0x450] sm:$0xff]
    %v3308 = vld [vmem:[#allocation3 + $0x458] sm:$0xff]
    %v3309 = vld [vmem:[#allocation3 + $0x460] sm:$0xff]
    %v3310 = vld [vmem:[#allocation3 + $0x468] sm:$0xff]
    %v3311 = vld [vmem:[#allocation3 + $0x470] sm:$0xff]
    %v3312 = vld [vmem:[#allocation3 + $0x478] sm:$0xff]
    %v3313 = vld [vmem:[#allocation3 + $0x480] sm:$0xff]
    %v3314 = vld [vmem:[#allocation3 + $0x488] sm:$0xff]
    %v3315 = vld [vmem:[#allocation3 + $0x490] sm:$0xff]
    %v3316 = vld [vmem:[#allocation3 + $0x498] sm:$0xff]
    %v3317 = vld [vmem:[#allocation3 + $0x4a0] sm:$0xff]
    %v3318 = vld [vmem:[#allocation3 + $0x4a8] sm:$0xff]
    %v3319 = vld [vmem:[#allocation3 + $0x4b0] sm:$0xff]
    %v3320 = vld [vmem:[#allocation3 + $0x4b8] sm:$0xff]
    %v3321 = vld [vmem:[#allocation3 + $0x4c0] sm:$0xff]
    %v3322 = vld [vmem:[#allocation3 + $0x4c8] sm:$0xff]
    %v3323 = vld [vmem:[#allocation3 + $0x4d0] sm:$0xff]
    %v3324 = vld [vmem:[#allocation3 + $0x4d8] sm:$0xff]
    %v3325 = vld [vmem:[#allocation3 + $0x4e0] sm:$0xff]
    %v3326 = vld [vmem:[#allocation3 + $0x4e8] sm:$0xff]
    %v3327 = vld [vmem:[#allocation3 + $0x4f0] sm:$0xff]
    %v3328 = vld [vmem:[#allocation3 + $0x4f8] sm:$0xff]
    %v3329 = vld [vmem:[#allocation3 + $0x500] sm:$0xff]
    %v3330 = vld [vmem:[#allocation3 + $0x508] sm:$0xff]
    %v3331 = vld [vmem:[#allocation3 + $0x510] sm:$0xff]
    %v3332 = vld [vmem:[#allocation3 + $0x518] sm:$0xff]
    %v3333 = vld [vmem:[#allocation3 + $0x520] sm:$0xff]
    %v3334 = vld [vmem:[#allocation3 + $0x528] sm:$0xff]
    %v3335 = vld [vmem:[#allocation3 + $0x530] sm:$0xff]
    %v3336 = vld [vmem:[#allocation3 + $0x538] sm:$0xff]
    %v3337 = vld [vmem:[#allocation3 + $0x540] sm:$0xff]
    %v3338 = vld [vmem:[#allocation3 + $0x548] sm:$0xff]
    %v3339 = vld [vmem:[#allocation3 + $0x550] sm:$0xff]
    %v3340 = vld [vmem:[#allocation3 + $0x558] sm:$0xff]
    %v3341 = vld [vmem:[#allocation3 + $0x560] sm:$0xff]
    %v3342 = vld [vmem:[#allocation3 + $0x568] sm:$0xff]
    %v3343 = vld [vmem:[#allocation3 + $0x570] sm:$0xff]
    %v3344 = vld [vmem:[#allocation3 + $0x578] sm:$0xff]
    %v3345 = vld [vmem:[#allocation3 + $0x580] sm:$0xff]
    %v3346 = vld [vmem:[#allocation3 + $0x588] sm:$0xff]
    %v3347 = vld [vmem:[#allocation3 + $0x590] sm:$0xff]
    %v3348 = vld [vmem:[#allocation3 + $0x598] sm:$0xff]
    %v3349 = vld [vmem:[#allocation3 + $0x5a0] sm:$0xff]
    %v3350 = vld [vmem:[#allocation3 + $0x5a8] sm:$0xff]
    %v3351 = vld [vmem:[#allocation3 + $0x5b0] sm:$0xff]
    %v3352 = vld [vmem:[#allocation3 + $0x5b8] sm:$0xff]
    %v3353 = vld [vmem:[#allocation3 + $0x5c0] sm:$0xff]
    %v3354 = vld [vmem:[#allocation3 + $0x5c8] sm:$0xff]
    %v3355 = vld [vmem:[#allocation3 + $0x5d0] sm:$0xff]
    %v3356 = vld [vmem:[#allocation3 + $0x5d8] sm:$0xff]
    %v3357 = vld [vmem:[#allocation3 + $0x5e0] sm:$0xff]
    %v3358 = vld [vmem:[#allocation3 + $0x5e8] sm:$0xff]
    %v3359 = vld [vmem:[#allocation3 + $0x5f0] sm:$0xff]
    %v3360 = vld [vmem:[#allocation3 + $0x5f8] sm:$0xff]
    %v3361 = vld [vmem:[#allocation3 + $0x600] sm:$0xff]
    %v3362 = vld [vmem:[#allocation3 + $0x608] sm:$0xff]
    %v3363 = vld [vmem:[#allocation3 + $0x610] sm:$0xff]
    %v3364 = vld [vmem:[#allocation3 + $0x618] sm:$0xff]
    %v3365 = vld [vmem:[#allocation3 + $0x620] sm:$0xff]
    %v3366 = vld [vmem:[#allocation3 + $0x628] sm:$0xff]
    %v3367 = vld [vmem:[#allocation3 + $0x630] sm:$0xff]
    %v3368 = vld [vmem:[#allocation3 + $0x638] sm:$0xff]
    %v3369 = vld [vmem:[#allocation3 + $0x640] sm:$0xff]
    %v3370 = vld [vmem:[#allocation3 + $0x648] sm:$0xff]
    %v3371 = vld [vmem:[#allocation3 + $0x650] sm:$0xff]
    %v3372 = vld [vmem:[#allocation3 + $0x658] sm:$0xff]
    %v3373 = vld [vmem:[#allocation3 + $0x660] sm:$0xff]
    %v3374 = vld [vmem:[#allocation3 + $0x668] sm:$0xff]
    %v3375 = vld [vmem:[#allocation3 + $0x670] sm:$0xff]
    %v3376 = vld [vmem:[#allocation3 + $0x678] sm:$0xff]
    %v3377 = vld [vmem:[#allocation3 + $0x680] sm:$0xff]
    %v3378 = vld [vmem:[#allocation3 + $0x688] sm:$0xff]
    %v3379 = vld [vmem:[#allocation3 + $0x690] sm:$0xff]
    %v3380 = vld [vmem:[#allocation3 + $0x698] sm:$0xff]
    %v3381 = vld [vmem:[#allocation3 + $0x6a0] sm:$0xff]
    %v3382 = vld [vmem:[#allocation3 + $0x6a8] sm:$0xff]
    %v3383 = vld [vmem:[#allocation3 + $0x6b0] sm:$0xff]
    %v3384 = vld [vmem:[#allocation3 + $0x6b8] sm:$0xff]
    %v3385 = vld [vmem:[#allocation3 + $0x6c0] sm:$0xff]
    %v3386 = vld [vmem:[#allocation3 + $0x6c8] sm:$0xff]
    %v3387 = vld [vmem:[#allocation3 + $0x6d0] sm:$0xff]
    %v3388 = vld [vmem:[#allocation3 + $0x6d8] sm:$0xff]
    %v3389 = vld [vmem:[#allocation3 + $0x6e0] sm:$0xff]
    %v3390 = vld [vmem:[#allocation3 + $0x6e8] sm:$0xff]
    %v3391 = vld [vmem:[#allocation3 + $0x6f0] sm:$0xff]
    %v3392 = vld [vmem:[#allocation3 + $0x6f8] sm:$0xff]
    %v3393 = vld [vmem:[#allocation3 + $0x700] sm:$0xff]
    %v3394 = vld [vmem:[#allocation3 + $0x708] sm:$0xff]
    %v3395 = vld [vmem:[#allocation3 + $0x710] sm:$0xff]
    %v3396 = vld [vmem:[#allocation3 + $0x718] sm:$0xff]
    %v3397 = vld [vmem:[#allocation3 + $0x720] sm:$0xff]
    %v3398 = vld [vmem:[#allocation3 + $0x728] sm:$0xff]
    %v3399 = vld [vmem:[#allocation3 + $0x730] sm:$0xff]
    %v3400 = vld [vmem:[#allocation3 + $0x738] sm:$0xff]
    %v3401 = vld [vmem:[#allocation3 + $0x740] sm:$0xff]
    %v3402 = vld [vmem:[#allocation3 + $0x748] sm:$0xff]
    %v3403 = vld [vmem:[#allocation3 + $0x750] sm:$0xff]
    %v3404 = vld [vmem:[#allocation3 + $0x758] sm:$0xff]
    %v3405 = vld [vmem:[#allocation3 + $0x760] sm:$0xff]
    %v3406 = vld [vmem:[#allocation3 + $0x768] sm:$0xff]
    %v3407 = vld [vmem:[#allocation3 + $0x770] sm:$0xff]
    %v3408 = vld [vmem:[#allocation3 + $0x778] sm:$0xff]
    %v3409 = vld [vmem:[#allocation3 + $0x780] sm:$0xff]
    %v3410 = vld [vmem:[#allocation3 + $0x788] sm:$0xff]
    %v3411 = vld [vmem:[#allocation3 + $0x790] sm:$0xff]
    %v3412 = vld [vmem:[#allocation3 + $0x798] sm:$0xff]
    %v3413 = vld [vmem:[#allocation3 + $0x7a0] sm:$0xff]
    %v3414 = vld [vmem:[#allocation3 + $0x7a8] sm:$0xff]
    %v3415 = vld [vmem:[#allocation3 + $0x7b0] sm:$0xff]
    %v3416 = vld [vmem:[#allocation3 + $0x7b8] sm:$0xff]
    %v3417 = vld [vmem:[#allocation3 + $0x7c0] sm:$0xff]
    %v3418 = vld [vmem:[#allocation3 + $0x7c8] sm:$0xff]
    %v3419 = vld [vmem:[#allocation3 + $0x7d0] sm:$0xff]
    %v3420 = vld [vmem:[#allocation3 + $0x7d8] sm:$0xff]
    %v3421 = vld [vmem:[#allocation3 + $0x7e0] sm:$0xff]
    %v3422 = vld [vmem:[#allocation3 + $0x7e8] sm:$0xff]
    %v3423 = vld [vmem:[#allocation3 + $0x7f0] sm:$0xff]
    %v3424 = vld [vmem:[#allocation3 + $0x7f8] sm:$0xff]
    %3425 = vmatprep.subr.bf16.mxu0 %v3170
    %3426 = vmatpush1.bf16.msra.mxu0 %v3169
    %3427 = vmatprep.subr.bf16.mxu0 %v3178
    %3428 = vmatpush1.bf16.msra.mxu0 %v3177
    %3429 = vmatprep.subr.bf16.mxu0 %v3186
    %3430 = vmatpush1.bf16.msra.mxu0 %v3185
    %3431 = vmatprep.subr.bf16.mxu0 %v3194
    %3432 = vmatpush1.bf16.msra.mxu0 %v3193
    %3433 = vmatprep.subr.bf16.mxu0 %v3202
    %3434 = vmatpush1.bf16.msra.mxu0 %v3201
    %3435 = vmatprep.subr.bf16.mxu0 %v3210
    %3436 = vmatpush1.bf16.msra.mxu0 %v3209
    %3437 = vmatprep.subr.bf16.mxu0 %v3218
    %3438 = vmatpush1.bf16.msra.mxu0 %v3217
    %3439 = vmatprep.subr.bf16.mxu0 %v3226
    %3440 = vmatpush1.bf16.msra.mxu0 %v3225
    %3441 = vmatprep.subr.bf16.mxu0 %v3234
    %3442 = vmatpush1.bf16.msra.mxu0 %v3233
    %3443 = vmatprep.subr.bf16.mxu0 %v3242
    %3444 = vmatpush1.bf16.msra.mxu0 %v3241
    %3445 = vmatprep.subr.bf16.mxu0 %v3250
    %3446 = vmatpush1.bf16.msra.mxu0 %v3249
    %3447 = vmatprep.subr.bf16.mxu0 %v3258
    %3448 = vmatpush1.bf16.msra.mxu0 %v3257
    %3449 = vmatprep.subr.bf16.mxu0 %v3266
    %3450 = vmatpush1.bf16.msra.mxu0 %v3265
    %3451 = vmatprep.subr.bf16.mxu0 %v3274
    %3452 = vmatpush1.bf16.msra.mxu0 %v3273
    %3453 = vmatprep.subr.bf16.mxu0 %v3282
    %3454 = vmatpush1.bf16.msra.mxu0 %v3281
    %3455 = vmatprep.subr.bf16.mxu0 %v3290
    %3456 = vmatpush1.bf16.msra.mxu0 %v3289
    %3457 = vmatprep.mubr.bf16.mxu0 %v3106
    %3458 = vmatmul.mubr.bf16.gmra.mrb[0].mxu0 %v3105
    %v3459 = vpop.f32.mrb[0].mxu0
    %v3460 = vadd.f32 0.0, %v3459
    %v3461 = vpop.f32.mrb[0].mxu0
    %v3462 = vadd.f32 0.0, %v3461
    %v3463 = vpop.f32.mrb[0].mxu0
    %v3464 = vadd.f32 0.0, %v3463
    %v3465 = vpop.f32.mrb[0].mxu0
    %v3466 = vadd.f32 0.0, %v3465
    %3467 = vmatprep.mubr.bf16.mxu0 %v3110
    %3468 = vmatmul.mubr.bf16.gmra.mrb[0].mxu0 %v3109
    %v3469 = vpop.f32.mrb[0].mxu0
    %v3470 = vadd.f32 0.0, %v3469
    %v3471 = vpop.f32.mrb[0].mxu0
    %v3472 = vadd.f32 0.0, %v3471
    %v3473 = vpop.f32.mrb[0].mxu0
    %v3474 = vadd.f32 0.0, %v3473
    %v3475 = vpop.f32.mrb[0].mxu0
    %v3476 = vadd.f32 0.0, %v3475
    %3477 = vmatprep.mubr.bf16.mxu0 %v3114
    %3478 = vmatmul.mubr.bf16.gmra.mrb[0].mxu0 %v3113
    %v3479 = vpop.f32.mrb[0].mxu0
    %v3480 = vadd.f32 0.0, %v3479
    %v3481 = vpop.f32.mrb[0].mxu0
    %v3482 = vadd.f32 0.0, %v3481
    %v3483 = vpop.f32.mrb[0].mxu0
    %v3484 = vadd.f32 0.0, %v3483
    %v3485 = vpop.f32.mrb[0].mxu0
    %v3486 = vadd.f32 0.0, %v3485
    %3487 = vmatprep.mubr.bf16.mxu0 %v3118
    %3488 = vmatmul.mubr.bf16.gmra.mrb[0].mxu0 %v3117
    %v3489 = vpop.f32.mrb[0].mxu0
    %v3490 = vadd.f32 0.0, %v3489
    %v3491 = vpop.f32.mrb[0].mxu0
    %v3492 = vadd.f32 0.0, %v3491
    %v3493 = vpop.f32.mrb[0].mxu0
    %v3494 = vadd.f32 0.0, %v3493
    %v3495 = vpop.f32.mrb[0].mxu0
    %v3496 = vadd.f32 0.0, %v3495
    %3497 = vmatprep.mubr.bf16.mxu0 %v3122
    %3498 = vmatmul.mubr.bf16.gmra.mrb[0].mxu0 %v3121
    %v3499 = vpop.f32.mrb[0].mxu0
    %v3500 = vadd.f32 0.0, %v3499
    %v3501 = vpop.f32.mrb[0].mxu0
    %v3502 = vadd.f32 0.0, %v3501
    %v3503 = vpop.f32.mrb[0].mxu0
    %v3504 = vadd.f32 0.0, %v3503
    %v3505 = vpop.f32.mrb[0].mxu0
    %v3506 = vadd.f32 0.0, %v3505
    %3507 = vmatprep.mubr.bf16.mxu0 %v3126
    %3508 = vmatmul.mubr.bf16.gmra.mrb[0].mxu0 %v3125
    %v3509 = vpop.f32.mrb[0].mxu0
    %v3510 = vadd.f32 0.0, %v3509
    %v3511 = vpop.f32.mrb[0].mxu0
    %v3512 = vadd.f32 0.0, %v3511
    %v3513 = vpop.f32.mrb[0].mxu0
    %v3514 = vadd.f32 0.0, %v3513
    %v3515 = vpop.f32.mrb[0].mxu0
    %v3516 = vadd.f32 0.0, %v3515
    %3517 = vmatprep.mubr.bf16.mxu0 %v3130
    %3518 = vmatmul.mubr.bf16.gmra.mrb[0].mxu0 %v3129
    %v3519 = vpop.f32.mrb[0].mxu0
    %v3520 = vadd.f32 0.0, %v3519
    %v3521 = vpop.f32.mrb[0].mxu0
    %v3522 = vadd.f32 0.0, %v3521
    %v3523 = vpop.f32.mrb[0].mxu0
    %v3524 = vadd.f32 0.0, %v3523
    %v3525 = vpop.f32.mrb[0].mxu0
    %v3526 = vadd.f32 0.0, %v3525
    %3527 = vmatprep.mubr.bf16.mxu0 %v3134
    %3528 = vmatmul.mubr.bf16.gmra.mrb[0].mxu0 %v3133
    %v3529 = vpop.f32.mrb[0].mxu0
    %v3530 = vadd.f32 0.0, %v3529
    %v3531 = vpop.f32.mrb[0].mxu0
    %v3532 = vadd.f32 0.0, %v3531
    %v3533 = vpop.f32.mrb[0].mxu0
    %v3534 = vadd.f32 0.0, %v3533
    %v3535 = vpop.f32.mrb[0].mxu0
    %v3536 = vadd.f32 0.0, %v3535
    %3537 = vmatprep.mubr.bf16.mxu0 %v3138
    %3538 = vmatmul.mubr.bf16.gmra.mrb[0].mxu0 %v3137
    %v3539 = vpop.f32.mrb[0].mxu0
    %v3540 = vadd.f32 0.0, %v3539
    %v3541 = vpop.f32.mrb[0].mxu0
    %v3542 = vadd.f32 0.0, %v3541
    %v3543 = vpop.f32.mrb[0].mxu0
    %v3544 = vadd.f32 0.0, %v3543
    %v3545 = vpop.f32.mrb[0].mxu0
    %v3546 = vadd.f32 0.0, %v3545
    %3547 = vmatprep.mubr.bf16.mxu0 %v3142
    %3548 = vmatmul.mubr.bf16.gmra.mrb[0].mxu0 %v3141
    %v3549 = vpop.f32.mrb[0].mxu0
    %v3550 = vadd.f32 0.0, %v3549
    %v3551 = vpop.f32.mrb[0].mxu0
    %v3552 = vadd.f32 0.0, %v3551
    %v3553 = vpop.f32.mrb[0].mxu0
    %v3554 = vadd.f32 0.0, %v3553
    %v3555 = vpop.f32.mrb[0].mxu0
    %v3556 = vadd.f32 0.0, %v3555
    %3557 = vmatprep.mubr.bf16.mxu0 %v3146
    %3558 = vmatmul.mubr.bf16.gmra.mrb[0].mxu0 %v3145
    %v3559 = vpop.f32.mrb[0].mxu0
    %v3560 = vadd.f32 0.0, %v3559
    %v3561 = vpop.f32.mrb[0].mxu0
    %v3562 = vadd.f32 0.0, %v3561
    %v3563 = vpop.f32.mrb[0].mxu0
    %v3564 = vadd.f32 0.0, %v3563
    %v3565 = vpop.f32.mrb[0].mxu0
    %v3566 = vadd.f32 0.0, %v3565
    %3567 = vmatprep.mubr.bf16.mxu0 %v3150
    %3568 = vmatmul.mubr.bf16.gmra.mrb[0].mxu0 %v3149
    %v3569 = vpop.f32.mrb[0].mxu0
    %v3570 = vadd.f32 0.0, %v3569
    %v3571 = vpop.f32.mrb[0].mxu0
    %v3572 = vadd.f32 0.0, %v3571
    %v3573 = vpop.f32.mrb[0].mxu0
    %v3574 = vadd.f32 0.0, %v3573
    %v3575 = vpop.f32.mrb[0].mxu0
    %v3576 = vadd.f32 0.0, %v3575
    %3577 = vmatprep.mubr.bf16.mxu0 %v3154
    %3578 = vmatmul.mubr.bf16.gmra.mrb[0].mxu0 %v3153
    %v3579 = vpop.f32.mrb[0].mxu0
    %v3580 = vadd.f32 0.0, %v3579
    %v3581 = vpop.f32.mrb[0].mxu0
    %v3582 = vadd.f32 0.0, %v3581
    %v3583 = vpop.f32.mrb[0].mxu0
    %v3584 = vadd.f32 0.0, %v3583
    %v3585 = vpop.f32.mrb[0].mxu0
    %v3586 = vadd.f32 0.0, %v3585
    %3587 = vmatprep.mubr.bf16.mxu0 %v3158
    %3588 = vmatmul.mubr.bf16.gmra.mrb[0].mxu0 %v3157
    %v3589 = vpop.f32.mrb[0].mxu0
    %v3590 = vadd.f32 0.0, %v3589
    %v3591 = vpop.f32.mrb[0].mxu0
    %v3592 = vadd.f32 0.0, %v3591
    %v3593 = vpop.f32.mrb[0].mxu0
    %v3594 = vadd.f32 0.0, %v3593
    %v3595 = vpop.f32.mrb[0].mxu0
    %v3596 = vadd.f32 0.0, %v3595
    %3597 = vmatprep.mubr.bf16.mxu0 %v3162
    %3598 = vmatmul.mubr.bf16.gmra.mrb[0].mxu0 %v3161
    %v3599 = vpop.f32.mrb[0].mxu0
    %v3600 = vadd.f32 0.0, %v3599
    %v3601 = vpop.f32.mrb[0].mxu0
    %v3602 = vadd.f32 0.0, %v3601
    %v3603 = vpop.f32.mrb[0].mxu0
    %v3604 = vadd.f32 0.0, %v3603
    %v3605 = vpop.f32.mrb[0].mxu0
    %v3606 = vadd.f32 0.0, %v3605
    %3607 = vmatprep.mubr.bf16.mxu0 %v3166
    %3608 = vmatmul.mubr.bf16.gmra.mrb[0].mxu0 %v3165
    %v3609 = vpop.f32.mrb[0].mxu0
    %v3610 = vadd.f32 0.0, %v3609
    %v3611 = vpop.f32.mrb[0].mxu0
    %v3612 = vadd.f32 0.0, %v3611
    %v3613 = vpop.f32.mrb[0].mxu0
    %v3614 = vadd.f32 0.0, %v3613
    %v3615 = vpop.f32.mrb[0].mxu0
    %v3616 = vadd.f32 0.0, %v3615
    %3617 = vdwg.mxu0
    %3618 = vmatprep.subr.bf16.mxu0 %v3298
    %3619 = vmatpush1.bf16.msra.mxu0 %v3297
    %3620 = vmatprep.subr.bf16.mxu0 %v3306
    %3621 = vmatpush1.bf16.msra.mxu0 %v3305
    %3622 = vmatprep.subr.bf16.mxu0 %v3314
    %3623 = vmatpush1.bf16.msra.mxu0 %v3313
    %3624 = vmatprep.subr.bf16.mxu0 %v3322
    %3625 = vmatpush1.bf16.msra.mxu0 %v3321
    %3626 = vmatprep.subr.bf16.mxu0 %v3330
    %3627 = vmatpush1.bf16.msra.mxu0 %v3329
    %3628 = vmatprep.subr.bf16.mxu0 %v3338
    %3629 = vmatpush1.bf16.msra.mxu0 %v3337
    %3630 = vmatprep.subr.bf16.mxu0 %v3346
    %3631 = vmatpush1.bf16.msra.mxu0 %v3345
    %3632 = vmatprep.subr.bf16.mxu0 %v3354
    %3633 = vmatpush1.bf16.msra.mxu0 %v3353
    %3634 = vmatprep.subr.bf16.mxu0 %v3362
    %3635 = vmatpush1.bf16.msra.mxu0 %v3361
    %3636 = vmatprep.subr.bf16.mxu0 %v3370
    %3637 = vmatpush1.bf16.msra.mxu0 %v3369
    %3638 = vmatprep.subr.bf16.mxu0 %v3378
    %3639 = vmatpush1.bf16.msra.mxu0 %v3377
    %3640 = vmatprep.subr.bf16.mxu0 %v3386
    %3641 = vmatpush1.bf16.msra.mxu0 %v3385
    %3642 = vmatprep.subr.bf16.mxu0 %v3394
    %3643 = vmatpush1.bf16.msra.mxu0 %v3393
    %3644 = vmatprep.subr.bf16.mxu0 %v3402
    %3645 = vmatpush1.bf16.msra.mxu0 %v3401
    %3646 = vmatprep.subr.bf16.mxu0 %v3410
    %3647 = vmatpush1.bf16.msra.mxu0 %v3409
    %3648 = vmatprep.subr.bf16.mxu0 %v3418
    %3649 = vmatpush1.bf16.msra.mxu0 %v3417
    %3650 = vmatprep.mubr.bf16.mxu0 %v3108
    %3651 = vmatmul.mubr.bf16.gmra.mrb[0].mxu0 %v3107
    %v3652 = vpop.f32.mrb[0].mxu0
    %v3653 = vadd.f32 %v3460, %v3652
    %v3654 = vpop.f32.mrb[0].mxu0
    %v3655 = vadd.f32 %v3462, %v3654
    %v3656 = vpop.f32.mrb[0].mxu0
    %v3657 = vadd.f32 %v3464, %v3656
    %v3658 = vpop.f32.mrb[0].mxu0
    %v3659 = vadd.f32 %v3466, %v3658
    %3660 = vmatprep.mubr.bf16.mxu0 %v3112
    %3661 = vmatmul.mubr.bf16.gmra.mrb[0].mxu0 %v3111
    %v3662 = vpop.f32.mrb[0].mxu0
    %v3663 = vadd.f32 %v3470, %v3662
    %v3664 = vpop.f32.mrb[0].mxu0
    %v3665 = vadd.f32 %v3472, %v3664
    %v3666 = vpop.f32.mrb[0].mxu0
    %v3667 = vadd.f32 %v3474, %v3666
    %v3668 = vpop.f32.mrb[0].mxu0
    %v3669 = vadd.f32 %v3476, %v3668
    %3670 = vmatprep.mubr.bf16.mxu0 %v3116
    %3671 = vmatmul.mubr.bf16.gmra.mrb[0].mxu0 %v3115
    %v3672 = vpop.f32.mrb[0].mxu0
    %v3673 = vadd.f32 %v3480, %v3672
    %v3674 = vpop.f32.mrb[0].mxu0
    %v3675 = vadd.f32 %v3482, %v3674
    %v3676 = vpop.f32.mrb[0].mxu0
    %v3677 = vadd.f32 %v3484, %v3676
    %v3678 = vpop.f32.mrb[0].mxu0
    %v3679 = vadd.f32 %v3486, %v3678
    %3680 = vmatprep.mubr.bf16.mxu0 %v3120
    %3681 = vmatmul.mubr.bf16.gmra.mrb[0].mxu0 %v3119
    %v3682 = vpop.f32.mrb[0].mxu0
    %v3683 = vadd.f32 %v3490, %v3682
    %v3684 = vpop.f32.mrb[0].mxu0
    %v3685 = vadd.f32 %v3492, %v3684
    %v3686 = vpop.f32.mrb[0].mxu0
    %v3687 = vadd.f32 %v3494, %v3686
    %v3688 = vpop.f32.mrb[0].mxu0
    %v3689 = vadd.f32 %v3496, %v3688
    %3690 = vmatprep.mubr.bf16.mxu0 %v3124
    %3691 = vmatmul.mubr.bf16.gmra.mrb[0].mxu0 %v3123
    %v3692 = vpop.f32.mrb[0].mxu0
    %v3693 = vadd.f32 %v3500, %v3692
    %v3694 = vpop.f32.mrb[0].mxu0
    %v3695 = vadd.f32 %v3502, %v3694
    %v3696 = vpop.f32.mrb[0].mxu0
    %v3697 = vadd.f32 %v3504, %v3696
    %v3698 = vpop.f32.mrb[0].mxu0
    %v3699 = vadd.f32 %v3506, %v3698
    %3700 = vmatprep.mubr.bf16.mxu0 %v3128
    %3701 = vmatmul.mubr.bf16.gmra.mrb[0].mxu0 %v3127
    %v3702 = vpop.f32.mrb[0].mxu0
    %v3703 = vadd.f32 %v3510, %v3702
    %v3704 = vpop.f32.mrb[0].mxu0
    %v3705 = vadd.f32 %v3512, %v3704
    %v3706 = vpop.f32.mrb[0].mxu0
    %v3707 = vadd.f32 %v3514, %v3706
    %v3708 = vpop.f32.mrb[0].mxu0
    %v3709 = vadd.f32 %v3516, %v3708
    %3710 = vmatprep.mubr.bf16.mxu0 %v3132
    %3711 = vmatmul.mubr.bf16.gmra.mrb[0].mxu0 %v3131
    %v3712 = vpop.f32.mrb[0].mxu0
    %v3713 = vadd.f32 %v3520, %v3712
    %v3714 = vpop.f32.mrb[0].mxu0
    %v3715 = vadd.f32 %v3522, %v3714
    %v3716 = vpop.f32.mrb[0].mxu0
    %v3717 = vadd.f32 %v3524, %v3716
    %v3718 = vpop.f32.mrb[0].mxu0
    %v3719 = vadd.f32 %v3526, %v3718
    %3720 = vmatprep.mubr.bf16.mxu0 %v3136
    %3721 = vmatmul.mubr.bf16.gmra.mrb[0].mxu0 %v3135
    %v3722 = vpop.f32.mrb[0].mxu0
    %v3723 = vadd.f32 %v3530, %v3722
    %v3724 = vpop.f32.mrb[0].mxu0
    %v3725 = vadd.f32 %v3532, %v3724
    %v3726 = vpop.f32.mrb[0].mxu0
    %v3727 = vadd.f32 %v3534, %v3726
    %v3728 = vpop.f32.mrb[0].mxu0
    %v3729 = vadd.f32 %v3536, %v3728
    %3730 = vmatprep.mubr.bf16.mxu0 %v3140
    %3731 = vmatmul.mubr.bf16.gmra.mrb[0].mxu0 %v3139
    %v3732 = vpop.f32.mrb[0].mxu0
    %v3733 = vadd.f32 %v3540, %v3732
    %v3734 = vpop.f32.mrb[0].mxu0
    %v3735 = vadd.f32 %v3542, %v3734
    %v3736 = vpop.f32.mrb[0].mxu0
    %v3737 = vadd.f32 %v3544, %v3736
    %v3738 = vpop.f32.mrb[0].mxu0
    %v3739 = vadd.f32 %v3546, %v3738
    %3740 = vmatprep.mubr.bf16.mxu0 %v3144
    %3741 = vmatmul.mubr.bf16.gmra.mrb[0].mxu0 %v3143
    %v3742 = vpop.f32.mrb[0].mxu0
    %v3743 = vadd.f32 %v3550, %v3742
    %v3744 = vpop.f32.mrb[0].mxu0
    %v3745 = vadd.f32 %v3552, %v3744
    %v3746 = vpop.f32.mrb[0].mxu0
    %v3747 = vadd.f32 %v3554, %v3746
    %v3748 = vpop.f32.mrb[0].mxu0
    %v3749 = vadd.f32 %v3556, %v3748
    %3750 = vmatprep.mubr.bf16.mxu0 %v3148
    %3751 = vmatmul.mubr.bf16.gmra.mrb[0].mxu0 %v3147
    %v3752 = vpop.f32.mrb[0].mxu0
    %v3753 = vadd.f32 %v3560, %v3752
    %v3754 = vpop.f32.mrb[0].mxu0
    %v3755 = vadd.f32 %v3562, %v3754
    %v3756 = vpop.f32.mrb[0].mxu0
    %v3757 = vadd.f32 %v3564, %v3756
    %v3758 = vpop.f32.mrb[0].mxu0
    %v3759 = vadd.f32 %v3566, %v3758
    %3760 = vmatprep.mubr.bf16.mxu0 %v3152
    %3761 = vmatmul.mubr.bf16.gmra.mrb[0].mxu0 %v3151
    %v3762 = vpop.f32.mrb[0].mxu0
    %v3763 = vadd.f32 %v3570, %v3762
    %v3764 = vpop.f32.mrb[0].mxu0
    %v3765 = vadd.f32 %v3572, %v3764
    %v3766 = vpop.f32.mrb[0].mxu0
    %v3767 = vadd.f32 %v3574, %v3766
    %v3768 = vpop.f32.mrb[0].mxu0
    %v3769 = vadd.f32 %v3576, %v3768
    %3770 = vmatprep.mubr.bf16.mxu0 %v3156
    %3771 = vmatmul.mubr.bf16.gmra.mrb[0].mxu0 %v3155
    %v3772 = vpop.f32.mrb[0].mxu0
    %v3773 = vadd.f32 %v3580, %v3772
    %v3774 = vpop.f32.mrb[0].mxu0
    %v3775 = vadd.f32 %v3582, %v3774
    %v3776 = vpop.f32.mrb[0].mxu0
    %v3777 = vadd.f32 %v3584, %v3776
    %v3778 = vpop.f32.mrb[0].mxu0
    %v3779 = vadd.f32 %v3586, %v3778
    %3780 = vmatprep.mubr.bf16.mxu0 %v3160
    %3781 = vmatmul.mubr.bf16.gmra.mrb[0].mxu0 %v3159
    %v3782 = vpop.f32.mrb[0].mxu0
    %v3783 = vadd.f32 %v3590, %v3782
    %v3784 = vpop.f32.mrb[0].mxu0
    %v3785 = vadd.f32 %v3592, %v3784
    %v3786 = vpop.f32.mrb[0].mxu0
    %v3787 = vadd.f32 %v3594, %v3786
    %v3788 = vpop.f32.mrb[0].mxu0
    %v3789 = vadd.f32 %v3596, %v3788
    %3790 = vmatprep.mubr.bf16.mxu0 %v3164
    %3791 = vmatmul.mubr.bf16.gmra.mrb[0].mxu0 %v3163
    %v3792 = vpop.f32.mrb[0].mxu0
    %v3793 = vadd.f32 %v3600, %v3792
    %v3794 = vpop.f32.mrb[0].mxu0
    %v3795 = vadd.f32 %v3602, %v3794
    %v3796 = vpop.f32.mrb[0].mxu0
    %v3797 = vadd.f32 %v3604, %v3796
    %v3798 = vpop.f32.mrb[0].mxu0
    %v3799 = vadd.f32 %v3606, %v3798
    %3800 = vmatprep.mubr.bf16.mxu0 %v3168
    %3801 = vmatmul.mubr.bf16.gmra.mrb[0].mxu0 %v3167
    %v3802 = vpop.f32.mrb[0].mxu0
    %v3803 = vadd.f32 %v3610, %v3802
    %v3804 = vpop.f32.mrb[0].mxu0
    %v3805 = vadd.f32 %v3612, %v3804
    %v3806 = vpop.f32.mrb[0].mxu0
    %v3807 = vadd.f32 %v3614, %v3806
    %v3808 = vpop.f32.mrb[0].mxu0
    %v3809 = vadd.f32 %v3616, %v3808
    %3810 = vdwg.mxu0
    %3811 = vmatprep.subr.bf16.mxu0 %v3172
    %3812 = vmatpush1.bf16.msra.mxu0 %v3171
    %3813 = vmatprep.subr.bf16.mxu0 %v3180
    %3814 = vmatpush1.bf16.msra.mxu0 %v3179
    %3815 = vmatprep.subr.bf16.mxu0 %v3188
    %3816 = vmatpush1.bf16.msra.mxu0 %v3187
    %3817 = vmatprep.subr.bf16.mxu0 %v3196
    %3818 = vmatpush1.bf16.msra.mxu0 %v3195
    %3819 = vmatprep.subr.bf16.mxu0 %v3204
    %3820 = vmatpush1.bf16.msra.mxu0 %v3203
    %3821 = vmatprep.subr.bf16.mxu0 %v3212
    %3822 = vmatpush1.bf16.msra.mxu0 %v3211
    %3823 = vmatprep.subr.bf16.mxu0 %v3220
    %3824 = vmatpush1.bf16.msra.mxu0 %v3219
    %3825 = vmatprep.subr.bf16.mxu0 %v3228
    %3826 = vmatpush1.bf16.msra.mxu0 %v3227
    %3827 = vmatprep.subr.bf16.mxu0 %v3236
    %3828 = vmatpush1.bf16.msra.mxu0 %v3235
    %3829 = vmatprep.subr.bf16.mxu0 %v3244
    %3830 = vmatpush1.bf16.msra.mxu0 %v3243
    %3831 = vmatprep.subr.bf16.mxu0 %v3252
    %3832 = vmatpush1.bf16.msra.mxu0 %v3251
    %3833 = vmatprep.subr.bf16.mxu0 %v3260
    %3834 = vmatpush1.bf16.msra.mxu0 %v3259
    %3835 = vmatprep.subr.bf16.mxu0 %v3268
    %3836 = vmatpush1.bf16.msra.mxu0 %v3267
    %3837 = vmatprep.subr.bf16.mxu0 %v3276
    %3838 = vmatpush1.bf16.msra.mxu0 %v3275
    %3839 = vmatprep.subr.bf16.mxu0 %v3284
    %3840 = vmatpush1.bf16.msra.mxu0 %v3283
    %3841 = vmatprep.subr.bf16.mxu0 %v3292
    %3842 = vmatpush1.bf16.msra.mxu0 %v3291
    %3843 = vmatprep.mubr.bf16.mxu0 %v3106
    %3844 = vmatmul.mubr.bf16.gmra.mrb[0].mxu0 %v3105
    %v3845 = vpop.f32.mrb[0].mxu0
    %v3846 = vadd.f32 0.0, %v3845
    %v3847 = vpop.f32.mrb[0].mxu0
    %v3848 = vadd.f32 0.0, %v3847
    %v3849 = vpop.f32.mrb[0].mxu0
    %v3850 = vadd.f32 0.0, %v3849
    %v3851 = vpop.f32.mrb[0].mxu0
    %v3852 = vadd.f32 0.0, %v3851
    %3853 = vmatprep.mubr.bf16.mxu0 %v3110
    %3854 = vmatmul.mubr.bf16.gmra.mrb[0].mxu0 %v3109
    %v3855 = vpop.f32.mrb[0].mxu0
    %v3856 = vadd.f32 0.0, %v3855
    %v3857 = vpop.f32.mrb[0].mxu0
    %v3858 = vadd.f32 0.0, %v3857
    %v3859 = vpop.f32.mrb[0].mxu0
    %v3860 = vadd.f32 0.0, %v3859
    %v3861 = vpop.f32.mrb[0].mxu0
    %v3862 = vadd.f32 0.0, %v3861
    %3863 = vmatprep.mubr.bf16.mxu0 %v3114
    %3864 = vmatmul.mubr.bf16.gmra.mrb[0].mxu0 %v3113
    %v3865 = vpop.f32.mrb[0].mxu0
    %v3866 = vadd.f32 0.0, %v3865
    %v3867 = vpop.f32.mrb[0].mxu0
    %v3868 = vadd.f32 0.0, %v3867
    %v3869 = vpop.f32.mrb[0].mxu0
    %v3870 = vadd.f32 0.0, %v3869
    %v3871 = vpop.f32.mrb[0].mxu0
    %v3872 = vadd.f32 0.0, %v3871
    %3873 = vmatprep.mubr.bf16.mxu0 %v3118
    %3874 = vmatmul.mubr.bf16.gmra.mrb[0].mxu0 %v3117
    %v3875 = vpop.f32.mrb[0].mxu0
    %v3876 = vadd.f32 0.0, %v3875
    %v3877 = vpop.f32.mrb[0].mxu0
    %v3878 = vadd.f32 0.0, %v3877
    %v3879 = vpop.f32.mrb[0].mxu0
    %v3880 = vadd.f32 0.0, %v3879
    %v3881 = vpop.f32.mrb[0].mxu0
    %v3882 = vadd.f32 0.0, %v3881
    %3883 = vmatprep.mubr.bf16.mxu0 %v3122
    %3884 = vmatmul.mubr.bf16.gmra.mrb[0].mxu0 %v3121
    %v3885 = vpop.f32.mrb[0].mxu0
    %v3886 = vadd.f32 0.0, %v3885
    %v3887 = vpop.f32.mrb[0].mxu0
    %v3888 = vadd.f32 0.0, %v3887
    %v3889 = vpop.f32.mrb[0].mxu0
    %v3890 = vadd.f32 0.0, %v3889
    %v3891 = vpop.f32.mrb[0].mxu0
    %v3892 = vadd.f32 0.0, %v3891
    %3893 = vmatprep.mubr.bf16.mxu0 %v3126
    %3894 = vmatmul.mubr.bf16.gmra.mrb[0].mxu0 %v3125
    %v3895 = vpop.f32.mrb[0].mxu0
    %v3896 = vadd.f32 0.0, %v3895
    %v3897 = vpop.f32.mrb[0].mxu0
    %v3898 = vadd.f32 0.0, %v3897
    %v3899 = vpop.f32.mrb[0].mxu0
    %v3900 = vadd.f32 0.0, %v3899
    %v3901 = vpop.f32.mrb[0].mxu0
    %v3902 = vadd.f32 0.0, %v3901
    %3903 = vmatprep.mubr.bf16.mxu0 %v3130
    %3904 = vmatmul.mubr.bf16.gmra.mrb[0].mxu0 %v3129
    %v3905 = vpop.f32.mrb[0].mxu0
    %v3906 = vadd.f32 0.0, %v3905
    %v3907 = vpop.f32.mrb[0].mxu0
    %v3908 = vadd.f32 0.0, %v3907
    %v3909 = vpop.f32.mrb[0].mxu0
    %v3910 = vadd.f32 0.0, %v3909
    %v3911 = vpop.f32.mrb[0].mxu0
    %v3912 = vadd.f32 0.0, %v3911
    %3913 = vmatprep.mubr.bf16.mxu0 %v3134
    %3914 = vmatmul.mubr.bf16.gmra.mrb[0].mxu0 %v3133
    %v3915 = vpop.f32.mrb[0].mxu0
    %v3916 = vadd.f32 0.0, %v3915
    %v3917 = vpop.f32.mrb[0].mxu0
    %v3918 = vadd.f32 0.0, %v3917
    %v3919 = vpop.f32.mrb[0].mxu0
    %v3920 = vadd.f32 0.0, %v3919
    %v3921 = vpop.f32.mrb[0].mxu0
    %v3922 = vadd.f32 0.0, %v3921
    %3923 = vmatprep.mubr.bf16.mxu0 %v3138
    %3924 = vmatmul.mubr.bf16.gmra.mrb[0].mxu0 %v3137
    %v3925 = vpop.f32.mrb[0].mxu0
    %v3926 = vadd.f32 0.0, %v3925
    %v3927 = vpop.f32.mrb[0].mxu0
    %v3928 = vadd.f32 0.0, %v3927
    %v3929 = vpop.f32.mrb[0].mxu0
    %v3930 = vadd.f32 0.0, %v3929
    %v3931 = vpop.f32.mrb[0].mxu0
    %v3932 = vadd.f32 0.0, %v3931
    %3933 = vmatprep.mubr.bf16.mxu0 %v3142
    %3934 = vmatmul.mubr.bf16.gmra.mrb[0].mxu0 %v3141
    %v3935 = vpop.f32.mrb[0].mxu0
    %v3936 = vadd.f32 0.0, %v3935
    %v3937 = vpop.f32.mrb[0].mxu0
    %v3938 = vadd.f32 0.0, %v3937
    %v3939 = vpop.f32.mrb[0].mxu0
    %v3940 = vadd.f32 0.0, %v3939
    %v3941 = vpop.f32.mrb[0].mxu0
    %v3942 = vadd.f32 0.0, %v3941
    %3943 = vmatprep.mubr.bf16.mxu0 %v3146
    %3944 = vmatmul.mubr.bf16.gmra.mrb[0].mxu0 %v3145
    %v3945 = vpop.f32.mrb[0].mxu0
    %v3946 = vadd.f32 0.0, %v3945
    %v3947 = vpop.f32.mrb[0].mxu0
    %v3948 = vadd.f32 0.0, %v3947
    %v3949 = vpop.f32.mrb[0].mxu0
    %v3950 = vadd.f32 0.0, %v3949
    %v3951 = vpop.f32.mrb[0].mxu0
    %v3952 = vadd.f32 0.0, %v3951
    %3953 = vmatprep.mubr.bf16.mxu0 %v3150
    %3954 = vmatmul.mubr.bf16.gmra.mrb[0].mxu0 %v3149
    %v3955 = vpop.f32.mrb[0].mxu0
    %v3956 = vadd.f32 0.0, %v3955
    %v3957 = vpop.f32.mrb[0].mxu0
    %v3958 = vadd.f32 0.0, %v3957
    %v3959 = vpop.f32.mrb[0].mxu0
    %v3960 = vadd.f32 0.0, %v3959
    %v3961 = vpop.f32.mrb[0].mxu0
    %v3962 = vadd.f32 0.0, %v3961
    %3963 = vmatprep.mubr.bf16.mxu0 %v3154
    %3964 = vmatmul.mubr.bf16.gmra.mrb[0].mxu0 %v3153
    %v3965 = vpop.f32.mrb[0].mxu0
    %v3966 = vadd.f32 0.0, %v3965
    %v3967 = vpop.f32.mrb[0].mxu0
    %v3968 = vadd.f32 0.0, %v3967
    %v3969 = vpop.f32.mrb[0].mxu0
    %v3970 = vadd.f32 0.0, %v3969
    %v3971 = vpop.f32.mrb[0].mxu0
    %v3972 = vadd.f32 0.0, %v3971
    %3973 = vmatprep.mubr.bf16.mxu0 %v3158
    %3974 = vmatmul.mubr.bf16.gmra.mrb[0].mxu0 %v3157
    %v3975 = vpop.f32.mrb[0].mxu0
    %v3976 = vadd.f32 0.0, %v3975
    %v3977 = vpop.f32.mrb[0].mxu0
    %v3978 = vadd.f32 0.0, %v3977
    %v3979 = vpop.f32.mrb[0].mxu0
    %v3980 = vadd.f32 0.0, %v3979
    %v3981 = vpop.f32.mrb[0].mxu0
    %v3982 = vadd.f32 0.0, %v3981
    %3983 = vmatprep.mubr.bf16.mxu0 %v3162
    %3984 = vmatmul.mubr.bf16.gmra.mrb[0].mxu0 %v3161
    %v3985 = vpop.f32.mrb[0].mxu0
    %v3986 = vadd.f32 0.0, %v3985
    %v3987 = vpop.f32.mrb[0].mxu0
    %v3988 = vadd.f32 0.0, %v3987
    %v3989 = vpop.f32.mrb[0].mxu0
    %v3990 = vadd.f32 0.0, %v3989
    %v3991 = vpop.f32.mrb[0].mxu0
    %v3992 = vadd.f32 0.0, %v3991
    %3993 = vmatprep.mubr.bf16.mxu0 %v3166
    %3994 = vmatmul.mubr.bf16.gmra.mrb[0].mxu0 %v3165
    %v3995 = vpop.f32.mrb[0].mxu0
    %v3996 = vadd.f32 0.0, %v3995
    %v3997 = vpop.f32.mrb[0].mxu0
    %v3998 = vadd.f32 0.0, %v3997
    %v3999 = vpop.f32.mrb[0].mxu0
    %v4000 = vadd.f32 0.0, %v3999
    %v4001 = vpop.f32.mrb[0].mxu0
    %v4002 = vadd.f32 0.0, %v4001
    %4003 = vdwg.mxu0
    %4004 = vmatprep.subr.bf16.mxu0 %v3300
    %4005 = vmatpush1.bf16.msra.mxu0 %v3299
    %4006 = vmatprep.subr.bf16.mxu0 %v3308
    %4007 = vmatpush1.bf16.msra.mxu0 %v3307
    %4008 = vmatprep.subr.bf16.mxu0 %v3316
    %4009 = vmatpush1.bf16.msra.mxu0 %v3315
    %4010 = vmatprep.subr.bf16.mxu0 %v3324
    %4011 = vmatpush1.bf16.msra.mxu0 %v3323
    %4012 = vmatprep.subr.bf16.mxu0 %v3332
    %4013 = vmatpush1.bf16.msra.mxu0 %v3331
    %4014 = vmatprep.subr.bf16.mxu0 %v3340
    %4015 = vmatpush1.bf16.msra.mxu0 %v3339
    %4016 = vmatprep.subr.bf16.mxu0 %v3348
    %4017 = vmatpush1.bf16.msra.mxu0 %v3347
    %4018 = vmatprep.subr.bf16.mxu0 %v3356
    %4019 = vmatpush1.bf16.msra.mxu0 %v3355
    %4020 = vmatprep.subr.bf16.mxu0 %v3364
    %4021 = vmatpush1.bf16.msra.mxu0 %v3363
    %4022 = vmatprep.subr.bf16.mxu0 %v3372
    %4023 = vmatpush1.bf16.msra.mxu0 %v3371
    %4024 = vmatprep.subr.bf16.mxu0 %v3380
    %4025 = vmatpush1.bf16.msra.mxu0 %v3379
    %4026 = vmatprep.subr.bf16.mxu0 %v3388
    %4027 = vmatpush1.bf16.msra.mxu0 %v3387
    %4028 = vmatprep.subr.bf16.mxu0 %v3396
    %4029 = vmatpush1.bf16.msra.mxu0 %v3395
    %4030 = vmatprep.subr.bf16.mxu0 %v3404
    %4031 = vmatpush1.bf16.msra.mxu0 %v3403
    %4032 = vmatprep.subr.bf16.mxu0 %v3412
    %4033 = vmatpush1.bf16.msra.mxu0 %v3411
    %4034 = vmatprep.subr.bf16.mxu0 %v3420
    %4035 = vmatpush1.bf16.msra.mxu0 %v3419
    %4036 = vmatprep.mubr.bf16.mxu0 %v3108
    %4037 = vmatmul.mubr.bf16.gmra.mrb[0].mxu0 %v3107
    %v4038 = vpop.f32.mrb[0].mxu0
    %v4039 = vadd.f32 %v3846, %v4038
    %v4040 = vpop.f32.mrb[0].mxu0
    %v4041 = vadd.f32 %v3848, %v4040
    %v4042 = vpop.f32.mrb[0].mxu0
    %v4043 = vadd.f32 %v3850, %v4042
    %v4044 = vpop.f32.mrb[0].mxu0
    %v4045 = vadd.f32 %v3852, %v4044
    %4046 = vmatprep.mubr.bf16.mxu0 %v3112
    %4047 = vmatmul.mubr.bf16.gmra.mrb[0].mxu0 %v3111
    %v4048 = vpop.f32.mrb[0].mxu0
    %v4049 = vadd.f32 %v3856, %v4048
    %v4050 = vpop.f32.mrb[0].mxu0
    %v4051 = vadd.f32 %v3858, %v4050
    %v4052 = vpop.f32.mrb[0].mxu0
    %v4053 = vadd.f32 %v3860, %v4052
    %v4054 = vpop.f32.mrb[0].mxu0
    %v4055 = vadd.f32 %v3862, %v4054
    %4056 = vmatprep.mubr.bf16.mxu0 %v3116
    %4057 = vmatmul.mubr.bf16.gmra.mrb[0].mxu0 %v3115
    %v4058 = vpop.f32.mrb[0].mxu0
    %v4059 = vadd.f32 %v3866, %v4058
    %v4060 = vpop.f32.mrb[0].mxu0
    %v4061 = vadd.f32 %v3868, %v4060
    %v4062 = vpop.f32.mrb[0].mxu0
    %v4063 = vadd.f32 %v3870, %v4062
    %v4064 = vpop.f32.mrb[0].mxu0
    %v4065 = vadd.f32 %v3872, %v4064
    %4066 = vmatprep.mubr.bf16.mxu0 %v3120
    %4067 = vmatmul.mubr.bf16.gmra.mrb[0].mxu0 %v3119
    %v4068 = vpop.f32.mrb[0].mxu0
    %v4069 = vadd.f32 %v3876, %v4068
    %v4070 = vpop.f32.mrb[0].mxu0
    %v4071 = vadd.f32 %v3878, %v4070
    %v4072 = vpop.f32.mrb[0].mxu0
    %v4073 = vadd.f32 %v3880, %v4072
    %v4074 = vpop.f32.mrb[0].mxu0
    %v4075 = vadd.f32 %v3882, %v4074
    %4076 = vmatprep.mubr.bf16.mxu0 %v3124
    %4077 = vmatmul.mubr.bf16.gmra.mrb[0].mxu0 %v3123
    %v4078 = vpop.f32.mrb[0].mxu0
    %v4079 = vadd.f32 %v3886, %v4078
    %v4080 = vpop.f32.mrb[0].mxu0
    %v4081 = vadd.f32 %v3888, %v4080
    %v4082 = vpop.f32.mrb[0].mxu0
    %v4083 = vadd.f32 %v3890, %v4082
    %v4084 = vpop.f32.mrb[0].mxu0
    %v4085 = vadd.f32 %v3892, %v4084
    %4086 = vmatprep.mubr.bf16.mxu0 %v3128
    %4087 = vmatmul.mubr.bf16.gmra.mrb[0].mxu0 %v3127
    %v4088 = vpop.f32.mrb[0].mxu0
    %v4089 = vadd.f32 %v3896, %v4088
    %v4090 = vpop.f32.mrb[0].mxu0
    %v4091 = vadd.f32 %v3898, %v4090
    %v4092 = vpop.f32.mrb[0].mxu0
    %v4093 = vadd.f32 %v3900, %v4092
    %v4094 = vpop.f32.mrb[0].mxu0
    %v4095 = vadd.f32 %v3902, %v4094
    %4096 = vmatprep.mubr.bf16.mxu0 %v3132
    %4097 = vmatmul.mubr.bf16.gmra.mrb[0].mxu0 %v3131
    %v4098 = vpop.f32.mrb[0].mxu0
    %v4099 = vadd.f32 %v3906, %v4098
    %v4100 = vpop.f32.mrb[0].mxu0
    %v4101 = vadd.f32 %v3908, %v4100
    %v4102 = vpop.f32.mrb[0].mxu0
    %v4103 = vadd.f32 %v3910, %v4102
    %v4104 = vpop.f32.mrb[0].mxu0
    %v4105 = vadd.f32 %v3912, %v4104
    %4106 = vmatprep.mubr.bf16.mxu0 %v3136
    %4107 = vmatmul.mubr.bf16.gmra.mrb[0].mxu0 %v3135
    %v4108 = vpop.f32.mrb[0].mxu0
    %v4109 = vadd.f32 %v3916, %v4108
    %v4110 = vpop.f32.mrb[0].mxu0
    %v4111 = vadd.f32 %v3918, %v4110
    %v4112 = vpop.f32.mrb[0].mxu0
    %v4113 = vadd.f32 %v3920, %v4112
    %v4114 = vpop.f32.mrb[0].mxu0
    %v4115 = vadd.f32 %v3922, %v4114
    %4116 = vmatprep.mubr.bf16.mxu0 %v3140
    %4117 = vmatmul.mubr.bf16.gmra.mrb[0].mxu0 %v3139
    %v4118 = vpop.f32.mrb[0].mxu0
    %v4119 = vadd.f32 %v3926, %v4118
    %v4120 = vpop.f32.mrb[0].mxu0
    %v4121 = vadd.f32 %v3928, %v4120
    %v4122 = vpop.f32.mrb[0].mxu0
    %v4123 = vadd.f32 %v3930, %v4122
    %v4124 = vpop.f32.mrb[0].mxu0
    %v4125 = vadd.f32 %v3932, %v4124
    %4126 = vmatprep.mubr.bf16.mxu0 %v3144
    %4127 = vmatmul.mubr.bf16.gmra.mrb[0].mxu0 %v3143
    %v4128 = vpop.f32.mrb[0].mxu0
    %v4129 = vadd.f32 %v3936, %v4128
    %v4130 = vpop.f32.mrb[0].mxu0
    %v4131 = vadd.f32 %v3938, %v4130
    %v4132 = vpop.f32.mrb[0].mxu0
    %v4133 = vadd.f32 %v3940, %v4132
    %v4134 = vpop.f32.mrb[0].mxu0
    %v4135 = vadd.f32 %v3942, %v4134
    %4136 = vmatprep.mubr.bf16.mxu0 %v3148
    %4137 = vmatmul.mubr.bf16.gmra.mrb[0].mxu0 %v3147
    %v4138 = vpop.f32.mrb[0].mxu0
    %v4139 = vadd.f32 %v3946, %v4138
    %v4140 = vpop.f32.mrb[0].mxu0
    %v4141 = vadd.f32 %v3948, %v4140
    %v4142 = vpop.f32.mrb[0].mxu0
    %v4143 = vadd.f32 %v3950, %v4142
    %v4144 = vpop.f32.mrb[0].mxu0
    %v4145 = vadd.f32 %v3952, %v4144
    %4146 = vmatprep.mubr.bf16.mxu0 %v3152
    %4147 = vmatmul.mubr.bf16.gmra.mrb[0].mxu0 %v3151
    %v4148 = vpop.f32.mrb[0].mxu0
    %v4149 = vadd.f32 %v3956, %v4148
    %v4150 = vpop.f32.mrb[0].mxu0
    %v4151 = vadd.f32 %v3958, %v4150
    %v4152 = vpop.f32.mrb[0].mxu0
    %v4153 = vadd.f32 %v3960, %v4152
    %v4154 = vpop.f32.mrb[0].mxu0
    %v4155 = vadd.f32 %v3962, %v4154
    %4156 = vmatprep.mubr.bf16.mxu0 %v3156
    %4157 = vmatmul.mubr.bf16.gmra.mrb[0].mxu0 %v3155
    %v4158 = vpop.f32.mrb[0].mxu0
    %v4159 = vadd.f32 %v3966, %v4158
    %v4160 = vpop.f32.mrb[0].mxu0
    %v4161 = vadd.f32 %v3968, %v4160
    %v4162 = vpop.f32.mrb[0].mxu0
    %v4163 = vadd.f32 %v3970, %v4162
    %v4164 = vpop.f32.mrb[0].mxu0
    %v4165 = vadd.f32 %v3972, %v4164
    %4166 = vmatprep.mubr.bf16.mxu0 %v3160
    %4167 = vmatmul.mubr.bf16.gmra.mrb[0].mxu0 %v3159
    %v4168 = vpop.f32.mrb[0].mxu0
    %v4169 = vadd.f32 %v3976, %v4168
    %v4170 = vpop.f32.mrb[0].mxu0
    %v4171 = vadd.f32 %v3978, %v4170
    %v4172 = vpop.f32.mrb[0].mxu0
    %v4173 = vadd.f32 %v3980, %v4172
    %v4174 = vpop.f32.mrb[0].mxu0
    %v4175 = vadd.f32 %v3982, %v4174
    %4176 = vmatprep.mubr.bf16.mxu0 %v3164
    %4177 = vmatmul.mubr.bf16.gmra.mrb[0].mxu0 %v3163
    %v4178 = vpop.f32.mrb[0].mxu0
    %v4179 = vadd.f32 %v3986, %v4178
    %v4180 = vpop.f32.mrb[0].mxu0
    %v4181 = vadd.f32 %v3988, %v4180
    %v4182 = vpop.f32.mrb[0].mxu0
    %v4183 = vadd.f32 %v3990, %v4182
    %v4184 = vpop.f32.mrb[0].mxu0
    %v4185 = vadd.f32 %v3992, %v4184
    %4186 = vmatprep.mubr.bf16.mxu0 %v3168
    %4187 = vmatmul.mubr.bf16.gmra.mrb[0].mxu0 %v3167
    %v4188 = vpop.f32.mrb[0].mxu0
    %v4189 = vadd.f32 %v3996, %v4188
    %v4190 = vpop.f32.mrb[0].mxu0
    %v4191 = vadd.f32 %v3998, %v4190
    %v4192 = vpop.f32.mrb[0].mxu0
    %v4193 = vadd.f32 %v4000, %v4192
    %v4194 = vpop.f32.mrb[0].mxu0
    %v4195 = vadd.f32 %v4002, %v4194
    %4196 = vdwg.mxu0
    %4197 = vmatprep.subr.bf16.mxu0 %v3174
    %4198 = vmatpush1.bf16.msra.mxu0 %v3173
    %4199 = vmatprep.subr.bf16.mxu0 %v3182
    %4200 = vmatpush1.bf16.msra.mxu0 %v3181
    %4201 = vmatprep.subr.bf16.mxu0 %v3190
    %4202 = vmatpush1.bf16.msra.mxu0 %v3189
    %4203 = vmatprep.subr.bf16.mxu0 %v3198
    %4204 = vmatpush1.bf16.msra.mxu0 %v3197
    %4205 = vmatprep.subr.bf16.mxu0 %v3206
    %4206 = vmatpush1.bf16.msra.mxu0 %v3205
    %4207 = vmatprep.subr.bf16.mxu0 %v3214
    %4208 = vmatpush1.bf16.msra.mxu0 %v3213
    %4209 = vmatprep.subr.bf16.mxu0 %v3222
    %4210 = vmatpush1.bf16.msra.mxu0 %v3221
    %4211 = vmatprep.subr.bf16.mxu0 %v3230
    %4212 = vmatpush1.bf16.msra.mxu0 %v3229
    %4213 = vmatprep.subr.bf16.mxu0 %v3238
    %4214 = vmatpush1.bf16.msra.mxu0 %v3237
    %4215 = vmatprep.subr.bf16.mxu0 %v3246
    %4216 = vmatpush1.bf16.msra.mxu0 %v3245
    %4217 = vmatprep.subr.bf16.mxu0 %v3254
    %4218 = vmatpush1.bf16.msra.mxu0 %v3253
    %4219 = vmatprep.subr.bf16.mxu0 %v3262
    %4220 = vmatpush1.bf16.msra.mxu0 %v3261
    %4221 = vmatprep.subr.bf16.mxu0 %v3270
    %4222 = vmatpush1.bf16.msra.mxu0 %v3269
    %4223 = vmatprep.subr.bf16.mxu0 %v3278
    %4224 = vmatpush1.bf16.msra.mxu0 %v3277
    %4225 = vmatprep.subr.bf16.mxu0 %v3286
    %4226 = vmatpush1.bf16.msra.mxu0 %v3285
    %4227 = vmatprep.subr.bf16.mxu0 %v3294
    %4228 = vmatpush1.bf16.msra.mxu0 %v3293
    %4229 = vmatprep.mubr.bf16.mxu0 %v3106
    %4230 = vmatmul.mubr.bf16.gmra.mrb[0].mxu0 %v3105
    %v4231 = vpop.f32.mrb[0].mxu0
    %v4232 = vadd.f32 0.0, %v4231
    %v4233 = vpop.f32.mrb[0].mxu0
    %v4234 = vadd.f32 0.0, %v4233
    %v4235 = vpop.f32.mrb[0].mxu0
    %v4236 = vadd.f32 0.0, %v4235
    %v4237 = vpop.f32.mrb[0].mxu0
    %v4238 = vadd.f32 0.0, %v4237
    %4239 = vmatprep.mubr.bf16.mxu0 %v3110
    %4240 = vmatmul.mubr.bf16.gmra.mrb[0].mxu0 %v3109
    %v4241 = vpop.f32.mrb[0].mxu0
    %v4242 = vadd.f32 0.0, %v4241
    %v4243 = vpop.f32.mrb[0].mxu0
    %v4244 = vadd.f32 0.0, %v4243
    %v4245 = vpop.f32.mrb[0].mxu0
    %v4246 = vadd.f32 0.0, %v4245
    %v4247 = vpop.f32.mrb[0].mxu0
    %v4248 = vadd.f32 0.0, %v4247
    %4249 = vmatprep.mubr.bf16.mxu0 %v3114
    %4250 = vmatmul.mubr.bf16.gmra.mrb[0].mxu0 %v3113
    %v4251 = vpop.f32.mrb[0].mxu0
    %v4252 = vadd.f32 0.0, %v4251
    %v4253 = vpop.f32.mrb[0].mxu0
    %v4254 = vadd.f32 0.0, %v4253
    %v4255 = vpop.f32.mrb[0].mxu0
    %v4256 = vadd.f32 0.0, %v4255
    %v4257 = vpop.f32.mrb[0].mxu0
    %v4258 = vadd.f32 0.0, %v4257
    %4259 = vmatprep.mubr.bf16.mxu0 %v3118
    %4260 = vmatmul.mubr.bf16.gmra.mrb[0].mxu0 %v3117
    %v4261 = vpop.f32.mrb[0].mxu0
    %v4262 = vadd.f32 0.0, %v4261
    %v4263 = vpop.f32.mrb[0].mxu0
    %v4264 = vadd.f32 0.0, %v4263
    %v4265 = vpop.f32.mrb[0].mxu0
    %v4266 = vadd.f32 0.0, %v4265
    %v4267 = vpop.f32.mrb[0].mxu0
    %v4268 = vadd.f32 0.0, %v4267
    %4269 = vmatprep.mubr.bf16.mxu0 %v3122
    %4270 = vmatmul.mubr.bf16.gmra.mrb[0].mxu0 %v3121
    %v4271 = vpop.f32.mrb[0].mxu0
    %v4272 = vadd.f32 0.0, %v4271
    %v4273 = vpop.f32.mrb[0].mxu0
    %v4274 = vadd.f32 0.0, %v4273
    %v4275 = vpop.f32.mrb[0].mxu0
    %v4276 = vadd.f32 0.0, %v4275
    %v4277 = vpop.f32.mrb[0].mxu0
    %v4278 = vadd.f32 0.0, %v4277
    %4279 = vmatprep.mubr.bf16.mxu0 %v3126
    %4280 = vmatmul.mubr.bf16.gmra.mrb[0].mxu0 %v3125
    %v4281 = vpop.f32.mrb[0].mxu0
    %v4282 = vadd.f32 0.0, %v4281
    %v4283 = vpop.f32.mrb[0].mxu0
    %v4284 = vadd.f32 0.0, %v4283
    %v4285 = vpop.f32.mrb[0].mxu0
    %v4286 = vadd.f32 0.0, %v4285
    %v4287 = vpop.f32.mrb[0].mxu0
    %v4288 = vadd.f32 0.0, %v4287
    %4289 = vmatprep.mubr.bf16.mxu0 %v3130
    %4290 = vmatmul.mubr.bf16.gmra.mrb[0].mxu0 %v3129
    %v4291 = vpop.f32.mrb[0].mxu0
    %v4292 = vadd.f32 0.0, %v4291
    %v4293 = vpop.f32.mrb[0].mxu0
    %v4294 = vadd.f32 0.0, %v4293
    %v4295 = vpop.f32.mrb[0].mxu0
    %v4296 = vadd.f32 0.0, %v4295
    %v4297 = vpop.f32.mrb[0].mxu0
    %v4298 = vadd.f32 0.0, %v4297
    %4299 = vmatprep.mubr.bf16.mxu0 %v3134
    %4300 = vmatmul.mubr.bf16.gmra.mrb[0].mxu0 %v3133
    %v4301 = vpop.f32.mrb[0].mxu0
    %v4302 = vadd.f32 0.0, %v4301
    %v4303 = vpop.f32.mrb[0].mxu0
    %v4304 = vadd.f32 0.0, %v4303
    %v4305 = vpop.f32.mrb[0].mxu0
    %v4306 = vadd.f32 0.0, %v4305
    %v4307 = vpop.f32.mrb[0].mxu0
    %v4308 = vadd.f32 0.0, %v4307
    %4309 = vmatprep.mubr.bf16.mxu0 %v3138
    %4310 = vmatmul.mubr.bf16.gmra.mrb[0].mxu0 %v3137
    %v4311 = vpop.f32.mrb[0].mxu0
    %v4312 = vadd.f32 0.0, %v4311
    %v4313 = vpop.f32.mrb[0].mxu0
    %v4314 = vadd.f32 0.0, %v4313
    %v4315 = vpop.f32.mrb[0].mxu0
    %v4316 = vadd.f32 0.0, %v4315
    %v4317 = vpop.f32.mrb[0].mxu0
    %v4318 = vadd.f32 0.0, %v4317
    %4319 = vmatprep.mubr.bf16.mxu0 %v3142
    %4320 = vmatmul.mubr.bf16.gmra.mrb[0].mxu0 %v3141
    %v4321 = vpop.f32.mrb[0].mxu0
    %v4322 = vadd.f32 0.0, %v4321
    %v4323 = vpop.f32.mrb[0].mxu0
    %v4324 = vadd.f32 0.0, %v4323
    %v4325 = vpop.f32.mrb[0].mxu0
    %v4326 = vadd.f32 0.0, %v4325
    %v4327 = vpop.f32.mrb[0].mxu0
    %v4328 = vadd.f32 0.0, %v4327
    %4329 = vmatprep.mubr.bf16.mxu0 %v3146
    %4330 = vmatmul.mubr.bf16.gmra.mrb[0].mxu0 %v3145
    %v4331 = vpop.f32.mrb[0].mxu0
    %v4332 = vadd.f32 0.0, %v4331
    %v4333 = vpop.f32.mrb[0].mxu0
    %v4334 = vadd.f32 0.0, %v4333
    %v4335 = vpop.f32.mrb[0].mxu0
    %v4336 = vadd.f32 0.0, %v4335
    %v4337 = vpop.f32.mrb[0].mxu0
    %v4338 = vadd.f32 0.0, %v4337
    %4339 = vmatprep.mubr.bf16.mxu0 %v3150
    %4340 = vmatmul.mubr.bf16.gmra.mrb[0].mxu0 %v3149
    %v4341 = vpop.f32.mrb[0].mxu0
    %v4342 = vadd.f32 0.0, %v4341
    %v4343 = vpop.f32.mrb[0].mxu0
    %v4344 = vadd.f32 0.0, %v4343
    %v4345 = vpop.f32.mrb[0].mxu0
    %v4346 = vadd.f32 0.0, %v4345
    %v4347 = vpop.f32.mrb[0].mxu0
    %v4348 = vadd.f32 0.0, %v4347
    %4349 = vmatprep.mubr.bf16.mxu0 %v3154
    %4350 = vmatmul.mubr.bf16.gmra.mrb[0].mxu0 %v3153
    %v4351 = vpop.f32.mrb[0].mxu0
    %v4352 = vadd.f32 0.0, %v4351
    %v4353 = vpop.f32.mrb[0].mxu0
    %v4354 = vadd.f32 0.0, %v4353
    %v4355 = vpop.f32.mrb[0].mxu0
    %v4356 = vadd.f32 0.0, %v4355
    %v4357 = vpop.f32.mrb[0].mxu0
    %v4358 = vadd.f32 0.0, %v4357
    %4359 = vmatprep.mubr.bf16.mxu0 %v3158
    %4360 = vmatmul.mubr.bf16.gmra.mrb[0].mxu0 %v3157
    %v4361 = vpop.f32.mrb[0].mxu0
    %v4362 = vadd.f32 0.0, %v4361
    %v4363 = vpop.f32.mrb[0].mxu0
    %v4364 = vadd.f32 0.0, %v4363
    %v4365 = vpop.f32.mrb[0].mxu0
    %v4366 = vadd.f32 0.0, %v4365
    %v4367 = vpop.f32.mrb[0].mxu0
    %v4368 = vadd.f32 0.0, %v4367
    %4369 = vmatprep.mubr.bf16.mxu0 %v3162
    %4370 = vmatmul.mubr.bf16.gmra.mrb[0].mxu0 %v3161
    %v4371 = vpop.f32.mrb[0].mxu0
    %v4372 = vadd.f32 0.0, %v4371
    %v4373 = vpop.f32.mrb[0].mxu0
    %v4374 = vadd.f32 0.0, %v4373
    %v4375 = vpop.f32.mrb[0].mxu0
    %v4376 = vadd.f32 0.0, %v4375
    %v4377 = vpop.f32.mrb[0].mxu0
    %v4378 = vadd.f32 0.0, %v4377
    %4379 = vmatprep.mubr.bf16.mxu0 %v3166
    %4380 = vmatmul.mubr.bf16.gmra.mrb[0].mxu0 %v3165
    %v4381 = vpop.f32.mrb[0].mxu0
    %v4382 = vadd.f32 0.0, %v4381
    %v4383 = vpop.f32.mrb[0].mxu0
    %v4384 = vadd.f32 0.0, %v4383
    %v4385 = vpop.f32.mrb[0].mxu0
    %v4386 = vadd.f32 0.0, %v4385
    %v4387 = vpop.f32.mrb[0].mxu0
    %v4388 = vadd.f32 0.0, %v4387
    %4389 = vdwg.mxu0
    %4390 = vmatprep.subr.bf16.mxu0 %v3302
    %4391 = vmatpush1.bf16.msra.mxu0 %v3301
    %4392 = vmatprep.subr.bf16.mxu0 %v3310
    %4393 = vmatpush1.bf16.msra.mxu0 %v3309
    %4394 = vmatprep.subr.bf16.mxu0 %v3318
    %4395 = vmatpush1.bf16.msra.mxu0 %v3317
    %4396 = vmatprep.subr.bf16.mxu0 %v3326
    %4397 = vmatpush1.bf16.msra.mxu0 %v3325
    %4398 = vmatprep.subr.bf16.mxu0 %v3334
    %4399 = vmatpush1.bf16.msra.mxu0 %v3333
    %4400 = vmatprep.subr.bf16.mxu0 %v3342
    %4401 = vmatpush1.bf16.msra.mxu0 %v3341
    %4402 = vmatprep.subr.bf16.mxu0 %v3350
    %4403 = vmatpush1.bf16.msra.mxu0 %v3349
    %4404 = vmatprep.subr.bf16.mxu0 %v3358
    %4405 = vmatpush1.bf16.msra.mxu0 %v3357
    %4406 = vmatprep.subr.bf16.mxu0 %v3366
    %4407 = vmatpush1.bf16.msra.mxu0 %v3365
    %4408 = vmatprep.subr.bf16.mxu0 %v3374
    %4409 = vmatpush1.bf16.msra.mxu0 %v3373
    %4410 = vmatprep.subr.bf16.mxu0 %v3382
    %4411 = vmatpush1.bf16.msra.mxu0 %v3381
    %4412 = vmatprep.subr.bf16.mxu0 %v3390
    %4413 = vmatpush1.bf16.msra.mxu0 %v3389
    %4414 = vmatprep.subr.bf16.mxu0 %v3398
    %4415 = vmatpush1.bf16.msra.mxu0 %v3397
    %4416 = vmatprep.subr.bf16.mxu0 %v3406
    %4417 = vmatpush1.bf16.msra.mxu0 %v3405
    %4418 = vmatprep.subr.bf16.mxu0 %v3414
    %4419 = vmatpush1.bf16.msra.mxu0 %v3413
    %4420 = vmatprep.subr.bf16.mxu0 %v3422
    %4421 = vmatpush1.bf16.msra.mxu0 %v3421
    %4422 = vmatprep.mubr.bf16.mxu0 %v3108
    %4423 = vmatmul.mubr.bf16.gmra.mrb[0].mxu0 %v3107
    %v4424 = vpop.f32.mrb[0].mxu0
    %v4425 = vadd.f32 %v4232, %v4424
    %v4426 = vpop.f32.mrb[0].mxu0
    %v4427 = vadd.f32 %v4234, %v4426
    %v4428 = vpop.f32.mrb[0].mxu0
    %v4429 = vadd.f32 %v4236, %v4428
    %v4430 = vpop.f32.mrb[0].mxu0
    %v4431 = vadd.f32 %v4238, %v4430
    %4432 = vmatprep.mubr.bf16.mxu0 %v3112
    %4433 = vmatmul.mubr.bf16.gmra.mrb[0].mxu0 %v3111
    %v4434 = vpop.f32.mrb[0].mxu0
    %v4435 = vadd.f32 %v4242, %v4434
    %v4436 = vpop.f32.mrb[0].mxu0
    %v4437 = vadd.f32 %v4244, %v4436
    %v4438 = vpop.f32.mrb[0].mxu0
    %v4439 = vadd.f32 %v4246, %v4438
    %v4440 = vpop.f32.mrb[0].mxu0
    %v4441 = vadd.f32 %v4248, %v4440
    %4442 = vmatprep.mubr.bf16.mxu0 %v3116
    %4443 = vmatmul.mubr.bf16.gmra.mrb[0].mxu0 %v3115
    %v4444 = vpop.f32.mrb[0].mxu0
    %v4445 = vadd.f32 %v4252, %v4444
    %v4446 = vpop.f32.mrb[0].mxu0
    %v4447 = vadd.f32 %v4254, %v4446
    %v4448 = vpop.f32.mrb[0].mxu0
    %v4449 = vadd.f32 %v4256, %v4448
    %v4450 = vpop.f32.mrb[0].mxu0
    %v4451 = vadd.f32 %v4258, %v4450
    %4452 = vmatprep.mubr.bf16.mxu0 %v3120
    %4453 = vmatmul.mubr.bf16.gmra.mrb[0].mxu0 %v3119
    %v4454 = vpop.f32.mrb[0].mxu0
    %v4455 = vadd.f32 %v4262, %v4454
    %v4456 = vpop.f32.mrb[0].mxu0
    %v4457 = vadd.f32 %v4264, %v4456
    %v4458 = vpop.f32.mrb[0].mxu0
    %v4459 = vadd.f32 %v4266, %v4458
    %v4460 = vpop.f32.mrb[0].mxu0
    %v4461 = vadd.f32 %v4268, %v4460
    %4462 = vmatprep.mubr.bf16.mxu0 %v3124
    %4463 = vmatmul.mubr.bf16.gmra.mrb[0].mxu0 %v3123
    %v4464 = vpop.f32.mrb[0].mxu0
    %v4465 = vadd.f32 %v4272, %v4464
    %v4466 = vpop.f32.mrb[0].mxu0
    %v4467 = vadd.f32 %v4274, %v4466
    %v4468 = vpop.f32.mrb[0].mxu0
    %v4469 = vadd.f32 %v4276, %v4468
    %v4470 = vpop.f32.mrb[0].mxu0
    %v4471 = vadd.f32 %v4278, %v4470
    %4472 = vmatprep.mubr.bf16.mxu0 %v3128
    %4473 = vmatmul.mubr.bf16.gmra.mrb[0].mxu0 %v3127
    %v4474 = vpop.f32.mrb[0].mxu0
    %v4475 = vadd.f32 %v4282, %v4474
    %v4476 = vpop.f32.mrb[0].mxu0
    %v4477 = vadd.f32 %v4284, %v4476
    %v4478 = vpop.f32.mrb[0].mxu0
    %v4479 = vadd.f32 %v4286, %v4478
    %v4480 = vpop.f32.mrb[0].mxu0
    %v4481 = vadd.f32 %v4288, %v4480
    %4482 = vmatprep.mubr.bf16.mxu0 %v3132
    %4483 = vmatmul.mubr.bf16.gmra.mrb[0].mxu0 %v3131
    %v4484 = vpop.f32.mrb[0].mxu0
    %v4485 = vadd.f32 %v4292, %v4484
    %v4486 = vpop.f32.mrb[0].mxu0
    %v4487 = vadd.f32 %v4294, %v4486
    %v4488 = vpop.f32.mrb[0].mxu0
    %v4489 = vadd.f32 %v4296, %v4488
    %v4490 = vpop.f32.mrb[0].mxu0
    %v4491 = vadd.f32 %v4298, %v4490
    %4492 = vmatprep.mubr.bf16.mxu0 %v3136
    %4493 = vmatmul.mubr.bf16.gmra.mrb[0].mxu0 %v3135
    %v4494 = vpop.f32.mrb[0].mxu0
    %v4495 = vadd.f32 %v4302, %v4494
    %v4496 = vpop.f32.mrb[0].mxu0
    %v4497 = vadd.f32 %v4304, %v4496
    %v4498 = vpop.f32.mrb[0].mxu0
    %v4499 = vadd.f32 %v4306, %v4498
    %v4500 = vpop.f32.mrb[0].mxu0
    %v4501 = vadd.f32 %v4308, %v4500
    %4502 = vmatprep.mubr.bf16.mxu0 %v3140
    %4503 = vmatmul.mubr.bf16.gmra.mrb[0].mxu0 %v3139
    %v4504 = vpop.f32.mrb[0].mxu0
    %v4505 = vadd.f32 %v4312, %v4504
    %v4506 = vpop.f32.mrb[0].mxu0
    %v4507 = vadd.f32 %v4314, %v4506
    %v4508 = vpop.f32.mrb[0].mxu0
    %v4509 = vadd.f32 %v4316, %v4508
    %v4510 = vpop.f32.mrb[0].mxu0
    %v4511 = vadd.f32 %v4318, %v4510
    %4512 = vmatprep.mubr.bf16.mxu0 %v3144
    %4513 = vmatmul.mubr.bf16.gmra.mrb[0].mxu0 %v3143
    %v4514 = vpop.f32.mrb[0].mxu0
    %v4515 = vadd.f32 %v4322, %v4514
    %v4516 = vpop.f32.mrb[0].mxu0
    %v4517 = vadd.f32 %v4324, %v4516
    %v4518 = vpop.f32.mrb[0].mxu0
    %v4519 = vadd.f32 %v4326, %v4518
    %v4520 = vpop.f32.mrb[0].mxu0
    %v4521 = vadd.f32 %v4328, %v4520
    %4522 = vmatprep.mubr.bf16.mxu0 %v3148
    %4523 = vmatmul.mubr.bf16.gmra.mrb[0].mxu0 %v3147
    %v4524 = vpop.f32.mrb[0].mxu0
    %v4525 = vadd.f32 %v4332, %v4524
    %v4526 = vpop.f32.mrb[0].mxu0
    %v4527 = vadd.f32 %v4334, %v4526
    %v4528 = vpop.f32.mrb[0].mxu0
    %v4529 = vadd.f32 %v4336, %v4528
    %v4530 = vpop.f32.mrb[0].mxu0
    %v4531 = vadd.f32 %v4338, %v4530
    %4532 = vmatprep.mubr.bf16.mxu0 %v3152
    %4533 = vmatmul.mubr.bf16.gmra.mrb[0].mxu0 %v3151
    %v4534 = vpop.f32.mrb[0].mxu0
    %v4535 = vadd.f32 %v4342, %v4534
    %v4536 = vpop.f32.mrb[0].mxu0
    %v4537 = vadd.f32 %v4344, %v4536
    %v4538 = vpop.f32.mrb[0].mxu0
    %v4539 = vadd.f32 %v4346, %v4538
    %v4540 = vpop.f32.mrb[0].mxu0
    %v4541 = vadd.f32 %v4348, %v4540
    %4542 = vmatprep.mubr.bf16.mxu0 %v3156
    %4543 = vmatmul.mubr.bf16.gmra.mrb[0].mxu0 %v3155
    %v4544 = vpop.f32.mrb[0].mxu0
    %v4545 = vadd.f32 %v4352, %v4544
    %v4546 = vpop.f32.mrb[0].mxu0
    %v4547 = vadd.f32 %v4354, %v4546
    %v4548 = vpop.f32.mrb[0].mxu0
    %v4549 = vadd.f32 %v4356, %v4548
    %v4550 = vpop.f32.mrb[0].mxu0
    %v4551 = vadd.f32 %v4358, %v4550
    %4552 = vmatprep.mubr.bf16.mxu0 %v3160
    %4553 = vmatmul.mubr.bf16.gmra.mrb[0].mxu0 %v3159
    %v4554 = vpop.f32.mrb[0].mxu0
    %v4555 = vadd.f32 %v4362, %v4554
    %v4556 = vpop.f32.mrb[0].mxu0
    %v4557 = vadd.f32 %v4364, %v4556
    %v4558 = vpop.f32.mrb[0].mxu0
    %v4559 = vadd.f32 %v4366, %v4558
    %v4560 = vpop.f32.mrb[0].mxu0
    %v4561 = vadd.f32 %v4368, %v4560
    %4562 = vmatprep.mubr.bf16.mxu0 %v3164
    %4563 = vmatmul.mubr.bf16.gmra.mrb[0].mxu0 %v3163
    %v4564 = vpop.f32.mrb[0].mxu0
    %v4565 = vadd.f32 %v4372, %v4564
    %v4566 = vpop.f32.mrb[0].mxu0
    %v4567 = vadd.f32 %v4374, %v4566
    %v4568 = vpop.f32.mrb[0].mxu0
    %v4569 = vadd.f32 %v4376, %v4568
    %v4570 = vpop.f32.mrb[0].mxu0
    %v4571 = vadd.f32 %v4378, %v4570
    %4572 = vmatprep.mubr.bf16.mxu0 %v3168
    %4573 = vmatmul.mubr.bf16.gmra.mrb[0].mxu0 %v3167
    %v4574 = vpop.f32.mrb[0].mxu0
    %v4575 = vadd.f32 %v4382, %v4574
    %v4576 = vpop.f32.mrb[0].mxu0
    %v4577 = vadd.f32 %v4384, %v4576
    %v4578 = vpop.f32.mrb[0].mxu0
    %v4579 = vadd.f32 %v4386, %v4578
    %v4580 = vpop.f32.mrb[0].mxu0
    %v4581 = vadd.f32 %v4388, %v4580
    %4582 = vdwg.mxu0
    %4583 = vmatprep.subr.bf16.mxu0 %v3176
    %4584 = vmatpush1.bf16.msra.mxu0 %v3175
    %4585 = vmatprep.subr.bf16.mxu0 %v3184
    %4586 = vmatpush1.bf16.msra.mxu0 %v3183
    %4587 = vmatprep.subr.bf16.mxu0 %v3192
    %4588 = vmatpush1.bf16.msra.mxu0 %v3191
    %4589 = vmatprep.subr.bf16.mxu0 %v3200
    %4590 = vmatpush1.bf16.msra.mxu0 %v3199
    %4591 = vmatprep.subr.bf16.mxu0 %v3208
    %4592 = vmatpush1.bf16.msra.mxu0 %v3207
    %4593 = vmatprep.subr.bf16.mxu0 %v3216
    %4594 = vmatpush1.bf16.msra.mxu0 %v3215
    %4595 = vmatprep.subr.bf16.mxu0 %v3224
    %4596 = vmatpush1.bf16.msra.mxu0 %v3223
    %4597 = vmatprep.subr.bf16.mxu0 %v3232
    %4598 = vmatpush1.bf16.msra.mxu0 %v3231
    %4599 = vmatprep.subr.bf16.mxu0 %v3240
    %4600 = vmatpush1.bf16.msra.mxu0 %v3239
    %4601 = vmatprep.subr.bf16.mxu0 %v3248
    %4602 = vmatpush1.bf16.msra.mxu0 %v3247
    %4603 = vmatprep.subr.bf16.mxu0 %v3256
    %4604 = vmatpush1.bf16.msra.mxu0 %v3255
    %4605 = vmatprep.subr.bf16.mxu0 %v3264
    %4606 = vmatpush1.bf16.msra.mxu0 %v3263
    %4607 = vmatprep.subr.bf16.mxu0 %v3272
    %4608 = vmatpush1.bf16.msra.mxu0 %v3271
    %4609 = vmatprep.subr.bf16.mxu0 %v3280
    %4610 = vmatpush1.bf16.msra.mxu0 %v3279
    %4611 = vmatprep.subr.bf16.mxu0 %v3288
    %4612 = vmatpush1.bf16.msra.mxu0 %v3287
    %4613 = vmatprep.subr.bf16.mxu0 %v3296
    %4614 = vmatpush1.bf16.msra.mxu0 %v3295
    %4615 = vmatprep.mubr.bf16.mxu0 %v3106
    %4616 = vmatmul.mubr.bf16.gmra.mrb[0].mxu0 %v3105
    %v4617 = vpop.f32.mrb[0].mxu0
    %v4618 = vadd.f32 0.0, %v4617
    %v4619 = vpop.f32.mrb[0].mxu0
    %v4620 = vadd.f32 0.0, %v4619
    %v4621 = vpop.f32.mrb[0].mxu0
    %v4622 = vadd.f32 0.0, %v4621
    %v4623 = vpop.f32.mrb[0].mxu0
    %v4624 = vadd.f32 0.0, %v4623
    %4625 = vmatprep.mubr.bf16.mxu0 %v3110
    %4626 = vmatmul.mubr.bf16.gmra.mrb[0].mxu0 %v3109
    %v4627 = vpop.f32.mrb[0].mxu0
    %v4628 = vadd.f32 0.0, %v4627
    %v4629 = vpop.f32.mrb[0].mxu0
    %v4630 = vadd.f32 0.0, %v4629
    %v4631 = vpop.f32.mrb[0].mxu0
    %v4632 = vadd.f32 0.0, %v4631
    %v4633 = vpop.f32.mrb[0].mxu0
    %v4634 = vadd.f32 0.0, %v4633
    %4635 = vmatprep.mubr.bf16.mxu0 %v3114
    %4636 = vmatmul.mubr.bf16.gmra.mrb[0].mxu0 %v3113
    %v4637 = vpop.f32.mrb[0].mxu0
    %v4638 = vadd.f32 0.0, %v4637
    %v4639 = vpop.f32.mrb[0].mxu0
    %v4640 = vadd.f32 0.0, %v4639
    %v4641 = vpop.f32.mrb[0].mxu0
    %v4642 = vadd.f32 0.0, %v4641
    %v4643 = vpop.f32.mrb[0].mxu0
    %v4644 = vadd.f32 0.0, %v4643
    %4645 = vmatprep.mubr.bf16.mxu0 %v3118
    %4646 = vmatmul.mubr.bf16.gmra.mrb[0].mxu0 %v3117
    %v4647 = vpop.f32.mrb[0].mxu0
    %v4648 = vadd.f32 0.0, %v4647
    %v4649 = vpop.f32.mrb[0].mxu0
    %v4650 = vadd.f32 0.0, %v4649
    %v4651 = vpop.f32.mrb[0].mxu0
    %v4652 = vadd.f32 0.0, %v4651
    %v4653 = vpop.f32.mrb[0].mxu0
    %v4654 = vadd.f32 0.0, %v4653
    %4655 = vmatprep.mubr.bf16.mxu0 %v3122
    %4656 = vmatmul.mubr.bf16.gmra.mrb[0].mxu0 %v3121
    %v4657 = vpop.f32.mrb[0].mxu0
    %v4658 = vadd.f32 0.0, %v4657
    %v4659 = vpop.f32.mrb[0].mxu0
    %v4660 = vadd.f32 0.0, %v4659
    %v4661 = vpop.f32.mrb[0].mxu0
    %v4662 = vadd.f32 0.0, %v4661
    %v4663 = vpop.f32.mrb[0].mxu0
    %v4664 = vadd.f32 0.0, %v4663
    %4665 = vmatprep.mubr.bf16.mxu0 %v3126
    %4666 = vmatmul.mubr.bf16.gmra.mrb[0].mxu0 %v3125
    %v4667 = vpop.f32.mrb[0].mxu0
    %v4668 = vadd.f32 0.0, %v4667
    %v4669 = vpop.f32.mrb[0].mxu0
    %v4670 = vadd.f32 0.0, %v4669
    %v4671 = vpop.f32.mrb[0].mxu0
    %v4672 = vadd.f32 0.0, %v4671
    %v4673 = vpop.f32.mrb[0].mxu0
    %v4674 = vadd.f32 0.0, %v4673
    %4675 = vmatprep.mubr.bf16.mxu0 %v3130
    %4676 = vmatmul.mubr.bf16.gmra.mrb[0].mxu0 %v3129
    %v4677 = vpop.f32.mrb[0].mxu0
    %v4678 = vadd.f32 0.0, %v4677
    %v4679 = vpop.f32.mrb[0].mxu0
    %v4680 = vadd.f32 0.0, %v4679
    %v4681 = vpop.f32.mrb[0].mxu0
    %v4682 = vadd.f32 0.0, %v4681
    %v4683 = vpop.f32.mrb[0].mxu0
    %v4684 = vadd.f32 0.0, %v4683
    %4685 = vmatprep.mubr.bf16.mxu0 %v3134
    %4686 = vmatmul.mubr.bf16.gmra.mrb[0].mxu0 %v3133
    %v4687 = vpop.f32.mrb[0].mxu0
    %v4688 = vadd.f32 0.0, %v4687
    %v4689 = vpop.f32.mrb[0].mxu0
    %v4690 = vadd.f32 0.0, %v4689
    %v4691 = vpop.f32.mrb[0].mxu0
    %v4692 = vadd.f32 0.0, %v4691
    %v4693 = vpop.f32.mrb[0].mxu0
    %v4694 = vadd.f32 0.0, %v4693
    %4695 = vmatprep.mubr.bf16.mxu0 %v3138
    %4696 = vmatmul.mubr.bf16.gmra.mrb[0].mxu0 %v3137
    %v4697 = vpop.f32.mrb[0].mxu0
    %v4698 = vadd.f32 0.0, %v4697
    %v4699 = vpop.f32.mrb[0].mxu0
    %v4700 = vadd.f32 0.0, %v4699
    %v4701 = vpop.f32.mrb[0].mxu0
    %v4702 = vadd.f32 0.0, %v4701
    %v4703 = vpop.f32.mrb[0].mxu0
    %v4704 = vadd.f32 0.0, %v4703
    %4705 = vmatprep.mubr.bf16.mxu0 %v3142
    %4706 = vmatmul.mubr.bf16.gmra.mrb[0].mxu0 %v3141
    %v4707 = vpop.f32.mrb[0].mxu0
    %v4708 = vadd.f32 0.0, %v4707
    %v4709 = vpop.f32.mrb[0].mxu0
    %v4710 = vadd.f32 0.0, %v4709
    %v4711 = vpop.f32.mrb[0].mxu0
    %v4712 = vadd.f32 0.0, %v4711
    %v4713 = vpop.f32.mrb[0].mxu0
    %v4714 = vadd.f32 0.0, %v4713
    %4715 = vmatprep.mubr.bf16.mxu0 %v3146
    %4716 = vmatmul.mubr.bf16.gmra.mrb[0].mxu0 %v3145
    %v4717 = vpop.f32.mrb[0].mxu0
    %v4718 = vadd.f32 0.0, %v4717
    %v4719 = vpop.f32.mrb[0].mxu0
    %v4720 = vadd.f32 0.0, %v4719
    %v4721 = vpop.f32.mrb[0].mxu0
    %v4722 = vadd.f32 0.0, %v4721
    %v4723 = vpop.f32.mrb[0].mxu0
    %v4724 = vadd.f32 0.0, %v4723
    %4725 = vmatprep.mubr.bf16.mxu0 %v3150
    %4726 = vmatmul.mubr.bf16.gmra.mrb[0].mxu0 %v3149
    %v4727 = vpop.f32.mrb[0].mxu0
    %v4728 = vadd.f32 0.0, %v4727
    %v4729 = vpop.f32.mrb[0].mxu0
    %v4730 = vadd.f32 0.0, %v4729
    %v4731 = vpop.f32.mrb[0].mxu0
    %v4732 = vadd.f32 0.0, %v4731
    %v4733 = vpop.f32.mrb[0].mxu0
    %v4734 = vadd.f32 0.0, %v4733
    %4735 = vmatprep.mubr.bf16.mxu0 %v3154
    %4736 = vmatmul.mubr.bf16.gmra.mrb[0].mxu0 %v3153
    %v4737 = vpop.f32.mrb[0].mxu0
    %v4738 = vadd.f32 0.0, %v4737
    %v4739 = vpop.f32.mrb[0].mxu0
    %v4740 = vadd.f32 0.0, %v4739
    %v4741 = vpop.f32.mrb[0].mxu0
    %v4742 = vadd.f32 0.0, %v4741
    %v4743 = vpop.f32.mrb[0].mxu0
    %v4744 = vadd.f32 0.0, %v4743
    %4745 = vmatprep.mubr.bf16.mxu0 %v3158
    %4746 = vmatmul.mubr.bf16.gmra.mrb[0].mxu0 %v3157
    %v4747 = vpop.f32.mrb[0].mxu0
    %v4748 = vadd.f32 0.0, %v4747
    %v4749 = vpop.f32.mrb[0].mxu0
    %v4750 = vadd.f32 0.0, %v4749
    %v4751 = vpop.f32.mrb[0].mxu0
    %v4752 = vadd.f32 0.0, %v4751
    %v4753 = vpop.f32.mrb[0].mxu0
    %v4754 = vadd.f32 0.0, %v4753
    %4755 = vmatprep.mubr.bf16.mxu0 %v3162
    %4756 = vmatmul.mubr.bf16.gmra.mrb[0].mxu0 %v3161
    %v4757 = vpop.f32.mrb[0].mxu0
    %v4758 = vadd.f32 0.0, %v4757
    %v4759 = vpop.f32.mrb[0].mxu0
    %v4760 = vadd.f32 0.0, %v4759
    %v4761 = vpop.f32.mrb[0].mxu0
    %v4762 = vadd.f32 0.0, %v4761
    %v4763 = vpop.f32.mrb[0].mxu0
    %v4764 = vadd.f32 0.0, %v4763
    %4765 = vmatprep.mubr.bf16.mxu0 %v3166
    %4766 = vmatmul.mubr.bf16.gmra.mrb[0].mxu0 %v3165
    %v4767 = vpop.f32.mrb[0].mxu0
    %v4768 = vadd.f32 0.0, %v4767
    %v4769 = vpop.f32.mrb[0].mxu0
    %v4770 = vadd.f32 0.0, %v4769
    %v4771 = vpop.f32.mrb[0].mxu0
    %v4772 = vadd.f32 0.0, %v4771
    %v4773 = vpop.f32.mrb[0].mxu0
    %v4774 = vadd.f32 0.0, %v4773
    %4775 = vdwg.mxu0
    %4776 = vmatprep.subr.bf16.mxu0 %v3304
    %4777 = vmatpush1.bf16.msra.mxu0 %v3303
    %4778 = vmatprep.subr.bf16.mxu0 %v3312
    %4779 = vmatpush1.bf16.msra.mxu0 %v3311
    %4780 = vmatprep.subr.bf16.mxu0 %v3320
    %4781 = vmatpush1.bf16.msra.mxu0 %v3319
    %4782 = vmatprep.subr.bf16.mxu0 %v3328
    %4783 = vmatpush1.bf16.msra.mxu0 %v3327
    %4784 = vmatprep.subr.bf16.mxu0 %v3336
    %4785 = vmatpush1.bf16.msra.mxu0 %v3335
    %4786 = vmatprep.subr.bf16.mxu0 %v3344
    %4787 = vmatpush1.bf16.msra.mxu0 %v3343
    %4788 = vmatprep.subr.bf16.mxu0 %v3352
    %4789 = vmatpush1.bf16.msra.mxu0 %v3351
    %4790 = vmatprep.subr.bf16.mxu0 %v3360
    %4791 = vmatpush1.bf16.msra.mxu0 %v3359
    %4792 = vmatprep.subr.bf16.mxu0 %v3368
    %4793 = vmatpush1.bf16.msra.mxu0 %v3367
    %4794 = vmatprep.subr.bf16.mxu0 %v3376
    %4795 = vmatpush1.bf16.msra.mxu0 %v3375
    %4796 = vmatprep.subr.bf16.mxu0 %v3384
    %4797 = vmatpush1.bf16.msra.mxu0 %v3383
    %4798 = vmatprep.subr.bf16.mxu0 %v3392
    %4799 = vmatpush1.bf16.msra.mxu0 %v3391
    %4800 = vmatprep.subr.bf16.mxu0 %v3400
    %4801 = vmatpush1.bf16.msra.mxu0 %v3399
    %4802 = vmatprep.subr.bf16.mxu0 %v3408
    %4803 = vmatpush1.bf16.msra.mxu0 %v3407
    %4804 = vmatprep.subr.bf16.mxu0 %v3416
    %4805 = vmatpush1.bf16.msra.mxu0 %v3415
    %4806 = vmatprep.subr.bf16.mxu0 %v3424
    %4807 = vmatpush1.bf16.msra.mxu0 %v3423
    %4808 = vmatprep.mubr.bf16.mxu0 %v3108
    %4809 = vmatmul.mubr.bf16.gmra.mrb[0].mxu0 %v3107
    %v4810 = vpop.f32.mrb[0].mxu0
    %v4811 = vadd.f32 %v4618, %v4810
    %v4812 = vpop.f32.mrb[0].mxu0
    %v4813 = vadd.f32 %v4620, %v4812
    %v4814 = vpop.f32.mrb[0].mxu0
    %v4815 = vadd.f32 %v4622, %v4814
    %v4816 = vpop.f32.mrb[0].mxu0
    %v4817 = vadd.f32 %v4624, %v4816
    %4818 = vmatprep.mubr.bf16.mxu0 %v3112
    %4819 = vmatmul.mubr.bf16.gmra.mrb[0].mxu0 %v3111
    %v4820 = vpop.f32.mrb[0].mxu0
    %v4821 = vadd.f32 %v4628, %v4820
    %v4822 = vpop.f32.mrb[0].mxu0
    %v4823 = vadd.f32 %v4630, %v4822
    %v4824 = vpop.f32.mrb[0].mxu0
    %v4825 = vadd.f32 %v4632, %v4824
    %v4826 = vpop.f32.mrb[0].mxu0
    %v4827 = vadd.f32 %v4634, %v4826
    %4828 = vmatprep.mubr.bf16.mxu0 %v3116
    %4829 = vmatmul.mubr.bf16.gmra.mrb[0].mxu0 %v3115
    %v4830 = vpop.f32.mrb[0].mxu0
    %v4831 = vadd.f32 %v4638, %v4830
    %v4832 = vpop.f32.mrb[0].mxu0
    %v4833 = vadd.f32 %v4640, %v4832
    %v4834 = vpop.f32.mrb[0].mxu0
    %v4835 = vadd.f32 %v4642, %v4834
    %v4836 = vpop.f32.mrb[0].mxu0
    %v4837 = vadd.f32 %v4644, %v4836
    %4838 = vmatprep.mubr.bf16.mxu0 %v3120
    %4839 = vmatmul.mubr.bf16.gmra.mrb[0].mxu0 %v3119
    %v4840 = vpop.f32.mrb[0].mxu0
    %v4841 = vadd.f32 %v4648, %v4840
    %v4842 = vpop.f32.mrb[0].mxu0
    %v4843 = vadd.f32 %v4650, %v4842
    %v4844 = vpop.f32.mrb[0].mxu0
    %v4845 = vadd.f32 %v4652, %v4844
    %v4846 = vpop.f32.mrb[0].mxu0
    %v4847 = vadd.f32 %v4654, %v4846
    %4848 = vmatprep.mubr.bf16.mxu0 %v3124
    %4849 = vmatmul.mubr.bf16.gmra.mrb[0].mxu0 %v3123
    %v4850 = vpop.f32.mrb[0].mxu0
    %v4851 = vadd.f32 %v4658, %v4850
    %v4852 = vpop.f32.mrb[0].mxu0
    %v4853 = vadd.f32 %v4660, %v4852
    %v4854 = vpop.f32.mrb[0].mxu0
    %v4855 = vadd.f32 %v4662, %v4854
    %v4856 = vpop.f32.mrb[0].mxu0
    %v4857 = vadd.f32 %v4664, %v4856
    %4858 = vmatprep.mubr.bf16.mxu0 %v3128
    %4859 = vmatmul.mubr.bf16.gmra.mrb[0].mxu0 %v3127
    %v4860 = vpop.f32.mrb[0].mxu0
    %v4861 = vadd.f32 %v4668, %v4860
    %v4862 = vpop.f32.mrb[0].mxu0
    %v4863 = vadd.f32 %v4670, %v4862
    %v4864 = vpop.f32.mrb[0].mxu0
    %v4865 = vadd.f32 %v4672, %v4864
    %v4866 = vpop.f32.mrb[0].mxu0
    %v4867 = vadd.f32 %v4674, %v4866
    %4868 = vmatprep.mubr.bf16.mxu0 %v3132
    %4869 = vmatmul.mubr.bf16.gmra.mrb[0].mxu0 %v3131
    %v4870 = vpop.f32.mrb[0].mxu0
    %v4871 = vadd.f32 %v4678, %v4870
    %v4872 = vpop.f32.mrb[0].mxu0
    %v4873 = vadd.f32 %v4680, %v4872
    %v4874 = vpop.f32.mrb[0].mxu0
    %v4875 = vadd.f32 %v4682, %v4874
    %v4876 = vpop.f32.mrb[0].mxu0
    %v4877 = vadd.f32 %v4684, %v4876
    %4878 = vmatprep.mubr.bf16.mxu0 %v3136
    %4879 = vmatmul.mubr.bf16.gmra.mrb[0].mxu0 %v3135
    %v4880 = vpop.f32.mrb[0].mxu0
    %v4881 = vadd.f32 %v4688, %v4880
    %v4882 = vpop.f32.mrb[0].mxu0
    %v4883 = vadd.f32 %v4690, %v4882
    %v4884 = vpop.f32.mrb[0].mxu0
    %v4885 = vadd.f32 %v4692, %v4884
    %v4886 = vpop.f32.mrb[0].mxu0
    %v4887 = vadd.f32 %v4694, %v4886
    %4888 = vmatprep.mubr.bf16.mxu0 %v3140
    %4889 = vmatmul.mubr.bf16.gmra.mrb[0].mxu0 %v3139
    %v4890 = vpop.f32.mrb[0].mxu0
    %v4891 = vadd.f32 %v4698, %v4890
    %v4892 = vpop.f32.mrb[0].mxu0
    %v4893 = vadd.f32 %v4700, %v4892
    %v4894 = vpop.f32.mrb[0].mxu0
    %v4895 = vadd.f32 %v4702, %v4894
    %v4896 = vpop.f32.mrb[0].mxu0
    %v4897 = vadd.f32 %v4704, %v4896
    %4898 = vmatprep.mubr.bf16.mxu0 %v3144
    %4899 = vmatmul.mubr.bf16.gmra.mrb[0].mxu0 %v3143
    %v4900 = vpop.f32.mrb[0].mxu0
    %v4901 = vadd.f32 %v4708, %v4900
    %v4902 = vpop.f32.mrb[0].mxu0
    %v4903 = vadd.f32 %v4710, %v4902
    %v4904 = vpop.f32.mrb[0].mxu0
    %v4905 = vadd.f32 %v4712, %v4904
    %v4906 = vpop.f32.mrb[0].mxu0
    %v4907 = vadd.f32 %v4714, %v4906
    %4908 = vmatprep.mubr.bf16.mxu0 %v3148
    %4909 = vmatmul.mubr.bf16.gmra.mrb[0].mxu0 %v3147
    %v4910 = vpop.f32.mrb[0].mxu0
    %v4911 = vadd.f32 %v4718, %v4910
    %v4912 = vpop.f32.mrb[0].mxu0
    %v4913 = vadd.f32 %v4720, %v4912
    %v4914 = vpop.f32.mrb[0].mxu0
    %v4915 = vadd.f32 %v4722, %v4914
    %v4916 = vpop.f32.mrb[0].mxu0
    %v4917 = vadd.f32 %v4724, %v4916
    %4918 = vmatprep.mubr.bf16.mxu0 %v3152
    %4919 = vmatmul.mubr.bf16.gmra.mrb[0].mxu0 %v3151
    %v4920 = vpop.f32.mrb[0].mxu0
    %v4921 = vadd.f32 %v4728, %v4920
    %v4922 = vpop.f32.mrb[0].mxu0
    %v4923 = vadd.f32 %v4730, %v4922
    %v4924 = vpop.f32.mrb[0].mxu0
    %v4925 = vadd.f32 %v4732, %v4924
    %v4926 = vpop.f32.mrb[0].mxu0
    %v4927 = vadd.f32 %v4734, %v4926
    %4928 = vmatprep.mubr.bf16.mxu0 %v3156
    %4929 = vmatmul.mubr.bf16.gmra.mrb[0].mxu0 %v3155
    %v4930 = vpop.f32.mrb[0].mxu0
    %v4931 = vadd.f32 %v4738, %v4930
    %v4932 = vpop.f32.mrb[0].mxu0
    %v4933 = vadd.f32 %v4740, %v4932
    %v4934 = vpop.f32.mrb[0].mxu0
    %v4935 = vadd.f32 %v4742, %v4934
    %v4936 = vpop.f32.mrb[0].mxu0
    %v4937 = vadd.f32 %v4744, %v4936
    %4938 = vmatprep.mubr.bf16.mxu0 %v3160
    %4939 = vmatmul.mubr.bf16.gmra.mrb[0].mxu0 %v3159
    %v4940 = vpop.f32.mrb[0].mxu0
    %v4941 = vadd.f32 %v4748, %v4940
    %v4942 = vpop.f32.mrb[0].mxu0
    %v4943 = vadd.f32 %v4750, %v4942
    %v4944 = vpop.f32.mrb[0].mxu0
    %v4945 = vadd.f32 %v4752, %v4944
    %v4946 = vpop.f32.mrb[0].mxu0
    %v4947 = vadd.f32 %v4754, %v4946
    %4948 = vmatprep.mubr.bf16.mxu0 %v3164
    %4949 = vmatmul.mubr.bf16.gmra.mrb[0].mxu0 %v3163
    %v4950 = vpop.f32.mrb[0].mxu0
    %v4951 = vadd.f32 %v4758, %v4950
    %v4952 = vpop.f32.mrb[0].mxu0
    %v4953 = vadd.f32 %v4760, %v4952
    %v4954 = vpop.f32.mrb[0].mxu0
    %v4955 = vadd.f32 %v4762, %v4954
    %v4956 = vpop.f32.mrb[0].mxu0
    %v4957 = vadd.f32 %v4764, %v4956
    %4958 = vmatprep.mubr.bf16.mxu0 %v3168
    %4959 = vmatmul.mubr.bf16.gmra.mrb[0].mxu0 %v3167
    %v4960 = vpop.f32.mrb[0].mxu0
    %v4961 = vadd.f32 %v4768, %v4960
    %v4962 = vpop.f32.mrb[0].mxu0
    %v4963 = vadd.f32 %v4770, %v4962
    %v4964 = vpop.f32.mrb[0].mxu0
    %v4965 = vadd.f32 %v4772, %v4964
    %v4966 = vpop.f32.mrb[0].mxu0
    %v4967 = vadd.f32 %v4774, %v4966
    %4968 = vdwg.mxu0
    %v4969 = vld [vmem:[#allocation17] sm:$0xff]
    %v4970 = vld [vmem:[#allocation19] sm:$0xff]
    %v4971 = vadd.f32 %v3653, %v3657
    %v4972 = vadd.f32 %v4971, %v3663
    %v4973 = vadd.f32 %v4972, %v3667
    %v4974 = vadd.f32 %v4973, %v3673
    %v4975 = vadd.f32 %v4974, %v3677
    %v4976 = vadd.f32 %v4975, %v3683
    %v4977 = vadd.f32 %v4976, %v3687
    %v4978 = vadd.f32 %v4977, %v3693
    %v4979 = vadd.f32 %v4978, %v3697
    %v4980 = vadd.f32 %v4979, %v3703
    %v4981 = vadd.f32 %v4980, %v3707
    %v4982 = vadd.f32 %v4981, %v3713
    %v4983 = vadd.f32 %v4982, %v3717
    %v4984 = vadd.f32 %v4983, %v3723
    %v4985 = vadd.f32 %v4984, %v3727
    %v4986 = vadd.f32 %v4985, %v3733
    %v4987 = vadd.f32 %v4986, %v3737
    %v4988 = vadd.f32 %v4987, %v3743
    %v4989 = vadd.f32 %v4988, %v3747
    %v4990 = vadd.f32 %v4989, %v3753
    %v4991 = vadd.f32 %v4990, %v3757
    %v4992 = vadd.f32 %v4991, %v3763
    %v4993 = vadd.f32 %v4992, %v3767
    %v4994 = vadd.f32 %v4993, %v3773
    %v4995 = vadd.f32 %v4994, %v3777
    %v4996 = vadd.f32 %v4995, %v3783
    %v4997 = vadd.f32 %v4996, %v3787
    %v4998 = vadd.f32 %v4997, %v3793
    %v4999 = vadd.f32 %v4998, %v3797
    %v5000 = vadd.f32 %v4999, %v3803
    %v5001 = vadd.f32 %v5000, %v3807
    %v5002 = vrot.slane %v5001, 4
    %v5003 = vadd.f32 %v5001, %v5002
    %v5004 = vrot.slane %v5003, 2
    %v5005 = vadd.f32 %v5003, %v5004
    %v5006 = vrot.slane %v5005, 1
    %v5007 = vadd.f32 %v5005, %v5006
    %v5008 = vadd.f32 %v3655, %v3659
    %v5009 = vadd.f32 %v5008, %v3665
    %v5010 = vadd.f32 %v5009, %v3669
    %v5011 = vadd.f32 %v5010, %v3675
    %v5012 = vadd.f32 %v5011, %v3679
    %v5013 = vadd.f32 %v5012, %v3685
    %v5014 = vadd.f32 %v5013, %v3689
    %v5015 = vadd.f32 %v5014, %v3695
    %v5016 = vadd.f32 %v5015, %v3699
    %v5017 = vadd.f32 %v5016, %v3705
    %v5018 = vadd.f32 %v5017, %v3709
    %v5019 = vadd.f32 %v5018, %v3715
    %v5020 = vadd.f32 %v5019, %v3719
    %v5021 = vadd.f32 %v5020, %v3725
    %v5022 = vadd.f32 %v5021, %v3729
    %v5023 = vadd.f32 %v5022, %v3735
    %v5024 = vadd.f32 %v5023, %v3739
    %v5025 = vadd.f32 %v5024, %v3745
    %v5026 = vadd.f32 %v5025, %v3749
    %v5027 = vadd.f32 %v5026, %v3755
    %v5028 = vadd.f32 %v5027, %v3759
    %v5029 = vadd.f32 %v5028, %v3765
    %v5030 = vadd.f32 %v5029, %v3769
    %v5031 = vadd.f32 %v5030, %v3775
    %v5032 = vadd.f32 %v5031, %v3779
    %v5033 = vadd.f32 %v5032, %v3785
    %v5034 = vadd.f32 %v5033, %v3789
    %v5035 = vadd.f32 %v5034, %v3795
    %v5036 = vadd.f32 %v5035, %v3799
    %v5037 = vadd.f32 %v5036, %v3805
    %v5038 = vadd.f32 %v5037, %v3809
    %v5039 = vrot.slane %v5038, 4
    %v5040 = vadd.f32 %v5038, %v5039
    %v5041 = vrot.slane %v5040, 2
    %v5042 = vadd.f32 %v5040, %v5041
    %v5043 = vrot.slane %v5042, 1
    %v5044 = vadd.f32 %v5042, %v5043
    %v5045 = vadd.f32 %v4039, %v4043
    %v5046 = vadd.f32 %v5045, %v4049
    %v5047 = vadd.f32 %v5046, %v4053
    %v5048 = vadd.f32 %v5047, %v4059
    %v5049 = vadd.f32 %v5048, %v4063
    %v5050 = vadd.f32 %v5049, %v4069
    %v5051 = vadd.f32 %v5050, %v4073
    %v5052 = vadd.f32 %v5051, %v4079
    %v5053 = vadd.f32 %v5052, %v4083
    %v5054 = vadd.f32 %v5053, %v4089
    %v5055 = vadd.f32 %v5054, %v4093
    %v5056 = vadd.f32 %v5055, %v4099
    %v5057 = vadd.f32 %v5056, %v4103
    %v5058 = vadd.f32 %v5057, %v4109
    %v5059 = vadd.f32 %v5058, %v4113
    %v5060 = vadd.f32 %v5059, %v4119
    %v5061 = vadd.f32 %v5060, %v4123
    %v5062 = vadd.f32 %v5061, %v4129
    %v5063 = vadd.f32 %v5062, %v4133
    %v5064 = vadd.f32 %v5063, %v4139
    %v5065 = vadd.f32 %v5064, %v4143
    %v5066 = vadd.f32 %v5065, %v4149
    %v5067 = vadd.f32 %v5066, %v4153
    %v5068 = vadd.f32 %v5067, %v4159
    %v5069 = vadd.f32 %v5068, %v4163
    %v5070 = vadd.f32 %v5069, %v4169
    %v5071 = vadd.f32 %v5070, %v4173
    %v5072 = vadd.f32 %v5071, %v4179
    %v5073 = vadd.f32 %v5072, %v4183
    %v5074 = vadd.f32 %v5073, %v4189
    %v5075 = vadd.f32 %v5074, %v4193
    %v5076 = vrot.slane %v5075, 4
    %v5077 = vadd.f32 %v5075, %v5076
    %v5078 = vrot.slane %v5077, 2
    %v5079 = vadd.f32 %v5077, %v5078
    %v5080 = vrot.slane %v5079, 1
    %v5081 = vadd.f32 %v5079, %v5080
    %v5082 = vadd.f32 %v4041, %v4045
    %v5083 = vadd.f32 %v5082, %v4051
    %v5084 = vadd.f32 %v5083, %v4055
    %v5085 = vadd.f32 %v5084, %v4061
    %v5086 = vadd.f32 %v5085, %v4065
    %v5087 = vadd.f32 %v5086, %v4071
    %v5088 = vadd.f32 %v5087, %v4075
    %v5089 = vadd.f32 %v5088, %v4081
    %v5090 = vadd.f32 %v5089, %v4085
    %v5091 = vadd.f32 %v5090, %v4091
    %v5092 = vadd.f32 %v5091, %v4095
    %v5093 = vadd.f32 %v5092, %v4101
    %v5094 = vadd.f32 %v5093, %v4105
    %v5095 = vadd.f32 %v5094, %v4111
    %v5096 = vadd.f32 %v5095, %v4115
    %v5097 = vadd.f32 %v5096, %v4121
    %v5098 = vadd.f32 %v5097, %v4125
    %v5099 = vadd.f32 %v5098, %v4131
    %v5100 = vadd.f32 %v5099, %v4135
    %v5101 = vadd.f32 %v5100, %v4141
    %v5102 = vadd.f32 %v5101, %v4145
    %v5103 = vadd.f32 %v5102, %v4151
    %v5104 = vadd.f32 %v5103, %v4155
    %v5105 = vadd.f32 %v5104, %v4161
    %v5106 = vadd.f32 %v5105, %v4165
    %v5107 = vadd.f32 %v5106, %v4171
    %v5108 = vadd.f32 %v5107, %v4175
    %v5109 = vadd.f32 %v5108, %v4181
    %v5110 = vadd.f32 %v5109, %v4185
    %v5111 = vadd.f32 %v5110, %v4191
    %v5112 = vadd.f32 %v5111, %v4195
    %v5113 = vrot.slane %v5112, 4
    %v5114 = vadd.f32 %v5112, %v5113
    %v5115 = vrot.slane %v5114, 2
    %v5116 = vadd.f32 %v5114, %v5115
    %v5117 = vrot.slane %v5116, 1
    %v5118 = vadd.f32 %v5116, %v5117
    %v5119 = vadd.f32 %v4425, %v4429
    %v5120 = vadd.f32 %v5119, %v4435
    %v5121 = vadd.f32 %v5120, %v4439
    %v5122 = vadd.f32 %v5121, %v4445
    %v5123 = vadd.f32 %v5122, %v4449
    %v5124 = vadd.f32 %v5123, %v4455
    %v5125 = vadd.f32 %v5124, %v4459
    %v5126 = vadd.f32 %v5125, %v4465
    %v5127 = vadd.f32 %v5126, %v4469
    %v5128 = vadd.f32 %v5127, %v4475
    %v5129 = vadd.f32 %v5128, %v4479
    %v5130 = vadd.f32 %v5129, %v4485
    %v5131 = vadd.f32 %v5130, %v4489
    %v5132 = vadd.f32 %v5131, %v4495
    %v5133 = vadd.f32 %v5132, %v4499
    %v5134 = vadd.f32 %v5133, %v4505
    %v5135 = vadd.f32 %v5134, %v4509
    %v5136 = vadd.f32 %v5135, %v4515
    %v5137 = vadd.f32 %v5136, %v4519
    %v5138 = vadd.f32 %v5137, %v4525
    %v5139 = vadd.f32 %v5138, %v4529
    %v5140 = vadd.f32 %v5139, %v4535
    %v5141 = vadd.f32 %v5140, %v4539
    %v5142 = vadd.f32 %v5141, %v4545
    %v5143 = vadd.f32 %v5142, %v4549
    %v5144 = vadd.f32 %v5143, %v4555
    %v5145 = vadd.f32 %v5144, %v4559
    %v5146 = vadd.f32 %v5145, %v4565
    %v5147 = vadd.f32 %v5146, %v4569
    %v5148 = vadd.f32 %v5147, %v4575
    %v5149 = vadd.f32 %v5148, %v4579
    %v5150 = vrot.slane %v5149, 4
    %v5151 = vadd.f32 %v5149, %v5150
    %v5152 = vrot.slane %v5151, 2
    %v5153 = vadd.f32 %v5151, %v5152
    %v5154 = vrot.slane %v5153, 1
    %v5155 = vadd.f32 %v5153, %v5154
    %v5156 = vadd.f32 %v4427, %v4431
    %v5157 = vadd.f32 %v5156, %v4437
    %v5158 = vadd.f32 %v5157, %v4441
    %v5159 = vadd.f32 %v5158, %v4447
    %v5160 = vadd.f32 %v5159, %v4451
    %v5161 = vadd.f32 %v5160, %v4457
    %v5162 = vadd.f32 %v5161, %v4461
    %v5163 = vadd.f32 %v5162, %v4467
    %v5164 = vadd.f32 %v5163, %v4471
    %v5165 = vadd.f32 %v5164, %v4477
    %v5166 = vadd.f32 %v5165, %v4481
    %v5167 = vadd.f32 %v5166, %v4487
    %v5168 = vadd.f32 %v5167, %v4491
    %v5169 = vadd.f32 %v5168, %v4497
    %v5170 = vadd.f32 %v5169, %v4501
    %v5171 = vadd.f32 %v5170, %v4507
    %v5172 = vadd.f32 %v5171, %v4511
    %v5173 = vadd.f32 %v5172, %v4517
    %v5174 = vadd.f32 %v5173, %v4521
    %v5175 = vadd.f32 %v5174, %v4527
    %v5176 = vadd.f32 %v5175, %v4531
    %v5177 = vadd.f32 %v5176, %v4537
    %v5178 = vadd.f32 %v5177, %v4541
    %v5179 = vadd.f32 %v5178, %v4547
    %v5180 = vadd.f32 %v5179, %v4551
    %v5181 = vadd.f32 %v5180, %v4557
    %v5182 = vadd.f32 %v5181, %v4561
    %v5183 = vadd.f32 %v5182, %v4567
    %v5184 = vadd.f32 %v5183, %v4571
    %v5185 = vadd.f32 %v5184, %v4577
    %v5186 = vadd.f32 %v5185, %v4581
    %v5187 = vrot.slane %v5186, 4
    %v5188 = vadd.f32 %v5186, %v5187
    %v5189 = vrot.slane %v5188, 2
    %v5190 = vadd.f32 %v5188, %v5189
    %v5191 = vrot.slane %v5190, 1
    %v5192 = vadd.f32 %v5190, %v5191
    %v5193 = vadd.f32 %v4811, %v4815
    %v5194 = vadd.f32 %v5193, %v4821
    %v5195 = vadd.f32 %v5194, %v4825
    %v5196 = vadd.f32 %v5195, %v4831
    %v5197 = vadd.f32 %v5196, %v4835
    %v5198 = vadd.f32 %v5197, %v4841
    %v5199 = vadd.f32 %v5198, %v4845
    %v5200 = vadd.f32 %v5199, %v4851
    %v5201 = vadd.f32 %v5200, %v4855
    %v5202 = vadd.f32 %v5201, %v4861
    %v5203 = vadd.f32 %v5202, %v4865
    %v5204 = vadd.f32 %v5203, %v4871
    %v5205 = vadd.f32 %v5204, %v4875
    %v5206 = vadd.f32 %v5205, %v4881
    %v5207 = vadd.f32 %v5206, %v4885
    %v5208 = vadd.f32 %v5207, %v4891
    %v5209 = vadd.f32 %v5208, %v4895
    %v5210 = vadd.f32 %v5209, %v4901
    %v5211 = vadd.f32 %v5210, %v4905
    %v5212 = vadd.f32 %v5211, %v4911
    %v5213 = vadd.f32 %v5212, %v4915
    %v5214 = vadd.f32 %v5213, %v4921
    %v5215 = vadd.f32 %v5214, %v4925
    %v5216 = vadd.f32 %v5215, %v4931
    %v5217 = vadd.f32 %v5216, %v4935
    %v5218 = vadd.f32 %v5217, %v4941
    %v5219 = vadd.f32 %v5218, %v4945
    %v5220 = vadd.f32 %v5219, %v4951
    %v5221 = vadd.f32 %v5220, %v4955
    %v5222 = vadd.f32 %v5221, %v4961
    %v5223 = vadd.f32 %v5222, %v4965
    %v5224 = vrot.slane %v5223, 4
    %v5225 = vadd.f32 %v5223, %v5224
    %v5226 = vrot.slane %v5225, 2
    %v5227 = vadd.f32 %v5225, %v5226
    %v5228 = vrot.slane %v5227, 1
    %v5229 = vadd.f32 %v5227, %v5228
    %v5230 = vadd.f32 %v4813, %v4817
    %v5231 = vadd.f32 %v5230, %v4823
    %v5232 = vadd.f32 %v5231, %v4827
    %v5233 = vadd.f32 %v5232, %v4833
    %v5234 = vadd.f32 %v5233, %v4837
    %v5235 = vadd.f32 %v5234, %v4843
    %v5236 = vadd.f32 %v5235, %v4847
    %v5237 = vadd.f32 %v5236, %v4853
    %v5238 = vadd.f32 %v5237, %v4857
    %v5239 = vadd.f32 %v5238, %v4863
    %v5240 = vadd.f32 %v5239, %v4867
    %v5241 = vadd.f32 %v5240, %v4873
    %v5242 = vadd.f32 %v5241, %v4877
    %v5243 = vadd.f32 %v5242, %v4883
    %v5244 = vadd.f32 %v5243, %v4887
    %v5245 = vadd.f32 %v5244, %v4893
    %v5246 = vadd.f32 %v5245, %v4897
    %v5247 = vadd.f32 %v5246, %v4903
    %v5248 = vadd.f32 %v5247, %v4907
    %v5249 = vadd.f32 %v5248, %v4913
    %v5250 = vadd.f32 %v5249, %v4917
    %v5251 = vadd.f32 %v5250, %v4923
    %v5252 = vadd.f32 %v5251, %v4927
    %v5253 = vadd.f32 %v5252, %v4933
    %v5254 = vadd.f32 %v5253, %v4937
    %v5255 = vadd.f32 %v5254, %v4943
    %v5256 = vadd.f32 %v5255, %v4947
    %v5257 = vadd.f32 %v5256, %v4953
    %v5258 = vadd.f32 %v5257, %v4957
    %v5259 = vadd.f32 %v5258, %v4963
    %v5260 = vadd.f32 %v5259, %v4967
    %v5261 = vrot.slane %v5260, 4
    %v5262 = vadd.f32 %v5260, %v5261
    %v5263 = vrot.slane %v5262, 2
    %v5264 = vadd.f32 %v5262, %v5263
    %v5265 = vrot.slane %v5264, 1
    %v5266 = vadd.f32 %v5264, %v5265
    %v5267 = vmul.f32 %v5007, %v1072
    %v5268 = vmul.f32 %v5044, %v1072
    %v5269 = vmul.f32 %v5081, %v1072
    %v5270 = vmul.f32 %v5118, %v1072
    %v5271 = vmul.f32 %v5155, %v1072
    %v5272 = vmul.f32 %v5192, %v1072
    %v5273 = vmul.f32 %v5229, %v1072
    %v5274 = vmul.f32 %v5266, %v1072
    %v5275 = vmul.f32 %v3653, %v3653
    %v5276 = vmul.f32 %v3655, %v3655
    %v5277 = vmul.f32 %v4039, %v4039
    %v5278 = vmul.f32 %v4041, %v4041
    %v5279 = vmul.f32 %v4425, %v4425
    %v5280 = vmul.f32 %v4427, %v4427
    %v5281 = vmul.f32 %v4811, %v4811
    %v5282 = vmul.f32 %v4813, %v4813
    %v5283 = vmul.f32 %v3657, %v3657
    %v5284 = vmul.f32 %v3659, %v3659
    %v5285 = vmul.f32 %v4043, %v4043
    %v5286 = vmul.f32 %v4045, %v4045
    %v5287 = vmul.f32 %v4429, %v4429
    %v5288 = vmul.f32 %v4431, %v4431
    %v5289 = vmul.f32 %v4815, %v4815
    %v5290 = vmul.f32 %v4817, %v4817
    %v5291 = vmul.f32 %v3663, %v3663
    %v5292 = vmul.f32 %v3665, %v3665
    %v5293 = vmul.f32 %v4049, %v4049
    %v5294 = vmul.f32 %v4051, %v4051
    %v5295 = vmul.f32 %v4435, %v4435
    %v5296 = vmul.f32 %v4437, %v4437
    %v5297 = vmul.f32 %v4821, %v4821
    %v5298 = vmul.f32 %v4823, %v4823
    %v5299 = vmul.f32 %v3667, %v3667
    %v5300 = vmul.f32 %v3669, %v3669
    %v5301 = vmul.f32 %v4053, %v4053
    %v5302 = vmul.f32 %v4055, %v4055
    %v5303 = vmul.f32 %v4439, %v4439
    %v5304 = vmul.f32 %v4441, %v4441
    %v5305 = vmul.f32 %v4825, %v4825
    %v5306 = vmul.f32 %v4827, %v4827
    %v5307 = vmul.f32 %v3673, %v3673
    %v5308 = vmul.f32 %v3675, %v3675
    %v5309 = vmul.f32 %v4059, %v4059
    %v5310 = vmul.f32 %v4061, %v4061
    %v5311 = vmul.f32 %v4445, %v4445
    %v5312 = vmul.f32 %v4447, %v4447
    %v5313 = vmul.f32 %v4831, %v4831
    %v5314 = vmul.f32 %v4833, %v4833
    %v5315 = vmul.f32 %v3677, %v3677
    %v5316 = vmul.f32 %v3679, %v3679
    %v5317 = vmul.f32 %v4063, %v4063
    %v5318 = vmul.f32 %v4065, %v4065
    %v5319 = vmul.f32 %v4449, %v4449
    %v5320 = vmul.f32 %v4451, %v4451
    %v5321 = vmul.f32 %v4835, %v4835
    %v5322 = vmul.f32 %v4837, %v4837
    %v5323 = vmul.f32 %v3683, %v3683
    %v5324 = vmul.f32 %v3685, %v3685
    %v5325 = vmul.f32 %v4069, %v4069
    %v5326 = vmul.f32 %v4071, %v4071
    %v5327 = vmul.f32 %v4455, %v4455
    %v5328 = vmul.f32 %v4457, %v4457
    %v5329 = vmul.f32 %v4841, %v4841
    %v5330 = vmul.f32 %v4843, %v4843
    %v5331 = vmul.f32 %v3687, %v3687
    %v5332 = vmul.f32 %v3689, %v3689
    %v5333 = vmul.f32 %v4073, %v4073
    %v5334 = vmul.f32 %v4075, %v4075
    %v5335 = vmul.f32 %v4459, %v4459
    %v5336 = vmul.f32 %v4461, %v4461
    %v5337 = vmul.f32 %v4845, %v4845
    %v5338 = vmul.f32 %v4847, %v4847
    %v5339 = vmul.f32 %v3693, %v3693
    %v5340 = vmul.f32 %v3695, %v3695
    %v5341 = vmul.f32 %v4079, %v4079
    %v5342 = vmul.f32 %v4081, %v4081
    %v5343 = vmul.f32 %v4465, %v4465
    %v5344 = vmul.f32 %v4467, %v4467
    %v5345 = vmul.f32 %v4851, %v4851
    %v5346 = vmul.f32 %v4853, %v4853
    %v5347 = vmul.f32 %v3697, %v3697
    %v5348 = vmul.f32 %v3699, %v3699
    %v5349 = vmul.f32 %v4083, %v4083
    %v5350 = vmul.f32 %v4085, %v4085
    %v5351 = vmul.f32 %v4469, %v4469
    %v5352 = vmul.f32 %v4471, %v4471
    %v5353 = vmul.f32 %v4855, %v4855
    %v5354 = vmul.f32 %v4857, %v4857
    %v5355 = vmul.f32 %v3703, %v3703
    %v5356 = vmul.f32 %v3705, %v3705
    %v5357 = vmul.f32 %v4089, %v4089
    %v5358 = vmul.f32 %v4091, %v4091
    %v5359 = vmul.f32 %v4475, %v4475
    %v5360 = vmul.f32 %v4477, %v4477
    %v5361 = vmul.f32 %v4861, %v4861
    %v5362 = vmul.f32 %v4863, %v4863
    %v5363 = vmul.f32 %v3707, %v3707
    %v5364 = vmul.f32 %v3709, %v3709
    %v5365 = vmul.f32 %v4093, %v4093
    %v5366 = vmul.f32 %v4095, %v4095
    %v5367 = vmul.f32 %v4479, %v4479
    %v5368 = vmul.f32 %v4481, %v4481
    %v5369 = vmul.f32 %v4865, %v4865
    %v5370 = vmul.f32 %v4867, %v4867
    %v5371 = vmul.f32 %v3713, %v3713
    %v5372 = vmul.f32 %v3715, %v3715
    %v5373 = vmul.f32 %v4099, %v4099
    %v5374 = vmul.f32 %v4101, %v4101
    %v5375 = vmul.f32 %v4485, %v4485
    %v5376 = vmul.f32 %v4487, %v4487
    %v5377 = vmul.f32 %v4871, %v4871
    %v5378 = vmul.f32 %v4873, %v4873
    %v5379 = vmul.f32 %v3717, %v3717
    %v5380 = vmul.f32 %v3719, %v3719
    %v5381 = vmul.f32 %v4103, %v4103
    %v5382 = vmul.f32 %v4105, %v4105
    %v5383 = vmul.f32 %v4489, %v4489
    %v5384 = vmul.f32 %v4491, %v4491
    %v5385 = vmul.f32 %v4875, %v4875
    %v5386 = vmul.f32 %v4877, %v4877
    %v5387 = vmul.f32 %v3723, %v3723
    %v5388 = vmul.f32 %v3725, %v3725
    %v5389 = vmul.f32 %v4109, %v4109
    %v5390 = vmul.f32 %v4111, %v4111
    %v5391 = vmul.f32 %v4495, %v4495
    %v5392 = vmul.f32 %v4497, %v4497
    %v5393 = vmul.f32 %v4881, %v4881
    %v5394 = vmul.f32 %v4883, %v4883
    %v5395 = vmul.f32 %v3727, %v3727
    %v5396 = vmul.f32 %v3729, %v3729
    %v5397 = vmul.f32 %v4113, %v4113
    %v5398 = vmul.f32 %v4115, %v4115
    %v5399 = vmul.f32 %v4499, %v4499
    %v5400 = vmul.f32 %v4501, %v4501
    %v5401 = vmul.f32 %v4885, %v4885
    %v5402 = vmul.f32 %v4887, %v4887
    %v5403 = vmul.f32 %v3733, %v3733
    %v5404 = vmul.f32 %v3735, %v3735
    %v5405 = vmul.f32 %v4119, %v4119
    %v5406 = vmul.f32 %v4121, %v4121
    %v5407 = vmul.f32 %v4505, %v4505
    %v5408 = vmul.f32 %v4507, %v4507
    %v5409 = vmul.f32 %v4891, %v4891
    %v5410 = vmul.f32 %v4893, %v4893
    %v5411 = vmul.f32 %v3737, %v3737
    %v5412 = vmul.f32 %v3739, %v3739
    %v5413 = vmul.f32 %v4123, %v4123
    %v5414 = vmul.f32 %v4125, %v4125
    %v5415 = vmul.f32 %v4509, %v4509
    %v5416 = vmul.f32 %v4511, %v4511
    %v5417 = vmul.f32 %v4895, %v4895
    %v5418 = vmul.f32 %v4897, %v4897
    %v5419 = vmul.f32 %v3743, %v3743
    %v5420 = vmul.f32 %v3745, %v3745
    %v5421 = vmul.f32 %v4129, %v4129
    %v5422 = vmul.f32 %v4131, %v4131
    %v5423 = vmul.f32 %v4515, %v4515
    %v5424 = vmul.f32 %v4517, %v4517
    %v5425 = vmul.f32 %v4901, %v4901
    %v5426 = vmul.f32 %v4903, %v4903
    %v5427 = vmul.f32 %v3747, %v3747
    %v5428 = vmul.f32 %v3749, %v3749
    %v5429 = vmul.f32 %v4133, %v4133
    %v5430 = vmul.f32 %v4135, %v4135
    %v5431 = vmul.f32 %v4519, %v4519
    %v5432 = vmul.f32 %v4521, %v4521
    %v5433 = vmul.f32 %v4905, %v4905
    %v5434 = vmul.f32 %v4907, %v4907
    %v5435 = vmul.f32 %v3753, %v3753
    %v5436 = vmul.f32 %v3755, %v3755
    %v5437 = vmul.f32 %v4139, %v4139
    %v5438 = vmul.f32 %v4141, %v4141
    %v5439 = vmul.f32 %v4525, %v4525
    %v5440 = vmul.f32 %v4527, %v4527
    %v5441 = vmul.f32 %v4911, %v4911
    %v5442 = vmul.f32 %v4913, %v4913
    %v5443 = vmul.f32 %v3757, %v3757
    %v5444 = vmul.f32 %v3759, %v3759
    %v5445 = vmul.f32 %v4143, %v4143
    %v5446 = vmul.f32 %v4145, %v4145
    %v5447 = vmul.f32 %v4529, %v4529
    %v5448 = vmul.f32 %v4531, %v4531
    %v5449 = vmul.f32 %v4915, %v4915
    %v5450 = vmul.f32 %v4917, %v4917
    %v5451 = vmul.f32 %v3763, %v3763
    %v5452 = vmul.f32 %v3765, %v3765
    %v5453 = vmul.f32 %v4149, %v4149
    %v5454 = vmul.f32 %v4151, %v4151
    %v5455 = vmul.f32 %v4535, %v4535
    %v5456 = vmul.f32 %v4537, %v4537
    %v5457 = vmul.f32 %v4921, %v4921
    %v5458 = vmul.f32 %v4923, %v4923
    %v5459 = vmul.f32 %v3767, %v3767
    %v5460 = vmul.f32 %v3769, %v3769
    %v5461 = vmul.f32 %v4153, %v4153
    %v5462 = vmul.f32 %v4155, %v4155
    %v5463 = vmul.f32 %v4539, %v4539
    %v5464 = vmul.f32 %v4541, %v4541
    %v5465 = vmul.f32 %v4925, %v4925
    %v5466 = vmul.f32 %v4927, %v4927
    %v5467 = vmul.f32 %v3773, %v3773
    %v5468 = vmul.f32 %v3775, %v3775
    %v5469 = vmul.f32 %v4159, %v4159
    %v5470 = vmul.f32 %v4161, %v4161
    %v5471 = vmul.f32 %v4545, %v4545
    %v5472 = vmul.f32 %v4547, %v4547
    %v5473 = vmul.f32 %v4931, %v4931
    %v5474 = vmul.f32 %v4933, %v4933
    %v5475 = vmul.f32 %v3777, %v3777
    %v5476 = vmul.f32 %v3779, %v3779
    %v5477 = vmul.f32 %v4163, %v4163
    %v5478 = vmul.f32 %v4165, %v4165
    %v5479 = vmul.f32 %v4549, %v4549
    %v5480 = vmul.f32 %v4551, %v4551
    %v5481 = vmul.f32 %v4935, %v4935
    %v5482 = vmul.f32 %v4937, %v4937
    %v5483 = vmul.f32 %v3783, %v3783
    %v5484 = vmul.f32 %v3785, %v3785
    %v5485 = vmul.f32 %v4169, %v4169
    %v5486 = vmul.f32 %v4171, %v4171
    %v5487 = vmul.f32 %v4555, %v4555
    %v5488 = vmul.f32 %v4557, %v4557
    %v5489 = vmul.f32 %v4941, %v4941
    %v5490 = vmul.f32 %v4943, %v4943
    %v5491 = vmul.f32 %v3787, %v3787
    %v5492 = vmul.f32 %v3789, %v3789
    %v5493 = vmul.f32 %v4173, %v4173
    %v5494 = vmul.f32 %v4175, %v4175
    %v5495 = vmul.f32 %v4559, %v4559
    %v5496 = vmul.f32 %v4561, %v4561
    %v5497 = vmul.f32 %v4945, %v4945
    %v5498 = vmul.f32 %v4947, %v4947
    %v5499 = vmul.f32 %v3793, %v3793
    %v5500 = vmul.f32 %v3795, %v3795
    %v5501 = vmul.f32 %v4179, %v4179
    %v5502 = vmul.f32 %v4181, %v4181
    %v5503 = vmul.f32 %v4565, %v4565
    %v5504 = vmul.f32 %v4567, %v4567
    %v5505 = vmul.f32 %v4951, %v4951
    %v5506 = vmul.f32 %v4953, %v4953
    %v5507 = vmul.f32 %v3797, %v3797
    %v5508 = vmul.f32 %v3799, %v3799
    %v5509 = vmul.f32 %v4183, %v4183
    %v5510 = vmul.f32 %v4185, %v4185
    %v5511 = vmul.f32 %v4569, %v4569
    %v5512 = vmul.f32 %v4571, %v4571
    %v5513 = vmul.f32 %v4955, %v4955
    %v5514 = vmul.f32 %v4957, %v4957
    %v5515 = vmul.f32 %v3803, %v3803
    %v5516 = vmul.f32 %v3805, %v3805
    %v5517 = vmul.f32 %v4189, %v4189
    %v5518 = vmul.f32 %v4191, %v4191
    %v5519 = vmul.f32 %v4575, %v4575
    %v5520 = vmul.f32 %v4577, %v4577
    %v5521 = vmul.f32 %v4961, %v4961
    %v5522 = vmul.f32 %v4963, %v4963
    %v5523 = vmul.f32 %v3807, %v3807
    %v5524 = vmul.f32 %v3809, %v3809
    %v5525 = vmul.f32 %v4193, %v4193
    %v5526 = vmul.f32 %v4195, %v4195
    %v5527 = vmul.f32 %v4579, %v4579
    %v5528 = vmul.f32 %v4581, %v4581
    %v5529 = vmul.f32 %v4965, %v4965
    %v5530 = vmul.f32 %v4967, %v4967
    %v5531 = vadd.f32 %v5275, %v5283
    %v5532 = vadd.f32 %v5531, %v5291
    %v5533 = vadd.f32 %v5532, %v5299
    %v5534 = vadd.f32 %v5533, %v5307
    %v5535 = vadd.f32 %v5534, %v5315
    %v5536 = vadd.f32 %v5535, %v5323
    %v5537 = vadd.f32 %v5536, %v5331
    %v5538 = vadd.f32 %v5537, %v5339
    %v5539 = vadd.f32 %v5538, %v5347
    %v5540 = vadd.f32 %v5539, %v5355
    %v5541 = vadd.f32 %v5540, %v5363
    %v5542 = vadd.f32 %v5541, %v5371
    %v5543 = vadd.f32 %v5542, %v5379
    %v5544 = vadd.f32 %v5543, %v5387
    %v5545 = vadd.f32 %v5544, %v5395
    %v5546 = vadd.f32 %v5545, %v5403
    %v5547 = vadd.f32 %v5546, %v5411
    %v5548 = vadd.f32 %v5547, %v5419
    %v5549 = vadd.f32 %v5548, %v5427
    %v5550 = vadd.f32 %v5549, %v5435
    %v5551 = vadd.f32 %v5550, %v5443
    %v5552 = vadd.f32 %v5551, %v5451
    %v5553 = vadd.f32 %v5552, %v5459
    %v5554 = vadd.f32 %v5553, %v5467
    %v5555 = vadd.f32 %v5554, %v5475
    %v5556 = vadd.f32 %v5555, %v5483
    %v5557 = vadd.f32 %v5556, %v5491
    %v5558 = vadd.f32 %v5557, %v5499
    %v5559 = vadd.f32 %v5558, %v5507
    %v5560 = vadd.f32 %v5559, %v5515
    %v5561 = vadd.f32 %v5560, %v5523
    %v5562 = vrot.slane %v5561, 4
    %v5563 = vadd.f32 %v5561, %v5562
    %v5564 = vrot.slane %v5563, 2
    %v5565 = vadd.f32 %v5563, %v5564
    %v5566 = vrot.slane %v5565, 1
    %v5567 = vadd.f32 %v5565, %v5566
    %v5568 = vadd.f32 %v5276, %v5284
    %v5569 = vadd.f32 %v5568, %v5292
    %v5570 = vadd.f32 %v5569, %v5300
    %v5571 = vadd.f32 %v5570, %v5308
    %v5572 = vadd.f32 %v5571, %v5316
    %v5573 = vadd.f32 %v5572, %v5324
    %v5574 = vadd.f32 %v5573, %v5332
    %v5575 = vadd.f32 %v5574, %v5340
    %v5576 = vadd.f32 %v5575, %v5348
    %v5577 = vadd.f32 %v5576, %v5356
    %v5578 = vadd.f32 %v5577, %v5364
    %v5579 = vadd.f32 %v5578, %v5372
    %v5580 = vadd.f32 %v5579, %v5380
    %v5581 = vadd.f32 %v5580, %v5388
    %v5582 = vadd.f32 %v5581, %v5396
    %v5583 = vadd.f32 %v5582, %v5404
    %v5584 = vadd.f32 %v5583, %v5412
    %v5585 = vadd.f32 %v5584, %v5420
    %v5586 = vadd.f32 %v5585, %v5428
    %v5587 = vadd.f32 %v5586, %v5436
    %v5588 = vadd.f32 %v5587, %v5444
    %v5589 = vadd.f32 %v5588, %v5452
    %v5590 = vadd.f32 %v5589, %v5460
    %v5591 = vadd.f32 %v5590, %v5468
    %v5592 = vadd.f32 %v5591, %v5476
    %v5593 = vadd.f32 %v5592, %v5484
    %v5594 = vadd.f32 %v5593, %v5492
    %v5595 = vadd.f32 %v5594, %v5500
    %v5596 = vadd.f32 %v5595, %v5508
    %v5597 = vadd.f32 %v5596, %v5516
    %v5598 = vadd.f32 %v5597, %v5524
    %v5599 = vrot.slane %v5598, 4
    %v5600 = vadd.f32 %v5598, %v5599
    %v5601 = vrot.slane %v5600, 2
    %v5602 = vadd.f32 %v5600, %v5601
    %v5603 = vrot.slane %v5602, 1
    %v5604 = vadd.f32 %v5602, %v5603
    %v5605 = vadd.f32 %v5277, %v5285
    %v5606 = vadd.f32 %v5605, %v5293
    %v5607 = vadd.f32 %v5606, %v5301
    %v5608 = vadd.f32 %v5607, %v5309
    %v5609 = vadd.f32 %v5608, %v5317
    %v5610 = vadd.f32 %v5609, %v5325
    %v5611 = vadd.f32 %v5610, %v5333
    %v5612 = vadd.f32 %v5611, %v5341
    %v5613 = vadd.f32 %v5612, %v5349
    %v5614 = vadd.f32 %v5613, %v5357
    %v5615 = vadd.f32 %v5614, %v5365
    %v5616 = vadd.f32 %v5615, %v5373
    %v5617 = vadd.f32 %v5616, %v5381
    %v5618 = vadd.f32 %v5617, %v5389
    %v5619 = vadd.f32 %v5618, %v5397
    %v5620 = vadd.f32 %v5619, %v5405
    %v5621 = vadd.f32 %v5620, %v5413
    %v5622 = vadd.f32 %v5621, %v5421
    %v5623 = vadd.f32 %v5622, %v5429
    %v5624 = vadd.f32 %v5623, %v5437
    %v5625 = vadd.f32 %v5624, %v5445
    %v5626 = vadd.f32 %v5625, %v5453
    %v5627 = vadd.f32 %v5626, %v5461
    %v5628 = vadd.f32 %v5627, %v5469
    %v5629 = vadd.f32 %v5628, %v5477
    %v5630 = vadd.f32 %v5629, %v5485
    %v5631 = vadd.f32 %v5630, %v5493
    %v5632 = vadd.f32 %v5631, %v5501
    %v5633 = vadd.f32 %v5632, %v5509
    %v5634 = vadd.f32 %v5633, %v5517
    %v5635 = vadd.f32 %v5634, %v5525
    %v5636 = vrot.slane %v5635, 4
    %v5637 = vadd.f32 %v5635, %v5636
    %v5638 = vrot.slane %v5637, 2
    %v5639 = vadd.f32 %v5637, %v5638
    %v5640 = vrot.slane %v5639, 1
    %v5641 = vadd.f32 %v5639, %v5640
    %v5642 = vadd.f32 %v5278, %v5286
    %v5643 = vadd.f32 %v5642, %v5294
    %v5644 = vadd.f32 %v5643, %v5302
    %v5645 = vadd.f32 %v5644, %v5310
    %v5646 = vadd.f32 %v5645, %v5318
    %v5647 = vadd.f32 %v5646, %v5326
    %v5648 = vadd.f32 %v5647, %v5334
    %v5649 = vadd.f32 %v5648, %v5342
    %v5650 = vadd.f32 %v5649, %v5350
    %v5651 = vadd.f32 %v5650, %v5358
    %v5652 = vadd.f32 %v5651, %v5366
    %v5653 = vadd.f32 %v5652, %v5374
    %v5654 = vadd.f32 %v5653, %v5382
    %v5655 = vadd.f32 %v5654, %v5390
    %v5656 = vadd.f32 %v5655, %v5398
    %v5657 = vadd.f32 %v5656, %v5406
    %v5658 = vadd.f32 %v5657, %v5414
    %v5659 = vadd.f32 %v5658, %v5422
    %v5660 = vadd.f32 %v5659, %v5430
    %v5661 = vadd.f32 %v5660, %v5438
    %v5662 = vadd.f32 %v5661, %v5446
    %v5663 = vadd.f32 %v5662, %v5454
    %v5664 = vadd.f32 %v5663, %v5462
    %v5665 = vadd.f32 %v5664, %v5470
    %v5666 = vadd.f32 %v5665, %v5478
    %v5667 = vadd.f32 %v5666, %v5486
    %v5668 = vadd.f32 %v5667, %v5494
    %v5669 = vadd.f32 %v5668, %v5502
    %v5670 = vadd.f32 %v5669, %v5510
    %v5671 = vadd.f32 %v5670, %v5518
    %v5672 = vadd.f32 %v5671, %v5526
    %v5673 = vrot.slane %v5672, 4
    %v5674 = vadd.f32 %v5672, %v5673
    %v5675 = vrot.slane %v5674, 2
    %v5676 = vadd.f32 %v5674, %v5675
    %v5677 = vrot.slane %v5676, 1
    %v5678 = vadd.f32 %v5676, %v5677
    %v5679 = vadd.f32 %v5279, %v5287
    %v5680 = vadd.f32 %v5679, %v5295
    %v5681 = vadd.f32 %v5680, %v5303
    %v5682 = vadd.f32 %v5681, %v5311
    %v5683 = vadd.f32 %v5682, %v5319
    %v5684 = vadd.f32 %v5683, %v5327
    %v5685 = vadd.f32 %v5684, %v5335
    %v5686 = vadd.f32 %v5685, %v5343
    %v5687 = vadd.f32 %v5686, %v5351
    %v5688 = vadd.f32 %v5687, %v5359
    %v5689 = vadd.f32 %v5688, %v5367
    %v5690 = vadd.f32 %v5689, %v5375
    %v5691 = vadd.f32 %v5690, %v5383
    %v5692 = vadd.f32 %v5691, %v5391
    %v5693 = vadd.f32 %v5692, %v5399
    %v5694 = vadd.f32 %v5693, %v5407
    %v5695 = vadd.f32 %v5694, %v5415
    %v5696 = vadd.f32 %v5695, %v5423
    %v5697 = vadd.f32 %v5696, %v5431
    %v5698 = vadd.f32 %v5697, %v5439
    %v5699 = vadd.f32 %v5698, %v5447
    %v5700 = vadd.f32 %v5699, %v5455
    %v5701 = vadd.f32 %v5700, %v5463
    %v5702 = vadd.f32 %v5701, %v5471
    %v5703 = vadd.f32 %v5702, %v5479
    %v5704 = vadd.f32 %v5703, %v5487
    %v5705 = vadd.f32 %v5704, %v5495
    %v5706 = vadd.f32 %v5705, %v5503
    %v5707 = vadd.f32 %v5706, %v5511
    %v5708 = vadd.f32 %v5707, %v5519
    %v5709 = vadd.f32 %v5708, %v5527
    %v5710 = vrot.slane %v5709, 4
    %v5711 = vadd.f32 %v5709, %v5710
    %v5712 = vrot.slane %v5711, 2
    %v5713 = vadd.f32 %v5711, %v5712
    %v5714 = vrot.slane %v5713, 1
    %v5715 = vadd.f32 %v5713, %v5714
    %v5716 = vadd.f32 %v5280, %v5288
    %v5717 = vadd.f32 %v5716, %v5296
    %v5718 = vadd.f32 %v5717, %v5304
    %v5719 = vadd.f32 %v5718, %v5312
    %v5720 = vadd.f32 %v5719, %v5320
    %v5721 = vadd.f32 %v5720, %v5328
    %v5722 = vadd.f32 %v5721, %v5336
    %v5723 = vadd.f32 %v5722, %v5344
    %v5724 = vadd.f32 %v5723, %v5352
    %v5725 = vadd.f32 %v5724, %v5360
    %v5726 = vadd.f32 %v5725, %v5368
    %v5727 = vadd.f32 %v5726, %v5376
    %v5728 = vadd.f32 %v5727, %v5384
    %v5729 = vadd.f32 %v5728, %v5392
    %v5730 = vadd.f32 %v5729, %v5400
    %v5731 = vadd.f32 %v5730, %v5408
    %v5732 = vadd.f32 %v5731, %v5416
    %v5733 = vadd.f32 %v5732, %v5424
    %v5734 = vadd.f32 %v5733, %v5432
    %v5735 = vadd.f32 %v5734, %v5440
    %v5736 = vadd.f32 %v5735, %v5448
    %v5737 = vadd.f32 %v5736, %v5456
    %v5738 = vadd.f32 %v5737, %v5464
    %v5739 = vadd.f32 %v5738, %v5472
    %v5740 = vadd.f32 %v5739, %v5480
    %v5741 = vadd.f32 %v5740, %v5488
    %v5742 = vadd.f32 %v5741, %v5496
    %v5743 = vadd.f32 %v5742, %v5504
    %v5744 = vadd.f32 %v5743, %v5512
    %v5745 = vadd.f32 %v5744, %v5520
    %v5746 = vadd.f32 %v5745, %v5528
    %v5747 = vrot.slane %v5746, 4
    %v5748 = vadd.f32 %v5746, %v5747
    %v5749 = vrot.slane %v5748, 2
    %v5750 = vadd.f32 %v5748, %v5749
    %v5751 = vrot.slane %v5750, 1
    %v5752 = vadd.f32 %v5750, %v5751
    %v5753 = vadd.f32 %v5281, %v5289
    %v5754 = vadd.f32 %v5753, %v5297
    %v5755 = vadd.f32 %v5754, %v5305
    %v5756 = vadd.f32 %v5755, %v5313
    %v5757 = vadd.f32 %v5756, %v5321
    %v5758 = vadd.f32 %v5757, %v5329
    %v5759 = vadd.f32 %v5758, %v5337
    %v5760 = vadd.f32 %v5759, %v5345
    %v5761 = vadd.f32 %v5760, %v5353
    %v5762 = vadd.f32 %v5761, %v5361
    %v5763 = vadd.f32 %v5762, %v5369
    %v5764 = vadd.f32 %v5763, %v5377
    %v5765 = vadd.f32 %v5764, %v5385
    %v5766 = vadd.f32 %v5765, %v5393
    %v5767 = vadd.f32 %v5766, %v5401
    %v5768 = vadd.f32 %v5767, %v5409
    %v5769 = vadd.f32 %v5768, %v5417
    %v5770 = vadd.f32 %v5769, %v5425
    %v5771 = vadd.f32 %v5770, %v5433
    %v5772 = vadd.f32 %v5771, %v5441
    %v5773 = vadd.f32 %v5772, %v5449
    %v5774 = vadd.f32 %v5773, %v5457
    %v5775 = vadd.f32 %v5774, %v5465
    %v5776 = vadd.f32 %v5775, %v5473
    %v5777 = vadd.f32 %v5776, %v5481
    %v5778 = vadd.f32 %v5777, %v5489
    %v5779 = vadd.f32 %v5778, %v5497
    %v5780 = vadd.f32 %v5779, %v5505
    %v5781 = vadd.f32 %v5780, %v5513
    %v5782 = vadd.f32 %v5781, %v5521
    %v5783 = vadd.f32 %v5782, %v5529
    %v5784 = vrot.slane %v5783, 4
    %v5785 = vadd.f32 %v5783, %v5784
    %v5786 = vrot.slane %v5785, 2
    %v5787 = vadd.f32 %v5785, %v5786
    %v5788 = vrot.slane %v5787, 1
    %v5789 = vadd.f32 %v5787, %v5788
    %v5790 = vadd.f32 %v5282, %v5290
    %v5791 = vadd.f32 %v5790, %v5298
    %v5792 = vadd.f32 %v5791, %v5306
    %v5793 = vadd.f32 %v5792, %v5314
    %v5794 = vadd.f32 %v5793, %v5322
    %v5795 = vadd.f32 %v5794, %v5330
    %v5796 = vadd.f32 %v5795, %v5338
    %v5797 = vadd.f32 %v5796, %v5346
    %v5798 = vadd.f32 %v5797, %v5354
    %v5799 = vadd.f32 %v5798, %v5362
    %v5800 = vadd.f32 %v5799, %v5370
    %v5801 = vadd.f32 %v5800, %v5378
    %v5802 = vadd.f32 %v5801, %v5386
    %v5803 = vadd.f32 %v5802, %v5394
    %v5804 = vadd.f32 %v5803, %v5402
    %v5805 = vadd.f32 %v5804, %v5410
    %v5806 = vadd.f32 %v5805, %v5418
    %v5807 = vadd.f32 %v5806, %v5426
    %v5808 = vadd.f32 %v5807, %v5434
    %v5809 = vadd.f32 %v5808, %v5442
    %v5810 = vadd.f32 %v5809, %v5450
    %v5811 = vadd.f32 %v5810, %v5458
    %v5812 = vadd.f32 %v5811, %v5466
    %v5813 = vadd.f32 %v5812, %v5474
    %v5814 = vadd.f32 %v5813, %v5482
    %v5815 = vadd.f32 %v5814, %v5490
    %v5816 = vadd.f32 %v5815, %v5498
    %v5817 = vadd.f32 %v5816, %v5506
    %v5818 = vadd.f32 %v5817, %v5514
    %v5819 = vadd.f32 %v5818, %v5522
    %v5820 = vadd.f32 %v5819, %v5530
    %v5821 = vrot.slane %v5820, 4
    %v5822 = vadd.f32 %v5820, %v5821
    %v5823 = vrot.slane %v5822, 2
    %v5824 = vadd.f32 %v5822, %v5823
    %v5825 = vrot.slane %v5824, 1
    %v5826 = vadd.f32 %v5824, %v5825
    %v5827 = vmul.f32 %v5567, %v1072
    %v5828 = vmul.f32 %v5604, %v1072
    %v5829 = vmul.f32 %v5641, %v1072
    %v5830 = vmul.f32 %v5678, %v1072
    %v5831 = vmul.f32 %v5715, %v1072
    %v5832 = vmul.f32 %v5752, %v1072
    %v5833 = vmul.f32 %v5789, %v1072
    %v5834 = vmul.f32 %v5826, %v1072
    %v5835 = vmul.f32 %v5267, %v5267
    %v5836 = vmul.f32 %v5268, %v5268
    %v5837 = vmul.f32 %v5269, %v5269
    %v5838 = vmul.f32 %v5270, %v5270
    %v5839 = vmul.f32 %v5271, %v5271
    %v5840 = vmul.f32 %v5272, %v5272
    %v5841 = vmul.f32 %v5273, %v5273
    %v5842 = vmul.f32 %v5274, %v5274
    %v5843 = vsub.f32 %v5827, %v5835
    %v5844 = vsub.f32 %v5828, %v5836
    %v5845 = vsub.f32 %v5829, %v5837
    %v5846 = vsub.f32 %v5830, %v5838
    %v5847 = vsub.f32 %v5831, %v5839
    %v5848 = vsub.f32 %v5832, %v5840
    %v5849 = vsub.f32 %v5833, %v5841
    %v5850 = vsub.f32 %v5834, %v5842
    %v5851 = vmax.f32 %v5843, 0.0
    %v5852 = vmax.f32 %v5844, 0.0
    %v5853 = vmax.f32 %v5845, 0.0
    %v5854 = vmax.f32 %v5846, 0.0
    %v5855 = vmax.f32 %v5847, 0.0
    %v5856 = vmax.f32 %v5848, 0.0
    %v5857 = vmax.f32 %v5849, 0.0
    %v5858 = vmax.f32 %v5850, 0.0
    %v5859 = vadd.f32 %v5851, 1e-05
    %v5860 = vadd.f32 %v5852, 1e-05
    %v5861 = vadd.f32 %v5853, 1e-05
    %v5862 = vadd.f32 %v5854, 1e-05
    %v5863 = vadd.f32 %v5855, 1e-05
    %v5864 = vadd.f32 %v5856, 1e-05
    %v5865 = vadd.f32 %v5857, 1e-05
    %v5866 = vadd.f32 %v5858, 1e-05
    %v5867 = vrsqrt.pop %v5859
    %v5868 = vrsqrt.pop %v5860
    %v5869 = vrsqrt.pop %v5861
    %v5870 = vrsqrt.pop %v5862
    %v5871 = vrsqrt.pop %v5863
    %v5872 = vrsqrt.pop %v5864
    %v5873 = vrsqrt.pop %v5865
    %v5874 = vrsqrt.pop %v5866
    %v5883 = vcombine.low %v5867, %v5868
    %v5884 = vcombine.low %v5869, %v5870
    %v5885 = vcombine.low %v5871, %v5872
    %v5886 = vcombine.low %v5873, %v5874
    %v5888 = vunpack.c.l.s4 1966171168
    %v5889 = vunpack.c.0.s8 %v5888
    %v5890 = vlaneseq
    %v5891 = vshrl.u32 %v5890, 7
    %v5892 = vsub.s32 %v5889, %v5891
    %v5893 = vrot.slane %v5883, %v5892
    %v5895 = vunpack.c.l.s4 1966171168
    %v5896 = vunpack.c.0.s8 %v5895
    %v5897 = vlaneseq
    %v5898 = vshrl.u32 %v5897, 7
    %v5899 = vsub.s32 %v5896, %v5898
    %v5900 = vrot.slane %v5884, %v5899
    %v5902 = vunpack.c.l.s4 1966171168
    %v5903 = vunpack.c.0.s8 %v5902
    %v5904 = vlaneseq
    %v5905 = vshrl.u32 %v5904, 7
    %v5906 = vsub.s32 %v5903, %v5905
    %v5907 = vrot.slane %v5885, %v5906
    %v5909 = vunpack.c.l.s4 1966171168
    %v5910 = vunpack.c.0.s8 %v5909
    %v5911 = vlaneseq
    %v5912 = vshrl.u32 %v5911, 7
    %v5913 = vsub.s32 %v5910, %v5912
    %v5914 = vrot.slane %v5886, %v5913
    %v5915 = vcombine.low %v5893, %v5900
    %v5916 = vcombine.low %v5907, %v5914
    %v5918 = vunpack.c.l.s4 1966171168
    %v5919 = vunpack.c.0.s8 %v5918
    %v5920 = vlaneseq
    %v5921 = vshrl.u32 %v5920, 7
    %v5922 = vsub.s32 %v5919, %v5921
    %v5923 = vrot.slane %v5915, %v5922
    %v5925 = vunpack.c.l.s4 1966171168
    %v5926 = vunpack.c.0.s8 %v5925
    %v5927 = vlaneseq
    %v5928 = vshrl.u32 %v5927, 7
    %v5929 = vsub.s32 %v5926, %v5928
    %v5930 = vrot.slane %v5916, %v5929
    %v5931 = vcombine.low %v5923, %v5930
    %v5933 = vmul.f32 %v4969, %v5931
    %v5935 = vlaneseq
    %v5936 = vshrl.u32 %v5935, 7
    %v5937 = vsub.s32 0, %v5936
    %v5938 = vrot.slane %v5933, %v5937
    %v5939 = vlaneseq
    %v5940 = vshrl.u32 %v5939, 7
    %v5941 = vsub.s32 1, %v5940
    %v5942 = vrot.slane %v5933, %v5941
    %v5943 = vlaneseq
    %v5944 = vshrl.u32 %v5943, 7
    %v5945 = vsub.s32 2, %v5944
    %v5946 = vrot.slane %v5933, %v5945
    %v5947 = vlaneseq
    %v5948 = vshrl.u32 %v5947, 7
    %v5949 = vsub.s32 3, %v5948
    %v5950 = vrot.slane %v5933, %v5949
    %v5951 = vlaneseq
    %v5952 = vshrl.u32 %v5951, 7
    %v5953 = vsub.s32 4, %v5952
    %v5954 = vrot.slane %v5933, %v5953
    %v5955 = vlaneseq
    %v5956 = vshrl.u32 %v5955, 7
    %v5957 = vsub.s32 5, %v5956
    %v5958 = vrot.slane %v5933, %v5957
    %v5959 = vlaneseq
    %v5960 = vshrl.u32 %v5959, 7
    %v5961 = vsub.s32 6, %v5960
    %v5962 = vrot.slane %v5933, %v5961
    %v5963 = vlaneseq
    %v5964 = vshrl.u32 %v5963, 7
    %v5965 = vsub.s32 7, %v5964
    %v5966 = vrot.slane %v5933, %v5965
    %v5975 = vmul.f32 %v5267, %v5938
    %v5976 = vmul.f32 %v5268, %v5942
    %v5977 = vmul.f32 %v5269, %v5946
    %v5978 = vmul.f32 %v5270, %v5950
    %v5979 = vmul.f32 %v5271, %v5954
    %v5980 = vmul.f32 %v5272, %v5958
    %v5981 = vmul.f32 %v5273, %v5962
    %v5982 = vmul.f32 %v5274, %v5966
    %v5991 = vcombine.low %v5975, %v5976
    %v5992 = vcombine.low %v5977, %v5978
    %v5993 = vcombine.low %v5979, %v5980
    %v5994 = vcombine.low %v5981, %v5982
    %v5996 = vunpack.c.l.s4 1966171168
    %v5997 = vunpack.c.0.s8 %v5996
    %v5998 = vlaneseq
    %v5999 = vshrl.u32 %v5998, 7
    %v6000 = vsub.s32 %v5997, %v5999
    %v6001 = vrot.slane %v5991, %v6000
    %v6003 = vunpack.c.l.s4 1966171168
    %v6004 = vunpack.c.0.s8 %v6003
    %v6005 = vlaneseq
    %v6006 = vshrl.u32 %v6005, 7
    %v6007 = vsub.s32 %v6004, %v6006
    %v6008 = vrot.slane %v5992, %v6007
    %v6010 = vunpack.c.l.s4 1966171168
    %v6011 = vunpack.c.0.s8 %v6010
    %v6012 = vlaneseq
    %v6013 = vshrl.u32 %v6012, 7
    %v6014 = vsub.s32 %v6011, %v6013
    %v6015 = vrot.slane %v5993, %v6014
    %v6017 = vunpack.c.l.s4 1966171168
    %v6018 = vunpack.c.0.s8 %v6017
    %v6019 = vlaneseq
    %v6020 = vshrl.u32 %v6019, 7
    %v6021 = vsub.s32 %v6018, %v6020
    %v6022 = vrot.slane %v5994, %v6021
    %v6023 = vcombine.low %v6001, %v6008
    %v6024 = vcombine.low %v6015, %v6022
    %v6026 = vunpack.c.l.s4 1966171168
    %v6027 = vunpack.c.0.s8 %v6026
    %v6028 = vlaneseq
    %v6029 = vshrl.u32 %v6028, 7
    %v6030 = vsub.s32 %v6027, %v6029
    %v6031 = vrot.slane %v6023, %v6030
    %v6033 = vunpack.c.l.s4 1966171168
    %v6034 = vunpack.c.0.s8 %v6033
    %v6035 = vlaneseq
    %v6036 = vshrl.u32 %v6035, 7
    %v6037 = vsub.s32 %v6034, %v6036
    %v6038 = vrot.slane %v6024, %v6037
    %v6039 = vcombine.low %v6031, %v6038
    %v6041 = vsub.f32 %v4970, %v6039
    %v6042 = vmul.f32 %v3653, %v5938
    %v6043 = vmul.f32 %v3655, %v5942
    %v6044 = vmul.f32 %v4039, %v5946
    %v6045 = vmul.f32 %v4041, %v5950
    %v6046 = vmul.f32 %v4425, %v5954
    %v6047 = vmul.f32 %v4427, %v5958
    %v6048 = vmul.f32 %v4811, %v5962
    %v6049 = vmul.f32 %v4813, %v5966
    %v6050 = vmul.f32 %v3657, %v5938
    %v6051 = vmul.f32 %v3659, %v5942
    %v6052 = vmul.f32 %v4043, %v5946
    %v6053 = vmul.f32 %v4045, %v5950
    %v6054 = vmul.f32 %v4429, %v5954
    %v6055 = vmul.f32 %v4431, %v5958
    %v6056 = vmul.f32 %v4815, %v5962
    %v6057 = vmul.f32 %v4817, %v5966
    %v6058 = vmul.f32 %v3663, %v5938
    %v6059 = vmul.f32 %v3665, %v5942
    %v6060 = vmul.f32 %v4049, %v5946
    %v6061 = vmul.f32 %v4051, %v5950
    %v6062 = vmul.f32 %v4435, %v5954
    %v6063 = vmul.f32 %v4437, %v5958
    %v6064 = vmul.f32 %v4821, %v5962
    %v6065 = vmul.f32 %v4823, %v5966
    %v6066 = vmul.f32 %v3667, %v5938
    %v6067 = vmul.f32 %v3669, %v5942
    %v6068 = vmul.f32 %v4053, %v5946
    %v6069 = vmul.f32 %v4055, %v5950
    %v6070 = vmul.f32 %v4439, %v5954
    %v6071 = vmul.f32 %v4441, %v5958
    %v6072 = vmul.f32 %v4825, %v5962
    %v6073 = vmul.f32 %v4827, %v5966
    %v6074 = vmul.f32 %v3673, %v5938
    %v6075 = vmul.f32 %v3675, %v5942
    %v6076 = vmul.f32 %v4059, %v5946
    %v6077 = vmul.f32 %v4061, %v5950
    %v6078 = vmul.f32 %v4445, %v5954
    %v6079 = vmul.f32 %v4447, %v5958
    %v6080 = vmul.f32 %v4831, %v5962
    %v6081 = vmul.f32 %v4833, %v5966
    %v6082 = vmul.f32 %v3677, %v5938
    %v6083 = vmul.f32 %v3679, %v5942
    %v6084 = vmul.f32 %v4063, %v5946
    %v6085 = vmul.f32 %v4065, %v5950
    %v6086 = vmul.f32 %v4449, %v5954
    %v6087 = vmul.f32 %v4451, %v5958
    %v6088 = vmul.f32 %v4835, %v5962
    %v6089 = vmul.f32 %v4837, %v5966
    %v6090 = vmul.f32 %v3683, %v5938
    %v6091 = vmul.f32 %v3685, %v5942
    %v6092 = vmul.f32 %v4069, %v5946
    %v6093 = vmul.f32 %v4071, %v5950
    %v6094 = vmul.f32 %v4455, %v5954
    %v6095 = vmul.f32 %v4457, %v5958
    %v6096 = vmul.f32 %v4841, %v5962
    %v6097 = vmul.f32 %v4843, %v5966
    %v6098 = vmul.f32 %v3687, %v5938
    %v6099 = vmul.f32 %v3689, %v5942
    %v6100 = vmul.f32 %v4073, %v5946
    %v6101 = vmul.f32 %v4075, %v5950
    %v6102 = vmul.f32 %v4459, %v5954
    %v6103 = vmul.f32 %v4461, %v5958
    %v6104 = vmul.f32 %v4845, %v5962
    %v6105 = vmul.f32 %v4847, %v5966
    %v6106 = vmul.f32 %v3693, %v5938
    %v6107 = vmul.f32 %v3695, %v5942
    %v6108 = vmul.f32 %v4079, %v5946
    %v6109 = vmul.f32 %v4081, %v5950
    %v6110 = vmul.f32 %v4465, %v5954
    %v6111 = vmul.f32 %v4467, %v5958
    %v6112 = vmul.f32 %v4851, %v5962
    %v6113 = vmul.f32 %v4853, %v5966
    %v6114 = vmul.f32 %v3697, %v5938
    %v6115 = vmul.f32 %v3699, %v5942
    %v6116 = vmul.f32 %v4083, %v5946
    %v6117 = vmul.f32 %v4085, %v5950
    %v6118 = vmul.f32 %v4469, %v5954
    %v6119 = vmul.f32 %v4471, %v5958
    %v6120 = vmul.f32 %v4855, %v5962
    %v6121 = vmul.f32 %v4857, %v5966
    %v6122 = vmul.f32 %v3703, %v5938
    %v6123 = vmul.f32 %v3705, %v5942
    %v6124 = vmul.f32 %v4089, %v5946
    %v6125 = vmul.f32 %v4091, %v5950
    %v6126 = vmul.f32 %v4475, %v5954
    %v6127 = vmul.f32 %v4477, %v5958
    %v6128 = vmul.f32 %v4861, %v5962
    %v6129 = vmul.f32 %v4863, %v5966
    %v6130 = vmul.f32 %v3707, %v5938
    %v6131 = vmul.f32 %v3709, %v5942
    %v6132 = vmul.f32 %v4093, %v5946
    %v6133 = vmul.f32 %v4095, %v5950
    %v6134 = vmul.f32 %v4479, %v5954
    %v6135 = vmul.f32 %v4481, %v5958
    %v6136 = vmul.f32 %v4865, %v5962
    %v6137 = vmul.f32 %v4867, %v5966
    %v6138 = vmul.f32 %v3713, %v5938
    %v6139 = vmul.f32 %v3715, %v5942
    %v6140 = vmul.f32 %v4099, %v5946
    %v6141 = vmul.f32 %v4101, %v5950
    %v6142 = vmul.f32 %v4485, %v5954
    %v6143 = vmul.f32 %v4487, %v5958
    %v6144 = vmul.f32 %v4871, %v5962
    %v6145 = vmul.f32 %v4873, %v5966
    %v6146 = vmul.f32 %v3717, %v5938
    %v6147 = vmul.f32 %v3719, %v5942
    %v6148 = vmul.f32 %v4103, %v5946
    %v6149 = vmul.f32 %v4105, %v5950
    %v6150 = vmul.f32 %v4489, %v5954
    %v6151 = vmul.f32 %v4491, %v5958
    %v6152 = vmul.f32 %v4875, %v5962
    %v6153 = vmul.f32 %v4877, %v5966
    %v6154 = vmul.f32 %v3723, %v5938
    %v6155 = vmul.f32 %v3725, %v5942
    %v6156 = vmul.f32 %v4109, %v5946
    %v6157 = vmul.f32 %v4111, %v5950
    %v6158 = vmul.f32 %v4495, %v5954
    %v6159 = vmul.f32 %v4497, %v5958
    %v6160 = vmul.f32 %v4881, %v5962
    %v6161 = vmul.f32 %v4883, %v5966
    %v6162 = vmul.f32 %v3727, %v5938
    %v6163 = vmul.f32 %v3729, %v5942
    %v6164 = vmul.f32 %v4113, %v5946
    %v6165 = vmul.f32 %v4115, %v5950
    %v6166 = vmul.f32 %v4499, %v5954
    %v6167 = vmul.f32 %v4501, %v5958
    %v6168 = vmul.f32 %v4885, %v5962
    %v6169 = vmul.f32 %v4887, %v5966
    %v6170 = vmul.f32 %v3733, %v5938
    %v6171 = vmul.f32 %v3735, %v5942
    %v6172 = vmul.f32 %v4119, %v5946
    %v6173 = vmul.f32 %v4121, %v5950
    %v6174 = vmul.f32 %v4505, %v5954
    %v6175 = vmul.f32 %v4507, %v5958
    %v6176 = vmul.f32 %v4891, %v5962
    %v6177 = vmul.f32 %v4893, %v5966
    %v6178 = vmul.f32 %v3737, %v5938
    %v6179 = vmul.f32 %v3739, %v5942
    %v6180 = vmul.f32 %v4123, %v5946
    %v6181 = vmul.f32 %v4125, %v5950
    %v6182 = vmul.f32 %v4509, %v5954
    %v6183 = vmul.f32 %v4511, %v5958
    %v6184 = vmul.f32 %v4895, %v5962
    %v6185 = vmul.f32 %v4897, %v5966
    %v6186 = vmul.f32 %v3743, %v5938
    %v6187 = vmul.f32 %v3745, %v5942
    %v6188 = vmul.f32 %v4129, %v5946
    %v6189 = vmul.f32 %v4131, %v5950
    %v6190 = vmul.f32 %v4515, %v5954
    %v6191 = vmul.f32 %v4517, %v5958
    %v6192 = vmul.f32 %v4901, %v5962
    %v6193 = vmul.f32 %v4903, %v5966
    %v6194 = vmul.f32 %v3747, %v5938
    %v6195 = vmul.f32 %v3749, %v5942
    %v6196 = vmul.f32 %v4133, %v5946
    %v6197 = vmul.f32 %v4135, %v5950
    %v6198 = vmul.f32 %v4519, %v5954
    %v6199 = vmul.f32 %v4521, %v5958
    %v6200 = vmul.f32 %v4905, %v5962
    %v6201 = vmul.f32 %v4907, %v5966
    %v6202 = vmul.f32 %v3753, %v5938
    %v6203 = vmul.f32 %v3755, %v5942
    %v6204 = vmul.f32 %v4139, %v5946
    %v6205 = vmul.f32 %v4141, %v5950
    %v6206 = vmul.f32 %v4525, %v5954
    %v6207 = vmul.f32 %v4527, %v5958
    %v6208 = vmul.f32 %v4911, %v5962
    %v6209 = vmul.f32 %v4913, %v5966
    %v6210 = vmul.f32 %v3757, %v5938
    %v6211 = vmul.f32 %v3759, %v5942
    %v6212 = vmul.f32 %v4143, %v5946
    %v6213 = vmul.f32 %v4145, %v5950
    %v6214 = vmul.f32 %v4529, %v5954
    %v6215 = vmul.f32 %v4531, %v5958
    %v6216 = vmul.f32 %v4915, %v5962
    %v6217 = vmul.f32 %v4917, %v5966
    %v6218 = vmul.f32 %v3763, %v5938
    %v6219 = vmul.f32 %v3765, %v5942
    %v6220 = vmul.f32 %v4149, %v5946
    %v6221 = vmul.f32 %v4151, %v5950
    %v6222 = vmul.f32 %v4535, %v5954
    %v6223 = vmul.f32 %v4537, %v5958
    %v6224 = vmul.f32 %v4921, %v5962
    %v6225 = vmul.f32 %v4923, %v5966
    %v6226 = vmul.f32 %v3767, %v5938
    %v6227 = vmul.f32 %v3769, %v5942
    %v6228 = vmul.f32 %v4153, %v5946
    %v6229 = vmul.f32 %v4155, %v5950
    %v6230 = vmul.f32 %v4539, %v5954
    %v6231 = vmul.f32 %v4541, %v5958
    %v6232 = vmul.f32 %v4925, %v5962
    %v6233 = vmul.f32 %v4927, %v5966
    %v6234 = vmul.f32 %v3773, %v5938
    %v6235 = vmul.f32 %v3775, %v5942
    %v6236 = vmul.f32 %v4159, %v5946
    %v6237 = vmul.f32 %v4161, %v5950
    %v6238 = vmul.f32 %v4545, %v5954
    %v6239 = vmul.f32 %v4547, %v5958
    %v6240 = vmul.f32 %v4931, %v5962
    %v6241 = vmul.f32 %v4933, %v5966
    %v6242 = vmul.f32 %v3777, %v5938
    %v6243 = vmul.f32 %v3779, %v5942
    %v6244 = vmul.f32 %v4163, %v5946
    %v6245 = vmul.f32 %v4165, %v5950
    %v6246 = vmul.f32 %v4549, %v5954
    %v6247 = vmul.f32 %v4551, %v5958
    %v6248 = vmul.f32 %v4935, %v5962
    %v6249 = vmul.f32 %v4937, %v5966
    %v6250 = vmul.f32 %v3783, %v5938
    %v6251 = vmul.f32 %v3785, %v5942
    %v6252 = vmul.f32 %v4169, %v5946
    %v6253 = vmul.f32 %v4171, %v5950
    %v6254 = vmul.f32 %v4555, %v5954
    %v6255 = vmul.f32 %v4557, %v5958
    %v6256 = vmul.f32 %v4941, %v5962
    %v6257 = vmul.f32 %v4943, %v5966
    %v6258 = vmul.f32 %v3787, %v5938
    %v6259 = vmul.f32 %v3789, %v5942
    %v6260 = vmul.f32 %v4173, %v5946
    %v6261 = vmul.f32 %v4175, %v5950
    %v6262 = vmul.f32 %v4559, %v5954
    %v6263 = vmul.f32 %v4561, %v5958
    %v6264 = vmul.f32 %v4945, %v5962
    %v6265 = vmul.f32 %v4947, %v5966
    %v6266 = vmul.f32 %v3793, %v5938
    %v6267 = vmul.f32 %v3795, %v5942
    %v6268 = vmul.f32 %v4179, %v5946
    %v6269 = vmul.f32 %v4181, %v5950
    %v6270 = vmul.f32 %v4565, %v5954
    %v6271 = vmul.f32 %v4567, %v5958
    %v6272 = vmul.f32 %v4951, %v5962
    %v6273 = vmul.f32 %v4953, %v5966
    %v6274 = vmul.f32 %v3797, %v5938
    %v6275 = vmul.f32 %v3799, %v5942
    %v6276 = vmul.f32 %v4183, %v5946
    %v6277 = vmul.f32 %v4185, %v5950
    %v6278 = vmul.f32 %v4569, %v5954
    %v6279 = vmul.f32 %v4571, %v5958
    %v6280 = vmul.f32 %v4955, %v5962
    %v6281 = vmul.f32 %v4957, %v5966
    %v6282 = vmul.f32 %v3803, %v5938
    %v6283 = vmul.f32 %v3805, %v5942
    %v6284 = vmul.f32 %v4189, %v5946
    %v6285 = vmul.f32 %v4191, %v5950
    %v6286 = vmul.f32 %v4575, %v5954
    %v6287 = vmul.f32 %v4577, %v5958
    %v6288 = vmul.f32 %v4961, %v5962
    %v6289 = vmul.f32 %v4963, %v5966
    %v6290 = vmul.f32 %v3807, %v5938
    %v6291 = vmul.f32 %v3809, %v5942
    %v6292 = vmul.f32 %v4193, %v5946
    %v6293 = vmul.f32 %v4195, %v5950
    %v6294 = vmul.f32 %v4579, %v5954
    %v6295 = vmul.f32 %v4581, %v5958
    %v6296 = vmul.f32 %v4965, %v5962
    %v6297 = vmul.f32 %v4967, %v5966
    %v6299 = vlaneseq
    %v6300 = vshrl.u32 %v6299, 7
    %v6301 = vsub.s32 0, %v6300
    %v6302 = vrot.slane %v6041, %v6301
    %v6303 = vlaneseq
    %v6304 = vshrl.u32 %v6303, 7
    %v6305 = vsub.s32 1, %v6304
    %v6306 = vrot.slane %v6041, %v6305
    %v6307 = vlaneseq
    %v6308 = vshrl.u32 %v6307, 7
    %v6309 = vsub.s32 2, %v6308
    %v6310 = vrot.slane %v6041, %v6309
    %v6311 = vlaneseq
    %v6312 = vshrl.u32 %v6311, 7
    %v6313 = vsub.s32 3, %v6312
    %v6314 = vrot.slane %v6041, %v6313
    %v6315 = vlaneseq
    %v6316 = vshrl.u32 %v6315, 7
    %v6317 = vsub.s32 4, %v6316
    %v6318 = vrot.slane %v6041, %v6317
    %v6319 = vlaneseq
    %v6320 = vshrl.u32 %v6319, 7
    %v6321 = vsub.s32 5, %v6320
    %v6322 = vrot.slane %v6041, %v6321
    %v6323 = vlaneseq
    %v6324 = vshrl.u32 %v6323, 7
    %v6325 = vsub.s32 6, %v6324
    %v6326 = vrot.slane %v6041, %v6325
    %v6327 = vlaneseq
    %v6328 = vshrl.u32 %v6327, 7
    %v6329 = vsub.s32 7, %v6328
    %v6330 = vrot.slane %v6041, %v6329
    %v6339 = vadd.f32 %v6042, %v6302
    %v6340 = vadd.f32 %v6043, %v6306
    %v6341 = vadd.f32 %v6044, %v6310
    %v6342 = vadd.f32 %v6045, %v6314
    %v6343 = vadd.f32 %v6046, %v6318
    %v6344 = vadd.f32 %v6047, %v6322
    %v6345 = vadd.f32 %v6048, %v6326
    %v6346 = vadd.f32 %v6049, %v6330
    %v6347 = vadd.f32 %v6050, %v6302
    %v6348 = vadd.f32 %v6051, %v6306
    %v6349 = vadd.f32 %v6052, %v6310
    %v6350 = vadd.f32 %v6053, %v6314
    %v6351 = vadd.f32 %v6054, %v6318
    %v6352 = vadd.f32 %v6055, %v6322
    %v6353 = vadd.f32 %v6056, %v6326
    %v6354 = vadd.f32 %v6057, %v6330
    %v6355 = vadd.f32 %v6058, %v6302
    %v6356 = vadd.f32 %v6059, %v6306
    %v6357 = vadd.f32 %v6060, %v6310
    %v6358 = vadd.f32 %v6061, %v6314
    %v6359 = vadd.f32 %v6062, %v6318
    %v6360 = vadd.f32 %v6063, %v6322
    %v6361 = vadd.f32 %v6064, %v6326
    %v6362 = vadd.f32 %v6065, %v6330
    %v6363 = vadd.f32 %v6066, %v6302
    %v6364 = vadd.f32 %v6067, %v6306
    %v6365 = vadd.f32 %v6068, %v6310
    %v6366 = vadd.f32 %v6069, %v6314
    %v6367 = vadd.f32 %v6070, %v6318
    %v6368 = vadd.f32 %v6071, %v6322
    %v6369 = vadd.f32 %v6072, %v6326
    %v6370 = vadd.f32 %v6073, %v6330
    %v6371 = vadd.f32 %v6074, %v6302
    %v6372 = vadd.f32 %v6075, %v6306
    %v6373 = vadd.f32 %v6076, %v6310
    %v6374 = vadd.f32 %v6077, %v6314
    %v6375 = vadd.f32 %v6078, %v6318
    %v6376 = vadd.f32 %v6079, %v6322
    %v6377 = vadd.f32 %v6080, %v6326
    %v6378 = vadd.f32 %v6081, %v6330
    %v6379 = vadd.f32 %v6082, %v6302
    %v6380 = vadd.f32 %v6083, %v6306
    %v6381 = vadd.f32 %v6084, %v6310
    %v6382 = vadd.f32 %v6085, %v6314
    %v6383 = vadd.f32 %v6086, %v6318
    %v6384 = vadd.f32 %v6087, %v6322
    %v6385 = vadd.f32 %v6088, %v6326
    %v6386 = vadd.f32 %v6089, %v6330
    %v6387 = vadd.f32 %v6090, %v6302
    %v6388 = vadd.f32 %v6091, %v6306
    %v6389 = vadd.f32 %v6092, %v6310
    %v6390 = vadd.f32 %v6093, %v6314
    %v6391 = vadd.f32 %v6094, %v6318
    %v6392 = vadd.f32 %v6095, %v6322
    %v6393 = vadd.f32 %v6096, %v6326
    %v6394 = vadd.f32 %v6097, %v6330
    %v6395 = vadd.f32 %v6098, %v6302
    %v6396 = vadd.f32 %v6099, %v6306
    %v6397 = vadd.f32 %v6100, %v6310
    %v6398 = vadd.f32 %v6101, %v6314
    %v6399 = vadd.f32 %v6102, %v6318
    %v6400 = vadd.f32 %v6103, %v6322
    %v6401 = vadd.f32 %v6104, %v6326
    %v6402 = vadd.f32 %v6105, %v6330
    %v6403 = vadd.f32 %v6106, %v6302
    %v6404 = vadd.f32 %v6107, %v6306
    %v6405 = vadd.f32 %v6108, %v6310
    %v6406 = vadd.f32 %v6109, %v6314
    %v6407 = vadd.f32 %v6110, %v6318
    %v6408 = vadd.f32 %v6111, %v6322
    %v6409 = vadd.f32 %v6112, %v6326
    %v6410 = vadd.f32 %v6113, %v6330
    %v6411 = vadd.f32 %v6114, %v6302
    %v6412 = vadd.f32 %v6115, %v6306
    %v6413 = vadd.f32 %v6116, %v6310
    %v6414 = vadd.f32 %v6117, %v6314
    %v6415 = vadd.f32 %v6118, %v6318
    %v6416 = vadd.f32 %v6119, %v6322
    %v6417 = vadd.f32 %v6120, %v6326
    %v6418 = vadd.f32 %v6121, %v6330
    %v6419 = vadd.f32 %v6122, %v6302
    %v6420 = vadd.f32 %v6123, %v6306
    %v6421 = vadd.f32 %v6124, %v6310
    %v6422 = vadd.f32 %v6125, %v6314
    %v6423 = vadd.f32 %v6126, %v6318
    %v6424 = vadd.f32 %v6127, %v6322
    %v6425 = vadd.f32 %v6128, %v6326
    %v6426 = vadd.f32 %v6129, %v6330
    %v6427 = vadd.f32 %v6130, %v6302
    %v6428 = vadd.f32 %v6131, %v6306
    %v6429 = vadd.f32 %v6132, %v6310
    %v6430 = vadd.f32 %v6133, %v6314
    %v6431 = vadd.f32 %v6134, %v6318
    %v6432 = vadd.f32 %v6135, %v6322
    %v6433 = vadd.f32 %v6136, %v6326
    %v6434 = vadd.f32 %v6137, %v6330
    %v6435 = vadd.f32 %v6138, %v6302
    %v6436 = vadd.f32 %v6139, %v6306
    %v6437 = vadd.f32 %v6140, %v6310
    %v6438 = vadd.f32 %v6141, %v6314
    %v6439 = vadd.f32 %v6142, %v6318
    %v6440 = vadd.f32 %v6143, %v6322
    %v6441 = vadd.f32 %v6144, %v6326
    %v6442 = vadd.f32 %v6145, %v6330
    %v6443 = vadd.f32 %v6146, %v6302
    %v6444 = vadd.f32 %v6147, %v6306
    %v6445 = vadd.f32 %v6148, %v6310
    %v6446 = vadd.f32 %v6149, %v6314
    %v6447 = vadd.f32 %v6150, %v6318
    %v6448 = vadd.f32 %v6151, %v6322
    %v6449 = vadd.f32 %v6152, %v6326
    %v6450 = vadd.f32 %v6153, %v6330
    %v6451 = vadd.f32 %v6154, %v6302
    %v6452 = vadd.f32 %v6155, %v6306
    %v6453 = vadd.f32 %v6156, %v6310
    %v6454 = vadd.f32 %v6157, %v6314
    %v6455 = vadd.f32 %v6158, %v6318
    %v6456 = vadd.f32 %v6159, %v6322
    %v6457 = vadd.f32 %v6160, %v6326
    %v6458 = vadd.f32 %v6161, %v6330
    %v6459 = vadd.f32 %v6162, %v6302
    %v6460 = vadd.f32 %v6163, %v6306
    %v6461 = vadd.f32 %v6164, %v6310
    %v6462 = vadd.f32 %v6165, %v6314
    %v6463 = vadd.f32 %v6166, %v6318
    %v6464 = vadd.f32 %v6167, %v6322
    %v6465 = vadd.f32 %v6168, %v6326
    %v6466 = vadd.f32 %v6169, %v6330
    %v6467 = vadd.f32 %v6170, %v6302
    %v6468 = vadd.f32 %v6171, %v6306
    %v6469 = vadd.f32 %v6172, %v6310
    %v6470 = vadd.f32 %v6173, %v6314
    %v6471 = vadd.f32 %v6174, %v6318
    %v6472 = vadd.f32 %v6175, %v6322
    %v6473 = vadd.f32 %v6176, %v6326
    %v6474 = vadd.f32 %v6177, %v6330
    %v6475 = vadd.f32 %v6178, %v6302
    %v6476 = vadd.f32 %v6179, %v6306
    %v6477 = vadd.f32 %v6180, %v6310
    %v6478 = vadd.f32 %v6181, %v6314
    %v6479 = vadd.f32 %v6182, %v6318
    %v6480 = vadd.f32 %v6183, %v6322
    %v6481 = vadd.f32 %v6184, %v6326
    %v6482 = vadd.f32 %v6185, %v6330
    %v6483 = vadd.f32 %v6186, %v6302
    %v6484 = vadd.f32 %v6187, %v6306
    %v6485 = vadd.f32 %v6188, %v6310
    %v6486 = vadd.f32 %v6189, %v6314
    %v6487 = vadd.f32 %v6190, %v6318
    %v6488 = vadd.f32 %v6191, %v6322
    %v6489 = vadd.f32 %v6192, %v6326
    %v6490 = vadd.f32 %v6193, %v6330
    %v6491 = vadd.f32 %v6194, %v6302
    %v6492 = vadd.f32 %v6195, %v6306
    %v6493 = vadd.f32 %v6196, %v6310
    %v6494 = vadd.f32 %v6197, %v6314
    %v6495 = vadd.f32 %v6198, %v6318
    %v6496 = vadd.f32 %v6199, %v6322
    %v6497 = vadd.f32 %v6200, %v6326
    %v6498 = vadd.f32 %v6201, %v6330
    %v6499 = vadd.f32 %v6202, %v6302
    %v6500 = vadd.f32 %v6203, %v6306
    %v6501 = vadd.f32 %v6204, %v6310
    %v6502 = vadd.f32 %v6205, %v6314
    %v6503 = vadd.f32 %v6206, %v6318
    %v6504 = vadd.f32 %v6207, %v6322
    %v6505 = vadd.f32 %v6208, %v6326
    %v6506 = vadd.f32 %v6209, %v6330
    %v6507 = vadd.f32 %v6210, %v6302
    %v6508 = vadd.f32 %v6211, %v6306
    %v6509 = vadd.f32 %v6212, %v6310
    %v6510 = vadd.f32 %v6213, %v6314
    %v6511 = vadd.f32 %v6214, %v6318
    %v6512 = vadd.f32 %v6215, %v6322
    %v6513 = vadd.f32 %v6216, %v6326
    %v6514 = vadd.f32 %v6217, %v6330
    %v6515 = vadd.f32 %v6218, %v6302
    %v6516 = vadd.f32 %v6219, %v6306
    %v6517 = vadd.f32 %v6220, %v6310
    %v6518 = vadd.f32 %v6221, %v6314
    %v6519 = vadd.f32 %v6222, %v6318
    %v6520 = vadd.f32 %v6223, %v6322
    %v6521 = vadd.f32 %v6224, %v6326
    %v6522 = vadd.f32 %v6225, %v6330
    %v6523 = vadd.f32 %v6226, %v6302
    %v6524 = vadd.f32 %v6227, %v6306
    %v6525 = vadd.f32 %v6228, %v6310
    %v6526 = vadd.f32 %v6229, %v6314
    %v6527 = vadd.f32 %v6230, %v6318
    %v6528 = vadd.f32 %v6231, %v6322
    %v6529 = vadd.f32 %v6232, %v6326
    %v6530 = vadd.f32 %v6233, %v6330
    %v6531 = vadd.f32 %v6234, %v6302
    %v6532 = vadd.f32 %v6235, %v6306
    %v6533 = vadd.f32 %v6236, %v6310
    %v6534 = vadd.f32 %v6237, %v6314
    %v6535 = vadd.f32 %v6238, %v6318
    %v6536 = vadd.f32 %v6239, %v6322
    %v6537 = vadd.f32 %v6240, %v6326
    %v6538 = vadd.f32 %v6241, %v6330
    %v6539 = vadd.f32 %v6242, %v6302
    %v6540 = vadd.f32 %v6243, %v6306
    %v6541 = vadd.f32 %v6244, %v6310
    %v6542 = vadd.f32 %v6245, %v6314
    %v6543 = vadd.f32 %v6246, %v6318
    %v6544 = vadd.f32 %v6247, %v6322
    %v6545 = vadd.f32 %v6248, %v6326
    %v6546 = vadd.f32 %v6249, %v6330
    %v6547 = vadd.f32 %v6250, %v6302
    %v6548 = vadd.f32 %v6251, %v6306
    %v6549 = vadd.f32 %v6252, %v6310
    %v6550 = vadd.f32 %v6253, %v6314
    %v6551 = vadd.f32 %v6254, %v6318
    %v6552 = vadd.f32 %v6255, %v6322
    %v6553 = vadd.f32 %v6256, %v6326
    %v6554 = vadd.f32 %v6257, %v6330
    %v6555 = vadd.f32 %v6258, %v6302
    %v6556 = vadd.f32 %v6259, %v6306
    %v6557 = vadd.f32 %v6260, %v6310
    %v6558 = vadd.f32 %v6261, %v6314
    %v6559 = vadd.f32 %v6262, %v6318
    %v6560 = vadd.f32 %v6263, %v6322
    %v6561 = vadd.f32 %v6264, %v6326
    %v6562 = vadd.f32 %v6265, %v6330
    %v6563 = vadd.f32 %v6266, %v6302
    %v6564 = vadd.f32 %v6267, %v6306
    %v6565 = vadd.f32 %v6268, %v6310
    %v6566 = vadd.f32 %v6269, %v6314
    %v6567 = vadd.f32 %v6270, %v6318
    %v6568 = vadd.f32 %v6271, %v6322
    %v6569 = vadd.f32 %v6272, %v6326
    %v6570 = vadd.f32 %v6273, %v6330
    %v6571 = vadd.f32 %v6274, %v6302
    %v6572 = vadd.f32 %v6275, %v6306
    %v6573 = vadd.f32 %v6276, %v6310
    %v6574 = vadd.f32 %v6277, %v6314
    %v6575 = vadd.f32 %v6278, %v6318
    %v6576 = vadd.f32 %v6279, %v6322
    %v6577 = vadd.f32 %v6280, %v6326
    %v6578 = vadd.f32 %v6281, %v6330
    %v6579 = vadd.f32 %v6282, %v6302
    %v6580 = vadd.f32 %v6283, %v6306
    %v6581 = vadd.f32 %v6284, %v6310
    %v6582 = vadd.f32 %v6285, %v6314
    %v6583 = vadd.f32 %v6286, %v6318
    %v6584 = vadd.f32 %v6287, %v6322
    %v6585 = vadd.f32 %v6288, %v6326
    %v6586 = vadd.f32 %v6289, %v6330
    %v6587 = vadd.f32 %v6290, %v6302
    %v6588 = vadd.f32 %v6291, %v6306
    %v6589 = vadd.f32 %v6292, %v6310
    %v6590 = vadd.f32 %v6293, %v6314
    %v6591 = vadd.f32 %v6294, %v6318
    %v6592 = vadd.f32 %v6295, %v6322
    %v6593 = vadd.f32 %v6296, %v6326
    %v6594 = vadd.f32 %v6297, %v6330
    %v6595 = vmul.f32 %v6339, 0.2
    %v6596 = vmul.f32 %v6340, 0.2
    %v6597 = vmul.f32 %v6341, 0.2
    %v6598 = vmul.f32 %v6342, 0.2
    %v6599 = vmul.f32 %v6343, 0.2
    %v6600 = vmul.f32 %v6344, 0.2
    %v6601 = vmul.f32 %v6345, 0.2
    %v6602 = vmul.f32 %v6346, 0.2
    %v6603 = vmul.f32 %v6347, 0.2
    %v6604 = vmul.f32 %v6348, 0.2
    %v6605 = vmul.f32 %v6349, 0.2
    %v6606 = vmul.f32 %v6350, 0.2
    %v6607 = vmul.f32 %v6351, 0.2
    %v6608 = vmul.f32 %v6352, 0.2
    %v6609 = vmul.f32 %v6353, 0.2
    %v6610 = vmul.f32 %v6354, 0.2
    %v6611 = vmul.f32 %v6355, 0.2
    %v6612 = vmul.f32 %v6356, 0.2
    %v6613 = vmul.f32 %v6357, 0.2
    %v6614 = vmul.f32 %v6358, 0.2
    %v6615 = vmul.f32 %v6359, 0.2
    %v6616 = vmul.f32 %v6360, 0.2
    %v6617 = vmul.f32 %v6361, 0.2
    %v6618 = vmul.f32 %v6362, 0.2
    %v6619 = vmul.f32 %v6363, 0.2
    %v6620 = vmul.f32 %v6364, 0.2
    %v6621 = vmul.f32 %v6365, 0.2
    %v6622 = vmul.f32 %v6366, 0.2
    %v6623 = vmul.f32 %v6367, 0.2
    %v6624 = vmul.f32 %v6368, 0.2
    %v6625 = vmul.f32 %v6369, 0.2
    %v6626 = vmul.f32 %v6370, 0.2
    %v6627 = vmul.f32 %v6371, 0.2
    %v6628 = vmul.f32 %v6372, 0.2
    %v6629 = vmul.f32 %v6373, 0.2
    %v6630 = vmul.f32 %v6374, 0.2
    %v6631 = vmul.f32 %v6375, 0.2
    %v6632 = vmul.f32 %v6376, 0.2
    %v6633 = vmul.f32 %v6377, 0.2
    %v6634 = vmul.f32 %v6378, 0.2
    %v6635 = vmul.f32 %v6379, 0.2
    %v6636 = vmul.f32 %v6380, 0.2
    %v6637 = vmul.f32 %v6381, 0.2
    %v6638 = vmul.f32 %v6382, 0.2
    %v6639 = vmul.f32 %v6383, 0.2
    %v6640 = vmul.f32 %v6384, 0.2
    %v6641 = vmul.f32 %v6385, 0.2
    %v6642 = vmul.f32 %v6386, 0.2
    %v6643 = vmul.f32 %v6387, 0.2
    %v6644 = vmul.f32 %v6388, 0.2
    %v6645 = vmul.f32 %v6389, 0.2
    %v6646 = vmul.f32 %v6390, 0.2
    %v6647 = vmul.f32 %v6391, 0.2
    %v6648 = vmul.f32 %v6392, 0.2
    %v6649 = vmul.f32 %v6393, 0.2
    %v6650 = vmul.f32 %v6394, 0.2
    %v6651 = vmul.f32 %v6395, 0.2
    %v6652 = vmul.f32 %v6396, 0.2
    %v6653 = vmul.f32 %v6397, 0.2
    %v6654 = vmul.f32 %v6398, 0.2
    %v6655 = vmul.f32 %v6399, 0.2
    %v6656 = vmul.f32 %v6400, 0.2
    %v6657 = vmul.f32 %v6401, 0.2
    %v6658 = vmul.f32 %v6402, 0.2
    %v6659 = vmul.f32 %v6403, 0.2
    %v6660 = vmul.f32 %v6404, 0.2
    %v6661 = vmul.f32 %v6405, 0.2
    %v6662 = vmul.f32 %v6406, 0.2
    %v6663 = vmul.f32 %v6407, 0.2
    %v6664 = vmul.f32 %v6408, 0.2
    %v6665 = vmul.f32 %v6409, 0.2
    %v6666 = vmul.f32 %v6410, 0.2
    %v6667 = vmul.f32 %v6411, 0.2
    %v6668 = vmul.f32 %v6412, 0.2
    %v6669 = vmul.f32 %v6413, 0.2
    %v6670 = vmul.f32 %v6414, 0.2
    %v6671 = vmul.f32 %v6415, 0.2
    %v6672 = vmul.f32 %v6416, 0.2
    %v6673 = vmul.f32 %v6417, 0.2
    %v6674 = vmul.f32 %v6418, 0.2
    %v6675 = vmul.f32 %v6419, 0.2
    %v6676 = vmul.f32 %v6420, 0.2
    %v6677 = vmul.f32 %v6421, 0.2
    %v6678 = vmul.f32 %v6422, 0.2
    %v6679 = vmul.f32 %v6423, 0.2
    %v6680 = vmul.f32 %v6424, 0.2
    %v6681 = vmul.f32 %v6425, 0.2
    %v6682 = vmul.f32 %v6426, 0.2
    %v6683 = vmul.f32 %v6427, 0.2
    %v6684 = vmul.f32 %v6428, 0.2
    %v6685 = vmul.f32 %v6429, 0.2
    %v6686 = vmul.f32 %v6430, 0.2
    %v6687 = vmul.f32 %v6431, 0.2
    %v6688 = vmul.f32 %v6432, 0.2
    %v6689 = vmul.f32 %v6433, 0.2
    %v6690 = vmul.f32 %v6434, 0.2
    %v6691 = vmul.f32 %v6435, 0.2
    %v6692 = vmul.f32 %v6436, 0.2
    %v6693 = vmul.f32 %v6437, 0.2
    %v6694 = vmul.f32 %v6438, 0.2
    %v6695 = vmul.f32 %v6439, 0.2
    %v6696 = vmul.f32 %v6440, 0.2
    %v6697 = vmul.f32 %v6441, 0.2
    %v6698 = vmul.f32 %v6442, 0.2
    %v6699 = vmul.f32 %v6443, 0.2
    %v6700 = vmul.f32 %v6444, 0.2
    %v6701 = vmul.f32 %v6445, 0.2
    %v6702 = vmul.f32 %v6446, 0.2
    %v6703 = vmul.f32 %v6447, 0.2
    %v6704 = vmul.f32 %v6448, 0.2
    %v6705 = vmul.f32 %v6449, 0.2
    %v6706 = vmul.f32 %v6450, 0.2
    %v6707 = vmul.f32 %v6451, 0.2
    %v6708 = vmul.f32 %v6452, 0.2
    %v6709 = vmul.f32 %v6453, 0.2
    %v6710 = vmul.f32 %v6454, 0.2
    %v6711 = vmul.f32 %v6455, 0.2
    %v6712 = vmul.f32 %v6456, 0.2
    %v6713 = vmul.f32 %v6457, 0.2
    %v6714 = vmul.f32 %v6458, 0.2
    %v6715 = vmul.f32 %v6459, 0.2
    %v6716 = vmul.f32 %v6460, 0.2
    %v6717 = vmul.f32 %v6461, 0.2
    %v6718 = vmul.f32 %v6462, 0.2
    %v6719 = vmul.f32 %v6463, 0.2
    %v6720 = vmul.f32 %v6464, 0.2
    %v6721 = vmul.f32 %v6465, 0.2
    %v6722 = vmul.f32 %v6466, 0.2
    %v6723 = vmul.f32 %v6467, 0.2
    %v6724 = vmul.f32 %v6468, 0.2
    %v6725 = vmul.f32 %v6469, 0.2
    %v6726 = vmul.f32 %v6470, 0.2
    %v6727 = vmul.f32 %v6471, 0.2
    %v6728 = vmul.f32 %v6472, 0.2
    %v6729 = vmul.f32 %v6473, 0.2
    %v6730 = vmul.f32 %v6474, 0.2
    %v6731 = vmul.f32 %v6475, 0.2
    %v6732 = vmul.f32 %v6476, 0.2
    %v6733 = vmul.f32 %v6477, 0.2
    %v6734 = vmul.f32 %v6478, 0.2
    %v6735 = vmul.f32 %v6479, 0.2
    %v6736 = vmul.f32 %v6480, 0.2
    %v6737 = vmul.f32 %v6481, 0.2
    %v6738 = vmul.f32 %v6482, 0.2
    %v6739 = vmul.f32 %v6483, 0.2
    %v6740 = vmul.f32 %v6484, 0.2
    %v6741 = vmul.f32 %v6485, 0.2
    %v6742 = vmul.f32 %v6486, 0.2
    %v6743 = vmul.f32 %v6487, 0.2
    %v6744 = vmul.f32 %v6488, 0.2
    %v6745 = vmul.f32 %v6489, 0.2
    %v6746 = vmul.f32 %v6490, 0.2
    %v6747 = vmul.f32 %v6491, 0.2
    %v6748 = vmul.f32 %v6492, 0.2
    %v6749 = vmul.f32 %v6493, 0.2
    %v6750 = vmul.f32 %v6494, 0.2
    %v6751 = vmul.f32 %v6495, 0.2
    %v6752 = vmul.f32 %v6496, 0.2
    %v6753 = vmul.f32 %v6497, 0.2
    %v6754 = vmul.f32 %v6498, 0.2
    %v6755 = vmul.f32 %v6499, 0.2
    %v6756 = vmul.f32 %v6500, 0.2
    %v6757 = vmul.f32 %v6501, 0.2
    %v6758 = vmul.f32 %v6502, 0.2
    %v6759 = vmul.f32 %v6503, 0.2
    %v6760 = vmul.f32 %v6504, 0.2
    %v6761 = vmul.f32 %v6505, 0.2
    %v6762 = vmul.f32 %v6506, 0.2
    %v6763 = vmul.f32 %v6507, 0.2
    %v6764 = vmul.f32 %v6508, 0.2
    %v6765 = vmul.f32 %v6509, 0.2
    %v6766 = vmul.f32 %v6510, 0.2
    %v6767 = vmul.f32 %v6511, 0.2
    %v6768 = vmul.f32 %v6512, 0.2
    %v6769 = vmul.f32 %v6513, 0.2
    %v6770 = vmul.f32 %v6514, 0.2
    %v6771 = vmul.f32 %v6515, 0.2
    %v6772 = vmul.f32 %v6516, 0.2
    %v6773 = vmul.f32 %v6517, 0.2
    %v6774 = vmul.f32 %v6518, 0.2
    %v6775 = vmul.f32 %v6519, 0.2
    %v6776 = vmul.f32 %v6520, 0.2
    %v6777 = vmul.f32 %v6521, 0.2
    %v6778 = vmul.f32 %v6522, 0.2
    %v6779 = vmul.f32 %v6523, 0.2
    %v6780 = vmul.f32 %v6524, 0.2
    %v6781 = vmul.f32 %v6525, 0.2
    %v6782 = vmul.f32 %v6526, 0.2
    %v6783 = vmul.f32 %v6527, 0.2
    %v6784 = vmul.f32 %v6528, 0.2
    %v6785 = vmul.f32 %v6529, 0.2
    %v6786 = vmul.f32 %v6530, 0.2
    %v6787 = vmul.f32 %v6531, 0.2
    %v6788 = vmul.f32 %v6532, 0.2
    %v6789 = vmul.f32 %v6533, 0.2
    %v6790 = vmul.f32 %v6534, 0.2
    %v6791 = vmul.f32 %v6535, 0.2
    %v6792 = vmul.f32 %v6536, 0.2
    %v6793 = vmul.f32 %v6537, 0.2
    %v6794 = vmul.f32 %v6538, 0.2
    %v6795 = vmul.f32 %v6539, 0.2
    %v6796 = vmul.f32 %v6540, 0.2
    %v6797 = vmul.f32 %v6541, 0.2
    %v6798 = vmul.f32 %v6542, 0.2
    %v6799 = vmul.f32 %v6543, 0.2
    %v6800 = vmul.f32 %v6544, 0.2
    %v6801 = vmul.f32 %v6545, 0.2
    %v6802 = vmul.f32 %v6546, 0.2
    %v6803 = vmul.f32 %v6547, 0.2
    %v6804 = vmul.f32 %v6548, 0.2
    %v6805 = vmul.f32 %v6549, 0.2
    %v6806 = vmul.f32 %v6550, 0.2
    %v6807 = vmul.f32 %v6551, 0.2
    %v6808 = vmul.f32 %v6552, 0.2
    %v6809 = vmul.f32 %v6553, 0.2
    %v6810 = vmul.f32 %v6554, 0.2
    %v6811 = vmul.f32 %v6555, 0.2
    %v6812 = vmul.f32 %v6556, 0.2
    %v6813 = vmul.f32 %v6557, 0.2
    %v6814 = vmul.f32 %v6558, 0.2
    %v6815 = vmul.f32 %v6559, 0.2
    %v6816 = vmul.f32 %v6560, 0.2
    %v6817 = vmul.f32 %v6561, 0.2
    %v6818 = vmul.f32 %v6562, 0.2
    %v6819 = vmul.f32 %v6563, 0.2
    %v6820 = vmul.f32 %v6564, 0.2
    %v6821 = vmul.f32 %v6565, 0.2
    %v6822 = vmul.f32 %v6566, 0.2
    %v6823 = vmul.f32 %v6567, 0.2
    %v6824 = vmul.f32 %v6568, 0.2
    %v6825 = vmul.f32 %v6569, 0.2
    %v6826 = vmul.f32 %v6570, 0.2
    %v6827 = vmul.f32 %v6571, 0.2
    %v6828 = vmul.f32 %v6572, 0.2
    %v6829 = vmul.f32 %v6573, 0.2
    %v6830 = vmul.f32 %v6574, 0.2
    %v6831 = vmul.f32 %v6575, 0.2
    %v6832 = vmul.f32 %v6576, 0.2
    %v6833 = vmul.f32 %v6577, 0.2
    %v6834 = vmul.f32 %v6578, 0.2
    %v6835 = vmul.f32 %v6579, 0.2
    %v6836 = vmul.f32 %v6580, 0.2
    %v6837 = vmul.f32 %v6581, 0.2
    %v6838 = vmul.f32 %v6582, 0.2
    %v6839 = vmul.f32 %v6583, 0.2
    %v6840 = vmul.f32 %v6584, 0.2
    %v6841 = vmul.f32 %v6585, 0.2
    %v6842 = vmul.f32 %v6586, 0.2
    %v6843 = vmul.f32 %v6587, 0.2
    %v6844 = vmul.f32 %v6588, 0.2
    %v6845 = vmul.f32 %v6589, 0.2
    %v6846 = vmul.f32 %v6590, 0.2
    %v6847 = vmul.f32 %v6591, 0.2
    %v6848 = vmul.f32 %v6592, 0.2
    %v6849 = vmul.f32 %v6593, 0.2
    %v6850 = vmul.f32 %v6594, 0.2
    %v6851 = vmax.f32 %v6339, %v6595
    %v6852 = vmax.f32 %v6340, %v6596
    %v6853 = vmax.f32 %v6341, %v6597
    %v6854 = vmax.f32 %v6342, %v6598
    %v6855 = vmax.f32 %v6343, %v6599
    %v6856 = vmax.f32 %v6344, %v6600
    %v6857 = vmax.f32 %v6345, %v6601
    %v6858 = vmax.f32 %v6346, %v6602
    %v6859 = vmax.f32 %v6347, %v6603
    %v6860 = vmax.f32 %v6348, %v6604
    %v6861 = vmax.f32 %v6349, %v6605
    %v6862 = vmax.f32 %v6350, %v6606
    %v6863 = vmax.f32 %v6351, %v6607
    %v6864 = vmax.f32 %v6352, %v6608
    %v6865 = vmax.f32 %v6353, %v6609
    %v6866 = vmax.f32 %v6354, %v6610
    %v6867 = vmax.f32 %v6355, %v6611
    %v6868 = vmax.f32 %v6356, %v6612
    %v6869 = vmax.f32 %v6357, %v6613
    %v6870 = vmax.f32 %v6358, %v6614
    %v6871 = vmax.f32 %v6359, %v6615
    %v6872 = vmax.f32 %v6360, %v6616
    %v6873 = vmax.f32 %v6361, %v6617
    %v6874 = vmax.f32 %v6362, %v6618
    %v6875 = vmax.f32 %v6363, %v6619
    %v6876 = vmax.f32 %v6364, %v6620
    %v6877 = vmax.f32 %v6365, %v6621
    %v6878 = vmax.f32 %v6366, %v6622
    %v6879 = vmax.f32 %v6367, %v6623
    %v6880 = vmax.f32 %v6368, %v6624
    %v6881 = vmax.f32 %v6369, %v6625
    %v6882 = vmax.f32 %v6370, %v6626
    %v6883 = vmax.f32 %v6371, %v6627
    %v6884 = vmax.f32 %v6372, %v6628
    %v6885 = vmax.f32 %v6373, %v6629
    %v6886 = vmax.f32 %v6374, %v6630
    %v6887 = vmax.f32 %v6375, %v6631
    %v6888 = vmax.f32 %v6376, %v6632
    %v6889 = vmax.f32 %v6377, %v6633
    %v6890 = vmax.f32 %v6378, %v6634
    %v6891 = vmax.f32 %v6379, %v6635
    %v6892 = vmax.f32 %v6380, %v6636
    %v6893 = vmax.f32 %v6381, %v6637
    %v6894 = vmax.f32 %v6382, %v6638
    %v6895 = vmax.f32 %v6383, %v6639
    %v6896 = vmax.f32 %v6384, %v6640
    %v6897 = vmax.f32 %v6385, %v6641
    %v6898 = vmax.f32 %v6386, %v6642
    %v6899 = vmax.f32 %v6387, %v6643
    %v6900 = vmax.f32 %v6388, %v6644
    %v6901 = vmax.f32 %v6389, %v6645
    %v6902 = vmax.f32 %v6390, %v6646
    %v6903 = vmax.f32 %v6391, %v6647
    %v6904 = vmax.f32 %v6392, %v6648
    %v6905 = vmax.f32 %v6393, %v6649
    %v6906 = vmax.f32 %v6394, %v6650
    %v6907 = vmax.f32 %v6395, %v6651
    %v6908 = vmax.f32 %v6396, %v6652
    %v6909 = vmax.f32 %v6397, %v6653
    %v6910 = vmax.f32 %v6398, %v6654
    %v6911 = vmax.f32 %v6399, %v6655
    %v6912 = vmax.f32 %v6400, %v6656
    %v6913 = vmax.f32 %v6401, %v6657
    %v6914 = vmax.f32 %v6402, %v6658
    %v6915 = vmax.f32 %v6403, %v6659
    %v6916 = vmax.f32 %v6404, %v6660
    %v6917 = vmax.f32 %v6405, %v6661
    %v6918 = vmax.f32 %v6406, %v6662
    %v6919 = vmax.f32 %v6407, %v6663
    %v6920 = vmax.f32 %v6408, %v6664
    %v6921 = vmax.f32 %v6409, %v6665
    %v6922 = vmax.f32 %v6410, %v6666
    %v6923 = vmax.f32 %v6411, %v6667
    %v6924 = vmax.f32 %v6412, %v6668
    %v6925 = vmax.f32 %v6413, %v6669
    %v6926 = vmax.f32 %v6414, %v6670
    %v6927 = vmax.f32 %v6415, %v6671
    %v6928 = vmax.f32 %v6416, %v6672
    %v6929 = vmax.f32 %v6417, %v6673
    %v6930 = vmax.f32 %v6418, %v6674
    %v6931 = vmax.f32 %v6419, %v6675
    %v6932 = vmax.f32 %v6420, %v6676
    %v6933 = vmax.f32 %v6421, %v6677
    %v6934 = vmax.f32 %v6422, %v6678
    %v6935 = vmax.f32 %v6423, %v6679
    %v6936 = vmax.f32 %v6424, %v6680
    %v6937 = vmax.f32 %v6425, %v6681
    %v6938 = vmax.f32 %v6426, %v6682
    %v6939 = vmax.f32 %v6427, %v6683
    %v6940 = vmax.f32 %v6428, %v6684
    %v6941 = vmax.f32 %v6429, %v6685
    %v6942 = vmax.f32 %v6430, %v6686
    %v6943 = vmax.f32 %v6431, %v6687
    %v6944 = vmax.f32 %v6432, %v6688
    %v6945 = vmax.f32 %v6433, %v6689
    %v6946 = vmax.f32 %v6434, %v6690
    %v6947 = vmax.f32 %v6435, %v6691
    %v6948 = vmax.f32 %v6436, %v6692
    %v6949 = vmax.f32 %v6437, %v6693
    %v6950 = vmax.f32 %v6438, %v6694
    %v6951 = vmax.f32 %v6439, %v6695
    %v6952 = vmax.f32 %v6440, %v6696
    %v6953 = vmax.f32 %v6441, %v6697
    %v6954 = vmax.f32 %v6442, %v6698
    %v6955 = vmax.f32 %v6443, %v6699
    %v6956 = vmax.f32 %v6444, %v6700
    %v6957 = vmax.f32 %v6445, %v6701
    %v6958 = vmax.f32 %v6446, %v6702
    %v6959 = vmax.f32 %v6447, %v6703
    %v6960 = vmax.f32 %v6448, %v6704
    %v6961 = vmax.f32 %v6449, %v6705
    %v6962 = vmax.f32 %v6450, %v6706
    %v6963 = vmax.f32 %v6451, %v6707
    %v6964 = vmax.f32 %v6452, %v6708
    %v6965 = vmax.f32 %v6453, %v6709
    %v6966 = vmax.f32 %v6454, %v6710
    %v6967 = vmax.f32 %v6455, %v6711
    %v6968 = vmax.f32 %v6456, %v6712
    %v6969 = vmax.f32 %v6457, %v6713
    %v6970 = vmax.f32 %v6458, %v6714
    %v6971 = vmax.f32 %v6459, %v6715
    %v6972 = vmax.f32 %v6460, %v6716
    %v6973 = vmax.f32 %v6461, %v6717
    %v6974 = vmax.f32 %v6462, %v6718
    %v6975 = vmax.f32 %v6463, %v6719
    %v6976 = vmax.f32 %v6464, %v6720
    %v6977 = vmax.f32 %v6465, %v6721
    %v6978 = vmax.f32 %v6466, %v6722
    %v6979 = vmax.f32 %v6467, %v6723
    %v6980 = vmax.f32 %v6468, %v6724
    %v6981 = vmax.f32 %v6469, %v6725
    %v6982 = vmax.f32 %v6470, %v6726
    %v6983 = vmax.f32 %v6471, %v6727
    %v6984 = vmax.f32 %v6472, %v6728
    %v6985 = vmax.f32 %v6473, %v6729
    %v6986 = vmax.f32 %v6474, %v6730
    %v6987 = vmax.f32 %v6475, %v6731
    %v6988 = vmax.f32 %v6476, %v6732
    %v6989 = vmax.f32 %v6477, %v6733
    %v6990 = vmax.f32 %v6478, %v6734
    %v6991 = vmax.f32 %v6479, %v6735
    %v6992 = vmax.f32 %v6480, %v6736
    %v6993 = vmax.f32 %v6481, %v6737
    %v6994 = vmax.f32 %v6482, %v6738
    %v6995 = vmax.f32 %v6483, %v6739
    %v6996 = vmax.f32 %v6484, %v6740
    %v6997 = vmax.f32 %v6485, %v6741
    %v6998 = vmax.f32 %v6486, %v6742
    %v6999 = vmax.f32 %v6487, %v6743
    %v7000 = vmax.f32 %v6488, %v6744
    %v7001 = vmax.f32 %v6489, %v6745
    %v7002 = vmax.f32 %v6490, %v6746
    %v7003 = vmax.f32 %v6491, %v6747
    %v7004 = vmax.f32 %v6492, %v6748
    %v7005 = vmax.f32 %v6493, %v6749
    %v7006 = vmax.f32 %v6494, %v6750
    %v7007 = vmax.f32 %v6495, %v6751
    %v7008 = vmax.f32 %v6496, %v6752
    %v7009 = vmax.f32 %v6497, %v6753
    %v7010 = vmax.f32 %v6498, %v6754
    %v7011 = vmax.f32 %v6499, %v6755
    %v7012 = vmax.f32 %v6500, %v6756
    %v7013 = vmax.f32 %v6501, %v6757
    %v7014 = vmax.f32 %v6502, %v6758
    %v7015 = vmax.f32 %v6503, %v6759
    %v7016 = vmax.f32 %v6504, %v6760
    %v7017 = vmax.f32 %v6505, %v6761
    %v7018 = vmax.f32 %v6506, %v6762
    %v7019 = vmax.f32 %v6507, %v6763
    %v7020 = vmax.f32 %v6508, %v6764
    %v7021 = vmax.f32 %v6509, %v6765
    %v7022 = vmax.f32 %v6510, %v6766
    %v7023 = vmax.f32 %v6511, %v6767
    %v7024 = vmax.f32 %v6512, %v6768
    %v7025 = vmax.f32 %v6513, %v6769
    %v7026 = vmax.f32 %v6514, %v6770
    %v7027 = vmax.f32 %v6515, %v6771
    %v7028 = vmax.f32 %v6516, %v6772
    %v7029 = vmax.f32 %v6517, %v6773
    %v7030 = vmax.f32 %v6518, %v6774
    %v7031 = vmax.f32 %v6519, %v6775
    %v7032 = vmax.f32 %v6520, %v6776
    %v7033 = vmax.f32 %v6521, %v6777
    %v7034 = vmax.f32 %v6522, %v6778
    %v7035 = vmax.f32 %v6523, %v6779
    %v7036 = vmax.f32 %v6524, %v6780
    %v7037 = vmax.f32 %v6525, %v6781
    %v7038 = vmax.f32 %v6526, %v6782
    %v7039 = vmax.f32 %v6527, %v6783
    %v7040 = vmax.f32 %v6528, %v6784
    %v7041 = vmax.f32 %v6529, %v6785
    %v7042 = vmax.f32 %v6530, %v6786
    %v7043 = vmax.f32 %v6531, %v6787
    %v7044 = vmax.f32 %v6532, %v6788
    %v7045 = vmax.f32 %v6533, %v6789
    %v7046 = vmax.f32 %v6534, %v6790
    %v7047 = vmax.f32 %v6535, %v6791
    %v7048 = vmax.f32 %v6536, %v6792
    %v7049 = vmax.f32 %v6537, %v6793
    %v7050 = vmax.f32 %v6538, %v6794
    %v7051 = vmax.f32 %v6539, %v6795
    %v7052 = vmax.f32 %v6540, %v6796
    %v7053 = vmax.f32 %v6541, %v6797
    %v7054 = vmax.f32 %v6542, %v6798
    %v7055 = vmax.f32 %v6543, %v6799
    %v7056 = vmax.f32 %v6544, %v6800
    %v7057 = vmax.f32 %v6545, %v6801
    %v7058 = vmax.f32 %v6546, %v6802
    %v7059 = vmax.f32 %v6547, %v6803
    %v7060 = vmax.f32 %v6548, %v6804
    %v7061 = vmax.f32 %v6549, %v6805
    %v7062 = vmax.f32 %v6550, %v6806
    %v7063 = vmax.f32 %v6551, %v6807
    %v7064 = vmax.f32 %v6552, %v6808
    %v7065 = vmax.f32 %v6553, %v6809
    %v7066 = vmax.f32 %v6554, %v6810
    %v7067 = vmax.f32 %v6555, %v6811
    %v7068 = vmax.f32 %v6556, %v6812
    %v7069 = vmax.f32 %v6557, %v6813
    %v7070 = vmax.f32 %v6558, %v6814
    %v7071 = vmax.f32 %v6559, %v6815
    %v7072 = vmax.f32 %v6560, %v6816
    %v7073 = vmax.f32 %v6561, %v6817
    %v7074 = vmax.f32 %v6562, %v6818
    %v7075 = vmax.f32 %v6563, %v6819
    %v7076 = vmax.f32 %v6564, %v6820
    %v7077 = vmax.f32 %v6565, %v6821
    %v7078 = vmax.f32 %v6566, %v6822
    %v7079 = vmax.f32 %v6567, %v6823
    %v7080 = vmax.f32 %v6568, %v6824
    %v7081 = vmax.f32 %v6569, %v6825
    %v7082 = vmax.f32 %v6570, %v6826
    %v7083 = vmax.f32 %v6571, %v6827
    %v7084 = vmax.f32 %v6572, %v6828
    %v7085 = vmax.f32 %v6573, %v6829
    %v7086 = vmax.f32 %v6574, %v6830
    %v7087 = vmax.f32 %v6575, %v6831
    %v7088 = vmax.f32 %v6576, %v6832
    %v7089 = vmax.f32 %v6577, %v6833
    %v7090 = vmax.f32 %v6578, %v6834
    %v7091 = vmax.f32 %v6579, %v6835
    %v7092 = vmax.f32 %v6580, %v6836
    %v7093 = vmax.f32 %v6581, %v6837
    %v7094 = vmax.f32 %v6582, %v6838
    %v7095 = vmax.f32 %v6583, %v6839
    %v7096 = vmax.f32 %v6584, %v6840
    %v7097 = vmax.f32 %v6585, %v6841
    %v7098 = vmax.f32 %v6586, %v6842
    %v7099 = vmax.f32 %v6587, %v6843
    %v7100 = vmax.f32 %v6588, %v6844
    %v7101 = vmax.f32 %v6589, %v6845
    %v7102 = vmax.f32 %v6590, %v6846
    %v7103 = vmax.f32 %v6591, %v6847
    %v7104 = vmax.f32 %v6592, %v6848
    %v7105 = vmax.f32 %v6593, %v6849
    %v7106 = vmax.f32 %v6594, %v6850
    %s7107 = smul.u32 4, 128
    %s7108 = smul.u32 %s7107, 7
    %s7109 = sshll.u32 %s7108, 4
    %7110 = dma.done %s232, %s7109
    %v7111 = vpack.c.bf16 %v6859, %v6851
    %v7112 = vpack.c.bf16 %v6860, %v6852
    %v7113 = vpack.c.bf16 %v6861, %v6853
    %v7114 = vpack.c.bf16 %v6862, %v6854
    %v7115 = vpack.c.bf16 %v6863, %v6855
    %v7116 = vpack.c.bf16 %v6864, %v6856
    %v7117 = vpack.c.bf16 %v6865, %v6857
    %v7118 = vpack.c.bf16 %v6866, %v6858
    %v7119 = vpack.c.bf16 %v6875, %v6867
    %v7120 = vpack.c.bf16 %v6876, %v6868
    %v7121 = vpack.c.bf16 %v6877, %v6869
    %v7122 = vpack.c.bf16 %v6878, %v6870
    %v7123 = vpack.c.bf16 %v6879, %v6871
    %v7124 = vpack.c.bf16 %v6880, %v6872
    %v7125 = vpack.c.bf16 %v6881, %v6873
    %v7126 = vpack.c.bf16 %v6882, %v6874
    %v7127 = vpack.c.bf16 %v6891, %v6883
    %v7128 = vpack.c.bf16 %v6892, %v6884
    %v7129 = vpack.c.bf16 %v6893, %v6885
    %v7130 = vpack.c.bf16 %v6894, %v6886
    %v7131 = vpack.c.bf16 %v6895, %v6887
    %v7132 = vpack.c.bf16 %v6896, %v6888
    %v7133 = vpack.c.bf16 %v6897, %v6889
    %v7134 = vpack.c.bf16 %v6898, %v6890
    %v7135 = vpack.c.bf16 %v6907, %v6899
    %v7136 = vpack.c.bf16 %v6908, %v6900
    %v7137 = vpack.c.bf16 %v6909, %v6901
    %v7138 = vpack.c.bf16 %v6910, %v6902
    %v7139 = vpack.c.bf16 %v6911, %v6903
    %v7140 = vpack.c.bf16 %v6912, %v6904
    %v7141 = vpack.c.bf16 %v6913, %v6905
    %v7142 = vpack.c.bf16 %v6914, %v6906
    %v7143 = vpack.c.bf16 %v6923, %v6915
    %v7144 = vpack.c.bf16 %v6924, %v6916
    %v7145 = vpack.c.bf16 %v6925, %v6917
    %v7146 = vpack.c.bf16 %v6926, %v6918
    %v7147 = vpack.c.bf16 %v6927, %v6919
    %v7148 = vpack.c.bf16 %v6928, %v6920
    %v7149 = vpack.c.bf16 %v6929, %v6921
    %v7150 = vpack.c.bf16 %v6930, %v6922
    %v7151 = vpack.c.bf16 %v6939, %v6931
    %v7152 = vpack.c.bf16 %v6940, %v6932
    %v7153 = vpack.c.bf16 %v6941, %v6933
    %v7154 = vpack.c.bf16 %v6942, %v6934
    %v7155 = vpack.c.bf16 %v6943, %v6935
    %v7156 = vpack.c.bf16 %v6944, %v6936
    %v7157 = vpack.c.bf16 %v6945, %v6937
    %v7158 = vpack.c.bf16 %v6946, %v6938
    %v7159 = vpack.c.bf16 %v6955, %v6947
    %v7160 = vpack.c.bf16 %v6956, %v6948
    %v7161 = vpack.c.bf16 %v6957, %v6949
    %v7162 = vpack.c.bf16 %v6958, %v6950
    %v7163 = vpack.c.bf16 %v6959, %v6951
    %v7164 = vpack.c.bf16 %v6960, %v6952
    %v7165 = vpack.c.bf16 %v6961, %v6953
    %v7166 = vpack.c.bf16 %v6962, %v6954
    %v7167 = vpack.c.bf16 %v6971, %v6963
    %v7168 = vpack.c.bf16 %v6972, %v6964
    %v7169 = vpack.c.bf16 %v6973, %v6965
    %v7170 = vpack.c.bf16 %v6974, %v6966
    %v7171 = vpack.c.bf16 %v6975, %v6967
    %v7172 = vpack.c.bf16 %v6976, %v6968
    %v7173 = vpack.c.bf16 %v6977, %v6969
    %v7174 = vpack.c.bf16 %v6978, %v6970
    %v7175 = vpack.c.bf16 %v6987, %v6979
    %v7176 = vpack.c.bf16 %v6988, %v6980
    %v7177 = vpack.c.bf16 %v6989, %v6981
    %v7178 = vpack.c.bf16 %v6990, %v6982
    %v7179 = vpack.c.bf16 %v6991, %v6983
    %v7180 = vpack.c.bf16 %v6992, %v6984
    %v7181 = vpack.c.bf16 %v6993, %v6985
    %v7182 = vpack.c.bf16 %v6994, %v6986
    %v7183 = vpack.c.bf16 %v7003, %v6995
    %v7184 = vpack.c.bf16 %v7004, %v6996
    %v7185 = vpack.c.bf16 %v7005, %v6997
    %v7186 = vpack.c.bf16 %v7006, %v6998
    %v7187 = vpack.c.bf16 %v7007, %v6999
    %v7188 = vpack.c.bf16 %v7008, %v7000
    %v7189 = vpack.c.bf16 %v7009, %v7001
    %v7190 = vpack.c.bf16 %v7010, %v7002
    %v7191 = vpack.c.bf16 %v7019, %v7011
    %v7192 = vpack.c.bf16 %v7020, %v7012
    %v7193 = vpack.c.bf16 %v7021, %v7013
    %v7194 = vpack.c.bf16 %v7022, %v7014
    %v7195 = vpack.c.bf16 %v7023, %v7015
    %v7196 = vpack.c.bf16 %v7024, %v7016
    %v7197 = vpack.c.bf16 %v7025, %v7017
    %v7198 = vpack.c.bf16 %v7026, %v7018
    %v7199 = vpack.c.bf16 %v7035, %v7027
    %v7200 = vpack.c.bf16 %v7036, %v7028
    %v7201 = vpack.c.bf16 %v7037, %v7029
    %v7202 = vpack.c.bf16 %v7038, %v7030
    %v7203 = vpack.c.bf16 %v7039, %v7031
    %v7204 = vpack.c.bf16 %v7040, %v7032
    %v7205 = vpack.c.bf16 %v7041, %v7033
    %v7206 = vpack.c.bf16 %v7042, %v7034
    %v7207 = vpack.c.bf16 %v7051, %v7043
    %v7208 = vpack.c.bf16 %v7052, %v7044
    %v7209 = vpack.c.bf16 %v7053, %v7045
    %v7210 = vpack.c.bf16 %v7054, %v7046
    %v7211 = vpack.c.bf16 %v7055, %v7047
    %v7212 = vpack.c.bf16 %v7056, %v7048
    %v7213 = vpack.c.bf16 %v7057, %v7049
    %v7214 = vpack.c.bf16 %v7058, %v7050
    %v7215 = vpack.c.bf16 %v7067, %v7059
    %v7216 = vpack.c.bf16 %v7068, %v7060
    %v7217 = vpack.c.bf16 %v7069, %v7061
    %v7218 = vpack.c.bf16 %v7070, %v7062
    %v7219 = vpack.c.bf16 %v7071, %v7063
    %v7220 = vpack.c.bf16 %v7072, %v7064
    %v7221 = vpack.c.bf16 %v7073, %v7065
    %v7222 = vpack.c.bf16 %v7074, %v7066
    %v7223 = vpack.c.bf16 %v7083, %v7075
    %v7224 = vpack.c.bf16 %v7084, %v7076
    %v7225 = vpack.c.bf16 %v7085, %v7077
    %v7226 = vpack.c.bf16 %v7086, %v7078
    %v7227 = vpack.c.bf16 %v7087, %v7079
    %v7228 = vpack.c.bf16 %v7088, %v7080
    %v7229 = vpack.c.bf16 %v7089, %v7081
    %v7230 = vpack.c.bf16 %v7090, %v7082
    %v7231 = vpack.c.bf16 %v7099, %v7091
    %v7232 = vpack.c.bf16 %v7100, %v7092
    %v7233 = vpack.c.bf16 %v7101, %v7093
    %v7234 = vpack.c.bf16 %v7102, %v7094
    %v7235 = vpack.c.bf16 %v7103, %v7095
    %v7236 = vpack.c.bf16 %v7104, %v7096
    %v7237 = vpack.c.bf16 %v7105, %v7097
    %v7238 = vpack.c.bf16 %v7106, %v7098
    %v7239 = vld [vmem:[#allocation4] sm:$0xff]
    %v7240 = vld [vmem:[#allocation4 + $0x8] sm:$0xff]
    %v7241 = vld [vmem:[#allocation4 + $0x10] sm:$0xff]
    %v7242 = vld [vmem:[#allocation4 + $0x18] sm:$0xff]
    %v7243 = vld [vmem:[#allocation4 + $0x20] sm:$0xff]
    %v7244 = vld [vmem:[#allocation4 + $0x28] sm:$0xff]
    %v7245 = vld [vmem:[#allocation4 + $0x30] sm:$0xff]
    %v7246 = vld [vmem:[#allocation4 + $0x38] sm:$0xff]
    %v7247 = vld [vmem:[#allocation4 + $0x40] sm:$0xff]
    %v7248 = vld [vmem:[#allocation4 + $0x48] sm:$0xff]
    %v7249 = vld [vmem:[#allocation4 + $0x50] sm:$0xff]
    %v7250 = vld [vmem:[#allocation4 + $0x58] sm:$0xff]
    %v7251 = vld [vmem:[#allocation4 + $0x60] sm:$0xff]
    %v7252 = vld [vmem:[#allocation4 + $0x68] sm:$0xff]
    %v7253 = vld [vmem:[#allocation4 + $0x70] sm:$0xff]
    %v7254 = vld [vmem:[#allocation4 + $0x78] sm:$0xff]
    %v7255 = vld [vmem:[#allocation4 + $0x80] sm:$0xff]
    %v7256 = vld [vmem:[#allocation4 + $0x88] sm:$0xff]
    %v7257 = vld [vmem:[#allocation4 + $0x90] sm:$0xff]
    %v7258 = vld [vmem:[#allocation4 + $0x98] sm:$0xff]
    %v7259 = vld [vmem:[#allocation4 + $0xa0] sm:$0xff]
    %v7260 = vld [vmem:[#allocation4 + $0xa8] sm:$0xff]
    %v7261 = vld [vmem:[#allocation4 + $0xb0] sm:$0xff]
    %v7262 = vld [vmem:[#allocation4 + $0xb8] sm:$0xff]
    %v7263 = vld [vmem:[#allocation4 + $0xc0] sm:$0xff]
    %v7264 = vld [vmem:[#allocation4 + $0xc8] sm:$0xff]
    %v7265 = vld [vmem:[#allocation4 + $0xd0] sm:$0xff]
    %v7266 = vld [vmem:[#allocation4 + $0xd8] sm:$0xff]
    %v7267 = vld [vmem:[#allocation4 + $0xe0] sm:$0xff]
    %v7268 = vld [vmem:[#allocation4 + $0xe8] sm:$0xff]
    %v7269 = vld [vmem:[#allocation4 + $0xf0] sm:$0xff]
    %v7270 = vld [vmem:[#allocation4 + $0xf8] sm:$0xff]
    %v7271 = vld [vmem:[#allocation4 + $0x100] sm:$0xff]
    %v7272 = vld [vmem:[#allocation4 + $0x108] sm:$0xff]
    %v7273 = vld [vmem:[#allocation4 + $0x110] sm:$0xff]
    %v7274 = vld [vmem:[#allocation4 + $0x118] sm:$0xff]
    %v7275 = vld [vmem:[#allocation4 + $0x120] sm:$0xff]
    %v7276 = vld [vmem:[#allocation4 + $0x128] sm:$0xff]
    %v7277 = vld [vmem:[#allocation4 + $0x130] sm:$0xff]
    %v7278 = vld [vmem:[#allocation4 + $0x138] sm:$0xff]
    %v7279 = vld [vmem:[#allocation4 + $0x140] sm:$0xff]
    %v7280 = vld [vmem:[#allocation4 + $0x148] sm:$0xff]
    %v7281 = vld [vmem:[#allocation4 + $0x150] sm:$0xff]
    %v7282 = vld [vmem:[#allocation4 + $0x158] sm:$0xff]
    %v7283 = vld [vmem:[#allocation4 + $0x160] sm:$0xff]
    %v7284 = vld [vmem:[#allocation4 + $0x168] sm:$0xff]
    %v7285 = vld [vmem:[#allocation4 + $0x170] sm:$0xff]
    %v7286 = vld [vmem:[#allocation4 + $0x178] sm:$0xff]
    %v7287 = vld [vmem:[#allocation4 + $0x180] sm:$0xff]
    %v7288 = vld [vmem:[#allocation4 + $0x188] sm:$0xff]
    %v7289 = vld [vmem:[#allocation4 + $0x190] sm:$0xff]
    %v7290 = vld [vmem:[#allocation4 + $0x198] sm:$0xff]
    %v7291 = vld [vmem:[#allocation4 + $0x1a0] sm:$0xff]
    %v7292 = vld [vmem:[#allocation4 + $0x1a8] sm:$0xff]
    %v7293 = vld [vmem:[#allocation4 + $0x1b0] sm:$0xff]
    %v7294 = vld [vmem:[#allocation4 + $0x1b8] sm:$0xff]
    %v7295 = vld [vmem:[#allocation4 + $0x1c0] sm:$0xff]
    %v7296 = vld [vmem:[#allocation4 + $0x1c8] sm:$0xff]
    %v7297 = vld [vmem:[#allocation4 + $0x1d0] sm:$0xff]
    %v7298 = vld [vmem:[#allocation4 + $0x1d8] sm:$0xff]
    %v7299 = vld [vmem:[#allocation4 + $0x1e0] sm:$0xff]
    %v7300 = vld [vmem:[#allocation4 + $0x1e8] sm:$0xff]
    %v7301 = vld [vmem:[#allocation4 + $0x1f0] sm:$0xff]
    %v7302 = vld [vmem:[#allocation4 + $0x1f8] sm:$0xff]
    %v7303 = vld [vmem:[#allocation4 + $0x200] sm:$0xff]
    %v7304 = vld [vmem:[#allocation4 + $0x208] sm:$0xff]
    %v7305 = vld [vmem:[#allocation4 + $0x210] sm:$0xff]
    %v7306 = vld [vmem:[#allocation4 + $0x218] sm:$0xff]
    %v7307 = vld [vmem:[#allocation4 + $0x220] sm:$0xff]
    %v7308 = vld [vmem:[#allocation4 + $0x228] sm:$0xff]
    %v7309 = vld [vmem:[#allocation4 + $0x230] sm:$0xff]
    %v7310 = vld [vmem:[#allocation4 + $0x238] sm:$0xff]
    %v7311 = vld [vmem:[#allocation4 + $0x240] sm:$0xff]
    %v7312 = vld [vmem:[#allocation4 + $0x248] sm:$0xff]
    %v7313 = vld [vmem:[#allocation4 + $0x250] sm:$0xff]
    %v7314 = vld [vmem:[#allocation4 + $0x258] sm:$0xff]
    %v7315 = vld [vmem:[#allocation4 + $0x260] sm:$0xff]
    %v7316 = vld [vmem:[#allocation4 + $0x268] sm:$0xff]
    %v7317 = vld [vmem:[#allocation4 + $0x270] sm:$0xff]
    %v7318 = vld [vmem:[#allocation4 + $0x278] sm:$0xff]
    %v7319 = vld [vmem:[#allocation4 + $0x280] sm:$0xff]
    %v7320 = vld [vmem:[#allocation4 + $0x288] sm:$0xff]
    %v7321 = vld [vmem:[#allocation4 + $0x290] sm:$0xff]
    %v7322 = vld [vmem:[#allocation4 + $0x298] sm:$0xff]
    %v7323 = vld [vmem:[#allocation4 + $0x2a0] sm:$0xff]
    %v7324 = vld [vmem:[#allocation4 + $0x2a8] sm:$0xff]
    %v7325 = vld [vmem:[#allocation4 + $0x2b0] sm:$0xff]
    %v7326 = vld [vmem:[#allocation4 + $0x2b8] sm:$0xff]
    %v7327 = vld [vmem:[#allocation4 + $0x2c0] sm:$0xff]
    %v7328 = vld [vmem:[#allocation4 + $0x2c8] sm:$0xff]
    %v7329 = vld [vmem:[#allocation4 + $0x2d0] sm:$0xff]
    %v7330 = vld [vmem:[#allocation4 + $0x2d8] sm:$0xff]
    %v7331 = vld [vmem:[#allocation4 + $0x2e0] sm:$0xff]
    %v7332 = vld [vmem:[#allocation4 + $0x2e8] sm:$0xff]
    %v7333 = vld [vmem:[#allocation4 + $0x2f0] sm:$0xff]
    %v7334 = vld [vmem:[#allocation4 + $0x2f8] sm:$0xff]
    %v7335 = vld [vmem:[#allocation4 + $0x300] sm:$0xff]
    %v7336 = vld [vmem:[#allocation4 + $0x308] sm:$0xff]
    %v7337 = vld [vmem:[#allocation4 + $0x310] sm:$0xff]
    %v7338 = vld [vmem:[#allocation4 + $0x318] sm:$0xff]
    %v7339 = vld [vmem:[#allocation4 + $0x320] sm:$0xff]
    %v7340 = vld [vmem:[#allocation4 + $0x328] sm:$0xff]
    %v7341 = vld [vmem:[#allocation4 + $0x330] sm:$0xff]
    %v7342 = vld [vmem:[#allocation4 + $0x338] sm:$0xff]
    %v7343 = vld [vmem:[#allocation4 + $0x340] sm:$0xff]
    %v7344 = vld [vmem:[#allocation4 + $0x348] sm:$0xff]
    %v7345 = vld [vmem:[#allocation4 + $0x350] sm:$0xff]
    %v7346 = vld [vmem:[#allocation4 + $0x358] sm:$0xff]
    %v7347 = vld [vmem:[#allocation4 + $0x360] sm:$0xff]
    %v7348 = vld [vmem:[#allocation4 + $0x368] sm:$0xff]
    %v7349 = vld [vmem:[#allocation4 + $0x370] sm:$0xff]
    %v7350 = vld [vmem:[#allocation4 + $0x378] sm:$0xff]
    %v7351 = vld [vmem:[#allocation4 + $0x380] sm:$0xff]
    %v7352 = vld [vmem:[#allocation4 + $0x388] sm:$0xff]
    %v7353 = vld [vmem:[#allocation4 + $0x390] sm:$0xff]
    %v7354 = vld [vmem:[#allocation4 + $0x398] sm:$0xff]
    %v7355 = vld [vmem:[#allocation4 + $0x3a0] sm:$0xff]
    %v7356 = vld [vmem:[#allocation4 + $0x3a8] sm:$0xff]
    %v7357 = vld [vmem:[#allocation4 + $0x3b0] sm:$0xff]
    %v7358 = vld [vmem:[#allocation4 + $0x3b8] sm:$0xff]
    %v7359 = vld [vmem:[#allocation4 + $0x3c0] sm:$0xff]
    %v7360 = vld [vmem:[#allocation4 + $0x3c8] sm:$0xff]
    %v7361 = vld [vmem:[#allocation4 + $0x3d0] sm:$0xff]
    %v7362 = vld [vmem:[#allocation4 + $0x3d8] sm:$0xff]
    %v7363 = vld [vmem:[#allocation4 + $0x3e0] sm:$0xff]
    %v7364 = vld [vmem:[#allocation4 + $0x3e8] sm:$0xff]
    %v7365 = vld [vmem:[#allocation4 + $0x3f0] sm:$0xff]
    %v7366 = vld [vmem:[#allocation4 + $0x3f8] sm:$0xff]
    %v7367 = vld [vmem:[#allocation4 + $0x400] sm:$0xff]
    %v7368 = vld [vmem:[#allocation4 + $0x408] sm:$0xff]
    %v7369 = vld [vmem:[#allocation4 + $0x410] sm:$0xff]
    %v7370 = vld [vmem:[#allocation4 + $0x418] sm:$0xff]
    %v7371 = vld [vmem:[#allocation4 + $0x420] sm:$0xff]
    %v7372 = vld [vmem:[#allocation4 + $0x428] sm:$0xff]
    %v7373 = vld [vmem:[#allocation4 + $0x430] sm:$0xff]
    %v7374 = vld [vmem:[#allocation4 + $0x438] sm:$0xff]
    %v7375 = vld [vmem:[#allocation4 + $0x440] sm:$0xff]
    %v7376 = vld [vmem:[#allocation4 + $0x448] sm:$0xff]
    %v7377 = vld [vmem:[#allocation4 + $0x450] sm:$0xff]
    %v7378 = vld [vmem:[#allocation4 + $0x458] sm:$0xff]
    %v7379 = vld [vmem:[#allocation4 + $0x460] sm:$0xff]
    %v7380 = vld [vmem:[#allocation4 + $0x468] sm:$0xff]
    %v7381 = vld [vmem:[#allocation4 + $0x470] sm:$0xff]
    %v7382 = vld [vmem:[#allocation4 + $0x478] sm:$0xff]
    %v7383 = vld [vmem:[#allocation4 + $0x480] sm:$0xff]
    %v7384 = vld [vmem:[#allocation4 + $0x488] sm:$0xff]
    %v7385 = vld [vmem:[#allocation4 + $0x490] sm:$0xff]
    %v7386 = vld [vmem:[#allocation4 + $0x498] sm:$0xff]
    %v7387 = vld [vmem:[#allocation4 + $0x4a0] sm:$0xff]
    %v7388 = vld [vmem:[#allocation4 + $0x4a8] sm:$0xff]
    %v7389 = vld [vmem:[#allocation4 + $0x4b0] sm:$0xff]
    %v7390 = vld [vmem:[#allocation4 + $0x4b8] sm:$0xff]
    %v7391 = vld [vmem:[#allocation4 + $0x4c0] sm:$0xff]
    %v7392 = vld [vmem:[#allocation4 + $0x4c8] sm:$0xff]
    %v7393 = vld [vmem:[#allocation4 + $0x4d0] sm:$0xff]
    %v7394 = vld [vmem:[#allocation4 + $0x4d8] sm:$0xff]
    %v7395 = vld [vmem:[#allocation4 + $0x4e0] sm:$0xff]
    %v7396 = vld [vmem:[#allocation4 + $0x4e8] sm:$0xff]
    %v7397 = vld [vmem:[#allocation4 + $0x4f0] sm:$0xff]
    %v7398 = vld [vmem:[#allocation4 + $0x4f8] sm:$0xff]
    %v7399 = vld [vmem:[#allocation4 + $0x500] sm:$0xff]
    %v7400 = vld [vmem:[#allocation4 + $0x508] sm:$0xff]
    %v7401 = vld [vmem:[#allocation4 + $0x510] sm:$0xff]
    %v7402 = vld [vmem:[#allocation4 + $0x518] sm:$0xff]
    %v7403 = vld [vmem:[#allocation4 + $0x520] sm:$0xff]
    %v7404 = vld [vmem:[#allocation4 + $0x528] sm:$0xff]
    %v7405 = vld [vmem:[#allocation4 + $0x530] sm:$0xff]
    %v7406 = vld [vmem:[#allocation4 + $0x538] sm:$0xff]
    %v7407 = vld [vmem:[#allocation4 + $0x540] sm:$0xff]
    %v7408 = vld [vmem:[#allocation4 + $0x548] sm:$0xff]
    %v7409 = vld [vmem:[#allocation4 + $0x550] sm:$0xff]
    %v7410 = vld [vmem:[#allocation4 + $0x558] sm:$0xff]
    %v7411 = vld [vmem:[#allocation4 + $0x560] sm:$0xff]
    %v7412 = vld [vmem:[#allocation4 + $0x568] sm:$0xff]
    %v7413 = vld [vmem:[#allocation4 + $0x570] sm:$0xff]
    %v7414 = vld [vmem:[#allocation4 + $0x578] sm:$0xff]
    %v7415 = vld [vmem:[#allocation4 + $0x580] sm:$0xff]
    %v7416 = vld [vmem:[#allocation4 + $0x588] sm:$0xff]
    %v7417 = vld [vmem:[#allocation4 + $0x590] sm:$0xff]
    %v7418 = vld [vmem:[#allocation4 + $0x598] sm:$0xff]
    %v7419 = vld [vmem:[#allocation4 + $0x5a0] sm:$0xff]
    %v7420 = vld [vmem:[#allocation4 + $0x5a8] sm:$0xff]
    %v7421 = vld [vmem:[#allocation4 + $0x5b0] sm:$0xff]
    %v7422 = vld [vmem:[#allocation4 + $0x5b8] sm:$0xff]
    %v7423 = vld [vmem:[#allocation4 + $0x5c0] sm:$0xff]
    %v7424 = vld [vmem:[#allocation4 + $0x5c8] sm:$0xff]
    %v7425 = vld [vmem:[#allocation4 + $0x5d0] sm:$0xff]
    %v7426 = vld [vmem:[#allocation4 + $0x5d8] sm:$0xff]
    %v7427 = vld [vmem:[#allocation4 + $0x5e0] sm:$0xff]
    %v7428 = vld [vmem:[#allocation4 + $0x5e8] sm:$0xff]
    %v7429 = vld [vmem:[#allocation4 + $0x5f0] sm:$0xff]
    %v7430 = vld [vmem:[#allocation4 + $0x5f8] sm:$0xff]
    %v7431 = vld [vmem:[#allocation4 + $0x600] sm:$0xff]
    %v7432 = vld [vmem:[#allocation4 + $0x608] sm:$0xff]
    %v7433 = vld [vmem:[#allocation4 + $0x610] sm:$0xff]
    %v7434 = vld [vmem:[#allocation4 + $0x618] sm:$0xff]
    %v7435 = vld [vmem:[#allocation4 + $0x620] sm:$0xff]
    %v7436 = vld [vmem:[#allocation4 + $0x628] sm:$0xff]
    %v7437 = vld [vmem:[#allocation4 + $0x630] sm:$0xff]
    %v7438 = vld [vmem:[#allocation4 + $0x638] sm:$0xff]
    %v7439 = vld [vmem:[#allocation4 + $0x640] sm:$0xff]
    %v7440 = vld [vmem:[#allocation4 + $0x648] sm:$0xff]
    %v7441 = vld [vmem:[#allocation4 + $0x650] sm:$0xff]
    %v7442 = vld [vmem:[#allocation4 + $0x658] sm:$0xff]
    %v7443 = vld [vmem:[#allocation4 + $0x660] sm:$0xff]
    %v7444 = vld [vmem:[#allocation4 + $0x668] sm:$0xff]
    %v7445 = vld [vmem:[#allocation4 + $0x670] sm:$0xff]
    %v7446 = vld [vmem:[#allocation4 + $0x678] sm:$0xff]
    %v7447 = vld [vmem:[#allocation4 + $0x680] sm:$0xff]
    %v7448 = vld [vmem:[#allocation4 + $0x688] sm:$0xff]
    %v7449 = vld [vmem:[#allocation4 + $0x690] sm:$0xff]
    %v7450 = vld [vmem:[#allocation4 + $0x698] sm:$0xff]
    %v7451 = vld [vmem:[#allocation4 + $0x6a0] sm:$0xff]
    %v7452 = vld [vmem:[#allocation4 + $0x6a8] sm:$0xff]
    %v7453 = vld [vmem:[#allocation4 + $0x6b0] sm:$0xff]
    %v7454 = vld [vmem:[#allocation4 + $0x6b8] sm:$0xff]
    %v7455 = vld [vmem:[#allocation4 + $0x6c0] sm:$0xff]
    %v7456 = vld [vmem:[#allocation4 + $0x6c8] sm:$0xff]
    %v7457 = vld [vmem:[#allocation4 + $0x6d0] sm:$0xff]
    %v7458 = vld [vmem:[#allocation4 + $0x6d8] sm:$0xff]
    %v7459 = vld [vmem:[#allocation4 + $0x6e0] sm:$0xff]
    %v7460 = vld [vmem:[#allocation4 + $0x6e8] sm:$0xff]
    %v7461 = vld [vmem:[#allocation4 + $0x6f0] sm:$0xff]
    %v7462 = vld [vmem:[#allocation4 + $0x6f8] sm:$0xff]
    %v7463 = vld [vmem:[#allocation4 + $0x700] sm:$0xff]
    %v7464 = vld [vmem:[#allocation4 + $0x708] sm:$0xff]
    %v7465 = vld [vmem:[#allocation4 + $0x710] sm:$0xff]
    %v7466 = vld [vmem:[#allocation4 + $0x718] sm:$0xff]
    %v7467 = vld [vmem:[#allocation4 + $0x720] sm:$0xff]
    %v7468 = vld [vmem:[#allocation4 + $0x728] sm:$0xff]
    %v7469 = vld [vmem:[#allocation4 + $0x730] sm:$0xff]
    %v7470 = vld [vmem:[#allocation4 + $0x738] sm:$0xff]
    %v7471 = vld [vmem:[#allocation4 + $0x740] sm:$0xff]
    %v7472 = vld [vmem:[#allocation4 + $0x748] sm:$0xff]
    %v7473 = vld [vmem:[#allocation4 + $0x750] sm:$0xff]
    %v7474 = vld [vmem:[#allocation4 + $0x758] sm:$0xff]
    %v7475 = vld [vmem:[#allocation4 + $0x760] sm:$0xff]
    %v7476 = vld [vmem:[#allocation4 + $0x768] sm:$0xff]
    %v7477 = vld [vmem:[#allocation4 + $0x770] sm:$0xff]
    %v7478 = vld [vmem:[#allocation4 + $0x778] sm:$0xff]
    %v7479 = vld [vmem:[#allocation4 + $0x780] sm:$0xff]
    %v7480 = vld [vmem:[#allocation4 + $0x788] sm:$0xff]
    %v7481 = vld [vmem:[#allocation4 + $0x790] sm:$0xff]
    %v7482 = vld [vmem:[#allocation4 + $0x798] sm:$0xff]
    %v7483 = vld [vmem:[#allocation4 + $0x7a0] sm:$0xff]
    %v7484 = vld [vmem:[#allocation4 + $0x7a8] sm:$0xff]
    %v7485 = vld [vmem:[#allocation4 + $0x7b0] sm:$0xff]
    %v7486 = vld [vmem:[#allocation4 + $0x7b8] sm:$0xff]
    %v7487 = vld [vmem:[#allocation4 + $0x7c0] sm:$0xff]
    %v7488 = vld [vmem:[#allocation4 + $0x7c8] sm:$0xff]
    %v7489 = vld [vmem:[#allocation4 + $0x7d0] sm:$0xff]
    %v7490 = vld [vmem:[#allocation4 + $0x7d8] sm:$0xff]
    %v7491 = vld [vmem:[#allocation4 + $0x7e0] sm:$0xff]
    %v7492 = vld [vmem:[#allocation4 + $0x7e8] sm:$0xff]
    %v7493 = vld [vmem:[#allocation4 + $0x7f0] sm:$0xff]
    %v7494 = vld [vmem:[#allocation4 + $0x7f8] sm:$0xff]
    %v7495 = vld [vmem:[#allocation4 + $0x800] sm:$0xff]
    %v7496 = vld [vmem:[#allocation4 + $0x808] sm:$0xff]
    %v7497 = vld [vmem:[#allocation4 + $0x810] sm:$0xff]
    %v7498 = vld [vmem:[#allocation4 + $0x818] sm:$0xff]
    %v7499 = vld [vmem:[#allocation4 + $0x820] sm:$0xff]
    %v7500 = vld [vmem:[#allocation4 + $0x828] sm:$0xff]
    %v7501 = vld [vmem:[#allocation4 + $0x830] sm:$0xff]
    %v7502 = vld [vmem:[#allocation4 + $0x838] sm:$0xff]
    %v7503 = vld [vmem:[#allocation4 + $0x840] sm:$0xff]
    %v7504 = vld [vmem:[#allocation4 + $0x848] sm:$0xff]
    %v7505 = vld [vmem:[#allocation4 + $0x850] sm:$0xff]
    %v7506 = vld [vmem:[#allocation4 + $0x858] sm:$0xff]
    %v7507 = vld [vmem:[#allocation4 + $0x860] sm:$0xff]
    %v7508 = vld [vmem:[#allocation4 + $0x868] sm:$0xff]
    %v7509 = vld [vmem:[#allocation4 + $0x870] sm:$0xff]
    %v7510 = vld [vmem:[#allocation4 + $0x878] sm:$0xff]
    %v7511 = vld [vmem:[#allocation4 + $0x880] sm:$0xff]
    %v7512 = vld [vmem:[#allocation4 + $0x888] sm:$0xff]
    %v7513 = vld [vmem:[#allocation4 + $0x890] sm:$0xff]
    %v7514 = vld [vmem:[#allocation4 + $0x898] sm:$0xff]
    %v7515 = vld [vmem:[#allocation4 + $0x8a0] sm:$0xff]
    %v7516 = vld [vmem:[#allocation4 + $0x8a8] sm:$0xff]
    %v7517 = vld [vmem:[#allocation4 + $0x8b0] sm:$0xff]
    %v7518 = vld [vmem:[#allocation4 + $0x8b8] sm:$0xff]
    %v7519 = vld [vmem:[#allocation4 + $0x8c0] sm:$0xff]
    %v7520 = vld [vmem:[#allocation4 + $0x8c8] sm:$0xff]
    %v7521 = vld [vmem:[#allocation4 + $0x8d0] sm:$0xff]
    %v7522 = vld [vmem:[#allocation4 + $0x8d8] sm:$0xff]
    %v7523 = vld [vmem:[#allocation4 + $0x8e0] sm:$0xff]
    %v7524 = vld [vmem:[#allocation4 + $0x8e8] sm:$0xff]
    %v7525 = vld [vmem:[#allocation4 + $0x8f0] sm:$0xff]
    %v7526 = vld [vmem:[#allocation4 + $0x8f8] sm:$0xff]
    %v7527 = vld [vmem:[#allocation4 + $0x900] sm:$0xff]
    %v7528 = vld [vmem:[#allocation4 + $0x908] sm:$0xff]
    %v7529 = vld [vmem:[#allocation4 + $0x910] sm:$0xff]
    %v7530 = vld [vmem:[#allocation4 + $0x918] sm:$0xff]
    %v7531 = vld [vmem:[#allocation4 + $0x920] sm:$0xff]
    %v7532 = vld [vmem:[#allocation4 + $0x928] sm:$0xff]
    %v7533 = vld [vmem:[#allocation4 + $0x930] sm:$0xff]
    %v7534 = vld [vmem:[#allocation4 + $0x938] sm:$0xff]
    %v7535 = vld [vmem:[#allocation4 + $0x940] sm:$0xff]
    %v7536 = vld [vmem:[#allocation4 + $0x948] sm:$0xff]
    %v7537 = vld [vmem:[#allocation4 + $0x950] sm:$0xff]
    %v7538 = vld [vmem:[#allocation4 + $0x958] sm:$0xff]
    %v7539 = vld [vmem:[#allocation4 + $0x960] sm:$0xff]
    %v7540 = vld [vmem:[#allocation4 + $0x968] sm:$0xff]
    %v7541 = vld [vmem:[#allocation4 + $0x970] sm:$0xff]
    %v7542 = vld [vmem:[#allocation4 + $0x978] sm:$0xff]
    %v7543 = vld [vmem:[#allocation4 + $0x980] sm:$0xff]
    %v7544 = vld [vmem:[#allocation4 + $0x988] sm:$0xff]
    %v7545 = vld [vmem:[#allocation4 + $0x990] sm:$0xff]
    %v7546 = vld [vmem:[#allocation4 + $0x998] sm:$0xff]
    %v7547 = vld [vmem:[#allocation4 + $0x9a0] sm:$0xff]
    %v7548 = vld [vmem:[#allocation4 + $0x9a8] sm:$0xff]
    %v7549 = vld [vmem:[#allocation4 + $0x9b0] sm:$0xff]
    %v7550 = vld [vmem:[#allocation4 + $0x9b8] sm:$0xff]
    %v7551 = vld [vmem:[#allocation4 + $0x9c0] sm:$0xff]
    %v7552 = vld [vmem:[#allocation4 + $0x9c8] sm:$0xff]
    %v7553 = vld [vmem:[#allocation4 + $0x9d0] sm:$0xff]
    %v7554 = vld [vmem:[#allocation4 + $0x9d8] sm:$0xff]
    %v7555 = vld [vmem:[#allocation4 + $0x9e0] sm:$0xff]
    %v7556 = vld [vmem:[#allocation4 + $0x9e8] sm:$0xff]
    %v7557 = vld [vmem:[#allocation4 + $0x9f0] sm:$0xff]
    %v7558 = vld [vmem:[#allocation4 + $0x9f8] sm:$0xff]
    %v7559 = vld [vmem:[#allocation4 + $0xa00] sm:$0xff]
    %v7560 = vld [vmem:[#allocation4 + $0xa08] sm:$0xff]
    %v7561 = vld [vmem:[#allocation4 + $0xa10] sm:$0xff]
    %v7562 = vld [vmem:[#allocation4 + $0xa18] sm:$0xff]
    %v7563 = vld [vmem:[#allocation4 + $0xa20] sm:$0xff]
    %v7564 = vld [vmem:[#allocation4 + $0xa28] sm:$0xff]
    %v7565 = vld [vmem:[#allocation4 + $0xa30] sm:$0xff]
    %v7566 = vld [vmem:[#allocation4 + $0xa38] sm:$0xff]
    %v7567 = vld [vmem:[#allocation4 + $0xa40] sm:$0xff]
    %v7568 = vld [vmem:[#allocation4 + $0xa48] sm:$0xff]
    %v7569 = vld [vmem:[#allocation4 + $0xa50] sm:$0xff]
    %v7570 = vld [vmem:[#allocation4 + $0xa58] sm:$0xff]
    %v7571 = vld [vmem:[#allocation4 + $0xa60] sm:$0xff]
    %v7572 = vld [vmem:[#allocation4 + $0xa68] sm:$0xff]
    %v7573 = vld [vmem:[#allocation4 + $0xa70] sm:$0xff]
    %v7574 = vld [vmem:[#allocation4 + $0xa78] sm:$0xff]
    %v7575 = vld [vmem:[#allocation4 + $0xa80] sm:$0xff]
    %v7576 = vld [vmem:[#allocation4 + $0xa88] sm:$0xff]
    %v7577 = vld [vmem:[#allocation4 + $0xa90] sm:$0xff]
    %v7578 = vld [vmem:[#allocation4 + $0xa98] sm:$0xff]
    %v7579 = vld [vmem:[#allocation4 + $0xaa0] sm:$0xff]
    %v7580 = vld [vmem:[#allocation4 + $0xaa8] sm:$0xff]
    %v7581 = vld [vmem:[#allocation4 + $0xab0] sm:$0xff]
    %v7582 = vld [vmem:[#allocation4 + $0xab8] sm:$0xff]
    %v7583 = vld [vmem:[#allocation4 + $0xac0] sm:$0xff]
    %v7584 = vld [vmem:[#allocation4 + $0xac8] sm:$0xff]
    %v7585 = vld [vmem:[#allocation4 + $0xad0] sm:$0xff]
    %v7586 = vld [vmem:[#allocation4 + $0xad8] sm:$0xff]
    %v7587 = vld [vmem:[#allocation4 + $0xae0] sm:$0xff]
    %v7588 = vld [vmem:[#allocation4 + $0xae8] sm:$0xff]
    %v7589 = vld [vmem:[#allocation4 + $0xaf0] sm:$0xff]
    %v7590 = vld [vmem:[#allocation4 + $0xaf8] sm:$0xff]
    %v7591 = vld [vmem:[#allocation4 + $0xb00] sm:$0xff]
    %v7592 = vld [vmem:[#allocation4 + $0xb08] sm:$0xff]
    %v7593 = vld [vmem:[#allocation4 + $0xb10] sm:$0xff]
    %v7594 = vld [vmem:[#allocation4 + $0xb18] sm:$0xff]
    %v7595 = vld [vmem:[#allocation4 + $0xb20] sm:$0xff]
    %v7596 = vld [vmem:[#allocation4 + $0xb28] sm:$0xff]
    %v7597 = vld [vmem:[#allocation4 + $0xb30] sm:$0xff]
    %v7598 = vld [vmem:[#allocation4 + $0xb38] sm:$0xff]
    %v7599 = vld [vmem:[#allocation4 + $0xb40] sm:$0xff]
    %v7600 = vld [vmem:[#allocation4 + $0xb48] sm:$0xff]
    %v7601 = vld [vmem:[#allocation4 + $0xb50] sm:$0xff]
    %v7602 = vld [vmem:[#allocation4 + $0xb58] sm:$0xff]
    %v7603 = vld [vmem:[#allocation4 + $0xb60] sm:$0xff]
    %v7604 = vld [vmem:[#allocation4 + $0xb68] sm:$0xff]
    %v7605 = vld [vmem:[#allocation4 + $0xb70] sm:$0xff]
    %v7606 = vld [vmem:[#allocation4 + $0xb78] sm:$0xff]
    %v7607 = vld [vmem:[#allocation4 + $0xb80] sm:$0xff]
    %v7608 = vld [vmem:[#allocation4 + $0xb88] sm:$0xff]
    %v7609 = vld [vmem:[#allocation4 + $0xb90] sm:$0xff]
    %v7610 = vld [vmem:[#allocation4 + $0xb98] sm:$0xff]
    %v7611 = vld [vmem:[#allocation4 + $0xba0] sm:$0xff]
    %v7612 = vld [vmem:[#allocation4 + $0xba8] sm:$0xff]
    %v7613 = vld [vmem:[#allocation4 + $0xbb0] sm:$0xff]
    %v7614 = vld [vmem:[#allocation4 + $0xbb8] sm:$0xff]
    %v7615 = vld [vmem:[#allocation4 + $0xbc0] sm:$0xff]
    %v7616 = vld [vmem:[#allocation4 + $0xbc8] sm:$0xff]
    %v7617 = vld [vmem:[#allocation4 + $0xbd0] sm:$0xff]
    %v7618 = vld [vmem:[#allocation4 + $0xbd8] sm:$0xff]
    %v7619 = vld [vmem:[#allocation4 + $0xbe0] sm:$0xff]
    %v7620 = vld [vmem:[#allocation4 + $0xbe8] sm:$0xff]
    %v7621 = vld [vmem:[#allocation4 + $0xbf0] sm:$0xff]
    %v7622 = vld [vmem:[#allocation4 + $0xbf8] sm:$0xff]
    %v7623 = vld [vmem:[#allocation4 + $0xc00] sm:$0xff]
    %v7624 = vld [vmem:[#allocation4 + $0xc08] sm:$0xff]
    %v7625 = vld [vmem:[#allocation4 + $0xc10] sm:$0xff]
    %v7626 = vld [vmem:[#allocation4 + $0xc18] sm:$0xff]
    %v7627 = vld [vmem:[#allocation4 + $0xc20] sm:$0xff]
    %v7628 = vld [vmem:[#allocation4 + $0xc28] sm:$0xff]
    %v7629 = vld [vmem:[#allocation4 + $0xc30] sm:$0xff]
    %v7630 = vld [vmem:[#allocation4 + $0xc38] sm:$0xff]
    %v7631 = vld [vmem:[#allocation4 + $0xc40] sm:$0xff]
    %v7632 = vld [vmem:[#allocation4 + $0xc48] sm:$0xff]
    %v7633 = vld [vmem:[#allocation4 + $0xc50] sm:$0xff]
    %v7634 = vld [vmem:[#allocation4 + $0xc58] sm:$0xff]
    %v7635 = vld [vmem:[#allocation4 + $0xc60] sm:$0xff]
    %v7636 = vld [vmem:[#allocation4 + $0xc68] sm:$0xff]
    %v7637 = vld [vmem:[#allocation4 + $0xc70] sm:$0xff]
    %v7638 = vld [vmem:[#allocation4 + $0xc78] sm:$0xff]
    %v7639 = vld [vmem:[#allocation4 + $0xc80] sm:$0xff]
    %v7640 = vld [vmem:[#allocation4 + $0xc88] sm:$0xff]
    %v7641 = vld [vmem:[#allocation4 + $0xc90] sm:$0xff]
    %v7642 = vld [vmem:[#allocation4 + $0xc98] sm:$0xff]
    %v7643 = vld [vmem:[#allocation4 + $0xca0] sm:$0xff]
    %v7644 = vld [vmem:[#allocation4 + $0xca8] sm:$0xff]
    %v7645 = vld [vmem:[#allocation4 + $0xcb0] sm:$0xff]
    %v7646 = vld [vmem:[#allocation4 + $0xcb8] sm:$0xff]
    %v7647 = vld [vmem:[#allocation4 + $0xcc0] sm:$0xff]
    %v7648 = vld [vmem:[#allocation4 + $0xcc8] sm:$0xff]
    %v7649 = vld [vmem:[#allocation4 + $0xcd0] sm:$0xff]
    %v7650 = vld [vmem:[#allocation4 + $0xcd8] sm:$0xff]
    %v7651 = vld [vmem:[#allocation4 + $0xce0] sm:$0xff]
    %v7652 = vld [vmem:[#allocation4 + $0xce8] sm:$0xff]
    %v7653 = vld [vmem:[#allocation4 + $0xcf0] sm:$0xff]
    %v7654 = vld [vmem:[#allocation4 + $0xcf8] sm:$0xff]
    %v7655 = vld [vmem:[#allocation4 + $0xd00] sm:$0xff]
    %v7656 = vld [vmem:[#allocation4 + $0xd08] sm:$0xff]
    %v7657 = vld [vmem:[#allocation4 + $0xd10] sm:$0xff]
    %v7658 = vld [vmem:[#allocation4 + $0xd18] sm:$0xff]
    %v7659 = vld [vmem:[#allocation4 + $0xd20] sm:$0xff]
    %v7660 = vld [vmem:[#allocation4 + $0xd28] sm:$0xff]
    %v7661 = vld [vmem:[#allocation4 + $0xd30] sm:$0xff]
    %v7662 = vld [vmem:[#allocation4 + $0xd38] sm:$0xff]
    %v7663 = vld [vmem:[#allocation4 + $0xd40] sm:$0xff]
    %v7664 = vld [vmem:[#allocation4 + $0xd48] sm:$0xff]
    %v7665 = vld [vmem:[#allocation4 + $0xd50] sm:$0xff]
    %v7666 = vld [vmem:[#allocation4 + $0xd58] sm:$0xff]
    %v7667 = vld [vmem:[#allocation4 + $0xd60] sm:$0xff]
    %v7668 = vld [vmem:[#allocation4 + $0xd68] sm:$0xff]
    %v7669 = vld [vmem:[#allocation4 + $0xd70] sm:$0xff]
    %v7670 = vld [vmem:[#allocation4 + $0xd78] sm:$0xff]
    %v7671 = vld [vmem:[#allocation4 + $0xd80] sm:$0xff]
    %v7672 = vld [vmem:[#allocation4 + $0xd88] sm:$0xff]
    %v7673 = vld [vmem:[#allocation4 + $0xd90] sm:$0xff]
    %v7674 = vld [vmem:[#allocation4 + $0xd98] sm:$0xff]
    %v7675 = vld [vmem:[#allocation4 + $0xda0] sm:$0xff]
    %v7676 = vld [vmem:[#allocation4 + $0xda8] sm:$0xff]
    %v7677 = vld [vmem:[#allocation4 + $0xdb0] sm:$0xff]
    %v7678 = vld [vmem:[#allocation4 + $0xdb8] sm:$0xff]
    %v7679 = vld [vmem:[#allocation4 + $0xdc0] sm:$0xff]
    %v7680 = vld [vmem:[#allocation4 + $0xdc8] sm:$0xff]
    %v7681 = vld [vmem:[#allocation4 + $0xdd0] sm:$0xff]
    %v7682 = vld [vmem:[#allocation4 + $0xdd8] sm:$0xff]
    %v7683 = vld [vmem:[#allocation4 + $0xde0] sm:$0xff]
    %v7684 = vld [vmem:[#allocation4 + $0xde8] sm:$0xff]
    %v7685 = vld [vmem:[#allocation4 + $0xdf0] sm:$0xff]
    %v7686 = vld [vmem:[#allocation4 + $0xdf8] sm:$0xff]
    %v7687 = vld [vmem:[#allocation20] sm:$0xff]
    %v7689 = vlaneseq
    %v7690 = vshrl.u32 %v7689, 7
    %v7691 = vsub.s32 0, %v7690
    %v7692 = vrot.slane %v7687, %v7691
    %v7693 = vlaneseq
    %v7694 = vshrl.u32 %v7693, 7
    %v7695 = vsub.s32 1, %v7694
    %v7696 = vrot.slane %v7687, %v7695
    %v7697 = vlaneseq
    %v7698 = vshrl.u32 %v7697, 7
    %v7699 = vsub.s32 2, %v7698
    %v7700 = vrot.slane %v7687, %v7699
    %v7701 = vlaneseq
    %v7702 = vshrl.u32 %v7701, 7
    %v7703 = vsub.s32 3, %v7702
    %v7704 = vrot.slane %v7687, %v7703
    %v7705 = vlaneseq
    %v7706 = vshrl.u32 %v7705, 7
    %v7707 = vsub.s32 4, %v7706
    %v7708 = vrot.slane %v7687, %v7707
    %v7709 = vlaneseq
    %v7710 = vshrl.u32 %v7709, 7
    %v7711 = vsub.s32 5, %v7710
    %v7712 = vrot.slane %v7687, %v7711
    %v7713 = vlaneseq
    %v7714 = vshrl.u32 %v7713, 7
    %v7715 = vsub.s32 6, %v7714
    %v7716 = vrot.slane %v7687, %v7715
    %7724 = vmatprep.subr.bf16.mxu0 %v7240
    %7725 = vmatpush1.bf16.msra.mxu0 %v7239
    %7726 = vmatprep.subr.bf16.mxu0 %v7247
    %7727 = vmatpush1.bf16.msra.mxu0 %v7246
    %7728 = vmatprep.subr.bf16.mxu0 %v7254
    %7729 = vmatpush1.bf16.msra.mxu0 %v7253
    %7730 = vmatprep.subr.bf16.mxu0 %v7261
    %7731 = vmatpush1.bf16.msra.mxu0 %v7260
    %7732 = vmatprep.subr.bf16.mxu0 %v7268
    %7733 = vmatpush1.bf16.msra.mxu0 %v7267
    %7734 = vmatprep.subr.bf16.mxu0 %v7275
    %7735 = vmatpush1.bf16.msra.mxu0 %v7274
    %7736 = vmatprep.subr.bf16.mxu0 %v7282
    %7737 = vmatpush1.bf16.msra.mxu0 %v7281
    %7738 = vmatprep.subr.bf16.mxu0 %v7289
    %7739 = vmatpush1.bf16.msra.mxu0 %v7288
    %7740 = vmatprep.subr.bf16.mxu0 %v7296
    %7741 = vmatpush1.bf16.msra.mxu0 %v7295
    %7742 = vmatprep.subr.bf16.mxu0 %v7303
    %7743 = vmatpush1.bf16.msra.mxu0 %v7302
    %7744 = vmatprep.subr.bf16.mxu0 %v7310
    %7745 = vmatpush1.bf16.msra.mxu0 %v7309
    %7746 = vmatprep.subr.bf16.mxu0 %v7317
    %7747 = vmatpush1.bf16.msra.mxu0 %v7316
    %7748 = vmatprep.subr.bf16.mxu0 %v7324
    %7749 = vmatpush1.bf16.msra.mxu0 %v7323
    %7750 = vmatprep.subr.bf16.mxu0 %v7331
    %7751 = vmatpush1.bf16.msra.mxu0 %v7330
    %7752 = vmatprep.subr.bf16.mxu0 %v7338
    %7753 = vmatpush1.bf16.msra.mxu0 %v7337
    %7754 = vmatprep.subr.bf16.mxu0 %v7345
    %7755 = vmatpush1.bf16.msra.mxu0 %v7344
    %7756 = vmatprep.mubr.bf16.mxu0 %v7112
    %7757 = vmatmul.mubr.bf16.gmra.mrb[0].mxu0 %v7111
    %v7758 = vpop.f32.mrb[0].mxu0
    %v7759 = vadd.f32 %v7692, %v7758
    %v7760 = vpop.f32.mrb[0].mxu0
    %v7761 = vadd.f32 %v7696, %v7760
    %v7762 = vpop.f32.mrb[0].mxu0
    %v7763 = vadd.f32 %v7692, %v7762
    %v7764 = vpop.f32.mrb[0].mxu0
    %v7765 = vadd.f32 %v7696, %v7764
    %7766 = vmatprep.mubr.bf16.mxu0 %v7120
    %7767 = vmatmul.mubr.bf16.gmra.mrb[0].mxu0 %v7119
    %v7768 = vpop.f32.mrb[0].mxu0
    %v7769 = vadd.f32 %v7692, %v7768
    %v7770 = vpop.f32.mrb[0].mxu0
    %v7771 = vadd.f32 %v7696, %v7770
    %v7772 = vpop.f32.mrb[0].mxu0
    %v7773 = vadd.f32 %v7692, %v7772
    %v7774 = vpop.f32.mrb[0].mxu0
    %v7775 = vadd.f32 %v7696, %v7774
    %7776 = vmatprep.mubr.bf16.mxu0 %v7128
    %7777 = vmatmul.mubr.bf16.gmra.mrb[0].mxu0 %v7127
    %v7778 = vpop.f32.mrb[0].mxu0
    %v7779 = vadd.f32 %v7692, %v7778
    %v7780 = vpop.f32.mrb[0].mxu0
    %v7781 = vadd.f32 %v7696, %v7780
    %v7782 = vpop.f32.mrb[0].mxu0
    %v7783 = vadd.f32 %v7692, %v7782
    %v7784 = vpop.f32.mrb[0].mxu0
    %v7785 = vadd.f32 %v7696, %v7784
    %7786 = vmatprep.mubr.bf16.mxu0 %v7136
    %7787 = vmatmul.mubr.bf16.gmra.mrb[0].mxu0 %v7135
    %v7788 = vpop.f32.mrb[0].mxu0
    %v7789 = vadd.f32 %v7692, %v7788
    %v7790 = vpop.f32.mrb[0].mxu0
    %v7791 = vadd.f32 %v7696, %v7790
    %v7792 = vpop.f32.mrb[0].mxu0
    %v7793 = vadd.f32 %v7692, %v7792
    %v7794 = vpop.f32.mrb[0].mxu0
    %v7795 = vadd.f32 %v7696, %v7794
    %7796 = vmatprep.mubr.bf16.mxu0 %v7144
    %7797 = vmatmul.mubr.bf16.gmra.mrb[0].mxu0 %v7143
    %v7798 = vpop.f32.mrb[0].mxu0
    %v7799 = vadd.f32 %v7692, %v7798
    %v7800 = vpop.f32.mrb[0].mxu0
    %v7801 = vadd.f32 %v7696, %v7800
    %v7802 = vpop.f32.mrb[0].mxu0
    %v7803 = vadd.f32 %v7692, %v7802
    %v7804 = vpop.f32.mrb[0].mxu0
    %v7805 = vadd.f32 %v7696, %v7804
    %7806 = vmatprep.mubr.bf16.mxu0 %v7152
    %7807 = vmatmul.mubr.bf16.gmra.mrb[0].mxu0 %v7151
    %v7808 = vpop.f32.mrb[0].mxu0
    %v7809 = vadd.f32 %v7692, %v7808
    %v7810 = vpop.f32.mrb[0].mxu0
    %v7811 = vadd.f32 %v7696, %v7810
    %v7812 = vpop.f32.mrb[0].mxu0
    %v7813 = vadd.f32 %v7692, %v7812
    %v7814 = vpop.f32.mrb[0].mxu0
    %v7815 = vadd.f32 %v7696, %v7814
    %7816 = vmatprep.mubr.bf16.mxu0 %v7160
    %7817 = vmatmul.mubr.bf16.gmra.mrb[0].mxu0 %v7159
    %v7818 = vpop.f32.mrb[0].mxu0
    %v7819 = vadd.f32 %v7692, %v7818
    %v7820 = vpop.f32.mrb[0].mxu0
    %v7821 = vadd.f32 %v7696, %v7820
    %v7822 = vpop.f32.mrb[0].mxu0
    %v7823 = vadd.f32 %v7692, %v7822
    %v7824 = vpop.f32.mrb[0].mxu0
    %v7825 = vadd.f32 %v7696, %v7824
    %7826 = vmatprep.mubr.bf16.mxu0 %v7168
    %7827 = vmatmul.mubr.bf16.gmra.mrb[0].mxu0 %v7167
    %v7828 = vpop.f32.mrb[0].mxu0
    %v7829 = vadd.f32 %v7692, %v7828
    %v7830 = vpop.f32.mrb[0].mxu0
    %v7831 = vadd.f32 %v7696, %v7830
    %v7832 = vpop.f32.mrb[0].mxu0
    %v7833 = vadd.f32 %v7692, %v7832
    %v7834 = vpop.f32.mrb[0].mxu0
    %v7835 = vadd.f32 %v7696, %v7834
    %7836 = vmatprep.mubr.bf16.mxu0 %v7176
    %7837 = vmatmul.mubr.bf16.gmra.mrb[0].mxu0 %v7175
    %v7838 = vpop.f32.mrb[0].mxu0
    %v7839 = vadd.f32 %v7692, %v7838
    %v7840 = vpop.f32.mrb[0].mxu0
    %v7841 = vadd.f32 %v7696, %v7840
    %v7842 = vpop.f32.mrb[0].mxu0
    %v7843 = vadd.f32 %v7692, %v7842
    %v7844 = vpop.f32.mrb[0].mxu0
    %v7845 = vadd.f32 %v7696, %v7844
    %7846 = vmatprep.mubr.bf16.mxu0 %v7184
    %7847 = vmatmul.mubr.bf16.gmra.mrb[0].mxu0 %v7183
    %v7848 = vpop.f32.mrb[0].mxu0
    %v7849 = vadd.f32 %v7692, %v7848
    %v7850 = vpop.f32.mrb[0].mxu0
    %v7851 = vadd.f32 %v7696, %v7850
    %v7852 = vpop.f32.mrb[0].mxu0
    %v7853 = vadd.f32 %v7692, %v7852
    %v7854 = vpop.f32.mrb[0].mxu0
    %v7855 = vadd.f32 %v7696, %v7854
    %7856 = vmatprep.mubr.bf16.mxu0 %v7192
    %7857 = vmatmul.mubr.bf16.gmra.mrb[0].mxu0 %v7191
    %v7858 = vpop.f32.mrb[0].mxu0
    %v7859 = vadd.f32 %v7692, %v7858
    %v7860 = vpop.f32.mrb[0].mxu0
    %v7861 = vadd.f32 %v7696, %v7860
    %v7862 = vpop.f32.mrb[0].mxu0
    %v7863 = vadd.f32 %v7692, %v7862
    %v7864 = vpop.f32.mrb[0].mxu0
    %v7865 = vadd.f32 %v7696, %v7864
    %7866 = vmatprep.mubr.bf16.mxu0 %v7200
    %7867 = vmatmul.mubr.bf16.gmra.mrb[0].mxu0 %v7199
    %v7868 = vpop.f32.mrb[0].mxu0
    %v7869 = vadd.f32 %v7692, %v7868
    %v7870 = vpop.f32.mrb[0].mxu0
    %v7871 = vadd.f32 %v7696, %v7870
    %v7872 = vpop.f32.mrb[0].mxu0
    %v7873 = vadd.f32 %v7692, %v7872
    %v7874 = vpop.f32.mrb[0].mxu0
    %v7875 = vadd.f32 %v7696, %v7874
    %7876 = vmatprep.mubr.bf16.mxu0 %v7208
    %7877 = vmatmul.mubr.bf16.gmra.mrb[0].mxu0 %v7207
    %v7878 = vpop.f32.mrb[0].mxu0
    %v7879 = vadd.f32 %v7692, %v7878
    %v7880 = vpop.f32.mrb[0].mxu0
    %v7881 = vadd.f32 %v7696, %v7880
    %v7882 = vpop.f32.mrb[0].mxu0
    %v7883 = vadd.f32 %v7692, %v7882
    %v7884 = vpop.f32.mrb[0].mxu0
    %v7885 = vadd.f32 %v7696, %v7884
    %7886 = vmatprep.mubr.bf16.mxu0 %v7216
    %7887 = vmatmul.mubr.bf16.gmra.mrb[0].mxu0 %v7215
    %v7888 = vpop.f32.mrb[0].mxu0
    %v7889 = vadd.f32 %v7692, %v7888
    %v7890 = vpop.f32.mrb[0].mxu0
    %v7891 = vadd.f32 %v7696, %v7890
    %v7892 = vpop.f32.mrb[0].mxu0
    %v7893 = vadd.f32 %v7692, %v7892
    %v7894 = vpop.f32.mrb[0].mxu0
    %v7895 = vadd.f32 %v7696, %v7894
    %7896 = vmatprep.mubr.bf16.mxu0 %v7224
    %7897 = vmatmul.mubr.bf16.gmra.mrb[0].mxu0 %v7223
    %v7898 = vpop.f32.mrb[0].mxu0
    %v7899 = vadd.f32 %v7692, %v7898
    %v7900 = vpop.f32.mrb[0].mxu0
    %v7901 = vadd.f32 %v7696, %v7900
    %v7902 = vpop.f32.mrb[0].mxu0
    %v7903 = vadd.f32 %v7692, %v7902
    %v7904 = vpop.f32.mrb[0].mxu0
    %v7905 = vadd.f32 %v7696, %v7904
    %7906 = vmatprep.mubr.bf16.mxu0 %v7232
    %7907 = vmatmul.mubr.bf16.gmra.mrb[0].mxu0 %v7231
    %v7908 = vpop.f32.mrb[0].mxu0
    %v7909 = vadd.f32 %v7692, %v7908
    %v7910 = vpop.f32.mrb[0].mxu0
    %v7911 = vadd.f32 %v7696, %v7910
    %v7912 = vpop.f32.mrb[0].mxu0
    %v7913 = vadd.f32 %v7692, %v7912
    %v7914 = vpop.f32.mrb[0].mxu0
    %v7915 = vadd.f32 %v7696, %v7914
    %7916 = vdwg.mxu0
    %7917 = vmatprep.subr.bf16.mxu0 %v7352
    %7918 = vmatpush1.bf16.msra.mxu0 %v7351
    %7919 = vmatprep.subr.bf16.mxu0 %v7359
    %7920 = vmatpush1.bf16.msra.mxu0 %v7358
    %7921 = vmatprep.subr.bf16.mxu0 %v7366
    %7922 = vmatpush1.bf16.msra.mxu0 %v7365
    %7923 = vmatprep.subr.bf16.mxu0 %v7373
    %7924 = vmatpush1.bf16.msra.mxu0 %v7372
    %7925 = vmatprep.subr.bf16.mxu0 %v7380
    %7926 = vmatpush1.bf16.msra.mxu0 %v7379
    %7927 = vmatprep.subr.bf16.mxu0 %v7387
    %7928 = vmatpush1.bf16.msra.mxu0 %v7386
    %7929 = vmatprep.subr.bf16.mxu0 %v7394
    %7930 = vmatpush1.bf16.msra.mxu0 %v7393
    %7931 = vmatprep.subr.bf16.mxu0 %v7401
    %7932 = vmatpush1.bf16.msra.mxu0 %v7400
    %7933 = vmatprep.subr.bf16.mxu0 %v7408
    %7934 = vmatpush1.bf16.msra.mxu0 %v7407
    %7935 = vmatprep.subr.bf16.mxu0 %v7415
    %7936 = vmatpush1.bf16.msra.mxu0 %v7414
    %7937 = vmatprep.subr.bf16.mxu0 %v7422
    %7938 = vmatpush1.bf16.msra.mxu0 %v7421
    %7939 = vmatprep.subr.bf16.mxu0 %v7429
    %7940 = vmatpush1.bf16.msra.mxu0 %v7428
    %7941 = vmatprep.subr.bf16.mxu0 %v7436
    %7942 = vmatpush1.bf16.msra.mxu0 %v7435
    %7943 = vmatprep.subr.bf16.mxu0 %v7443
    %7944 = vmatpush1.bf16.msra.mxu0 %v7442
    %7945 = vmatprep.subr.bf16.mxu0 %v7450
    %7946 = vmatpush1.bf16.msra.mxu0 %v7449
    %7947 = vmatprep.subr.bf16.mxu0 %v7457
    %7948 = vmatpush1.bf16.msra.mxu0 %v7456
    %7949 = vmatprep.mubr.bf16.mxu0 %v7114
    %7950 = vmatmul.mubr.bf16.gmra.mrb[0].mxu0 %v7113
    %v7951 = vpop.f32.mrb[0].mxu0
    %v7952 = vadd.f32 %v7759, %v7951
    %v7953 = vpop.f32.mrb[0].mxu0
    %v7954 = vadd.f32 %v7761, %v7953
    %v7955 = vpop.f32.mrb[0].mxu0
    %v7956 = vadd.f32 %v7763, %v7955
    %v7957 = vpop.f32.mrb[0].mxu0
    %v7958 = vadd.f32 %v7765, %v7957
    %7959 = vmatprep.mubr.bf16.mxu0 %v7122
    %7960 = vmatmul.mubr.bf16.gmra.mrb[0].mxu0 %v7121
    %v7961 = vpop.f32.mrb[0].mxu0
    %v7962 = vadd.f32 %v7769, %v7961
    %v7963 = vpop.f32.mrb[0].mxu0
    %v7964 = vadd.f32 %v7771, %v7963
    %v7965 = vpop.f32.mrb[0].mxu0
    %v7966 = vadd.f32 %v7773, %v7965
    %v7967 = vpop.f32.mrb[0].mxu0
    %v7968 = vadd.f32 %v7775, %v7967
    %7969 = vmatprep.mubr.bf16.mxu0 %v7130
    %7970 = vmatmul.mubr.bf16.gmra.mrb[0].mxu0 %v7129
    %v7971 = vpop.f32.mrb[0].mxu0
    %v7972 = vadd.f32 %v7779, %v7971
    %v7973 = vpop.f32.mrb[0].mxu0
    %v7974 = vadd.f32 %v7781, %v7973
    %v7975 = vpop.f32.mrb[0].mxu0
    %v7976 = vadd.f32 %v7783, %v7975
    %v7977 = vpop.f32.mrb[0].mxu0
    %v7978 = vadd.f32 %v7785, %v7977
    %7979 = vmatprep.mubr.bf16.mxu0 %v7138
    %7980 = vmatmul.mubr.bf16.gmra.mrb[0].mxu0 %v7137
    %v7981 = vpop.f32.mrb[0].mxu0
    %v7982 = vadd.f32 %v7789, %v7981
    %v7983 = vpop.f32.mrb[0].mxu0
    %v7984 = vadd.f32 %v7791, %v7983
    %v7985 = vpop.f32.mrb[0].mxu0
    %v7986 = vadd.f32 %v7793, %v7985
    %v7987 = vpop.f32.mrb[0].mxu0
    %v7988 = vadd.f32 %v7795, %v7987
    %7989 = vmatprep.mubr.bf16.mxu0 %v7146
    %7990 = vmatmul.mubr.bf16.gmra.mrb[0].mxu0 %v7145
    %v7991 = vpop.f32.mrb[0].mxu0
    %v7992 = vadd.f32 %v7799, %v7991
    %v7993 = vpop.f32.mrb[0].mxu0
    %v7994 = vadd.f32 %v7801, %v7993
    %v7995 = vpop.f32.mrb[0].mxu0
    %v7996 = vadd.f32 %v7803, %v7995
    %v7997 = vpop.f32.mrb[0].mxu0
    %v7998 = vadd.f32 %v7805, %v7997
    %7999 = vmatprep.mubr.bf16.mxu0 %v7154
    %8000 = vmatmul.mubr.bf16.gmra.mrb[0].mxu0 %v7153
    %v8001 = vpop.f32.mrb[0].mxu0
    %v8002 = vadd.f32 %v7809, %v8001
    %v8003 = vpop.f32.mrb[0].mxu0
    %v8004 = vadd.f32 %v7811, %v8003
    %v8005 = vpop.f32.mrb[0].mxu0
    %v8006 = vadd.f32 %v7813, %v8005
    %v8007 = vpop.f32.mrb[0].mxu0
    %v8008 = vadd.f32 %v7815, %v8007
    %8009 = vmatprep.mubr.bf16.mxu0 %v7162
    %8010 = vmatmul.mubr.bf16.gmra.mrb[0].mxu0 %v7161
    %v8011 = vpop.f32.mrb[0].mxu0
    %v8012 = vadd.f32 %v7819, %v8011
    %v8013 = vpop.f32.mrb[0].mxu0
    %v8014 = vadd.f32 %v7821, %v8013
    %v8015 = vpop.f32.mrb[0].mxu0
    %v8016 = vadd.f32 %v7823, %v8015
    %v8017 = vpop.f32.mrb[0].mxu0
    %v8018 = vadd.f32 %v7825, %v8017
    %8019 = vmatprep.mubr.bf16.mxu0 %v7170
    %8020 = vmatmul.mubr.bf16.gmra.mrb[0].mxu0 %v7169
    %v8021 = vpop.f32.mrb[0].mxu0
    %v8022 = vadd.f32 %v7829, %v8021
    %v8023 = vpop.f32.mrb[0].mxu0
    %v8024 = vadd.f32 %v7831, %v8023
    %v8025 = vpop.f32.mrb[0].mxu0
    %v8026 = vadd.f32 %v7833, %v8025
    %v8027 = vpop.f32.mrb[0].mxu0
    %v8028 = vadd.f32 %v7835, %v8027
    %8029 = vmatprep.mubr.bf16.mxu0 %v7178
    %8030 = vmatmul.mubr.bf16.gmra.mrb[0].mxu0 %v7177
    %v8031 = vpop.f32.mrb[0].mxu0
    %v8032 = vadd.f32 %v7839, %v8031
    %v8033 = vpop.f32.mrb[0].mxu0
    %v8034 = vadd.f32 %v7841, %v8033
    %v8035 = vpop.f32.mrb[0].mxu0
    %v8036 = vadd.f32 %v7843, %v8035
    %v8037 = vpop.f32.mrb[0].mxu0
    %v8038 = vadd.f32 %v7845, %v8037
    %8039 = vmatprep.mubr.bf16.mxu0 %v7186
    %8040 = vmatmul.mubr.bf16.gmra.mrb[0].mxu0 %v7185
    %v8041 = vpop.f32.mrb[0].mxu0
    %v8042 = vadd.f32 %v7849, %v8041
    %v8043 = vpop.f32.mrb[0].mxu0
    %v8044 = vadd.f32 %v7851, %v8043
    %v8045 = vpop.f32.mrb[0].mxu0
    %v8046 = vadd.f32 %v7853, %v8045
    %v8047 = vpop.f32.mrb[0].mxu0
    %v8048 = vadd.f32 %v7855, %v8047
    %8049 = vmatprep.mubr.bf16.mxu0 %v7194
    %8050 = vmatmul.mubr.bf16.gmra.mrb[0].mxu0 %v7193
    %v8051 = vpop.f32.mrb[0].mxu0
    %v8052 = vadd.f32 %v7859, %v8051
    %v8053 = vpop.f32.mrb[0].mxu0
    %v8054 = vadd.f32 %v7861, %v8053
    %v8055 = vpop.f32.mrb[0].mxu0
    %v8056 = vadd.f32 %v7863, %v8055
    %v8057 = vpop.f32.mrb[0].mxu0
    %v8058 = vadd.f32 %v7865, %v8057
    %8059 = vmatprep.mubr.bf16.mxu0 %v7202
    %8060 = vmatmul.mubr.bf16.gmra.mrb[0].mxu0 %v7201
    %v8061 = vpop.f32.mrb[0].mxu0
    %v8062 = vadd.f32 %v7869, %v8061
    %v8063 = vpop.f32.mrb[0].mxu0
    %v8064 = vadd.f32 %v7871, %v8063
    %v8065 = vpop.f32.mrb[0].mxu0
    %v8066 = vadd.f32 %v7873, %v8065
    %v8067 = vpop.f32.mrb[0].mxu0
    %v8068 = vadd.f32 %v7875, %v8067
    %8069 = vmatprep.mubr.bf16.mxu0 %v7210
    %8070 = vmatmul.mubr.bf16.gmra.mrb[0].mxu0 %v7209
    %v8071 = vpop.f32.mrb[0].mxu0
    %v8072 = vadd.f32 %v7879, %v8071
    %v8073 = vpop.f32.mrb[0].mxu0
    %v8074 = vadd.f32 %v7881, %v8073
    %v8075 = vpop.f32.mrb[0].mxu0
    %v8076 = vadd.f32 %v7883, %v8075
    %v8077 = vpop.f32.mrb[0].mxu0
    %v8078 = vadd.f32 %v7885, %v8077
    %8079 = vmatprep.mubr.bf16.mxu0 %v7218
    %8080 = vmatmul.mubr.bf16.gmra.mrb[0].mxu0 %v7217
    %v8081 = vpop.f32.mrb[0].mxu0
    %v8082 = vadd.f32 %v7889, %v8081
    %v8083 = vpop.f32.mrb[0].mxu0
    %v8084 = vadd.f32 %v7891, %v8083
    %v8085 = vpop.f32.mrb[0].mxu0
    %v8086 = vadd.f32 %v7893, %v8085
    %v8087 = vpop.f32.mrb[0].mxu0
    %v8088 = vadd.f32 %v7895, %v8087
    %8089 = vmatprep.mubr.bf16.mxu0 %v7226
    %8090 = vmatmul.mubr.bf16.gmra.mrb[0].mxu0 %v7225
    %v8091 = vpop.f32.mrb[0].mxu0
    %v8092 = vadd.f32 %v7899, %v8091
    %v8093 = vpop.f32.mrb[0].mxu0
    %v8094 = vadd.f32 %v7901, %v8093
    %v8095 = vpop.f32.mrb[0].mxu0
    %v8096 = vadd.f32 %v7903, %v8095
    %v8097 = vpop.f32.mrb[0].mxu0
    %v8098 = vadd.f32 %v7905, %v8097
    %8099 = vmatprep.mubr.bf16.mxu0 %v7234
    %8100 = vmatmul.mubr.bf16.gmra.mrb[0].mxu0 %v7233
    %v8101 = vpop.f32.mrb[0].mxu0
    %v8102 = vadd.f32 %v7909, %v8101
    %v8103 = vpop.f32.mrb[0].mxu0
    %v8104 = vadd.f32 %v7911, %v8103
    %v8105 = vpop.f32.mrb[0].mxu0
    %v8106 = vadd.f32 %v7913, %v8105
    %v8107 = vpop.f32.mrb[0].mxu0
    %v8108 = vadd.f32 %v7915, %v8107
    %8109 = vdwg.mxu0
    %8110 = vmatprep.subr.bf16.mxu0 %v7464
    %8111 = vmatpush1.bf16.msra.mxu0 %v7463
    %8112 = vmatprep.subr.bf16.mxu0 %v7471
    %8113 = vmatpush1.bf16.msra.mxu0 %v7470
    %8114 = vmatprep.subr.bf16.mxu0 %v7478
    %8115 = vmatpush1.bf16.msra.mxu0 %v7477
    %8116 = vmatprep.subr.bf16.mxu0 %v7485
    %8117 = vmatpush1.bf16.msra.mxu0 %v7484
    %8118 = vmatprep.subr.bf16.mxu0 %v7492
    %8119 = vmatpush1.bf16.msra.mxu0 %v7491
    %8120 = vmatprep.subr.bf16.mxu0 %v7499
    %8121 = vmatpush1.bf16.msra.mxu0 %v7498
    %8122 = vmatprep.subr.bf16.mxu0 %v7506
    %8123 = vmatpush1.bf16.msra.mxu0 %v7505
    %8124 = vmatprep.subr.bf16.mxu0 %v7513
    %8125 = vmatpush1.bf16.msra.mxu0 %v7512
    %8126 = vmatprep.subr.bf16.mxu0 %v7520
    %8127 = vmatpush1.bf16.msra.mxu0 %v7519
    %8128 = vmatprep.subr.bf16.mxu0 %v7527
    %8129 = vmatpush1.bf16.msra.mxu0 %v7526
    %8130 = vmatprep.subr.bf16.mxu0 %v7534
    %8131 = vmatpush1.bf16.msra.mxu0 %v7533
    %8132 = vmatprep.subr.bf16.mxu0 %v7541
    %8133 = vmatpush1.bf16.msra.mxu0 %v7540
    %8134 = vmatprep.subr.bf16.mxu0 %v7548
    %8135 = vmatpush1.bf16.msra.mxu0 %v7547
    %8136 = vmatprep.subr.bf16.mxu0 %v7555
    %8137 = vmatpush1.bf16.msra.mxu0 %v7554
    %8138 = vmatprep.subr.bf16.mxu0 %v7562
    %8139 = vmatpush1.bf16.msra.mxu0 %v7561
    %8140 = vmatprep.subr.bf16.mxu0 %v7569
    %8141 = vmatpush1.bf16.msra.mxu0 %v7568
    %8142 = vmatprep.mubr.bf16.mxu0 %v7116
    %8143 = vmatmul.mubr.bf16.gmra.mrb[0].mxu0 %v7115
    %v8144 = vpop.f32.mrb[0].mxu0
    %v8145 = vadd.f32 %v7952, %v8144
    %v8146 = vpop.f32.mrb[0].mxu0
    %v8147 = vadd.f32 %v7954, %v8146
    %v8148 = vpop.f32.mrb[0].mxu0
    %v8149 = vadd.f32 %v7956, %v8148
    %v8150 = vpop.f32.mrb[0].mxu0
    %v8151 = vadd.f32 %v7958, %v8150
    %8152 = vmatprep.mubr.bf16.mxu0 %v7124
    %8153 = vmatmul.mubr.bf16.gmra.mrb[0].mxu0 %v7123
    %v8154 = vpop.f32.mrb[0].mxu0
    %v8155 = vadd.f32 %v7962, %v8154
    %v8156 = vpop.f32.mrb[0].mxu0
    %v8157 = vadd.f32 %v7964, %v8156
    %v8158 = vpop.f32.mrb[0].mxu0
    %v8159 = vadd.f32 %v7966, %v8158
    %v8160 = vpop.f32.mrb[0].mxu0
    %v8161 = vadd.f32 %v7968, %v8160
    %8162 = vmatprep.mubr.bf16.mxu0 %v7132
    %8163 = vmatmul.mubr.bf16.gmra.mrb[0].mxu0 %v7131
    %v8164 = vpop.f32.mrb[0].mxu0
    %v8165 = vadd.f32 %v7972, %v8164
    %v8166 = vpop.f32.mrb[0].mxu0
    %v8167 = vadd.f32 %v7974, %v8166
    %v8168 = vpop.f32.mrb[0].mxu0
    %v8169 = vadd.f32 %v7976, %v8168
    %v8170 = vpop.f32.mrb[0].mxu0
    %v8171 = vadd.f32 %v7978, %v8170
    %8172 = vmatprep.mubr.bf16.mxu0 %v7140
    %8173 = vmatmul.mubr.bf16.gmra.mrb[0].mxu0 %v7139
    %v8174 = vpop.f32.mrb[0].mxu0
    %v8175 = vadd.f32 %v7982, %v8174
    %v8176 = vpop.f32.mrb[0].mxu0
    %v8177 = vadd.f32 %v7984, %v8176
    %v8178 = vpop.f32.mrb[0].mxu0
    %v8179 = vadd.f32 %v7986, %v8178
    %v8180 = vpop.f32.mrb[0].mxu0
    %v8181 = vadd.f32 %v7988, %v8180
    %8182 = vmatprep.mubr.bf16.mxu0 %v7148
    %8183 = vmatmul.mubr.bf16.gmra.mrb[0].mxu0 %v7147
    %v8184 = vpop.f32.mrb[0].mxu0
    %v8185 = vadd.f32 %v7992, %v8184
    %v8186 = vpop.f32.mrb[0].mxu0
    %v8187 = vadd.f32 %v7994, %v8186
    %v8188 = vpop.f32.mrb[0].mxu0
    %v8189 = vadd.f32 %v7996, %v8188
    %v8190 = vpop.f32.mrb[0].mxu0
    %v8191 = vadd.f32 %v7998, %v8190
    %8192 = vmatprep.mubr.bf16.mxu0 %v7156
    %8193 = vmatmul.mubr.bf16.gmra.mrb[0].mxu0 %v7155
    %v8194 = vpop.f32.mrb[0].mxu0
    %v8195 = vadd.f32 %v8002, %v8194
    %v8196 = vpop.f32.mrb[0].mxu0
    %v8197 = vadd.f32 %v8004, %v8196
    %v8198 = vpop.f32.mrb[0].mxu0
    %v8199 = vadd.f32 %v8006, %v8198
    %v8200 = vpop.f32.mrb[0].mxu0
    %v8201 = vadd.f32 %v8008, %v8200
    %8202 = vmatprep.mubr.bf16.mxu0 %v7164
    %8203 = vmatmul.mubr.bf16.gmra.mrb[0].mxu0 %v7163
    %v8204 = vpop.f32.mrb[0].mxu0
    %v8205 = vadd.f32 %v8012, %v8204
    %v8206 = vpop.f32.mrb[0].mxu0
    %v8207 = vadd.f32 %v8014, %v8206
    %v8208 = vpop.f32.mrb[0].mxu0
    %v8209 = vadd.f32 %v8016, %v8208
    %v8210 = vpop.f32.mrb[0].mxu0
    %v8211 = vadd.f32 %v8018, %v8210
    %8212 = vmatprep.mubr.bf16.mxu0 %v7172
    %8213 = vmatmul.mubr.bf16.gmra.mrb[0].mxu0 %v7171
    %v8214 = vpop.f32.mrb[0].mxu0
    %v8215 = vadd.f32 %v8022, %v8214
    %v8216 = vpop.f32.mrb[0].mxu0
    %v8217 = vadd.f32 %v8024, %v8216
    %v8218 = vpop.f32.mrb[0].mxu0
    %v8219 = vadd.f32 %v8026, %v8218
    %v8220 = vpop.f32.mrb[0].mxu0
    %v8221 = vadd.f32 %v8028, %v8220
    %8222 = vmatprep.mubr.bf16.mxu0 %v7180
    %8223 = vmatmul.mubr.bf16.gmra.mrb[0].mxu0 %v7179
    %v8224 = vpop.f32.mrb[0].mxu0
    %v8225 = vadd.f32 %v8032, %v8224
    %v8226 = vpop.f32.mrb[0].mxu0
    %v8227 = vadd.f32 %v8034, %v8226
    %v8228 = vpop.f32.mrb[0].mxu0
    %v8229 = vadd.f32 %v8036, %v8228
    %v8230 = vpop.f32.mrb[0].mxu0
    %v8231 = vadd.f32 %v8038, %v8230
    %8232 = vmatprep.mubr.bf16.mxu0 %v7188
    %8233 = vmatmul.mubr.bf16.gmra.mrb[0].mxu0 %v7187
    %v8234 = vpop.f32.mrb[0].mxu0
    %v8235 = vadd.f32 %v8042, %v8234
    %v8236 = vpop.f32.mrb[0].mxu0
    %v8237 = vadd.f32 %v8044, %v8236
    %v8238 = vpop.f32.mrb[0].mxu0
    %v8239 = vadd.f32 %v8046, %v8238
    %v8240 = vpop.f32.mrb[0].mxu0
    %v8241 = vadd.f32 %v8048, %v8240
    %8242 = vmatprep.mubr.bf16.mxu0 %v7196
    %8243 = vmatmul.mubr.bf16.gmra.mrb[0].mxu0 %v7195
    %v8244 = vpop.f32.mrb[0].mxu0
    %v8245 = vadd.f32 %v8052, %v8244
    %v8246 = vpop.f32.mrb[0].mxu0
    %v8247 = vadd.f32 %v8054, %v8246
    %v8248 = vpop.f32.mrb[0].mxu0
    %v8249 = vadd.f32 %v8056, %v8248
    %v8250 = vpop.f32.mrb[0].mxu0
    %v8251 = vadd.f32 %v8058, %v8250
    %8252 = vmatprep.mubr.bf16.mxu0 %v7204
    %8253 = vmatmul.mubr.bf16.gmra.mrb[0].mxu0 %v7203
    %v8254 = vpop.f32.mrb[0].mxu0
    %v8255 = vadd.f32 %v8062, %v8254
    %v8256 = vpop.f32.mrb[0].mxu0
    %v8257 = vadd.f32 %v8064, %v8256
    %v8258 = vpop.f32.mrb[0].mxu0
    %v8259 = vadd.f32 %v8066, %v8258
    %v8260 = vpop.f32.mrb[0].mxu0
    %v8261 = vadd.f32 %v8068, %v8260
    %8262 = vmatprep.mubr.bf16.mxu0 %v7212
    %8263 = vmatmul.mubr.bf16.gmra.mrb[0].mxu0 %v7211
    %v8264 = vpop.f32.mrb[0].mxu0
    %v8265 = vadd.f32 %v8072, %v8264
    %v8266 = vpop.f32.mrb[0].mxu0
    %v8267 = vadd.f32 %v8074, %v8266
    %v8268 = vpop.f32.mrb[0].mxu0
    %v8269 = vadd.f32 %v8076, %v8268
    %v8270 = vpop.f32.mrb[0].mxu0
    %v8271 = vadd.f32 %v8078, %v8270
    %8272 = vmatprep.mubr.bf16.mxu0 %v7220
    %8273 = vmatmul.mubr.bf16.gmra.mrb[0].mxu0 %v7219
    %v8274 = vpop.f32.mrb[0].mxu0
    %v8275 = vadd.f32 %v8082, %v8274
    %v8276 = vpop.f32.mrb[0].mxu0
    %v8277 = vadd.f32 %v8084, %v8276
    %v8278 = vpop.f32.mrb[0].mxu0
    %v8279 = vadd.f32 %v8086, %v8278
    %v8280 = vpop.f32.mrb[0].mxu0
    %v8281 = vadd.f32 %v8088, %v8280
    %8282 = vmatprep.mubr.bf16.mxu0 %v7228
    %8283 = vmatmul.mubr.bf16.gmra.mrb[0].mxu0 %v7227
    %v8284 = vpop.f32.mrb[0].mxu0
    %v8285 = vadd.f32 %v8092, %v8284
    %v8286 = vpop.f32.mrb[0].mxu0
    %v8287 = vadd.f32 %v8094, %v8286
    %v8288 = vpop.f32.mrb[0].mxu0
    %v8289 = vadd.f32 %v8096, %v8288
    %v8290 = vpop.f32.mrb[0].mxu0
    %v8291 = vadd.f32 %v8098, %v8290
    %8292 = vmatprep.mubr.bf16.mxu0 %v7236
    %8293 = vmatmul.mubr.bf16.gmra.mrb[0].mxu0 %v7235
    %v8294 = vpop.f32.mrb[0].mxu0
    %v8295 = vadd.f32 %v8102, %v8294
    %v8296 = vpop.f32.mrb[0].mxu0
    %v8297 = vadd.f32 %v8104, %v8296
    %v8298 = vpop.f32.mrb[0].mxu0
    %v8299 = vadd.f32 %v8106, %v8298
    %v8300 = vpop.f32.mrb[0].mxu0
    %v8301 = vadd.f32 %v8108, %v8300
    %8302 = vdwg.mxu0
    %8303 = vmatprep.subr.bf16.mxu0 %v7576
    %8304 = vmatpush1.bf16.msra.mxu0 %v7575
    %8305 = vmatprep.subr.bf16.mxu0 %v7583
    %8306 = vmatpush1.bf16.msra.mxu0 %v7582
    %8307 = vmatprep.subr.bf16.mxu0 %v7590
    %8308 = vmatpush1.bf16.msra.mxu0 %v7589
    %8309 = vmatprep.subr.bf16.mxu0 %v7597
    %8310 = vmatpush1.bf16.msra.mxu0 %v7596
    %8311 = vmatprep.subr.bf16.mxu0 %v7604
    %8312 = vmatpush1.bf16.msra.mxu0 %v7603
    %8313 = vmatprep.subr.bf16.mxu0 %v7611
    %8314 = vmatpush1.bf16.msra.mxu0 %v7610
    %8315 = vmatprep.subr.bf16.mxu0 %v7618
    %8316 = vmatpush1.bf16.msra.mxu0 %v7617
    %8317 = vmatprep.subr.bf16.mxu0 %v7625
    %8318 = vmatpush1.bf16.msra.mxu0 %v7624
    %8319 = vmatprep.subr.bf16.mxu0 %v7632
    %8320 = vmatpush1.bf16.msra.mxu0 %v7631
    %8321 = vmatprep.subr.bf16.mxu0 %v7639
    %8322 = vmatpush1.bf16.msra.mxu0 %v7638
    %8323 = vmatprep.subr.bf16.mxu0 %v7646
    %8324 = vmatpush1.bf16.msra.mxu0 %v7645
    %8325 = vmatprep.subr.bf16.mxu0 %v7653
    %8326 = vmatpush1.bf16.msra.mxu0 %v7652
    %8327 = vmatprep.subr.bf16.mxu0 %v7660
    %8328 = vmatpush1.bf16.msra.mxu0 %v7659
    %8329 = vmatprep.subr.bf16.mxu0 %v7667
    %8330 = vmatpush1.bf16.msra.mxu0 %v7666
    %8331 = vmatprep.subr.bf16.mxu0 %v7674
    %8332 = vmatpush1.bf16.msra.mxu0 %v7673
    %8333 = vmatprep.subr.bf16.mxu0 %v7681
    %8334 = vmatpush1.bf16.msra.mxu0 %v7680
    %8335 = vmatprep.mubr.bf16.mxu0 %v7118
    %8336 = vmatmul.mubr.bf16.gmra.mrb[0].mxu0 %v7117
    %v8337 = vpop.f32.mrb[0].mxu0
    %v8338 = vadd.f32 %v8145, %v8337
    %v8339 = vpop.f32.mrb[0].mxu0
    %v8340 = vadd.f32 %v8147, %v8339
    %v8341 = vpop.f32.mrb[0].mxu0
    %v8342 = vadd.f32 %v8149, %v8341
    %v8343 = vpop.f32.mrb[0].mxu0
    %v8344 = vadd.f32 %v8151, %v8343
    %8345 = vmatprep.mubr.bf16.mxu0 %v7126
    %8346 = vmatmul.mubr.bf16.gmra.mrb[0].mxu0 %v7125
    %v8347 = vpop.f32.mrb[0].mxu0
    %v8348 = vadd.f32 %v8155, %v8347
    %v8349 = vpop.f32.mrb[0].mxu0
    %v8350 = vadd.f32 %v8157, %v8349
    %v8351 = vpop.f32.mrb[0].mxu0
    %v8352 = vadd.f32 %v8159, %v8351
    %v8353 = vpop.f32.mrb[0].mxu0
    %v8354 = vadd.f32 %v8161, %v8353
    %8355 = vmatprep.mubr.bf16.mxu0 %v7134
    %8356 = vmatmul.mubr.bf16.gmra.mrb[0].mxu0 %v7133
    %v8357 = vpop.f32.mrb[0].mxu0
    %v8358 = vadd.f32 %v8165, %v8357
    %v8359 = vpop.f32.mrb[0].mxu0
    %v8360 = vadd.f32 %v8167, %v8359
    %v8361 = vpop.f32.mrb[0].mxu0
    %v8362 = vadd.f32 %v8169, %v8361
    %v8363 = vpop.f32.mrb[0].mxu0
    %v8364 = vadd.f32 %v8171, %v8363
    %8365 = vmatprep.mubr.bf16.mxu0 %v7142
    %8366 = vmatmul.mubr.bf16.gmra.mrb[0].mxu0 %v7141
    %v8367 = vpop.f32.mrb[0].mxu0
    %v8368 = vadd.f32 %v8175, %v8367
    %v8369 = vpop.f32.mrb[0].mxu0
    %v8370 = vadd.f32 %v8177, %v8369
    %v8371 = vpop.f32.mrb[0].mxu0
    %v8372 = vadd.f32 %v8179, %v8371
    %v8373 = vpop.f32.mrb[0].mxu0
    %v8374 = vadd.f32 %v8181, %v8373
    %8375 = vmatprep.mubr.bf16.mxu0 %v7150
    %8376 = vmatmul.mubr.bf16.gmra.mrb[0].mxu0 %v7149
    %v8377 = vpop.f32.mrb[0].mxu0
    %v8378 = vadd.f32 %v8185, %v8377
    %v8379 = vpop.f32.mrb[0].mxu0
    %v8380 = vadd.f32 %v8187, %v8379
    %v8381 = vpop.f32.mrb[0].mxu0
    %v8382 = vadd.f32 %v8189, %v8381
    %v8383 = vpop.f32.mrb[0].mxu0
    %v8384 = vadd.f32 %v8191, %v8383
    %8385 = vmatprep.mubr.bf16.mxu0 %v7158
    %8386 = vmatmul.mubr.bf16.gmra.mrb[0].mxu0 %v7157
    %v8387 = vpop.f32.mrb[0].mxu0
    %v8388 = vadd.f32 %v8195, %v8387
    %v8389 = vpop.f32.mrb[0].mxu0
    %v8390 = vadd.f32 %v8197, %v8389
    %v8391 = vpop.f32.mrb[0].mxu0
    %v8392 = vadd.f32 %v8199, %v8391
    %v8393 = vpop.f32.mrb[0].mxu0
    %v8394 = vadd.f32 %v8201, %v8393
    %8395 = vmatprep.mubr.bf16.mxu0 %v7166
    %8396 = vmatmul.mubr.bf16.gmra.mrb[0].mxu0 %v7165
    %v8397 = vpop.f32.mrb[0].mxu0
    %v8398 = vadd.f32 %v8205, %v8397
    %v8399 = vpop.f32.mrb[0].mxu0
    %v8400 = vadd.f32 %v8207, %v8399
    %v8401 = vpop.f32.mrb[0].mxu0
    %v8402 = vadd.f32 %v8209, %v8401
    %v8403 = vpop.f32.mrb[0].mxu0
    %v8404 = vadd.f32 %v8211, %v8403
    %8405 = vmatprep.mubr.bf16.mxu0 %v7174
    %8406 = vmatmul.mubr.bf16.gmra.mrb[0].mxu0 %v7173
    %v8407 = vpop.f32.mrb[0].mxu0
    %v8408 = vadd.f32 %v8215, %v8407
    %v8409 = vpop.f32.mrb[0].mxu0
    %v8410 = vadd.f32 %v8217, %v8409
    %v8411 = vpop.f32.mrb[0].mxu0
    %v8412 = vadd.f32 %v8219, %v8411
    %v8413 = vpop.f32.mrb[0].mxu0
    %v8414 = vadd.f32 %v8221, %v8413
    %8415 = vmatprep.mubr.bf16.mxu0 %v7182
    %8416 = vmatmul.mubr.bf16.gmra.mrb[0].mxu0 %v7181
    %v8417 = vpop.f32.mrb[0].mxu0
    %v8418 = vadd.f32 %v8225, %v8417
    %v8419 = vpop.f32.mrb[0].mxu0
    %v8420 = vadd.f32 %v8227, %v8419
    %v8421 = vpop.f32.mrb[0].mxu0
    %v8422 = vadd.f32 %v8229, %v8421
    %v8423 = vpop.f32.mrb[0].mxu0
    %v8424 = vadd.f32 %v8231, %v8423
    %8425 = vmatprep.mubr.bf16.mxu0 %v7190
    %8426 = vmatmul.mubr.bf16.gmra.mrb[0].mxu0 %v7189
    %v8427 = vpop.f32.mrb[0].mxu0
    %v8428 = vadd.f32 %v8235, %v8427
    %v8429 = vpop.f32.mrb[0].mxu0
    %v8430 = vadd.f32 %v8237, %v8429
    %v8431 = vpop.f32.mrb[0].mxu0
    %v8432 = vadd.f32 %v8239, %v8431
    %v8433 = vpop.f32.mrb[0].mxu0
    %v8434 = vadd.f32 %v8241, %v8433
    %8435 = vmatprep.mubr.bf16.mxu0 %v7198
    %8436 = vmatmul.mubr.bf16.gmra.mrb[0].mxu0 %v7197
    %v8437 = vpop.f32.mrb[0].mxu0
    %v8438 = vadd.f32 %v8245, %v8437
    %v8439 = vpop.f32.mrb[0].mxu0
    %v8440 = vadd.f32 %v8247, %v8439
    %v8441 = vpop.f32.mrb[0].mxu0
    %v8442 = vadd.f32 %v8249, %v8441
    %v8443 = vpop.f32.mrb[0].mxu0
    %v8444 = vadd.f32 %v8251, %v8443
    %8445 = vmatprep.mubr.bf16.mxu0 %v7206
    %8446 = vmatmul.mubr.bf16.gmra.mrb[0].mxu0 %v7205
    %v8447 = vpop.f32.mrb[0].mxu0
    %v8448 = vadd.f32 %v8255, %v8447
    %v8449 = vpop.f32.mrb[0].mxu0
    %v8450 = vadd.f32 %v8257, %v8449
    %v8451 = vpop.f32.mrb[0].mxu0
    %v8452 = vadd.f32 %v8259, %v8451
    %v8453 = vpop.f32.mrb[0].mxu0
    %v8454 = vadd.f32 %v8261, %v8453
    %8455 = vmatprep.mubr.bf16.mxu0 %v7214
    %8456 = vmatmul.mubr.bf16.gmra.mrb[0].mxu0 %v7213
    %v8457 = vpop.f32.mrb[0].mxu0
    %v8458 = vadd.f32 %v8265, %v8457
    %v8459 = vpop.f32.mrb[0].mxu0
    %v8460 = vadd.f32 %v8267, %v8459
    %v8461 = vpop.f32.mrb[0].mxu0
    %v8462 = vadd.f32 %v8269, %v8461
    %v8463 = vpop.f32.mrb[0].mxu0
    %v8464 = vadd.f32 %v8271, %v8463
    %8465 = vmatprep.mubr.bf16.mxu0 %v7222
    %8466 = vmatmul.mubr.bf16.gmra.mrb[0].mxu0 %v7221
    %v8467 = vpop.f32.mrb[0].mxu0
    %v8468 = vadd.f32 %v8275, %v8467
    %v8469 = vpop.f32.mrb[0].mxu0
    %v8470 = vadd.f32 %v8277, %v8469
    %v8471 = vpop.f32.mrb[0].mxu0
    %v8472 = vadd.f32 %v8279, %v8471
    %v8473 = vpop.f32.mrb[0].mxu0
    %v8474 = vadd.f32 %v8281, %v8473
    %8475 = vmatprep.mubr.bf16.mxu0 %v7230
    %8476 = vmatmul.mubr.bf16.gmra.mrb[0].mxu0 %v7229
    %v8477 = vpop.f32.mrb[0].mxu0
    %v8478 = vadd.f32 %v8285, %v8477
    %v8479 = vpop.f32.mrb[0].mxu0
    %v8480 = vadd.f32 %v8287, %v8479
    %v8481 = vpop.f32.mrb[0].mxu0
    %v8482 = vadd.f32 %v8289, %v8481
    %v8483 = vpop.f32.mrb[0].mxu0
    %v8484 = vadd.f32 %v8291, %v8483
    %8485 = vmatprep.mubr.bf16.mxu0 %v7238
    %8486 = vmatmul.mubr.bf16.gmra.mrb[0].mxu0 %v7237
    %v8487 = vpop.f32.mrb[0].mxu0
    %v8488 = vadd.f32 %v8295, %v8487
    %v8489 = vpop.f32.mrb[0].mxu0
    %v8490 = vadd.f32 %v8297, %v8489
    %v8491 = vpop.f32.mrb[0].mxu0
    %v8492 = vadd.f32 %v8299, %v8491
    %v8493 = vpop.f32.mrb[0].mxu0
    %v8494 = vadd.f32 %v8301, %v8493
    %8495 = vdwg.mxu0
    %8496 = vmatprep.subr.bf16.mxu0 %v7242
    %8497 = vmatpush1.bf16.msra.mxu0 %v7241
    %8498 = vmatprep.subr.bf16.mxu0 %v7249
    %8499 = vmatpush1.bf16.msra.mxu0 %v7248
    %8500 = vmatprep.subr.bf16.mxu0 %v7256
    %8501 = vmatpush1.bf16.msra.mxu0 %v7255
    %8502 = vmatprep.subr.bf16.mxu0 %v7263
    %8503 = vmatpush1.bf16.msra.mxu0 %v7262
    %8504 = vmatprep.subr.bf16.mxu0 %v7270
    %8505 = vmatpush1.bf16.msra.mxu0 %v7269
    %8506 = vmatprep.subr.bf16.mxu0 %v7277
    %8507 = vmatpush1.bf16.msra.mxu0 %v7276
    %8508 = vmatprep.subr.bf16.mxu0 %v7284
    %8509 = vmatpush1.bf16.msra.mxu0 %v7283
    %8510 = vmatprep.subr.bf16.mxu0 %v7291
    %8511 = vmatpush1.bf16.msra.mxu0 %v7290
    %8512 = vmatprep.subr.bf16.mxu0 %v7298
    %8513 = vmatpush1.bf16.msra.mxu0 %v7297
    %8514 = vmatprep.subr.bf16.mxu0 %v7305
    %8515 = vmatpush1.bf16.msra.mxu0 %v7304
    %8516 = vmatprep.subr.bf16.mxu0 %v7312
    %8517 = vmatpush1.bf16.msra.mxu0 %v7311
    %8518 = vmatprep.subr.bf16.mxu0 %v7319
    %8519 = vmatpush1.bf16.msra.mxu0 %v7318
    %8520 = vmatprep.subr.bf16.mxu0 %v7326
    %8521 = vmatpush1.bf16.msra.mxu0 %v7325
    %8522 = vmatprep.subr.bf16.mxu0 %v7333
    %8523 = vmatpush1.bf16.msra.mxu0 %v7332
    %8524 = vmatprep.subr.bf16.mxu0 %v7340
    %8525 = vmatpush1.bf16.msra.mxu0 %v7339
    %8526 = vmatprep.subr.bf16.mxu0 %v7347
    %8527 = vmatpush1.bf16.msra.mxu0 %v7346
    %8528 = vmatprep.mubr.bf16.mxu0 %v7112
    %8529 = vmatmul.mubr.bf16.gmra.mrb[0].mxu0 %v7111
    %v8530 = vpop.f32.mrb[0].mxu0
    %v8531 = vadd.f32 %v7700, %v8530
    %v8532 = vpop.f32.mrb[0].mxu0
    %v8533 = vadd.f32 %v7704, %v8532
    %v8534 = vpop.f32.mrb[0].mxu0
    %v8535 = vadd.f32 %v7700, %v8534
    %v8536 = vpop.f32.mrb[0].mxu0
    %v8537 = vadd.f32 %v7704, %v8536
    %8538 = vmatprep.mubr.bf16.mxu0 %v7120
    %8539 = vmatmul.mubr.bf16.gmra.mrb[0].mxu0 %v7119
    %v8540 = vpop.f32.mrb[0].mxu0
    %v8541 = vadd.f32 %v7700, %v8540
    %v8542 = vpop.f32.mrb[0].mxu0
    %v8543 = vadd.f32 %v7704, %v8542
    %v8544 = vpop.f32.mrb[0].mxu0
    %v8545 = vadd.f32 %v7700, %v8544
    %v8546 = vpop.f32.mrb[0].mxu0
    %v8547 = vadd.f32 %v7704, %v8546
    %8548 = vmatprep.mubr.bf16.mxu0 %v7128
    %8549 = vmatmul.mubr.bf16.gmra.mrb[0].mxu0 %v7127
    %v8550 = vpop.f32.mrb[0].mxu0
    %v8551 = vadd.f32 %v7700, %v8550
    %v8552 = vpop.f32.mrb[0].mxu0
    %v8553 = vadd.f32 %v7704, %v8552
    %v8554 = vpop.f32.mrb[0].mxu0
    %v8555 = vadd.f32 %v7700, %v8554
    %v8556 = vpop.f32.mrb[0].mxu0
    %v8557 = vadd.f32 %v7704, %v8556
    %8558 = vmatprep.mubr.bf16.mxu0 %v7136
    %8559 = vmatmul.mubr.bf16.gmra.mrb[0].mxu0 %v7135
    %v8560 = vpop.f32.mrb[0].mxu0
    %v8561 = vadd.f32 %v7700, %v8560
    %v8562 = vpop.f32.mrb[0].mxu0
    %v8563 = vadd.f32 %v7704, %v8562
    %v8564 = vpop.f32.mrb[0].mxu0
    %v8565 = vadd.f32 %v7700, %v8564
    %v8566 = vpop.f32.mrb[0].mxu0
    %v8567 = vadd.f32 %v7704, %v8566
    %8568 = vmatprep.mubr.bf16.mxu0 %v7144
    %8569 = vmatmul.mubr.bf16.gmra.mrb[0].mxu0 %v7143
    %v8570 = vpop.f32.mrb[0].mxu0
    %v8571 = vadd.f32 %v7700, %v8570
    %v8572 = vpop.f32.mrb[0].mxu0
    %v8573 = vadd.f32 %v7704, %v8572
    %v8574 = vpop.f32.mrb[0].mxu0
    %v8575 = vadd.f32 %v7700, %v8574
    %v8576 = vpop.f32.mrb[0].mxu0
    %v8577 = vadd.f32 %v7704, %v8576
    %8578 = vmatprep.mubr.bf16.mxu0 %v7152
    %8579 = vmatmul.mubr.bf16.gmra.mrb[0].mxu0 %v7151
    %v8580 = vpop.f32.mrb[0].mxu0
    %v8581 = vadd.f32 %v7700, %v8580
    %v8582 = vpop.f32.mrb[0].mxu0
    %v8583 = vadd.f32 %v7704, %v8582
    %v8584 = vpop.f32.mrb[0].mxu0
    %v8585 = vadd.f32 %v7700, %v8584
    %v8586 = vpop.f32.mrb[0].mxu0
    %v8587 = vadd.f32 %v7704, %v8586
    %8588 = vmatprep.mubr.bf16.mxu0 %v7160
    %8589 = vmatmul.mubr.bf16.gmra.mrb[0].mxu0 %v7159
    %v8590 = vpop.f32.mrb[0].mxu0
    %v8591 = vadd.f32 %v7700, %v8590
    %v8592 = vpop.f32.mrb[0].mxu0
    %v8593 = vadd.f32 %v7704, %v8592
    %v8594 = vpop.f32.mrb[0].mxu0
    %v8595 = vadd.f32 %v7700, %v8594
    %v8596 = vpop.f32.mrb[0].mxu0
    %v8597 = vadd.f32 %v7704, %v8596
    %8598 = vmatprep.mubr.bf16.mxu0 %v7168
    %8599 = vmatmul.mubr.bf16.gmra.mrb[0].mxu0 %v7167
    %v8600 = vpop.f32.mrb[0].mxu0
    %v8601 = vadd.f32 %v7700, %v8600
    %v8602 = vpop.f32.mrb[0].mxu0
    %v8603 = vadd.f32 %v7704, %v8602
    %v8604 = vpop.f32.mrb[0].mxu0
    %v8605 = vadd.f32 %v7700, %v8604
    %v8606 = vpop.f32.mrb[0].mxu0
    %v8607 = vadd.f32 %v7704, %v8606
    %8608 = vmatprep.mubr.bf16.mxu0 %v7176
    %8609 = vmatmul.mubr.bf16.gmra.mrb[0].mxu0 %v7175
    %v8610 = vpop.f32.mrb[0].mxu0
    %v8611 = vadd.f32 %v7700, %v8610
    %v8612 = vpop.f32.mrb[0].mxu0
    %v8613 = vadd.f32 %v7704, %v8612
    %v8614 = vpop.f32.mrb[0].mxu0
    %v8615 = vadd.f32 %v7700, %v8614
    %v8616 = vpop.f32.mrb[0].mxu0
    %v8617 = vadd.f32 %v7704, %v8616
    %8618 = vmatprep.mubr.bf16.mxu0 %v7184
    %8619 = vmatmul.mubr.bf16.gmra.mrb[0].mxu0 %v7183
    %v8620 = vpop.f32.mrb[0].mxu0
    %v8621 = vadd.f32 %v7700, %v8620
    %v8622 = vpop.f32.mrb[0].mxu0
    %v8623 = vadd.f32 %v7704, %v8622
    %v8624 = vpop.f32.mrb[0].mxu0
    %v8625 = vadd.f32 %v7700, %v8624
    %v8626 = vpop.f32.mrb[0].mxu0
    %v8627 = vadd.f32 %v7704, %v8626
    %8628 = vmatprep.mubr.bf16.mxu0 %v7192
    %8629 = vmatmul.mubr.bf16.gmra.mrb[0].mxu0 %v7191
    %v8630 = vpop.f32.mrb[0].mxu0
    %v8631 = vadd.f32 %v7700, %v8630
    %v8632 = vpop.f32.mrb[0].mxu0
    %v8633 = vadd.f32 %v7704, %v8632
    %v8634 = vpop.f32.mrb[0].mxu0
    %v8635 = vadd.f32 %v7700, %v8634
    %v8636 = vpop.f32.mrb[0].mxu0
    %v8637 = vadd.f32 %v7704, %v8636
    %8638 = vmatprep.mubr.bf16.mxu0 %v7200
    %8639 = vmatmul.mubr.bf16.gmra.mrb[0].mxu0 %v7199
    %v8640 = vpop.f32.mrb[0].mxu0
    %v8641 = vadd.f32 %v7700, %v8640
    %v8642 = vpop.f32.mrb[0].mxu0
    %v8643 = vadd.f32 %v7704, %v8642
    %v8644 = vpop.f32.mrb[0].mxu0
    %v8645 = vadd.f32 %v7700, %v8644
    %v8646 = vpop.f32.mrb[0].mxu0
    %v8647 = vadd.f32 %v7704, %v8646
    %8648 = vmatprep.mubr.bf16.mxu0 %v7208
    %8649 = vmatmul.mubr.bf16.gmra.mrb[0].mxu0 %v7207
    %v8650 = vpop.f32.mrb[0].mxu0
    %v8651 = vadd.f32 %v7700, %v8650
    %v8652 = vpop.f32.mrb[0].mxu0
    %v8653 = vadd.f32 %v7704, %v8652
    %v8654 = vpop.f32.mrb[0].mxu0
    %v8655 = vadd.f32 %v7700, %v8654
    %v8656 = vpop.f32.mrb[0].mxu0
    %v8657 = vadd.f32 %v7704, %v8656
    %8658 = vmatprep.mubr.bf16.mxu0 %v7216
    %8659 = vmatmul.mubr.bf16.gmra.mrb[0].mxu0 %v7215
    %v8660 = vpop.f32.mrb[0].mxu0
    %v8661 = vadd.f32 %v7700, %v8660
    %v8662 = vpop.f32.mrb[0].mxu0
    %v8663 = vadd.f32 %v7704, %v8662
    %v8664 = vpop.f32.mrb[0].mxu0
    %v8665 = vadd.f32 %v7700, %v8664
    %v8666 = vpop.f32.mrb[0].mxu0
    %v8667 = vadd.f32 %v7704, %v8666
    %8668 = vmatprep.mubr.bf16.mxu0 %v7224
    %8669 = vmatmul.mubr.bf16.gmra.mrb[0].mxu0 %v7223
    %v8670 = vpop.f32.mrb[0].mxu0
    %v8671 = vadd.f32 %v7700, %v8670
    %v8672 = vpop.f32.mrb[0].mxu0
    %v8673 = vadd.f32 %v7704, %v8672
    %v8674 = vpop.f32.mrb[0].mxu0
    %v8675 = vadd.f32 %v7700, %v8674
    %v8676 = vpop.f32.mrb[0].mxu0
    %v8677 = vadd.f32 %v7704, %v8676
    %8678 = vmatprep.mubr.bf16.mxu0 %v7232
    %8679 = vmatmul.mubr.bf16.gmra.mrb[0].mxu0 %v7231
    %v8680 = vpop.f32.mrb[0].mxu0
    %v8681 = vadd.f32 %v7700, %v8680
    %v8682 = vpop.f32.mrb[0].mxu0
    %v8683 = vadd.f32 %v7704, %v8682
    %v8684 = vpop.f32.mrb[0].mxu0
    %v8685 = vadd.f32 %v7700, %v8684
    %v8686 = vpop.f32.mrb[0].mxu0
    %v8687 = vadd.f32 %v7704, %v8686
    %8688 = vdwg.mxu0
    %8689 = vmatprep.subr.bf16.mxu0 %v7354
    %8690 = vmatpush1.bf16.msra.mxu0 %v7353
    %8691 = vmatprep.subr.bf16.mxu0 %v7361
    %8692 = vmatpush1.bf16.msra.mxu0 %v7360
    %8693 = vmatprep.subr.bf16.mxu0 %v7368
    %8694 = vmatpush1.bf16.msra.mxu0 %v7367
    %8695 = vmatprep.subr.bf16.mxu0 %v7375
    %8696 = vmatpush1.bf16.msra.mxu0 %v7374
    %8697 = vmatprep.subr.bf16.mxu0 %v7382
    %8698 = vmatpush1.bf16.msra.mxu0 %v7381
    %8699 = vmatprep.subr.bf16.mxu0 %v7389
    %8700 = vmatpush1.bf16.msra.mxu0 %v7388
    %8701 = vmatprep.subr.bf16.mxu0 %v7396
    %8702 = vmatpush1.bf16.msra.mxu0 %v7395
    %8703 = vmatprep.subr.bf16.mxu0 %v7403
    %8704 = vmatpush1.bf16.msra.mxu0 %v7402
    %8705 = vmatprep.subr.bf16.mxu0 %v7410
    %8706 = vmatpush1.bf16.msra.mxu0 %v7409
    %8707 = vmatprep.subr.bf16.mxu0 %v7417
    %8708 = vmatpush1.bf16.msra.mxu0 %v7416
    %8709 = vmatprep.subr.bf16.mxu0 %v7424
    %8710 = vmatpush1.bf16.msra.mxu0 %v7423
    %8711 = vmatprep.subr.bf16.mxu0 %v7431
    %8712 = vmatpush1.bf16.msra.mxu0 %v7430
    %8713 = vmatprep.subr.bf16.mxu0 %v7438
    %8714 = vmatpush1.bf16.msra.mxu0 %v7437
    %8715 = vmatprep.subr.bf16.mxu0 %v7445
    %8716 = vmatpush1.bf16.msra.mxu0 %v7444
    %8717 = vmatprep.subr.bf16.mxu0 %v7452
    %8718 = vmatpush1.bf16.msra.mxu0 %v7451
    %8719 = vmatprep.subr.bf16.mxu0 %v7459
    %8720 = vmatpush1.bf16.msra.mxu0 %v7458
    %8721 = vmatprep.mubr.bf16.mxu0 %v7114
    %8722 = vmatmul.mubr.bf16.gmra.mrb[0].mxu0 %v7113
    %v8723 = vpop.f32.mrb[0].mxu0
    %v8724 = vadd.f32 %v8531, %v8723
    %v8725 = vpop.f32.mrb[0].mxu0
    %v8726 = vadd.f32 %v8533, %v8725
    %v8727 = vpop.f32.mrb[0].mxu0
    %v8728 = vadd.f32 %v8535, %v8727
    %v8729 = vpop.f32.mrb[0].mxu0
    %v8730 = vadd.f32 %v8537, %v8729
    %8731 = vmatprep.mubr.bf16.mxu0 %v7122
    %8732 = vmatmul.mubr.bf16.gmra.mrb[0].mxu0 %v7121
    %v8733 = vpop.f32.mrb[0].mxu0
    %v8734 = vadd.f32 %v8541, %v8733
    %v8735 = vpop.f32.mrb[0].mxu0
    %v8736 = vadd.f32 %v8543, %v8735
    %v8737 = vpop.f32.mrb[0].mxu0
    %v8738 = vadd.f32 %v8545, %v8737
    %v8739 = vpop.f32.mrb[0].mxu0
    %v8740 = vadd.f32 %v8547, %v8739
    %8741 = vmatprep.mubr.bf16.mxu0 %v7130
    %8742 = vmatmul.mubr.bf16.gmra.mrb[0].mxu0 %v7129
    %v8743 = vpop.f32.mrb[0].mxu0
    %v8744 = vadd.f32 %v8551, %v8743
    %v8745 = vpop.f32.mrb[0].mxu0
    %v8746 = vadd.f32 %v8553, %v8745
    %v8747 = vpop.f32.mrb[0].mxu0
    %v8748 = vadd.f32 %v8555, %v8747
    %v8749 = vpop.f32.mrb[0].mxu0
    %v8750 = vadd.f32 %v8557, %v8749
    %8751 = vmatprep.mubr.bf16.mxu0 %v7138
    %8752 = vmatmul.mubr.bf16.gmra.mrb[0].mxu0 %v7137
    %v8753 = vpop.f32.mrb[0].mxu0
    %v8754 = vadd.f32 %v8561, %v8753
    %v8755 = vpop.f32.mrb[0].mxu0
    %v8756 = vadd.f32 %v8563, %v8755
    %v8757 = vpop.f32.mrb[0].mxu0
    %v8758 = vadd.f32 %v8565, %v8757
    %v8759 = vpop.f32.mrb[0].mxu0
    %v8760 = vadd.f32 %v8567, %v8759
    %8761 = vmatprep.mubr.bf16.mxu0 %v7146
    %8762 = vmatmul.mubr.bf16.gmra.mrb[0].mxu0 %v7145
    %v8763 = vpop.f32.mrb[0].mxu0
    %v8764 = vadd.f32 %v8571, %v8763
    %v8765 = vpop.f32.mrb[0].mxu0
    %v8766 = vadd.f32 %v8573, %v8765
    %v8767 = vpop.f32.mrb[0].mxu0
    %v8768 = vadd.f32 %v8575, %v8767
    %v8769 = vpop.f32.mrb[0].mxu0
    %v8770 = vadd.f32 %v8577, %v8769
    %8771 = vmatprep.mubr.bf16.mxu0 %v7154
    %8772 = vmatmul.mubr.bf16.gmra.mrb[0].mxu0 %v7153
    %v8773 = vpop.f32.mrb[0].mxu0
    %v8774 = vadd.f32 %v8581, %v8773
    %v8775 = vpop.f32.mrb[0].mxu0
    %v8776 = vadd.f32 %v8583, %v8775
    %v8777 = vpop.f32.mrb[0].mxu0
    %v8778 = vadd.f32 %v8585, %v8777
    %v8779 = vpop.f32.mrb[0].mxu0
    %v8780 = vadd.f32 %v8587, %v8779
    %8781 = vmatprep.mubr.bf16.mxu0 %v7162
    %8782 = vmatmul.mubr.bf16.gmra.mrb[0].mxu0 %v7161
    %v8783 = vpop.f32.mrb[0].mxu0
    %v8784 = vadd.f32 %v8591, %v8783
    %v8785 = vpop.f32.mrb[0].mxu0
    %v8786 = vadd.f32 %v8593, %v8785
    %v8787 = vpop.f32.mrb[0].mxu0
    %v8788 = vadd.f32 %v8595, %v8787
    %v8789 = vpop.f32.mrb[0].mxu0
    %v8790 = vadd.f32 %v8597, %v8789
    %8791 = vmatprep.mubr.bf16.mxu0 %v7170
    %8792 = vmatmul.mubr.bf16.gmra.mrb[0].mxu0 %v7169
    %v8793 = vpop.f32.mrb[0].mxu0
    %v8794 = vadd.f32 %v8601, %v8793
    %v8795 = vpop.f32.mrb[0].mxu0
    %v8796 = vadd.f32 %v8603, %v8795
    %v8797 = vpop.f32.mrb[0].mxu0
    %v8798 = vadd.f32 %v8605, %v8797
    %v8799 = vpop.f32.mrb[0].mxu0
    %v8800 = vadd.f32 %v8607, %v8799
    %8801 = vmatprep.mubr.bf16.mxu0 %v7178
    %8802 = vmatmul.mubr.bf16.gmra.mrb[0].mxu0 %v7177
    %v8803 = vpop.f32.mrb[0].mxu0
    %v8804 = vadd.f32 %v8611, %v8803
    %v8805 = vpop.f32.mrb[0].mxu0
    %v8806 = vadd.f32 %v8613, %v8805
    %v8807 = vpop.f32.mrb[0].mxu0
    %v8808 = vadd.f32 %v8615, %v8807
    %v8809 = vpop.f32.mrb[0].mxu0
    %v8810 = vadd.f32 %v8617, %v8809
    %8811 = vmatprep.mubr.bf16.mxu0 %v7186
    %8812 = vmatmul.mubr.bf16.gmra.mrb[0].mxu0 %v7185
    %v8813 = vpop.f32.mrb[0].mxu0
    %v8814 = vadd.f32 %v8621, %v8813
    %v8815 = vpop.f32.mrb[0].mxu0
    %v8816 = vadd.f32 %v8623, %v8815
    %v8817 = vpop.f32.mrb[0].mxu0
    %v8818 = vadd.f32 %v8625, %v8817
    %v8819 = vpop.f32.mrb[0].mxu0
    %v8820 = vadd.f32 %v8627, %v8819
    %8821 = vmatprep.mubr.bf16.mxu0 %v7194
    %8822 = vmatmul.mubr.bf16.gmra.mrb[0].mxu0 %v7193
    %v8823 = vpop.f32.mrb[0].mxu0
    %v8824 = vadd.f32 %v8631, %v8823
    %v8825 = vpop.f32.mrb[0].mxu0
    %v8826 = vadd.f32 %v8633, %v8825
    %v8827 = vpop.f32.mrb[0].mxu0
    %v8828 = vadd.f32 %v8635, %v8827
    %v8829 = vpop.f32.mrb[0].mxu0
    %v8830 = vadd.f32 %v8637, %v8829
    %8831 = vmatprep.mubr.bf16.mxu0 %v7202
    %8832 = vmatmul.mubr.bf16.gmra.mrb[0].mxu0 %v7201
    %v8833 = vpop.f32.mrb[0].mxu0
    %v8834 = vadd.f32 %v8641, %v8833
    %v8835 = vpop.f32.mrb[0].mxu0
    %v8836 = vadd.f32 %v8643, %v8835
    %v8837 = vpop.f32.mrb[0].mxu0
    %v8838 = vadd.f32 %v8645, %v8837
    %v8839 = vpop.f32.mrb[0].mxu0
    %v8840 = vadd.f32 %v8647, %v8839
    %8841 = vmatprep.mubr.bf16.mxu0 %v7210
    %8842 = vmatmul.mubr.bf16.gmra.mrb[0].mxu0 %v7209
    %v8843 = vpop.f32.mrb[0].mxu0
    %v8844 = vadd.f32 %v8651, %v8843
    %v8845 = vpop.f32.mrb[0].mxu0
    %v8846 = vadd.f32 %v8653, %v8845
    %v8847 = vpop.f32.mrb[0].mxu0
    %v8848 = vadd.f32 %v8655, %v8847
    %v8849 = vpop.f32.mrb[0].mxu0
    %v8850 = vadd.f32 %v8657, %v8849
    %8851 = vmatprep.mubr.bf16.mxu0 %v7218
    %8852 = vmatmul.mubr.bf16.gmra.mrb[0].mxu0 %v7217
    %v8853 = vpop.f32.mrb[0].mxu0
    %v8854 = vadd.f32 %v8661, %v8853
    %v8855 = vpop.f32.mrb[0].mxu0
    %v8856 = vadd.f32 %v8663, %v8855
    %v8857 = vpop.f32.mrb[0].mxu0
    %v8858 = vadd.f32 %v8665, %v8857
    %v8859 = vpop.f32.mrb[0].mxu0
    %v8860 = vadd.f32 %v8667, %v8859
    %8861 = vmatprep.mubr.bf16.mxu0 %v7226
    %8862 = vmatmul.mubr.bf16.gmra.mrb[0].mxu0 %v7225
    %v8863 = vpop.f32.mrb[0].mxu0
    %v8864 = vadd.f32 %v8671, %v8863
    %v8865 = vpop.f32.mrb[0].mxu0
    %v8866 = vadd.f32 %v8673, %v8865
    %v8867 = vpop.f32.mrb[0].mxu0
    %v8868 = vadd.f32 %v8675, %v8867
    %v8869 = vpop.f32.mrb[0].mxu0
    %v8870 = vadd.f32 %v8677, %v8869
    %8871 = vmatprep.mubr.bf16.mxu0 %v7234
    %8872 = vmatmul.mubr.bf16.gmra.mrb[0].mxu0 %v7233
    %v8873 = vpop.f32.mrb[0].mxu0
    %v8874 = vadd.f32 %v8681, %v8873
    %v8875 = vpop.f32.mrb[0].mxu0
    %v8876 = vadd.f32 %v8683, %v8875
    %v8877 = vpop.f32.mrb[0].mxu0
    %v8878 = vadd.f32 %v8685, %v8877
    %v8879 = vpop.f32.mrb[0].mxu0
    %v8880 = vadd.f32 %v8687, %v8879
    %8881 = vdwg.mxu0
    %8882 = vmatprep.subr.bf16.mxu0 %v7466
    %8883 = vmatpush1.bf16.msra.mxu0 %v7465
    %8884 = vmatprep.subr.bf16.mxu0 %v7473
    %8885 = vmatpush1.bf16.msra.mxu0 %v7472
    %8886 = vmatprep.subr.bf16.mxu0 %v7480
    %8887 = vmatpush1.bf16.msra.mxu0 %v7479
    %8888 = vmatprep.subr.bf16.mxu0 %v7487
    %8889 = vmatpush1.bf16.msra.mxu0 %v7486
    %8890 = vmatprep.subr.bf16.mxu0 %v7494
    %8891 = vmatpush1.bf16.msra.mxu0 %v7493
    %8892 = vmatprep.subr.bf16.mxu0 %v7501
    %8893 = vmatpush1.bf16.msra.mxu0 %v7500
    %8894 = vmatprep.subr.bf16.mxu0 %v7508
    %8895 = vmatpush1.bf16.msra.mxu0 %v7507
    %8896 = vmatprep.subr.bf16.mxu0 %v7515
    %8897 = vmatpush1.bf16.msra.mxu0 %v7514
    %8898 = vmatprep.subr.bf16.mxu0 %v7522
    %8899 = vmatpush1.bf16.msra.mxu0 %v7521
    %8900 = vmatprep.subr.bf16.mxu0 %v7529
    %8901 = vmatpush1.bf16.msra.mxu0 %v7528
    %8902 = vmatprep.subr.bf16.mxu0 %v7536
    %8903 = vmatpush1.bf16.msra.mxu0 %v7535
    %8904 = vmatprep.subr.bf16.mxu0 %v7543
    %8905 = vmatpush1.bf16.msra.mxu0 %v7542
    %8906 = vmatprep.subr.bf16.mxu0 %v7550
    %8907 = vmatpush1.bf16.msra.mxu0 %v7549
    %8908 = vmatprep.subr.bf16.mxu0 %v7557
    %8909 = vmatpush1.bf16.msra.mxu0 %v7556
    %8910 = vmatprep.subr.bf16.mxu0 %v7564
    %8911 = vmatpush1.bf16.msra.mxu0 %v7563
    %8912 = vmatprep.subr.bf16.mxu0 %v7571
    %8913 = vmatpush1.bf16.msra.mxu0 %v7570
    %8914 = vmatprep.mubr.bf16.mxu0 %v7116
    %8915 = vmatmul.mubr.bf16.gmra.mrb[0].mxu0 %v7115
    %v8916 = vpop.f32.mrb[0].mxu0
    %v8917 = vadd.f32 %v8724, %v8916
    %v8918 = vpop.f32.mrb[0].mxu0
    %v8919 = vadd.f32 %v8726, %v8918
    %v8920 = vpop.f32.mrb[0].mxu0
    %v8921 = vadd.f32 %v8728, %v8920
    %v8922 = vpop.f32.mrb[0].mxu0
    %v8923 = vadd.f32 %v8730, %v8922
    %8924 = vmatprep.mubr.bf16.mxu0 %v7124
    %8925 = vmatmul.mubr.bf16.gmra.mrb[0].mxu0 %v7123
    %v8926 = vpop.f32.mrb[0].mxu0
    %v8927 = vadd.f32 %v8734, %v8926
    %v8928 = vpop.f32.mrb[0].mxu0
    %v8929 = vadd.f32 %v8736, %v8928
    %v8930 = vpop.f32.mrb[0].mxu0
    %v8931 = vadd.f32 %v8738, %v8930
    %v8932 = vpop.f32.mrb[0].mxu0
    %v8933 = vadd.f32 %v8740, %v8932
    %8934 = vmatprep.mubr.bf16.mxu0 %v7132
    %8935 = vmatmul.mubr.bf16.gmra.mrb[0].mxu0 %v7131
    %v8936 = vpop.f32.mrb[0].mxu0
    %v8937 = vadd.f32 %v8744, %v8936
    %v8938 = vpop.f32.mrb[0].mxu0
    %v8939 = vadd.f32 %v8746, %v8938
    %v8940 = vpop.f32.mrb[0].mxu0
    %v8941 = vadd.f32 %v8748, %v8940
    %v8942 = vpop.f32.mrb[0].mxu0
    %v8943 = vadd.f32 %v8750, %v8942
    %8944 = vmatprep.mubr.bf16.mxu0 %v7140
    %8945 = vmatmul.mubr.bf16.gmra.mrb[0].mxu0 %v7139
    %v8946 = vpop.f32.mrb[0].mxu0
    %v8947 = vadd.f32 %v8754, %v8946
    %v8948 = vpop.f32.mrb[0].mxu0
    %v8949 = vadd.f32 %v8756, %v8948
    %v8950 = vpop.f32.mrb[0].mxu0
    %v8951 = vadd.f32 %v8758, %v8950
    %v8952 = vpop.f32.mrb[0].mxu0
    %v8953 = vadd.f32 %v8760, %v8952
    %8954 = vmatprep.mubr.bf16.mxu0 %v7148
    %8955 = vmatmul.mubr.bf16.gmra.mrb[0].mxu0 %v7147
    %v8956 = vpop.f32.mrb[0].mxu0
    %v8957 = vadd.f32 %v8764, %v8956
    %v8958 = vpop.f32.mrb[0].mxu0
    %v8959 = vadd.f32 %v8766, %v8958
    %v8960 = vpop.f32.mrb[0].mxu0
    %v8961 = vadd.f32 %v8768, %v8960
    %v8962 = vpop.f32.mrb[0].mxu0
    %v8963 = vadd.f32 %v8770, %v8962
    %8964 = vmatprep.mubr.bf16.mxu0 %v7156
    %8965 = vmatmul.mubr.bf16.gmra.mrb[0].mxu0 %v7155
    %v8966 = vpop.f32.mrb[0].mxu0
    %v8967 = vadd.f32 %v8774, %v8966
    %v8968 = vpop.f32.mrb[0].mxu0
    %v8969 = vadd.f32 %v8776, %v8968
    %v8970 = vpop.f32.mrb[0].mxu0
    %v8971 = vadd.f32 %v8778, %v8970
    %v8972 = vpop.f32.mrb[0].mxu0
    %v8973 = vadd.f32 %v8780, %v8972
    %8974 = vmatprep.mubr.bf16.mxu0 %v7164
    %8975 = vmatmul.mubr.bf16.gmra.mrb[0].mxu0 %v7163
    %v8976 = vpop.f32.mrb[0].mxu0
    %v8977 = vadd.f32 %v8784, %v8976
    %v8978 = vpop.f32.mrb[0].mxu0
    %v8979 = vadd.f32 %v8786, %v8978
    %v8980 = vpop.f32.mrb[0].mxu0
    %v8981 = vadd.f32 %v8788, %v8980
    %v8982 = vpop.f32.mrb[0].mxu0
    %v8983 = vadd.f32 %v8790, %v8982
    %8984 = vmatprep.mubr.bf16.mxu0 %v7172
    %8985 = vmatmul.mubr.bf16.gmra.mrb[0].mxu0 %v7171
    %v8986 = vpop.f32.mrb[0].mxu0
    %v8987 = vadd.f32 %v8794, %v8986
    %v8988 = vpop.f32.mrb[0].mxu0
    %v8989 = vadd.f32 %v8796, %v8988
    %v8990 = vpop.f32.mrb[0].mxu0
    %v8991 = vadd.f32 %v8798, %v8990
    %v8992 = vpop.f32.mrb[0].mxu0
    %v8993 = vadd.f32 %v8800, %v8992
    %8994 = vmatprep.mubr.bf16.mxu0 %v7180
    %8995 = vmatmul.mubr.bf16.gmra.mrb[0].mxu0 %v7179
    %v8996 = vpop.f32.mrb[0].mxu0
    %v8997 = vadd.f32 %v8804, %v8996
    %v8998 = vpop.f32.mrb[0].mxu0
    %v8999 = vadd.f32 %v8806, %v8998
    %v9000 = vpop.f32.mrb[0].mxu0
    %v9001 = vadd.f32 %v8808, %v9000
    %v9002 = vpop.f32.mrb[0].mxu0
    %v9003 = vadd.f32 %v8810, %v9002
    %9004 = vmatprep.mubr.bf16.mxu0 %v7188
    %9005 = vmatmul.mubr.bf16.gmra.mrb[0].mxu0 %v7187
    %v9006 = vpop.f32.mrb[0].mxu0
    %v9007 = vadd.f32 %v8814, %v9006
    %v9008 = vpop.f32.mrb[0].mxu0
    %v9009 = vadd.f32 %v8816, %v9008
    %v9010 = vpop.f32.mrb[0].mxu0
    %v9011 = vadd.f32 %v8818, %v9010
    %v9012 = vpop.f32.mrb[0].mxu0
    %v9013 = vadd.f32 %v8820, %v9012
    %9014 = vmatprep.mubr.bf16.mxu0 %v7196
    %9015 = vmatmul.mubr.bf16.gmra.mrb[0].mxu0 %v7195
    %v9016 = vpop.f32.mrb[0].mxu0
    %v9017 = vadd.f32 %v8824, %v9016
    %v9018 = vpop.f32.mrb[0].mxu0
    %v9019 = vadd.f32 %v8826, %v9018
    %v9020 = vpop.f32.mrb[0].mxu0
    %v9021 = vadd.f32 %v8828, %v9020
    %v9022 = vpop.f32.mrb[0].mxu0
    %v9023 = vadd.f32 %v8830, %v9022
    %9024 = vmatprep.mubr.bf16.mxu0 %v7204
    %9025 = vmatmul.mubr.bf16.gmra.mrb[0].mxu0 %v7203
    %v9026 = vpop.f32.mrb[0].mxu0
    %v9027 = vadd.f32 %v8834, %v9026
    %v9028 = vpop.f32.mrb[0].mxu0
    %v9029 = vadd.f32 %v8836, %v9028
    %v9030 = vpop.f32.mrb[0].mxu0
    %v9031 = vadd.f32 %v8838, %v9030
    %v9032 = vpop.f32.mrb[0].mxu0
    %v9033 = vadd.f32 %v8840, %v9032
    %9034 = vmatprep.mubr.bf16.mxu0 %v7212
    %9035 = vmatmul.mubr.bf16.gmra.mrb[0].mxu0 %v7211
    %v9036 = vpop.f32.mrb[0].mxu0
    %v9037 = vadd.f32 %v8844, %v9036
    %v9038 = vpop.f32.mrb[0].mxu0
    %v9039 = vadd.f32 %v8846, %v9038
    %v9040 = vpop.f32.mrb[0].mxu0
    %v9041 = vadd.f32 %v8848, %v9040
    %v9042 = vpop.f32.mrb[0].mxu0
    %v9043 = vadd.f32 %v8850, %v9042
    %9044 = vmatprep.mubr.bf16.mxu0 %v7220
    %9045 = vmatmul.mubr.bf16.gmra.mrb[0].mxu0 %v7219
    %v9046 = vpop.f32.mrb[0].mxu0
    %v9047 = vadd.f32 %v8854, %v9046
    %v9048 = vpop.f32.mrb[0].mxu0
    %v9049 = vadd.f32 %v8856, %v9048
    %v9050 = vpop.f32.mrb[0].mxu0
    %v9051 = vadd.f32 %v8858, %v9050
    %v9052 = vpop.f32.mrb[0].mxu0
    %v9053 = vadd.f32 %v8860, %v9052
    %9054 = vmatprep.mubr.bf16.mxu0 %v7228
    %9055 = vmatmul.mubr.bf16.gmra.mrb[0].mxu0 %v7227
    %v9056 = vpop.f32.mrb[0].mxu0
    %v9057 = vadd.f32 %v8864, %v9056
    %v9058 = vpop.f32.mrb[0].mxu0
    %v9059 = vadd.f32 %v8866, %v9058
    %v9060 = vpop.f32.mrb[0].mxu0
    %v9061 = vadd.f32 %v8868, %v9060
    %v9062 = vpop.f32.mrb[0].mxu0
    %v9063 = vadd.f32 %v8870, %v9062
    %9064 = vmatprep.mubr.bf16.mxu0 %v7236
    %9065 = vmatmul.mubr.bf16.gmra.mrb[0].mxu0 %v7235
    %v9066 = vpop.f32.mrb[0].mxu0
    %v9067 = vadd.f32 %v8874, %v9066
    %v9068 = vpop.f32.mrb[0].mxu0
    %v9069 = vadd.f32 %v8876, %v9068
    %v9070 = vpop.f32.mrb[0].mxu0
    %v9071 = vadd.f32 %v8878, %v9070
    %v9072 = vpop.f32.mrb[0].mxu0
    %v9073 = vadd.f32 %v8880, %v9072
    %9074 = vdwg.mxu0
    %9075 = vmatprep.subr.bf16.mxu0 %v7578
    %9076 = vmatpush1.bf16.msra.mxu0 %v7577
    %9077 = vmatprep.subr.bf16.mxu0 %v7585
    %9078 = vmatpush1.bf16.msra.mxu0 %v7584
    %9079 = vmatprep.subr.bf16.mxu0 %v7592
    %9080 = vmatpush1.bf16.msra.mxu0 %v7591
    %9081 = vmatprep.subr.bf16.mxu0 %v7599
    %9082 = vmatpush1.bf16.msra.mxu0 %v7598
    %9083 = vmatprep.subr.bf16.mxu0 %v7606
    %9084 = vmatpush1.bf16.msra.mxu0 %v7605
    %9085 = vmatprep.subr.bf16.mxu0 %v7613
    %9086 = vmatpush1.bf16.msra.mxu0 %v7612
    %9087 = vmatprep.subr.bf16.mxu0 %v7620
    %9088 = vmatpush1.bf16.msra.mxu0 %v7619
    %9089 = vmatprep.subr.bf16.mxu0 %v7627
    %9090 = vmatpush1.bf16.msra.mxu0 %v7626
    %9091 = vmatprep.subr.bf16.mxu0 %v7634
    %9092 = vmatpush1.bf16.msra.mxu0 %v7633
    %9093 = vmatprep.subr.bf16.mxu0 %v7641
    %9094 = vmatpush1.bf16.msra.mxu0 %v7640
    %9095 = vmatprep.subr.bf16.mxu0 %v7648
    %9096 = vmatpush1.bf16.msra.mxu0 %v7647
    %9097 = vmatprep.subr.bf16.mxu0 %v7655
    %9098 = vmatpush1.bf16.msra.mxu0 %v7654
    %9099 = vmatprep.subr.bf16.mxu0 %v7662
    %9100 = vmatpush1.bf16.msra.mxu0 %v7661
    %9101 = vmatprep.subr.bf16.mxu0 %v7669
    %9102 = vmatpush1.bf16.msra.mxu0 %v7668
    %9103 = vmatprep.subr.bf16.mxu0 %v7676
    %9104 = vmatpush1.bf16.msra.mxu0 %v7675
    %9105 = vmatprep.subr.bf16.mxu0 %v7683
    %9106 = vmatpush1.bf16.msra.mxu0 %v7682
    %9107 = vmatprep.mubr.bf16.mxu0 %v7118
    %9108 = vmatmul.mubr.bf16.gmra.mrb[0].mxu0 %v7117
    %v9109 = vpop.f32.mrb[0].mxu0
    %v9110 = vadd.f32 %v8917, %v9109
    %v9111 = vpop.f32.mrb[0].mxu0
    %v9112 = vadd.f32 %v8919, %v9111
    %v9113 = vpop.f32.mrb[0].mxu0
    %v9114 = vadd.f32 %v8921, %v9113
    %v9115 = vpop.f32.mrb[0].mxu0
    %v9116 = vadd.f32 %v8923, %v9115
    %9117 = vmatprep.mubr.bf16.mxu0 %v7126
    %9118 = vmatmul.mubr.bf16.gmra.mrb[0].mxu0 %v7125
    %v9119 = vpop.f32.mrb[0].mxu0
    %v9120 = vadd.f32 %v8927, %v9119
    %v9121 = vpop.f32.mrb[0].mxu0
    %v9122 = vadd.f32 %v8929, %v9121
    %v9123 = vpop.f32.mrb[0].mxu0
    %v9124 = vadd.f32 %v8931, %v9123
    %v9125 = vpop.f32.mrb[0].mxu0
    %v9126 = vadd.f32 %v8933, %v9125
    %9127 = vmatprep.mubr.bf16.mxu0 %v7134
    %9128 = vmatmul.mubr.bf16.gmra.mrb[0].mxu0 %v7133
    %v9129 = vpop.f32.mrb[0].mxu0
    %v9130 = vadd.f32 %v8937, %v9129
    %v9131 = vpop.f32.mrb[0].mxu0
    %v9132 = vadd.f32 %v8939, %v9131
    %v9133 = vpop.f32.mrb[0].mxu0
    %v9134 = vadd.f32 %v8941, %v9133
    %v9135 = vpop.f32.mrb[0].mxu0
    %v9136 = vadd.f32 %v8943, %v9135
    %9137 = vmatprep.mubr.bf16.mxu0 %v7142
    %9138 = vmatmul.mubr.bf16.gmra.mrb[0].mxu0 %v7141
    %v9139 = vpop.f32.mrb[0].mxu0
    %v9140 = vadd.f32 %v8947, %v9139
    %v9141 = vpop.f32.mrb[0].mxu0
    %v9142 = vadd.f32 %v8949, %v9141
    %v9143 = vpop.f32.mrb[0].mxu0
    %v9144 = vadd.f32 %v8951, %v9143
    %v9145 = vpop.f32.mrb[0].mxu0
    %v9146 = vadd.f32 %v8953, %v9145
    %9147 = vmatprep.mubr.bf16.mxu0 %v7150
    %9148 = vmatmul.mubr.bf16.gmra.mrb[0].mxu0 %v7149
    %v9149 = vpop.f32.mrb[0].mxu0
    %v9150 = vadd.f32 %v8957, %v9149
    %v9151 = vpop.f32.mrb[0].mxu0
    %v9152 = vadd.f32 %v8959, %v9151
    %v9153 = vpop.f32.mrb[0].mxu0
    %v9154 = vadd.f32 %v8961, %v9153
    %v9155 = vpop.f32.mrb[0].mxu0
    %v9156 = vadd.f32 %v8963, %v9155
    %9157 = vmatprep.mubr.bf16.mxu0 %v7158
    %9158 = vmatmul.mubr.bf16.gmra.mrb[0].mxu0 %v7157
    %v9159 = vpop.f32.mrb[0].mxu0
    %v9160 = vadd.f32 %v8967, %v9159
    %v9161 = vpop.f32.mrb[0].mxu0
    %v9162 = vadd.f32 %v8969, %v9161
    %v9163 = vpop.f32.mrb[0].mxu0
    %v9164 = vadd.f32 %v8971, %v9163
    %v9165 = vpop.f32.mrb[0].mxu0
    %v9166 = vadd.f32 %v8973, %v9165
    %9167 = vmatprep.mubr.bf16.mxu0 %v7166
    %9168 = vmatmul.mubr.bf16.gmra.mrb[0].mxu0 %v7165
    %v9169 = vpop.f32.mrb[0].mxu0
    %v9170 = vadd.f32 %v8977, %v9169
    %v9171 = vpop.f32.mrb[0].mxu0
    %v9172 = vadd.f32 %v8979, %v9171
    %v9173 = vpop.f32.mrb[0].mxu0
    %v9174 = vadd.f32 %v8981, %v9173
    %v9175 = vpop.f32.mrb[0].mxu0
    %v9176 = vadd.f32 %v8983, %v9175
    %9177 = vmatprep.mubr.bf16.mxu0 %v7174
    %9178 = vmatmul.mubr.bf16.gmra.mrb[0].mxu0 %v7173
    %v9179 = vpop.f32.mrb[0].mxu0
    %v9180 = vadd.f32 %v8987, %v9179
    %v9181 = vpop.f32.mrb[0].mxu0
    %v9182 = vadd.f32 %v8989, %v9181
    %v9183 = vpop.f32.mrb[0].mxu0
    %v9184 = vadd.f32 %v8991, %v9183
    %v9185 = vpop.f32.mrb[0].mxu0
    %v9186 = vadd.f32 %v8993, %v9185
    %9187 = vmatprep.mubr.bf16.mxu0 %v7182
    %9188 = vmatmul.mubr.bf16.gmra.mrb[0].mxu0 %v7181
    %v9189 = vpop.f32.mrb[0].mxu0
    %v9190 = vadd.f32 %v8997, %v9189
    %v9191 = vpop.f32.mrb[0].mxu0
    %v9192 = vadd.f32 %v8999, %v9191
    %v9193 = vpop.f32.mrb[0].mxu0
    %v9194 = vadd.f32 %v9001, %v9193
    %v9195 = vpop.f32.mrb[0].mxu0
    %v9196 = vadd.f32 %v9003, %v9195
    %9197 = vmatprep.mubr.bf16.mxu0 %v7190
    %9198 = vmatmul.mubr.bf16.gmra.mrb[0].mxu0 %v7189
    %v9199 = vpop.f32.mrb[0].mxu0
    %v9200 = vadd.f32 %v9007, %v9199
    %v9201 = vpop.f32.mrb[0].mxu0
    %v9202 = vadd.f32 %v9009, %v9201
    %v9203 = vpop.f32.mrb[0].mxu0
    %v9204 = vadd.f32 %v9011, %v9203
    %v9205 = vpop.f32.mrb[0].mxu0
    %v9206 = vadd.f32 %v9013, %v9205
    %9207 = vmatprep.mubr.bf16.mxu0 %v7198
    %9208 = vmatmul.mubr.bf16.gmra.mrb[0].mxu0 %v7197
    %v9209 = vpop.f32.mrb[0].mxu0
    %v9210 = vadd.f32 %v9017, %v9209
    %v9211 = vpop.f32.mrb[0].mxu0
    %v9212 = vadd.f32 %v9019, %v9211
    %v9213 = vpop.f32.mrb[0].mxu0
    %v9214 = vadd.f32 %v9021, %v9213
    %v9215 = vpop.f32.mrb[0].mxu0
    %v9216 = vadd.f32 %v9023, %v9215
    %9217 = vmatprep.mubr.bf16.mxu0 %v7206
    %9218 = vmatmul.mubr.bf16.gmra.mrb[0].mxu0 %v7205
    %v9219 = vpop.f32.mrb[0].mxu0
    %v9220 = vadd.f32 %v9027, %v9219
    %v9221 = vpop.f32.mrb[0].mxu0
    %v9222 = vadd.f32 %v9029, %v9221
    %v9223 = vpop.f32.mrb[0].mxu0
    %v9224 = vadd.f32 %v9031, %v9223
    %v9225 = vpop.f32.mrb[0].mxu0
    %v9226 = vadd.f32 %v9033, %v9225
    %9227 = vmatprep.mubr.bf16.mxu0 %v7214
    %9228 = vmatmul.mubr.bf16.gmra.mrb[0].mxu0 %v7213
    %v9229 = vpop.f32.mrb[0].mxu0
    %v9230 = vadd.f32 %v9037, %v9229
    %v9231 = vpop.f32.mrb[0].mxu0
    %v9232 = vadd.f32 %v9039, %v9231
    %v9233 = vpop.f32.mrb[0].mxu0
    %v9234 = vadd.f32 %v9041, %v9233
    %v9235 = vpop.f32.mrb[0].mxu0
    %v9236 = vadd.f32 %v9043, %v9235
    %9237 = vmatprep.mubr.bf16.mxu0 %v7222
    %9238 = vmatmul.mubr.bf16.gmra.mrb[0].mxu0 %v7221
    %v9239 = vpop.f32.mrb[0].mxu0
    %v9240 = vadd.f32 %v9047, %v9239
    %v9241 = vpop.f32.mrb[0].mxu0
    %v9242 = vadd.f32 %v9049, %v9241
    %v9243 = vpop.f32.mrb[0].mxu0
    %v9244 = vadd.f32 %v9051, %v9243
    %v9245 = vpop.f32.mrb[0].mxu0
    %v9246 = vadd.f32 %v9053, %v9245
    %9247 = vmatprep.mubr.bf16.mxu0 %v7230
    %9248 = vmatmul.mubr.bf16.gmra.mrb[0].mxu0 %v7229
    %v9249 = vpop.f32.mrb[0].mxu0
    %v9250 = vadd.f32 %v9057, %v9249
    %v9251 = vpop.f32.mrb[0].mxu0
    %v9252 = vadd.f32 %v9059, %v9251
    %v9253 = vpop.f32.mrb[0].mxu0
    %v9254 = vadd.f32 %v9061, %v9253
    %v9255 = vpop.f32.mrb[0].mxu0
    %v9256 = vadd.f32 %v9063, %v9255
    %9257 = vmatprep.mubr.bf16.mxu0 %v7238
    %9258 = vmatmul.mubr.bf16.gmra.mrb[0].mxu0 %v7237
    %v9259 = vpop.f32.mrb[0].mxu0
    %v9260 = vadd.f32 %v9067, %v9259
    %v9261 = vpop.f32.mrb[0].mxu0
    %v9262 = vadd.f32 %v9069, %v9261
    %v9263 = vpop.f32.mrb[0].mxu0
    %v9264 = vadd.f32 %v9071, %v9263
    %v9265 = vpop.f32.mrb[0].mxu0
    %v9266 = vadd.f32 %v9073, %v9265
    %9267 = vdwg.mxu0
    %9268 = vmatprep.subr.bf16.mxu0 %v7244
    %9269 = vmatpush1.bf16.msra.mxu0 %v7243
    %9270 = vmatprep.subr.bf16.mxu0 %v7251
    %9271 = vmatpush1.bf16.msra.mxu0 %v7250
    %9272 = vmatprep.subr.bf16.mxu0 %v7258
    %9273 = vmatpush1.bf16.msra.mxu0 %v7257
    %9274 = vmatprep.subr.bf16.mxu0 %v7265
    %9275 = vmatpush1.bf16.msra.mxu0 %v7264
    %9276 = vmatprep.subr.bf16.mxu0 %v7272
    %9277 = vmatpush1.bf16.msra.mxu0 %v7271
    %9278 = vmatprep.subr.bf16.mxu0 %v7279
    %9279 = vmatpush1.bf16.msra.mxu0 %v7278
    %9280 = vmatprep.subr.bf16.mxu0 %v7286
    %9281 = vmatpush1.bf16.msra.mxu0 %v7285
    %9282 = vmatprep.subr.bf16.mxu0 %v7293
    %9283 = vmatpush1.bf16.msra.mxu0 %v7292
    %9284 = vmatprep.subr.bf16.mxu0 %v7300
    %9285 = vmatpush1.bf16.msra.mxu0 %v7299
    %9286 = vmatprep.subr.bf16.mxu0 %v7307
    %9287 = vmatpush1.bf16.msra.mxu0 %v7306
    %9288 = vmatprep.subr.bf16.mxu0 %v7314
    %9289 = vmatpush1.bf16.msra.mxu0 %v7313
    %9290 = vmatprep.subr.bf16.mxu0 %v7321
    %9291 = vmatpush1.bf16.msra.mxu0 %v7320
    %9292 = vmatprep.subr.bf16.mxu0 %v7328
    %9293 = vmatpush1.bf16.msra.mxu0 %v7327
    %9294 = vmatprep.subr.bf16.mxu0 %v7335
    %9295 = vmatpush1.bf16.msra.mxu0 %v7334
    %9296 = vmatprep.subr.bf16.mxu0 %v7342
    %9297 = vmatpush1.bf16.msra.mxu0 %v7341
    %9298 = vmatprep.subr.bf16.mxu0 %v7349
    %9299 = vmatpush1.bf16.msra.mxu0 %v7348
    %9300 = vmatprep.mubr.bf16.mxu0 %v7112
    %9301 = vmatmul.mubr.bf16.gmra.mrb[0].mxu0 %v7111
    %v9302 = vpop.f32.mrb[0].mxu0
    %v9303 = vadd.f32 %v7708, %v9302
    %v9304 = vpop.f32.mrb[0].mxu0
    %v9305 = vadd.f32 %v7712, %v9304
    %v9306 = vpop.f32.mrb[0].mxu0
    %v9307 = vadd.f32 %v7708, %v9306
    %v9308 = vpop.f32.mrb[0].mxu0
    %v9309 = vadd.f32 %v7712, %v9308
    %9310 = vmatprep.mubr.bf16.mxu0 %v7120
    %9311 = vmatmul.mubr.bf16.gmra.mrb[0].mxu0 %v7119
    %v9312 = vpop.f32.mrb[0].mxu0
    %v9313 = vadd.f32 %v7708, %v9312
    %v9314 = vpop.f32.mrb[0].mxu0
    %v9315 = vadd.f32 %v7712, %v9314
    %v9316 = vpop.f32.mrb[0].mxu0
    %v9317 = vadd.f32 %v7708, %v9316
    %v9318 = vpop.f32.mrb[0].mxu0
    %v9319 = vadd.f32 %v7712, %v9318
    %9320 = vmatprep.mubr.bf16.mxu0 %v7128
    %9321 = vmatmul.mubr.bf16.gmra.mrb[0].mxu0 %v7127
    %v9322 = vpop.f32.mrb[0].mxu0
    %v9323 = vadd.f32 %v7708, %v9322
    %v9324 = vpop.f32.mrb[0].mxu0
    %v9325 = vadd.f32 %v7712, %v9324
    %v9326 = vpop.f32.mrb[0].mxu0
    %v9327 = vadd.f32 %v7708, %v9326
    %v9328 = vpop.f32.mrb[0].mxu0
    %v9329 = vadd.f32 %v7712, %v9328
    %9330 = vmatprep.mubr.bf16.mxu0 %v7136
    %9331 = vmatmul.mubr.bf16.gmra.mrb[0].mxu0 %v7135
    %v9332 = vpop.f32.mrb[0].mxu0
    %v9333 = vadd.f32 %v7708, %v9332
    %v9334 = vpop.f32.mrb[0].mxu0
    %v9335 = vadd.f32 %v7712, %v9334
    %v9336 = vpop.f32.mrb[0].mxu0
    %v9337 = vadd.f32 %v7708, %v9336
    %v9338 = vpop.f32.mrb[0].mxu0
    %v9339 = vadd.f32 %v7712, %v9338
    %9340 = vmatprep.mubr.bf16.mxu0 %v7144
    %9341 = vmatmul.mubr.bf16.gmra.mrb[0].mxu0 %v7143
    %v9342 = vpop.f32.mrb[0].mxu0
    %v9343 = vadd.f32 %v7708, %v9342
    %v9344 = vpop.f32.mrb[0].mxu0
    %v9345 = vadd.f32 %v7712, %v9344
    %v9346 = vpop.f32.mrb[0].mxu0
    %v9347 = vadd.f32 %v7708, %v9346
    %v9348 = vpop.f32.mrb[0].mxu0
    %v9349 = vadd.f32 %v7712, %v9348
    %9350 = vmatprep.mubr.bf16.mxu0 %v7152
    %9351 = vmatmul.mubr.bf16.gmra.mrb[0].mxu0 %v7151
    %v9352 = vpop.f32.mrb[0].mxu0
    %v9353 = vadd.f32 %v7708, %v9352
    %v9354 = vpop.f32.mrb[0].mxu0
    %v9355 = vadd.f32 %v7712, %v9354
    %v9356 = vpop.f32.mrb[0].mxu0
    %v9357 = vadd.f32 %v7708, %v9356
    %v9358 = vpop.f32.mrb[0].mxu0
    %v9359 = vadd.f32 %v7712, %v9358
    %9360 = vmatprep.mubr.bf16.mxu0 %v7160
    %9361 = vmatmul.mubr.bf16.gmra.mrb[0].mxu0 %v7159
    %v9362 = vpop.f32.mrb[0].mxu0
    %v9363 = vadd.f32 %v7708, %v9362
    %v9364 = vpop.f32.mrb[0].mxu0
    %v9365 = vadd.f32 %v7712, %v9364
    %v9366 = vpop.f32.mrb[0].mxu0
    %v9367 = vadd.f32 %v7708, %v9366
    %v9368 = vpop.f32.mrb[0].mxu0
    %v9369 = vadd.f32 %v7712, %v9368
    %9370 = vmatprep.mubr.bf16.mxu0 %v7168
    %9371 = vmatmul.mubr.bf16.gmra.mrb[0].mxu0 %v7167
    %v9372 = vpop.f32.mrb[0].mxu0
    %v9373 = vadd.f32 %v7708, %v9372
    %v9374 = vpop.f32.mrb[0].mxu0
    %v9375 = vadd.f32 %v7712, %v9374
    %v9376 = vpop.f32.mrb[0].mxu0
    %v9377 = vadd.f32 %v7708, %v9376
    %v9378 = vpop.f32.mrb[0].mxu0
    %v9379 = vadd.f32 %v7712, %v9378
    %9380 = vmatprep.mubr.bf16.mxu0 %v7176
    %9381 = vmatmul.mubr.bf16.gmra.mrb[0].mxu0 %v7175
    %v9382 = vpop.f32.mrb[0].mxu0
    %v9383 = vadd.f32 %v7708, %v9382
    %v9384 = vpop.f32.mrb[0].mxu0
    %v9385 = vadd.f32 %v7712, %v9384
    %v9386 = vpop.f32.mrb[0].mxu0
    %v9387 = vadd.f32 %v7708, %v9386
    %v9388 = vpop.f32.mrb[0].mxu0
    %v9389 = vadd.f32 %v7712, %v9388
    %9390 = vmatprep.mubr.bf16.mxu0 %v7184
    %9391 = vmatmul.mubr.bf16.gmra.mrb[0].mxu0 %v7183
    %v9392 = vpop.f32.mrb[0].mxu0
    %v9393 = vadd.f32 %v7708, %v9392
    %v9394 = vpop.f32.mrb[0].mxu0
    %v9395 = vadd.f32 %v7712, %v9394
    %v9396 = vpop.f32.mrb[0].mxu0
    %v9397 = vadd.f32 %v7708, %v9396
    %v9398 = vpop.f32.mrb[0].mxu0
    %v9399 = vadd.f32 %v7712, %v9398
    %9400 = vmatprep.mubr.bf16.mxu0 %v7192
    %9401 = vmatmul.mubr.bf16.gmra.mrb[0].mxu0 %v7191
    %v9402 = vpop.f32.mrb[0].mxu0
    %v9403 = vadd.f32 %v7708, %v9402
    %v9404 = vpop.f32.mrb[0].mxu0
    %v9405 = vadd.f32 %v7712, %v9404
    %v9406 = vpop.f32.mrb[0].mxu0
    %v9407 = vadd.f32 %v7708, %v9406
    %v9408 = vpop.f32.mrb[0].mxu0
    %v9409 = vadd.f32 %v7712, %v9408
    %9410 = vmatprep.mubr.bf16.mxu0 %v7200
    %9411 = vmatmul.mubr.bf16.gmra.mrb[0].mxu0 %v7199
    %v9412 = vpop.f32.mrb[0].mxu0
    %v9413 = vadd.f32 %v7708, %v9412
    %v9414 = vpop.f32.mrb[0].mxu0
    %v9415 = vadd.f32 %v7712, %v9414
    %v9416 = vpop.f32.mrb[0].mxu0
    %v9417 = vadd.f32 %v7708, %v9416
    %v9418 = vpop.f32.mrb[0].mxu0
    %v9419 = vadd.f32 %v7712, %v9418
    %9420 = vmatprep.mubr.bf16.mxu0 %v7208
    %9421 = vmatmul.mubr.bf16.gmra.mrb[0].mxu0 %v7207
    %v9422 = vpop.f32.mrb[0].mxu0
    %v9423 = vadd.f32 %v7708, %v9422
    %v9424 = vpop.f32.mrb[0].mxu0
    %v9425 = vadd.f32 %v7712, %v9424
    %v9426 = vpop.f32.mrb[0].mxu0
    %v9427 = vadd.f32 %v7708, %v9426
    %v9428 = vpop.f32.mrb[0].mxu0
    %v9429 = vadd.f32 %v7712, %v9428
    %9430 = vmatprep.mubr.bf16.mxu0 %v7216
    %9431 = vmatmul.mubr.bf16.gmra.mrb[0].mxu0 %v7215
    %v9432 = vpop.f32.mrb[0].mxu0
    %v9433 = vadd.f32 %v7708, %v9432
    %v9434 = vpop.f32.mrb[0].mxu0
    %v9435 = vadd.f32 %v7712, %v9434
    %v9436 = vpop.f32.mrb[0].mxu0
    %v9437 = vadd.f32 %v7708, %v9436
    %v9438 = vpop.f32.mrb[0].mxu0
    %v9439 = vadd.f32 %v7712, %v9438
    %9440 = vmatprep.mubr.bf16.mxu0 %v7224
    %9441 = vmatmul.mubr.bf16.gmra.mrb[0].mxu0 %v7223
    %v9442 = vpop.f32.mrb[0].mxu0
    %v9443 = vadd.f32 %v7708, %v9442
    %v9444 = vpop.f32.mrb[0].mxu0
    %v9445 = vadd.f32 %v7712, %v9444
    %v9446 = vpop.f32.mrb[0].mxu0
    %v9447 = vadd.f32 %v7708, %v9446
    %v9448 = vpop.f32.mrb[0].mxu0
    %v9449 = vadd.f32 %v7712, %v9448
    %9450 = vmatprep.mubr.bf16.mxu0 %v7232
    %9451 = vmatmul.mubr.bf16.gmra.mrb[0].mxu0 %v7231
    %v9452 = vpop.f32.mrb[0].mxu0
    %v9453 = vadd.f32 %v7708, %v9452
    %v9454 = vpop.f32.mrb[0].mxu0
    %v9455 = vadd.f32 %v7712, %v9454
    %v9456 = vpop.f32.mrb[0].mxu0
    %v9457 = vadd.f32 %v7708, %v9456
    %v9458 = vpop.f32.mrb[0].mxu0
    %v9459 = vadd.f32 %v7712, %v9458
    %9460 = vdwg.mxu0
    %9461 = vmatprep.subr.bf16.mxu0 %v7356
    %9462 = vmatpush1.bf16.msra.mxu0 %v7355
    %9463 = vmatprep.subr.bf16.mxu0 %v7363
    %9464 = vmatpush1.bf16.msra.mxu0 %v7362
    %9465 = vmatprep.subr.bf16.mxu0 %v7370
    %9466 = vmatpush1.bf16.msra.mxu0 %v7369
    %9467 = vmatprep.subr.bf16.mxu0 %v7377
    %9468 = vmatpush1.bf16.msra.mxu0 %v7376
    %9469 = vmatprep.subr.bf16.mxu0 %v7384
    %9470 = vmatpush1.bf16.msra.mxu0 %v7383
    %9471 = vmatprep.subr.bf16.mxu0 %v7391
    %9472 = vmatpush1.bf16.msra.mxu0 %v7390
    %9473 = vmatprep.subr.bf16.mxu0 %v7398
    %9474 = vmatpush1.bf16.msra.mxu0 %v7397
    %9475 = vmatprep.subr.bf16.mxu0 %v7405
    %9476 = vmatpush1.bf16.msra.mxu0 %v7404
    %9477 = vmatprep.subr.bf16.mxu0 %v7412
    %9478 = vmatpush1.bf16.msra.mxu0 %v7411
    %9479 = vmatprep.subr.bf16.mxu0 %v7419
    %9480 = vmatpush1.bf16.msra.mxu0 %v7418
    %9481 = vmatprep.subr.bf16.mxu0 %v7426
    %9482 = vmatpush1.bf16.msra.mxu0 %v7425
    %9483 = vmatprep.subr.bf16.mxu0 %v7433
    %9484 = vmatpush1.bf16.msra.mxu0 %v7432
    %9485 = vmatprep.subr.bf16.mxu0 %v7440
    %9486 = vmatpush1.bf16.msra.mxu0 %v7439
    %9487 = vmatprep.subr.bf16.mxu0 %v7447
    %9488 = vmatpush1.bf16.msra.mxu0 %v7446
    %9489 = vmatprep.subr.bf16.mxu0 %v7454
    %9490 = vmatpush1.bf16.msra.mxu0 %v7453
    %9491 = vmatprep.subr.bf16.mxu0 %v7461
    %9492 = vmatpush1.bf16.msra.mxu0 %v7460
    %9493 = vmatprep.mubr.bf16.mxu0 %v7114
    %9494 = vmatmul.mubr.bf16.gmra.mrb[0].mxu0 %v7113
    %v9495 = vpop.f32.mrb[0].mxu0
    %v9496 = vadd.f32 %v9303, %v9495
    %v9497 = vpop.f32.mrb[0].mxu0
    %v9498 = vadd.f32 %v9305, %v9497
    %v9499 = vpop.f32.mrb[0].mxu0
    %v9500 = vadd.f32 %v9307, %v9499
    %v9501 = vpop.f32.mrb[0].mxu0
    %v9502 = vadd.f32 %v9309, %v9501
    %9503 = vmatprep.mubr.bf16.mxu0 %v7122
    %9504 = vmatmul.mubr.bf16.gmra.mrb[0].mxu0 %v7121
    %v9505 = vpop.f32.mrb[0].mxu0
    %v9506 = vadd.f32 %v9313, %v9505
    %v9507 = vpop.f32.mrb[0].mxu0
    %v9508 = vadd.f32 %v9315, %v9507
    %v9509 = vpop.f32.mrb[0].mxu0
    %v9510 = vadd.f32 %v9317, %v9509
    %v9511 = vpop.f32.mrb[0].mxu0
    %v9512 = vadd.f32 %v9319, %v9511
    %9513 = vmatprep.mubr.bf16.mxu0 %v7130
    %9514 = vmatmul.mubr.bf16.gmra.mrb[0].mxu0 %v7129
    %v9515 = vpop.f32.mrb[0].mxu0
    %v9516 = vadd.f32 %v9323, %v9515
    %v9517 = vpop.f32.mrb[0].mxu0
    %v9518 = vadd.f32 %v9325, %v9517
    %v9519 = vpop.f32.mrb[0].mxu0
    %v9520 = vadd.f32 %v9327, %v9519
    %v9521 = vpop.f32.mrb[0].mxu0
    %v9522 = vadd.f32 %v9329, %v9521
    %9523 = vmatprep.mubr.bf16.mxu0 %v7138
    %9524 = vmatmul.mubr.bf16.gmra.mrb[0].mxu0 %v7137
    %v9525 = vpop.f32.mrb[0].mxu0
    %v9526 = vadd.f32 %v9333, %v9525
    %v9527 = vpop.f32.mrb[0].mxu0
    %v9528 = vadd.f32 %v9335, %v9527
    %v9529 = vpop.f32.mrb[0].mxu0
    %v9530 = vadd.f32 %v9337, %v9529
    %v9531 = vpop.f32.mrb[0].mxu0
    %v9532 = vadd.f32 %v9339, %v9531
    %9533 = vmatprep.mubr.bf16.mxu0 %v7146
    %9534 = vmatmul.mubr.bf16.gmra.mrb[0].mxu0 %v7145
    %v9535 = vpop.f32.mrb[0].mxu0
    %v9536 = vadd.f32 %v9343, %v9535
    %v9537 = vpop.f32.mrb[0].mxu0
    %v9538 = vadd.f32 %v9345, %v9537
    %v9539 = vpop.f32.mrb[0].mxu0
    %v9540 = vadd.f32 %v9347, %v9539
    %v9541 = vpop.f32.mrb[0].mxu0
    %v9542 = vadd.f32 %v9349, %v9541
    %9543 = vmatprep.mubr.bf16.mxu0 %v7154
    %9544 = vmatmul.mubr.bf16.gmra.mrb[0].mxu0 %v7153
    %v9545 = vpop.f32.mrb[0].mxu0
    %v9546 = vadd.f32 %v9353, %v9545
    %v9547 = vpop.f32.mrb[0].mxu0
    %v9548 = vadd.f32 %v9355, %v9547
    %v9549 = vpop.f32.mrb[0].mxu0
    %v9550 = vadd.f32 %v9357, %v9549
    %v9551 = vpop.f32.mrb[0].mxu0
    %v9552 = vadd.f32 %v9359, %v9551
    %9553 = vmatprep.mubr.bf16.mxu0 %v7162
    %9554 = vmatmul.mubr.bf16.gmra.mrb[0].mxu0 %v7161
    %v9555 = vpop.f32.mrb[0].mxu0
    %v9556 = vadd.f32 %v9363, %v9555
    %v9557 = vpop.f32.mrb[0].mxu0
    %v9558 = vadd.f32 %v9365, %v9557
    %v9559 = vpop.f32.mrb[0].mxu0
    %v9560 = vadd.f32 %v9367, %v9559
    %v9561 = vpop.f32.mrb[0].mxu0
    %v9562 = vadd.f32 %v9369, %v9561
    %9563 = vmatprep.mubr.bf16.mxu0 %v7170
    %9564 = vmatmul.mubr.bf16.gmra.mrb[0].mxu0 %v7169
    %v9565 = vpop.f32.mrb[0].mxu0
    %v9566 = vadd.f32 %v9373, %v9565
    %v9567 = vpop.f32.mrb[0].mxu0
    %v9568 = vadd.f32 %v9375, %v9567
    %v9569 = vpop.f32.mrb[0].mxu0
    %v9570 = vadd.f32 %v9377, %v9569
    %v9571 = vpop.f32.mrb[0].mxu0
    %v9572 = vadd.f32 %v9379, %v9571
    %9573 = vmatprep.mubr.bf16.mxu0 %v7178
    %9574 = vmatmul.mubr.bf16.gmra.mrb[0].mxu0 %v7177
    %v9575 = vpop.f32.mrb[0].mxu0
    %v9576 = vadd.f32 %v9383, %v9575
    %v9577 = vpop.f32.mrb[0].mxu0
    %v9578 = vadd.f32 %v9385, %v9577
    %v9579 = vpop.f32.mrb[0].mxu0
    %v9580 = vadd.f32 %v9387, %v9579
    %v9581 = vpop.f32.mrb[0].mxu0
    %v9582 = vadd.f32 %v9389, %v9581
    %9583 = vmatprep.mubr.bf16.mxu0 %v7186
    %9584 = vmatmul.mubr.bf16.gmra.mrb[0].mxu0 %v7185
    %v9585 = vpop.f32.mrb[0].mxu0
    %v9586 = vadd.f32 %v9393, %v9585
    %v9587 = vpop.f32.mrb[0].mxu0
    %v9588 = vadd.f32 %v9395, %v9587
    %v9589 = vpop.f32.mrb[0].mxu0
    %v9590 = vadd.f32 %v9397, %v9589
    %v9591 = vpop.f32.mrb[0].mxu0
    %v9592 = vadd.f32 %v9399, %v9591
    %9593 = vmatprep.mubr.bf16.mxu0 %v7194
    %9594 = vmatmul.mubr.bf16.gmra.mrb[0].mxu0 %v7193
    %v9595 = vpop.f32.mrb[0].mxu0
    %v9596 = vadd.f32 %v9403, %v9595
    %v9597 = vpop.f32.mrb[0].mxu0
    %v9598 = vadd.f32 %v9405, %v9597
    %v9599 = vpop.f32.mrb[0].mxu0
    %v9600 = vadd.f32 %v9407, %v9599
    %v9601 = vpop.f32.mrb[0].mxu0
    %v9602 = vadd.f32 %v9409, %v9601
    %9603 = vmatprep.mubr.bf16.mxu0 %v7202
    %9604 = vmatmul.mubr.bf16.gmra.mrb[0].mxu0 %v7201
    %v9605 = vpop.f32.mrb[0].mxu0
    %v9606 = vadd.f32 %v9413, %v9605
    %v9607 = vpop.f32.mrb[0].mxu0
    %v9608 = vadd.f32 %v9415, %v9607
    %v9609 = vpop.f32.mrb[0].mxu0
    %v9610 = vadd.f32 %v9417, %v9609
    %v9611 = vpop.f32.mrb[0].mxu0
    %v9612 = vadd.f32 %v9419, %v9611
    %9613 = vmatprep.mubr.bf16.mxu0 %v7210
    %9614 = vmatmul.mubr.bf16.gmra.mrb[0].mxu0 %v7209
    %v9615 = vpop.f32.mrb[0].mxu0
    %v9616 = vadd.f32 %v9423, %v9615
    %v9617 = vpop.f32.mrb[0].mxu0
    %v9618 = vadd.f32 %v9425, %v9617
    %v9619 = vpop.f32.mrb[0].mxu0
    %v9620 = vadd.f32 %v9427, %v9619
    %v9621 = vpop.f32.mrb[0].mxu0
    %v9622 = vadd.f32 %v9429, %v9621
    %9623 = vmatprep.mubr.bf16.mxu0 %v7218
    %9624 = vmatmul.mubr.bf16.gmra.mrb[0].mxu0 %v7217
    %v9625 = vpop.f32.mrb[0].mxu0
    %v9626 = vadd.f32 %v9433, %v9625
    %v9627 = vpop.f32.mrb[0].mxu0
    %v9628 = vadd.f32 %v9435, %v9627
    %v9629 = vpop.f32.mrb[0].mxu0
    %v9630 = vadd.f32 %v9437, %v9629
    %v9631 = vpop.f32.mrb[0].mxu0
    %v9632 = vadd.f32 %v9439, %v9631
    %9633 = vmatprep.mubr.bf16.mxu0 %v7226
    %9634 = vmatmul.mubr.bf16.gmra.mrb[0].mxu0 %v7225
    %v9635 = vpop.f32.mrb[0].mxu0
    %v9636 = vadd.f32 %v9443, %v9635
    %v9637 = vpop.f32.mrb[0].mxu0
    %v9638 = vadd.f32 %v9445, %v9637
    %v9639 = vpop.f32.mrb[0].mxu0
    %v9640 = vadd.f32 %v9447, %v9639
    %v9641 = vpop.f32.mrb[0].mxu0
    %v9642 = vadd.f32 %v9449, %v9641
    %9643 = vmatprep.mubr.bf16.mxu0 %v7234
    %9644 = vmatmul.mubr.bf16.gmra.mrb[0].mxu0 %v7233
    %v9645 = vpop.f32.mrb[0].mxu0
    %v9646 = vadd.f32 %v9453, %v9645
    %v9647 = vpop.f32.mrb[0].mxu0
    %v9648 = vadd.f32 %v9455, %v9647
    %v9649 = vpop.f32.mrb[0].mxu0
    %v9650 = vadd.f32 %v9457, %v9649
    %v9651 = vpop.f32.mrb[0].mxu0
    %v9652 = vadd.f32 %v9459, %v9651
    %9653 = vdwg.mxu0
    %9654 = vmatprep.subr.bf16.mxu0 %v7468
    %9655 = vmatpush1.bf16.msra.mxu0 %v7467
    %9656 = vmatprep.subr.bf16.mxu0 %v7475
    %9657 = vmatpush1.bf16.msra.mxu0 %v7474
    %9658 = vmatprep.subr.bf16.mxu0 %v7482
    %9659 = vmatpush1.bf16.msra.mxu0 %v7481
    %9660 = vmatprep.subr.bf16.mxu0 %v7489
    %9661 = vmatpush1.bf16.msra.mxu0 %v7488
    %9662 = vmatprep.subr.bf16.mxu0 %v7496
    %9663 = vmatpush1.bf16.msra.mxu0 %v7495
    %9664 = vmatprep.subr.bf16.mxu0 %v7503
    %9665 = vmatpush1.bf16.msra.mxu0 %v7502
    %9666 = vmatprep.subr.bf16.mxu0 %v7510
    %9667 = vmatpush1.bf16.msra.mxu0 %v7509
    %9668 = vmatprep.subr.bf16.mxu0 %v7517
    %9669 = vmatpush1.bf16.msra.mxu0 %v7516
    %9670 = vmatprep.subr.bf16.mxu0 %v7524
    %9671 = vmatpush1.bf16.msra.mxu0 %v7523
    %9672 = vmatprep.subr.bf16.mxu0 %v7531
    %9673 = vmatpush1.bf16.msra.mxu0 %v7530
    %9674 = vmatprep.subr.bf16.mxu0 %v7538
    %9675 = vmatpush1.bf16.msra.mxu0 %v7537
    %9676 = vmatprep.subr.bf16.mxu0 %v7545
    %9677 = vmatpush1.bf16.msra.mxu0 %v7544
    %9678 = vmatprep.subr.bf16.mxu0 %v7552
    %9679 = vmatpush1.bf16.msra.mxu0 %v7551
    %9680 = vmatprep.subr.bf16.mxu0 %v7559
    %9681 = vmatpush1.bf16.msra.mxu0 %v7558
    %9682 = vmatprep.subr.bf16.mxu0 %v7566
    %9683 = vmatpush1.bf16.msra.mxu0 %v7565
    %9684 = vmatprep.subr.bf16.mxu0 %v7573
    %9685 = vmatpush1.bf16.msra.mxu0 %v7572
    %9686 = vmatprep.mubr.bf16.mxu0 %v7116
    %9687 = vmatmul.mubr.bf16.gmra.mrb[0].mxu0 %v7115
    %v9688 = vpop.f32.mrb[0].mxu0
    %v9689 = vadd.f32 %v9496, %v9688
    %v9690 = vpop.f32.mrb[0].mxu0
    %v9691 = vadd.f32 %v9498, %v9690
    %v9692 = vpop.f32.mrb[0].mxu0
    %v9693 = vadd.f32 %v9500, %v9692
    %v9694 = vpop.f32.mrb[0].mxu0
    %v9695 = vadd.f32 %v9502, %v9694
    %9696 = vmatprep.mubr.bf16.mxu0 %v7124
    %9697 = vmatmul.mubr.bf16.gmra.mrb[0].mxu0 %v7123
    %v9698 = vpop.f32.mrb[0].mxu0
    %v9699 = vadd.f32 %v9506, %v9698
    %v9700 = vpop.f32.mrb[0].mxu0
    %v9701 = vadd.f32 %v9508, %v9700
    %v9702 = vpop.f32.mrb[0].mxu0
    %v9703 = vadd.f32 %v9510, %v9702
    %v9704 = vpop.f32.mrb[0].mxu0
    %v9705 = vadd.f32 %v9512, %v9704
    %9706 = vmatprep.mubr.bf16.mxu0 %v7132
    %9707 = vmatmul.mubr.bf16.gmra.mrb[0].mxu0 %v7131
    %v9708 = vpop.f32.mrb[0].mxu0
    %v9709 = vadd.f32 %v9516, %v9708
    %v9710 = vpop.f32.mrb[0].mxu0
    %v9711 = vadd.f32 %v9518, %v9710
    %v9712 = vpop.f32.mrb[0].mxu0
    %v9713 = vadd.f32 %v9520, %v9712
    %v9714 = vpop.f32.mrb[0].mxu0
    %v9715 = vadd.f32 %v9522, %v9714
    %9716 = vmatprep.mubr.bf16.mxu0 %v7140
    %9717 = vmatmul.mubr.bf16.gmra.mrb[0].mxu0 %v7139
    %v9718 = vpop.f32.mrb[0].mxu0
    %v9719 = vadd.f32 %v9526, %v9718
    %v9720 = vpop.f32.mrb[0].mxu0
    %v9721 = vadd.f32 %v9528, %v9720
    %v9722 = vpop.f32.mrb[0].mxu0
    %v9723 = vadd.f32 %v9530, %v9722
    %v9724 = vpop.f32.mrb[0].mxu0
    %v9725 = vadd.f32 %v9532, %v9724
    %9726 = vmatprep.mubr.bf16.mxu0 %v7148
    %9727 = vmatmul.mubr.bf16.gmra.mrb[0].mxu0 %v7147
    %v9728 = vpop.f32.mrb[0].mxu0
    %v9729 = vadd.f32 %v9536, %v9728
    %v9730 = vpop.f32.mrb[0].mxu0
    %v9731 = vadd.f32 %v9538, %v9730
    %v9732 = vpop.f32.mrb[0].mxu0
    %v9733 = vadd.f32 %v9540, %v9732
    %v9734 = vpop.f32.mrb[0].mxu0
    %v9735 = vadd.f32 %v9542, %v9734
    %9736 = vmatprep.mubr.bf16.mxu0 %v7156
    %9737 = vmatmul.mubr.bf16.gmra.mrb[0].mxu0 %v7155
    %v9738 = vpop.f32.mrb[0].mxu0
    %v9739 = vadd.f32 %v9546, %v9738
    %v9740 = vpop.f32.mrb[0].mxu0
    %v9741 = vadd.f32 %v9548, %v9740
    %v9742 = vpop.f32.mrb[0].mxu0
    %v9743 = vadd.f32 %v9550, %v9742
    %v9744 = vpop.f32.mrb[0].mxu0
    %v9745 = vadd.f32 %v9552, %v9744
    %9746 = vmatprep.mubr.bf16.mxu0 %v7164
    %9747 = vmatmul.mubr.bf16.gmra.mrb[0].mxu0 %v7163
    %v9748 = vpop.f32.mrb[0].mxu0
    %v9749 = vadd.f32 %v9556, %v9748
    %v9750 = vpop.f32.mrb[0].mxu0
    %v9751 = vadd.f32 %v9558, %v9750
    %v9752 = vpop.f32.mrb[0].mxu0
    %v9753 = vadd.f32 %v9560, %v9752
    %v9754 = vpop.f32.mrb[0].mxu0
    %v9755 = vadd.f32 %v9562, %v9754
    %9756 = vmatprep.mubr.bf16.mxu0 %v7172
    %9757 = vmatmul.mubr.bf16.gmra.mrb[0].mxu0 %v7171
    %v9758 = vpop.f32.mrb[0].mxu0
    %v9759 = vadd.f32 %v9566, %v9758
    %v9760 = vpop.f32.mrb[0].mxu0
    %v9761 = vadd.f32 %v9568, %v9760
    %v9762 = vpop.f32.mrb[0].mxu0
    %v9763 = vadd.f32 %v9570, %v9762
    %v9764 = vpop.f32.mrb[0].mxu0
    %v9765 = vadd.f32 %v9572, %v9764
    %9766 = vmatprep.mubr.bf16.mxu0 %v7180
    %9767 = vmatmul.mubr.bf16.gmra.mrb[0].mxu0 %v7179
    %v9768 = vpop.f32.mrb[0].mxu0
    %v9769 = vadd.f32 %v9576, %v9768
    %v9770 = vpop.f32.mrb[0].mxu0
    %v9771 = vadd.f32 %v9578, %v9770
    %v9772 = vpop.f32.mrb[0].mxu0
    %v9773 = vadd.f32 %v9580, %v9772
    %v9774 = vpop.f32.mrb[0].mxu0
    %v9775 = vadd.f32 %v9582, %v9774
    %9776 = vmatprep.mubr.bf16.mxu0 %v7188
    %9777 = vmatmul.mubr.bf16.gmra.mrb[0].mxu0 %v7187
    %v9778 = vpop.f32.mrb[0].mxu0
    %v9779 = vadd.f32 %v9586, %v9778
    %v9780 = vpop.f32.mrb[0].mxu0
    %v9781 = vadd.f32 %v9588, %v9780
    %v9782 = vpop.f32.mrb[0].mxu0
    %v9783 = vadd.f32 %v9590, %v9782
    %v9784 = vpop.f32.mrb[0].mxu0
    %v9785 = vadd.f32 %v9592, %v9784
    %9786 = vmatprep.mubr.bf16.mxu0 %v7196
    %9787 = vmatmul.mubr.bf16.gmra.mrb[0].mxu0 %v7195
    %v9788 = vpop.f32.mrb[0].mxu0
    %v9789 = vadd.f32 %v9596, %v9788
    %v9790 = vpop.f32.mrb[0].mxu0
    %v9791 = vadd.f32 %v9598, %v9790
    %v9792 = vpop.f32.mrb[0].mxu0
    %v9793 = vadd.f32 %v9600, %v9792
    %v9794 = vpop.f32.mrb[0].mxu0
    %v9795 = vadd.f32 %v9602, %v9794
    %9796 = vmatprep.mubr.bf16.mxu0 %v7204
    %9797 = vmatmul.mubr.bf16.gmra.mrb[0].mxu0 %v7203
    %v9798 = vpop.f32.mrb[0].mxu0
    %v9799 = vadd.f32 %v9606, %v9798
    %v9800 = vpop.f32.mrb[0].mxu0
    %v9801 = vadd.f32 %v9608, %v9800
    %v9802 = vpop.f32.mrb[0].mxu0
    %v9803 = vadd.f32 %v9610, %v9802
    %v9804 = vpop.f32.mrb[0].mxu0
    %v9805 = vadd.f32 %v9612, %v9804
    %9806 = vmatprep.mubr.bf16.mxu0 %v7212
    %9807 = vmatmul.mubr.bf16.gmra.mrb[0].mxu0 %v7211
    %v9808 = vpop.f32.mrb[0].mxu0
    %v9809 = vadd.f32 %v9616, %v9808
    %v9810 = vpop.f32.mrb[0].mxu0
    %v9811 = vadd.f32 %v9618, %v9810
    %v9812 = vpop.f32.mrb[0].mxu0
    %v9813 = vadd.f32 %v9620, %v9812
    %v9814 = vpop.f32.mrb[0].mxu0
    %v9815 = vadd.f32 %v9622, %v9814
    %9816 = vmatprep.mubr.bf16.mxu0 %v7220
    %9817 = vmatmul.mubr.bf16.gmra.mrb[0].mxu0 %v7219
    %v9818 = vpop.f32.mrb[0].mxu0
    %v9819 = vadd.f32 %v9626, %v9818
    %v9820 = vpop.f32.mrb[0].mxu0
    %v9821 = vadd.f32 %v9628, %v9820
    %v9822 = vpop.f32.mrb[0].mxu0
    %v9823 = vadd.f32 %v9630, %v9822
    %v9824 = vpop.f32.mrb[0].mxu0
    %v9825 = vadd.f32 %v9632, %v9824
    %9826 = vmatprep.mubr.bf16.mxu0 %v7228
    %9827 = vmatmul.mubr.bf16.gmra.mrb[0].mxu0 %v7227
    %v9828 = vpop.f32.mrb[0].mxu0
    %v9829 = vadd.f32 %v9636, %v9828
    %v9830 = vpop.f32.mrb[0].mxu0
    %v9831 = vadd.f32 %v9638, %v9830
    %v9832 = vpop.f32.mrb[0].mxu0
    %v9833 = vadd.f32 %v9640, %v9832
    %v9834 = vpop.f32.mrb[0].mxu0
    %v9835 = vadd.f32 %v9642, %v9834
    %9836 = vmatprep.mubr.bf16.mxu0 %v7236
    %9837 = vmatmul.mubr.bf16.gmra.mrb[0].mxu0 %v7235
    %v9838 = vpop.f32.mrb[0].mxu0
    %v9839 = vadd.f32 %v9646, %v9838
    %v9840 = vpop.f32.mrb[0].mxu0
    %v9841 = vadd.f32 %v9648, %v9840
    %v9842 = vpop.f32.mrb[0].mxu0
    %v9843 = vadd.f32 %v9650, %v9842
    %v9844 = vpop.f32.mrb[0].mxu0
    %v9845 = vadd.f32 %v9652, %v9844
    %9846 = vdwg.mxu0
    %9847 = vmatprep.subr.bf16.mxu0 %v7580
    %9848 = vmatpush1.bf16.msra.mxu0 %v7579
    %9849 = vmatprep.subr.bf16.mxu0 %v7587
    %9850 = vmatpush1.bf16.msra.mxu0 %v7586
    %9851 = vmatprep.subr.bf16.mxu0 %v7594
    %9852 = vmatpush1.bf16.msra.mxu0 %v7593
    %9853 = vmatprep.subr.bf16.mxu0 %v7601
    %9854 = vmatpush1.bf16.msra.mxu0 %v7600
    %9855 = vmatprep.subr.bf16.mxu0 %v7608
    %9856 = vmatpush1.bf16.msra.mxu0 %v7607
    %9857 = vmatprep.subr.bf16.mxu0 %v7615
    %9858 = vmatpush1.bf16.msra.mxu0 %v7614
    %9859 = vmatprep.subr.bf16.mxu0 %v7622
    %9860 = vmatpush1.bf16.msra.mxu0 %v7621
    %9861 = vmatprep.subr.bf16.mxu0 %v7629
    %9862 = vmatpush1.bf16.msra.mxu0 %v7628
    %9863 = vmatprep.subr.bf16.mxu0 %v7636
    %9864 = vmatpush1.bf16.msra.mxu0 %v7635
    %9865 = vmatprep.subr.bf16.mxu0 %v7643
    %9866 = vmatpush1.bf16.msra.mxu0 %v7642
    %9867 = vmatprep.subr.bf16.mxu0 %v7650
    %9868 = vmatpush1.bf16.msra.mxu0 %v7649
    %9869 = vmatprep.subr.bf16.mxu0 %v7657
    %9870 = vmatpush1.bf16.msra.mxu0 %v7656
    %9871 = vmatprep.subr.bf16.mxu0 %v7664
    %9872 = vmatpush1.bf16.msra.mxu0 %v7663
    %9873 = vmatprep.subr.bf16.mxu0 %v7671
    %9874 = vmatpush1.bf16.msra.mxu0 %v7670
    %9875 = vmatprep.subr.bf16.mxu0 %v7678
    %9876 = vmatpush1.bf16.msra.mxu0 %v7677
    %9877 = vmatprep.subr.bf16.mxu0 %v7685
    %9878 = vmatpush1.bf16.msra.mxu0 %v7684
    %9879 = vmatprep.mubr.bf16.mxu0 %v7118
    %9880 = vmatmul.mubr.bf16.gmra.mrb[0].mxu0 %v7117
    %v9881 = vpop.f32.mrb[0].mxu0
    %v9882 = vadd.f32 %v9689, %v9881
    %v9883 = vpop.f32.mrb[0].mxu0
    %v9884 = vadd.f32 %v9691, %v9883
    %v9885 = vpop.f32.mrb[0].mxu0
    %v9886 = vadd.f32 %v9693, %v9885
    %v9887 = vpop.f32.mrb[0].mxu0
    %v9888 = vadd.f32 %v9695, %v9887
    %9889 = vmatprep.mubr.bf16.mxu0 %v7126
    %9890 = vmatmul.mubr.bf16.gmra.mrb[0].mxu0 %v7125
    %v9891 = vpop.f32.mrb[0].mxu0
    %v9892 = vadd.f32 %v9699, %v9891
    %v9893 = vpop.f32.mrb[0].mxu0
    %v9894 = vadd.f32 %v9701, %v9893
    %v9895 = vpop.f32.mrb[0].mxu0
    %v9896 = vadd.f32 %v9703, %v9895
    %v9897 = vpop.f32.mrb[0].mxu0
    %v9898 = vadd.f32 %v9705, %v9897
    %9899 = vmatprep.mubr.bf16.mxu0 %v7134
    %9900 = vmatmul.mubr.bf16.gmra.mrb[0].mxu0 %v7133
    %v9901 = vpop.f32.mrb[0].mxu0
    %v9902 = vadd.f32 %v9709, %v9901
    %v9903 = vpop.f32.mrb[0].mxu0
    %v9904 = vadd.f32 %v9711, %v9903
    %v9905 = vpop.f32.mrb[0].mxu0
    %v9906 = vadd.f32 %v9713, %v9905
    %v9907 = vpop.f32.mrb[0].mxu0
    %v9908 = vadd.f32 %v9715, %v9907
    %9909 = vmatprep.mubr.bf16.mxu0 %v7142
    %9910 = vmatmul.mubr.bf16.gmra.mrb[0].mxu0 %v7141
    %v9911 = vpop.f32.mrb[0].mxu0
    %v9912 = vadd.f32 %v9719, %v9911
    %v9913 = vpop.f32.mrb[0].mxu0
    %v9914 = vadd.f32 %v9721, %v9913
    %v9915 = vpop.f32.mrb[0].mxu0
    %v9916 = vadd.f32 %v9723, %v9915
    %v9917 = vpop.f32.mrb[0].mxu0
    %v9918 = vadd.f32 %v9725, %v9917
    %9919 = vmatprep.mubr.bf16.mxu0 %v7150
    %9920 = vmatmul.mubr.bf16.gmra.mrb[0].mxu0 %v7149
    %v9921 = vpop.f32.mrb[0].mxu0
    %v9922 = vadd.f32 %v9729, %v9921
    %v9923 = vpop.f32.mrb[0].mxu0
    %v9924 = vadd.f32 %v9731, %v9923
    %v9925 = vpop.f32.mrb[0].mxu0
    %v9926 = vadd.f32 %v9733, %v9925
    %v9927 = vpop.f32.mrb[0].mxu0
    %v9928 = vadd.f32 %v9735, %v9927
    %9929 = vmatprep.mubr.bf16.mxu0 %v7158
    %9930 = vmatmul.mubr.bf16.gmra.mrb[0].mxu0 %v7157
    %v9931 = vpop.f32.mrb[0].mxu0
    %v9932 = vadd.f32 %v9739, %v9931
    %v9933 = vpop.f32.mrb[0].mxu0
    %v9934 = vadd.f32 %v9741, %v9933
    %v9935 = vpop.f32.mrb[0].mxu0
    %v9936 = vadd.f32 %v9743, %v9935
    %v9937 = vpop.f32.mrb[0].mxu0
    %v9938 = vadd.f32 %v9745, %v9937
    %9939 = vmatprep.mubr.bf16.mxu0 %v7166
    %9940 = vmatmul.mubr.bf16.gmra.mrb[0].mxu0 %v7165
    %v9941 = vpop.f32.mrb[0].mxu0
    %v9942 = vadd.f32 %v9749, %v9941
    %v9943 = vpop.f32.mrb[0].mxu0
    %v9944 = vadd.f32 %v9751, %v9943
    %v9945 = vpop.f32.mrb[0].mxu0
    %v9946 = vadd.f32 %v9753, %v9945
    %v9947 = vpop.f32.mrb[0].mxu0
    %v9948 = vadd.f32 %v9755, %v9947
    %9949 = vmatprep.mubr.bf16.mxu0 %v7174
    %9950 = vmatmul.mubr.bf16.gmra.mrb[0].mxu0 %v7173
    %v9951 = vpop.f32.mrb[0].mxu0
    %v9952 = vadd.f32 %v9759, %v9951
    %v9953 = vpop.f32.mrb[0].mxu0
    %v9954 = vadd.f32 %v9761, %v9953
    %v9955 = vpop.f32.mrb[0].mxu0
    %v9956 = vadd.f32 %v9763, %v9955
    %v9957 = vpop.f32.mrb[0].mxu0
    %v9958 = vadd.f32 %v9765, %v9957
    %9959 = vmatprep.mubr.bf16.mxu0 %v7182
    %9960 = vmatmul.mubr.bf16.gmra.mrb[0].mxu0 %v7181
    %v9961 = vpop.f32.mrb[0].mxu0
    %v9962 = vadd.f32 %v9769, %v9961
    %v9963 = vpop.f32.mrb[0].mxu0
    %v9964 = vadd.f32 %v9771, %v9963
    %v9965 = vpop.f32.mrb[0].mxu0
    %v9966 = vadd.f32 %v9773, %v9965
    %v9967 = vpop.f32.mrb[0].mxu0
    %v9968 = vadd.f32 %v9775, %v9967
    %9969 = vmatprep.mubr.bf16.mxu0 %v7190
    %9970 = vmatmul.mubr.bf16.gmra.mrb[0].mxu0 %v7189
    %v9971 = vpop.f32.mrb[0].mxu0
    %v9972 = vadd.f32 %v9779, %v9971
    %v9973 = vpop.f32.mrb[0].mxu0
    %v9974 = vadd.f32 %v9781, %v9973
    %v9975 = vpop.f32.mrb[0].mxu0
    %v9976 = vadd.f32 %v9783, %v9975
    %v9977 = vpop.f32.mrb[0].mxu0
    %v9978 = vadd.f32 %v9785, %v9977
    %9979 = vmatprep.mubr.bf16.mxu0 %v7198
    %9980 = vmatmul.mubr.bf16.gmra.mrb[0].mxu0 %v7197
    %v9981 = vpop.f32.mrb[0].mxu0
    %v9982 = vadd.f32 %v9789, %v9981
    %v9983 = vpop.f32.mrb[0].mxu0
    %v9984 = vadd.f32 %v9791, %v9983
    %v9985 = vpop.f32.mrb[0].mxu0
    %v9986 = vadd.f32 %v9793, %v9985
    %v9987 = vpop.f32.mrb[0].mxu0
    %v9988 = vadd.f32 %v9795, %v9987
    %9989 = vmatprep.mubr.bf16.mxu0 %v7206
    %9990 = vmatmul.mubr.bf16.gmra.mrb[0].mxu0 %v7205
    %v9991 = vpop.f32.mrb[0].mxu0
    %v9992 = vadd.f32 %v9799, %v9991
    %v9993 = vpop.f32.mrb[0].mxu0
    %v9994 = vadd.f32 %v9801, %v9993
    %v9995 = vpop.f32.mrb[0].mxu0
    %v9996 = vadd.f32 %v9803, %v9995
    %v9997 = vpop.f32.mrb[0].mxu0
    %v9998 = vadd.f32 %v9805, %v9997
    %9999 = vmatprep.mubr.bf16.mxu0 %v7214
    %10000 = vmatmul.mubr.bf16.gmra.mrb[0].mxu0 %v7213
    %v10001 = vpop.f32.mrb[0].mxu0
    %v10002 = vadd.f32 %v9809, %v10001
    %v10003 = vpop.f32.mrb[0].mxu0
    %v10004 = vadd.f32 %v9811, %v10003
    %v10005 = vpop.f32.mrb[0].mxu0
    %v10006 = vadd.f32 %v9813, %v10005
    %v10007 = vpop.f32.mrb[0].mxu0
    %v10008 = vadd.f32 %v9815, %v10007
    %10009 = vmatprep.mubr.bf16.mxu0 %v7222
    %10010 = vmatmul.mubr.bf16.gmra.mrb[0].mxu0 %v7221
    %v10011 = vpop.f32.mrb[0].mxu0
    %v10012 = vadd.f32 %v9819, %v10011
    %v10013 = vpop.f32.mrb[0].mxu0
    %v10014 = vadd.f32 %v9821, %v10013
    %v10015 = vpop.f32.mrb[0].mxu0
    %v10016 = vadd.f32 %v9823, %v10015
    %v10017 = vpop.f32.mrb[0].mxu0
    %v10018 = vadd.f32 %v9825, %v10017
    %10019 = vmatprep.mubr.bf16.mxu0 %v7230
    %10020 = vmatmul.mubr.bf16.gmra.mrb[0].mxu0 %v7229
    %v10021 = vpop.f32.mrb[0].mxu0
    %v10022 = vadd.f32 %v9829, %v10021
    %v10023 = vpop.f32.mrb[0].mxu0
    %v10024 = vadd.f32 %v9831, %v10023
    %v10025 = vpop.f32.mrb[0].mxu0
    %v10026 = vadd.f32 %v9833, %v10025
    %v10027 = vpop.f32.mrb[0].mxu0
    %v10028 = vadd.f32 %v9835, %v10027
    %10029 = vmatprep.mubr.bf16.mxu0 %v7238
    %10030 = vmatmul.mubr.bf16.gmra.mrb[0].mxu0 %v7237
    %v10031 = vpop.f32.mrb[0].mxu0
    %v10032 = vadd.f32 %v9839, %v10031
    %v10033 = vpop.f32.mrb[0].mxu0
    %v10034 = vadd.f32 %v9841, %v10033
    %v10035 = vpop.f32.mrb[0].mxu0
    %v10036 = vadd.f32 %v9843, %v10035
    %v10037 = vpop.f32.mrb[0].mxu0
    %v10038 = vadd.f32 %v9845, %v10037
    %10039 = vdwg.mxu0
    %10040 = vmatprep.subr.bf16.mxu0 0
    %10041 = vmatpush1.bf16.msra.mxu0 %v7245
    %10042 = vmatprep.subr.bf16.mxu0 0
    %10043 = vmatpush1.bf16.msra.mxu0 %v7252
    %10044 = vmatprep.subr.bf16.mxu0 0
    %10045 = vmatpush1.bf16.msra.mxu0 %v7259
    %10046 = vmatprep.subr.bf16.mxu0 0
    %10047 = vmatpush1.bf16.msra.mxu0 %v7266
    %10048 = vmatprep.subr.bf16.mxu0 0
    %10049 = vmatpush1.bf16.msra.mxu0 %v7273
    %10050 = vmatprep.subr.bf16.mxu0 0
    %10051 = vmatpush1.bf16.msra.mxu0 %v7280
    %10052 = vmatprep.subr.bf16.mxu0 0
    %10053 = vmatpush1.bf16.msra.mxu0 %v7287
    %10054 = vmatprep.subr.bf16.mxu0 0
    %10055 = vmatpush1.bf16.msra.mxu0 %v7294
    %10056 = vmatprep.subr.bf16.mxu0 0
    %10057 = vmatpush1.bf16.msra.mxu0 %v7301
    %10058 = vmatprep.subr.bf16.mxu0 0
    %10059 = vmatpush1.bf16.msra.mxu0 %v7308
    %10060 = vmatprep.subr.bf16.mxu0 0
    %10061 = vmatpush1.bf16.msra.mxu0 %v7315
    %10062 = vmatprep.subr.bf16.mxu0 0
    %10063 = vmatpush1.bf16.msra.mxu0 %v7322
    %10064 = vmatprep.subr.bf16.mxu0 0
    %10065 = vmatpush1.bf16.msra.mxu0 %v7329
    %10066 = vmatprep.subr.bf16.mxu0 0
    %10067 = vmatpush1.bf16.msra.mxu0 %v7336
    %10068 = vmatprep.subr.bf16.mxu0 0
    %10069 = vmatpush1.bf16.msra.mxu0 %v7343
    %10070 = vmatprep.subr.bf16.mxu0 0
    %10071 = vmatpush1.bf16.msra.mxu0 %v7350
    %10072 = vmatprep.mubr.bf16.mxu0 %v7112
    %10073 = vmatmul.mubr.bf16.gmra.mrb[0].mxu0 %v7111
    %v10074 = vpop.f32.mrb[0].mxu0
    %v10075 = vadd.f32 %v7716, %v10074
    %v10076 = vpop.f32.mrb[0].mxu0
    %v10077 = vpop.f32.mrb[0].mxu0
    %v10078 = vadd.f32 %v7716, %v10077
    %v10079 = vpop.f32.mrb[0].mxu0
    %10080 = vmatprep.mubr.bf16.mxu0 %v7120
    %10081 = vmatmul.mubr.bf16.gmra.mrb[0].mxu0 %v7119
    %v10082 = vpop.f32.mrb[0].mxu0
    %v10083 = vadd.f32 %v7716, %v10082
    %v10084 = vpop.f32.mrb[0].mxu0
    %v10085 = vpop.f32.mrb[0].mxu0
    %v10086 = vadd.f32 %v7716, %v10085
    %v10087 = vpop.f32.mrb[0].mxu0
    %10088 = vmatprep.mubr.bf16.mxu0 %v7128
    %10089 = vmatmul.mubr.bf16.gmra.mrb[0].mxu0 %v7127
    %v10090 = vpop.f32.mrb[0].mxu0
    %v10091 = vadd.f32 %v7716, %v10090
    %v10092 = vpop.f32.mrb[0].mxu0
    %v10093 = vpop.f32.mrb[0].mxu0
    %v10094 = vadd.f32 %v7716, %v10093
    %v10095 = vpop.f32.mrb[0].mxu0
    %10096 = vmatprep.mubr.bf16.mxu0 %v7136
    %10097 = vmatmul.mubr.bf16.gmra.mrb[0].mxu0 %v7135
    %v10098 = vpop.f32.mrb[0].mxu0
    %v10099 = vadd.f32 %v7716, %v10098
    %v10100 = vpop.f32.mrb[0].mxu0
    %v10101 = vpop.f32.mrb[0].mxu0
    %v10102 = vadd.f32 %v7716, %v10101
    %v10103 = vpop.f32.mrb[0].mxu0
    %10104 = vmatprep.mubr.bf16.mxu0 %v7144
    %10105 = vmatmul.mubr.bf16.gmra.mrb[0].mxu0 %v7143
    %v10106 = vpop.f32.mrb[0].mxu0
    %v10107 = vadd.f32 %v7716, %v10106
    %v10108 = vpop.f32.mrb[0].mxu0
    %v10109 = vpop.f32.mrb[0].mxu0
    %v10110 = vadd.f32 %v7716, %v10109
    %v10111 = vpop.f32.mrb[0].mxu0
    %10112 = vmatprep.mubr.bf16.mxu0 %v7152
    %10113 = vmatmul.mubr.bf16.gmra.mrb[0].mxu0 %v7151
    %v10114 = vpop.f32.mrb[0].mxu0
    %v10115 = vadd.f32 %v7716, %v10114
    %v10116 = vpop.f32.mrb[0].mxu0
    %v10117 = vpop.f32.mrb[0].mxu0
    %v10118 = vadd.f32 %v7716, %v10117
    %v10119 = vpop.f32.mrb[0].mxu0
    %10120 = vmatprep.mubr.bf16.mxu0 %v7160
    %10121 = vmatmul.mubr.bf16.gmra.mrb[0].mxu0 %v7159
    %v10122 = vpop.f32.mrb[0].mxu0
    %v10123 = vadd.f32 %v7716, %v10122
    %v10124 = vpop.f32.mrb[0].mxu0
    %v10125 = vpop.f32.mrb[0].mxu0
    %v10126 = vadd.f32 %v7716, %v10125
    %v10127 = vpop.f32.mrb[0].mxu0
    %10128 = vmatprep.mubr.bf16.mxu0 %v7168
    %10129 = vmatmul.mubr.bf16.gmra.mrb[0].mxu0 %v7167
    %v10130 = vpop.f32.mrb[0].mxu0
    %v10131 = vadd.f32 %v7716, %v10130
    %v10132 = vpop.f32.mrb[0].mxu0
    %v10133 = vpop.f32.mrb[0].mxu0
    %v10134 = vadd.f32 %v7716, %v10133
    %v10135 = vpop.f32.mrb[0].mxu0
    %10136 = vmatprep.mubr.bf16.mxu0 %v7176
    %10137 = vmatmul.mubr.bf16.gmra.mrb[0].mxu0 %v7175
    %v10138 = vpop.f32.mrb[0].mxu0
    %v10139 = vadd.f32 %v7716, %v10138
    %v10140 = vpop.f32.mrb[0].mxu0
    %v10141 = vpop.f32.mrb[0].mxu0
    %v10142 = vadd.f32 %v7716, %v10141
    %v10143 = vpop.f32.mrb[0].mxu0
    %10144 = vmatprep.mubr.bf16.mxu0 %v7184
    %10145 = vmatmul.mubr.bf16.gmra.mrb[0].mxu0 %v7183
    %v10146 = vpop.f32.mrb[0].mxu0
    %v10147 = vadd.f32 %v7716, %v10146
    %v10148 = vpop.f32.mrb[0].mxu0
    %v10149 = vpop.f32.mrb[0].mxu0
    %v10150 = vadd.f32 %v7716, %v10149
    %v10151 = vpop.f32.mrb[0].mxu0
    %10152 = vmatprep.mubr.bf16.mxu0 %v7192
    %10153 = vmatmul.mubr.bf16.gmra.mrb[0].mxu0 %v7191
    %v10154 = vpop.f32.mrb[0].mxu0
    %v10155 = vadd.f32 %v7716, %v10154
    %v10156 = vpop.f32.mrb[0].mxu0
    %v10157 = vpop.f32.mrb[0].mxu0
    %v10158 = vadd.f32 %v7716, %v10157
    %v10159 = vpop.f32.mrb[0].mxu0
    %10160 = vmatprep.mubr.bf16.mxu0 %v7200
    %10161 = vmatmul.mubr.bf16.gmra.mrb[0].mxu0 %v7199
    %v10162 = vpop.f32.mrb[0].mxu0
    %v10163 = vadd.f32 %v7716, %v10162
    %v10164 = vpop.f32.mrb[0].mxu0
    %v10165 = vpop.f32.mrb[0].mxu0
    %v10166 = vadd.f32 %v7716, %v10165
    %v10167 = vpop.f32.mrb[0].mxu0
    %10168 = vmatprep.mubr.bf16.mxu0 %v7208
    %10169 = vmatmul.mubr.bf16.gmra.mrb[0].mxu0 %v7207
    %v10170 = vpop.f32.mrb[0].mxu0
    %v10171 = vadd.f32 %v7716, %v10170
    %v10172 = vpop.f32.mrb[0].mxu0
    %v10173 = vpop.f32.mrb[0].mxu0
    %v10174 = vadd.f32 %v7716, %v10173
    %v10175 = vpop.f32.mrb[0].mxu0
    %10176 = vmatprep.mubr.bf16.mxu0 %v7216
    %10177 = vmatmul.mubr.bf16.gmra.mrb[0].mxu0 %v7215
    %v10178 = vpop.f32.mrb[0].mxu0
    %v10179 = vadd.f32 %v7716, %v10178
    %v10180 = vpop.f32.mrb[0].mxu0
    %v10181 = vpop.f32.mrb[0].mxu0
    %v10182 = vadd.f32 %v7716, %v10181
    %v10183 = vpop.f32.mrb[0].mxu0
    %10184 = vmatprep.mubr.bf16.mxu0 %v7224
    %10185 = vmatmul.mubr.bf16.gmra.mrb[0].mxu0 %v7223
    %v10186 = vpop.f32.mrb[0].mxu0
    %v10187 = vadd.f32 %v7716, %v10186
    %v10188 = vpop.f32.mrb[0].mxu0
    %v10189 = vpop.f32.mrb[0].mxu0
    %v10190 = vadd.f32 %v7716, %v10189
    %v10191 = vpop.f32.mrb[0].mxu0
    %10192 = vmatprep.mubr.bf16.mxu0 %v7232
    %10193 = vmatmul.mubr.bf16.gmra.mrb[0].mxu0 %v7231
    %v10194 = vpop.f32.mrb[0].mxu0
    %v10195 = vadd.f32 %v7716, %v10194
    %v10196 = vpop.f32.mrb[0].mxu0
    %v10197 = vpop.f32.mrb[0].mxu0
    %v10198 = vadd.f32 %v7716, %v10197
    %v10199 = vpop.f32.mrb[0].mxu0
    %10200 = vdwg.mxu0
    %10201 = vmatprep.subr.bf16.mxu0 0
    %10202 = vmatpush1.bf16.msra.mxu0 %v7357
    %10203 = vmatprep.subr.bf16.mxu0 0
    %10204 = vmatpush1.bf16.msra.mxu0 %v7364
    %10205 = vmatprep.subr.bf16.mxu0 0
    %10206 = vmatpush1.bf16.msra.mxu0 %v7371
    %10207 = vmatprep.subr.bf16.mxu0 0
    %10208 = vmatpush1.bf16.msra.mxu0 %v7378
    %10209 = vmatprep.subr.bf16.mxu0 0
    %10210 = vmatpush1.bf16.msra.mxu0 %v7385
    %10211 = vmatprep.subr.bf16.mxu0 0
    %10212 = vmatpush1.bf16.msra.mxu0 %v7392
    %10213 = vmatprep.subr.bf16.mxu0 0
    %10214 = vmatpush1.bf16.msra.mxu0 %v7399
    %10215 = vmatprep.subr.bf16.mxu0 0
    %10216 = vmatpush1.bf16.msra.mxu0 %v7406
    %10217 = vmatprep.subr.bf16.mxu0 0
    %10218 = vmatpush1.bf16.msra.mxu0 %v7413
    %10219 = vmatprep.subr.bf16.mxu0 0
    %10220 = vmatpush1.bf16.msra.mxu0 %v7420
    %10221 = vmatprep.subr.bf16.mxu0 0
    %10222 = vmatpush1.bf16.msra.mxu0 %v7427
    %10223 = vmatprep.subr.bf16.mxu0 0
    %10224 = vmatpush1.bf16.msra.mxu0 %v7434
    %10225 = vmatprep.subr.bf16.mxu0 0
    %10226 = vmatpush1.bf16.msra.mxu0 %v7441
    %10227 = vmatprep.subr.bf16.mxu0 0
    %10228 = vmatpush1.bf16.msra.mxu0 %v7448
    %10229 = vmatprep.subr.bf16.mxu0 0
    %10230 = vmatpush1.bf16.msra.mxu0 %v7455
    %10231 = vmatprep.subr.bf16.mxu0 0
    %10232 = vmatpush1.bf16.msra.mxu0 %v7462
    %10233 = vmatprep.mubr.bf16.mxu0 %v7114
    %10234 = vmatmul.mubr.bf16.gmra.mrb[0].mxu0 %v7113
    %v10235 = vpop.f32.mrb[0].mxu0
    %v10236 = vadd.f32 %v10075, %v10235
    %v10237 = vpop.f32.mrb[0].mxu0
    %v10238 = vpop.f32.mrb[0].mxu0
    %v10239 = vadd.f32 %v10078, %v10238
    %v10240 = vpop.f32.mrb[0].mxu0
    %10241 = vmatprep.mubr.bf16.mxu0 %v7122
    %10242 = vmatmul.mubr.bf16.gmra.mrb[0].mxu0 %v7121
    %v10243 = vpop.f32.mrb[0].mxu0
    %v10244 = vadd.f32 %v10083, %v10243
    %v10245 = vpop.f32.mrb[0].mxu0
    %v10246 = vpop.f32.mrb[0].mxu0
    %v10247 = vadd.f32 %v10086, %v10246
    %v10248 = vpop.f32.mrb[0].mxu0
    %10249 = vmatprep.mubr.bf16.mxu0 %v7130
    %10250 = vmatmul.mubr.bf16.gmra.mrb[0].mxu0 %v7129
    %v10251 = vpop.f32.mrb[0].mxu0
    %v10252 = vadd.f32 %v10091, %v10251
    %v10253 = vpop.f32.mrb[0].mxu0
    %v10254 = vpop.f32.mrb[0].mxu0
    %v10255 = vadd.f32 %v10094, %v10254
    %v10256 = vpop.f32.mrb[0].mxu0
    %10257 = vmatprep.mubr.bf16.mxu0 %v7138
    %10258 = vmatmul.mubr.bf16.gmra.mrb[0].mxu0 %v7137
    %v10259 = vpop.f32.mrb[0].mxu0
    %v10260 = vadd.f32 %v10099, %v10259
    %v10261 = vpop.f32.mrb[0].mxu0
    %v10262 = vpop.f32.mrb[0].mxu0
    %v10263 = vadd.f32 %v10102, %v10262
    %v10264 = vpop.f32.mrb[0].mxu0
    %10265 = vmatprep.mubr.bf16.mxu0 %v7146
    %10266 = vmatmul.mubr.bf16.gmra.mrb[0].mxu0 %v7145
    %v10267 = vpop.f32.mrb[0].mxu0
    %v10268 = vadd.f32 %v10107, %v10267
    %v10269 = vpop.f32.mrb[0].mxu0
    %v10270 = vpop.f32.mrb[0].mxu0
    %v10271 = vadd.f32 %v10110, %v10270
    %v10272 = vpop.f32.mrb[0].mxu0
    %10273 = vmatprep.mubr.bf16.mxu0 %v7154
    %10274 = vmatmul.mubr.bf16.gmra.mrb[0].mxu0 %v7153
    %v10275 = vpop.f32.mrb[0].mxu0
    %v10276 = vadd.f32 %v10115, %v10275
    %v10277 = vpop.f32.mrb[0].mxu0
    %v10278 = vpop.f32.mrb[0].mxu0
    %v10279 = vadd.f32 %v10118, %v10278
    %v10280 = vpop.f32.mrb[0].mxu0
    %10281 = vmatprep.mubr.bf16.mxu0 %v7162
    %10282 = vmatmul.mubr.bf16.gmra.mrb[0].mxu0 %v7161
    %v10283 = vpop.f32.mrb[0].mxu0
    %v10284 = vadd.f32 %v10123, %v10283
    %v10285 = vpop.f32.mrb[0].mxu0
    %v10286 = vpop.f32.mrb[0].mxu0
    %v10287 = vadd.f32 %v10126, %v10286
    %v10288 = vpop.f32.mrb[0].mxu0
    %10289 = vmatprep.mubr.bf16.mxu0 %v7170
    %10290 = vmatmul.mubr.bf16.gmra.mrb[0].mxu0 %v7169
    %v10291 = vpop.f32.mrb[0].mxu0
    %v10292 = vadd.f32 %v10131, %v10291
    %v10293 = vpop.f32.mrb[0].mxu0
    %v10294 = vpop.f32.mrb[0].mxu0
    %v10295 = vadd.f32 %v10134, %v10294
    %v10296 = vpop.f32.mrb[0].mxu0
    %10297 = vmatprep.mubr.bf16.mxu0 %v7178
    %10298 = vmatmul.mubr.bf16.gmra.mrb[0].mxu0 %v7177
    %v10299 = vpop.f32.mrb[0].mxu0
    %v10300 = vadd.f32 %v10139, %v10299
    %v10301 = vpop.f32.mrb[0].mxu0
    %v10302 = vpop.f32.mrb[0].mxu0
    %v10303 = vadd.f32 %v10142, %v10302
    %v10304 = vpop.f32.mrb[0].mxu0
    %10305 = vmatprep.mubr.bf16.mxu0 %v7186
    %10306 = vmatmul.mubr.bf16.gmra.mrb[0].mxu0 %v7185
    %v10307 = vpop.f32.mrb[0].mxu0
    %v10308 = vadd.f32 %v10147, %v10307
    %v10309 = vpop.f32.mrb[0].mxu0
    %v10310 = vpop.f32.mrb[0].mxu0
    %v10311 = vadd.f32 %v10150, %v10310
    %v10312 = vpop.f32.mrb[0].mxu0
    %10313 = vmatprep.mubr.bf16.mxu0 %v7194
    %10314 = vmatmul.mubr.bf16.gmra.mrb[0].mxu0 %v7193
    %v10315 = vpop.f32.mrb[0].mxu0
    %v10316 = vadd.f32 %v10155, %v10315
    %v10317 = vpop.f32.mrb[0].mxu0
    %v10318 = vpop.f32.mrb[0].mxu0
    %v10319 = vadd.f32 %v10158, %v10318
    %v10320 = vpop.f32.mrb[0].mxu0
    %10321 = vmatprep.mubr.bf16.mxu0 %v7202
    %10322 = vmatmul.mubr.bf16.gmra.mrb[0].mxu0 %v7201
    %v10323 = vpop.f32.mrb[0].mxu0
    %v10324 = vadd.f32 %v10163, %v10323
    %v10325 = vpop.f32.mrb[0].mxu0
    %v10326 = vpop.f32.mrb[0].mxu0
    %v10327 = vadd.f32 %v10166, %v10326
    %v10328 = vpop.f32.mrb[0].mxu0
    %10329 = vmatprep.mubr.bf16.mxu0 %v7210
    %10330 = vmatmul.mubr.bf16.gmra.mrb[0].mxu0 %v7209
    %v10331 = vpop.f32.mrb[0].mxu0
    %v10332 = vadd.f32 %v10171, %v10331
    %v10333 = vpop.f32.mrb[0].mxu0
    %v10334 = vpop.f32.mrb[0].mxu0
    %v10335 = vadd.f32 %v10174, %v10334
    %v10336 = vpop.f32.mrb[0].mxu0
    %10337 = vmatprep.mubr.bf16.mxu0 %v7218
    %10338 = vmatmul.mubr.bf16.gmra.mrb[0].mxu0 %v7217
    %v10339 = vpop.f32.mrb[0].mxu0
    %v10340 = vadd.f32 %v10179, %v10339
    %v10341 = vpop.f32.mrb[0].mxu0
    %v10342 = vpop.f32.mrb[0].mxu0
    %v10343 = vadd.f32 %v10182, %v10342
    %v10344 = vpop.f32.mrb[0].mxu0
    %10345 = vmatprep.mubr.bf16.mxu0 %v7226
    %10346 = vmatmul.mubr.bf16.gmra.mrb[0].mxu0 %v7225
    %v10347 = vpop.f32.mrb[0].mxu0
    %v10348 = vadd.f32 %v10187, %v10347
    %v10349 = vpop.f32.mrb[0].mxu0
    %v10350 = vpop.f32.mrb[0].mxu0
    %v10351 = vadd.f32 %v10190, %v10350
    %v10352 = vpop.f32.mrb[0].mxu0
    %10353 = vmatprep.mubr.bf16.mxu0 %v7234
    %10354 = vmatmul.mubr.bf16.gmra.mrb[0].mxu0 %v7233
    %v10355 = vpop.f32.mrb[0].mxu0
    %v10356 = vadd.f32 %v10195, %v10355
    %v10357 = vpop.f32.mrb[0].mxu0
    %v10358 = vpop.f32.mrb[0].mxu0
    %v10359 = vadd.f32 %v10198, %v10358
    %v10360 = vpop.f32.mrb[0].mxu0
    %10361 = vdwg.mxu0
    %10362 = vmatprep.subr.bf16.mxu0 0
    %10363 = vmatpush1.bf16.msra.mxu0 %v7469
    %10364 = vmatprep.subr.bf16.mxu0 0
    %10365 = vmatpush1.bf16.msra.mxu0 %v7476
    %10366 = vmatprep.subr.bf16.mxu0 0
    %10367 = vmatpush1.bf16.msra.mxu0 %v7483
    %10368 = vmatprep.subr.bf16.mxu0 0
    %10369 = vmatpush1.bf16.msra.mxu0 %v7490
    %10370 = vmatprep.subr.bf16.mxu0 0
    %10371 = vmatpush1.bf16.msra.mxu0 %v7497
    %10372 = vmatprep.subr.bf16.mxu0 0
    %10373 = vmatpush1.bf16.msra.mxu0 %v7504
    %10374 = vmatprep.subr.bf16.mxu0 0
    %10375 = vmatpush1.bf16.msra.mxu0 %v7511
    %10376 = vmatprep.subr.bf16.mxu0 0
    %10377 = vmatpush1.bf16.msra.mxu0 %v7518
    %10378 = vmatprep.subr.bf16.mxu0 0
    %10379 = vmatpush1.bf16.msra.mxu0 %v7525
    %10380 = vmatprep.subr.bf16.mxu0 0
    %10381 = vmatpush1.bf16.msra.mxu0 %v7532
    %10382 = vmatprep.subr.bf16.mxu0 0
    %10383 = vmatpush1.bf16.msra.mxu0 %v7539
    %10384 = vmatprep.subr.bf16.mxu0 0
    %10385 = vmatpush1.bf16.msra.mxu0 %v7546
    %10386 = vmatprep.subr.bf16.mxu0 0
    %10387 = vmatpush1.bf16.msra.mxu0 %v7553
    %10388 = vmatprep.subr.bf16.mxu0 0
    %10389 = vmatpush1.bf16.msra.mxu0 %v7560
    %10390 = vmatprep.subr.bf16.mxu0 0
    %10391 = vmatpush1.bf16.msra.mxu0 %v7567
    %10392 = vmatprep.subr.bf16.mxu0 0
    %10393 = vmatpush1.bf16.msra.mxu0 %v7574
    %10394 = vmatprep.mubr.bf16.mxu0 %v7116
    %10395 = vmatmul.mubr.bf16.gmra.mrb[0].mxu0 %v7115
    %v10396 = vpop.f32.mrb[0].mxu0
    %v10397 = vadd.f32 %v10236, %v10396
    %v10398 = vpop.f32.mrb[0].mxu0
    %v10399 = vpop.f32.mrb[0].mxu0
    %v10400 = vadd.f32 %v10239, %v10399
    %v10401 = vpop.f32.mrb[0].mxu0
    %10402 = vmatprep.mubr.bf16.mxu0 %v7124
    %10403 = vmatmul.mubr.bf16.gmra.mrb[0].mxu0 %v7123
    %v10404 = vpop.f32.mrb[0].mxu0
    %v10405 = vadd.f32 %v10244, %v10404
    %v10406 = vpop.f32.mrb[0].mxu0
    %v10407 = vpop.f32.mrb[0].mxu0
    %v10408 = vadd.f32 %v10247, %v10407
    %v10409 = vpop.f32.mrb[0].mxu0
    %10410 = vmatprep.mubr.bf16.mxu0 %v7132
    %10411 = vmatmul.mubr.bf16.gmra.mrb[0].mxu0 %v7131
    %v10412 = vpop.f32.mrb[0].mxu0
    %v10413 = vadd.f32 %v10252, %v10412
    %v10414 = vpop.f32.mrb[0].mxu0
    %v10415 = vpop.f32.mrb[0].mxu0
    %v10416 = vadd.f32 %v10255, %v10415
    %v10417 = vpop.f32.mrb[0].mxu0
    %10418 = vmatprep.mubr.bf16.mxu0 %v7140
    %10419 = vmatmul.mubr.bf16.gmra.mrb[0].mxu0 %v7139
    %v10420 = vpop.f32.mrb[0].mxu0
    %v10421 = vadd.f32 %v10260, %v10420
    %v10422 = vpop.f32.mrb[0].mxu0
    %v10423 = vpop.f32.mrb[0].mxu0
    %v10424 = vadd.f32 %v10263, %v10423
    %v10425 = vpop.f32.mrb[0].mxu0
    %10426 = vmatprep.mubr.bf16.mxu0 %v7148
    %10427 = vmatmul.mubr.bf16.gmra.mrb[0].mxu0 %v7147
    %v10428 = vpop.f32.mrb[0].mxu0
    %v10429 = vadd.f32 %v10268, %v10428
    %v10430 = vpop.f32.mrb[0].mxu0
    %v10431 = vpop.f32.mrb[0].mxu0
    %v10432 = vadd.f32 %v10271, %v10431
    %v10433 = vpop.f32.mrb[0].mxu0
    %10434 = vmatprep.mubr.bf16.mxu0 %v7156
    %10435 = vmatmul.mubr.bf16.gmra.mrb[0].mxu0 %v7155
    %v10436 = vpop.f32.mrb[0].mxu0
    %v10437 = vadd.f32 %v10276, %v10436
    %v10438 = vpop.f32.mrb[0].mxu0
    %v10439 = vpop.f32.mrb[0].mxu0
    %v10440 = vadd.f32 %v10279, %v10439
    %v10441 = vpop.f32.mrb[0].mxu0
    %10442 = vmatprep.mubr.bf16.mxu0 %v7164
    %10443 = vmatmul.mubr.bf16.gmra.mrb[0].mxu0 %v7163
    %v10444 = vpop.f32.mrb[0].mxu0
    %v10445 = vadd.f32 %v10284, %v10444
    %v10446 = vpop.f32.mrb[0].mxu0
    %v10447 = vpop.f32.mrb[0].mxu0
    %v10448 = vadd.f32 %v10287, %v10447
    %v10449 = vpop.f32.mrb[0].mxu0
    %10450 = vmatprep.mubr.bf16.mxu0 %v7172
    %10451 = vmatmul.mubr.bf16.gmra.mrb[0].mxu0 %v7171
    %v10452 = vpop.f32.mrb[0].mxu0
    %v10453 = vadd.f32 %v10292, %v10452
    %v10454 = vpop.f32.mrb[0].mxu0
    %v10455 = vpop.f32.mrb[0].mxu0
    %v10456 = vadd.f32 %v10295, %v10455
    %v10457 = vpop.f32.mrb[0].mxu0
    %10458 = vmatprep.mubr.bf16.mxu0 %v7180
    %10459 = vmatmul.mubr.bf16.gmra.mrb[0].mxu0 %v7179
    %v10460 = vpop.f32.mrb[0].mxu0
    %v10461 = vadd.f32 %v10300, %v10460
    %v10462 = vpop.f32.mrb[0].mxu0
    %v10463 = vpop.f32.mrb[0].mxu0
    %v10464 = vadd.f32 %v10303, %v10463
    %v10465 = vpop.f32.mrb[0].mxu0
    %10466 = vmatprep.mubr.bf16.mxu0 %v7188
    %10467 = vmatmul.mubr.bf16.gmra.mrb[0].mxu0 %v7187
    %v10468 = vpop.f32.mrb[0].mxu0
    %v10469 = vadd.f32 %v10308, %v10468
    %v10470 = vpop.f32.mrb[0].mxu0
    %v10471 = vpop.f32.mrb[0].mxu0
    %v10472 = vadd.f32 %v10311, %v10471
    %v10473 = vpop.f32.mrb[0].mxu0
    %10474 = vmatprep.mubr.bf16.mxu0 %v7196
    %10475 = vmatmul.mubr.bf16.gmra.mrb[0].mxu0 %v7195
    %v10476 = vpop.f32.mrb[0].mxu0
    %v10477 = vadd.f32 %v10316, %v10476
    %v10478 = vpop.f32.mrb[0].mxu0
    %v10479 = vpop.f32.mrb[0].mxu0
    %v10480 = vadd.f32 %v10319, %v10479
    %v10481 = vpop.f32.mrb[0].mxu0
    %10482 = vmatprep.mubr.bf16.mxu0 %v7204
    %10483 = vmatmul.mubr.bf16.gmra.mrb[0].mxu0 %v7203
    %v10484 = vpop.f32.mrb[0].mxu0
    %v10485 = vadd.f32 %v10324, %v10484
    %v10486 = vpop.f32.mrb[0].mxu0
    %v10487 = vpop.f32.mrb[0].mxu0
    %v10488 = vadd.f32 %v10327, %v10487
    %v10489 = vpop.f32.mrb[0].mxu0
    %10490 = vmatprep.mubr.bf16.mxu0 %v7212
    %10491 = vmatmul.mubr.bf16.gmra.mrb[0].mxu0 %v7211
    %v10492 = vpop.f32.mrb[0].mxu0
    %v10493 = vadd.f32 %v10332, %v10492
    %v10494 = vpop.f32.mrb[0].mxu0
    %v10495 = vpop.f32.mrb[0].mxu0
    %v10496 = vadd.f32 %v10335, %v10495
    %v10497 = vpop.f32.mrb[0].mxu0
    %10498 = vmatprep.mubr.bf16.mxu0 %v7220
    %10499 = vmatmul.mubr.bf16.gmra.mrb[0].mxu0 %v7219
    %v10500 = vpop.f32.mrb[0].mxu0
    %v10501 = vadd.f32 %v10340, %v10500
    %v10502 = vpop.f32.mrb[0].mxu0
    %v10503 = vpop.f32.mrb[0].mxu0
    %v10504 = vadd.f32 %v10343, %v10503
    %v10505 = vpop.f32.mrb[0].mxu0
    %10506 = vmatprep.mubr.bf16.mxu0 %v7228
    %10507 = vmatmul.mubr.bf16.gmra.mrb[0].mxu0 %v7227
    %v10508 = vpop.f32.mrb[0].mxu0
    %v10509 = vadd.f32 %v10348, %v10508
    %v10510 = vpop.f32.mrb[0].mxu0
    %v10511 = vpop.f32.mrb[0].mxu0
    %v10512 = vadd.f32 %v10351, %v10511
    %v10513 = vpop.f32.mrb[0].mxu0
    %10514 = vmatprep.mubr.bf16.mxu0 %v7236
    %10515 = vmatmul.mubr.bf16.gmra.mrb[0].mxu0 %v7235
    %v10516 = vpop.f32.mrb[0].mxu0
    %v10517 = vadd.f32 %v10356, %v10516
    %v10518 = vpop.f32.mrb[0].mxu0
    %v10519 = vpop.f32.mrb[0].mxu0
    %v10520 = vadd.f32 %v10359, %v10519
    %v10521 = vpop.f32.mrb[0].mxu0
    %10522 = vdwg.mxu0
    %10523 = vmatprep.subr.bf16.mxu0 0
    %10524 = vmatpush1.bf16.msra.mxu0 %v7581
    %10525 = vmatprep.subr.bf16.mxu0 0
    %10526 = vmatpush1.bf16.msra.mxu0 %v7588
    %10527 = vmatprep.subr.bf16.mxu0 0
    %10528 = vmatpush1.bf16.msra.mxu0 %v7595
    %10529 = vmatprep.subr.bf16.mxu0 0
    %10530 = vmatpush1.bf16.msra.mxu0 %v7602
    %10531 = vmatprep.subr.bf16.mxu0 0
    %10532 = vmatpush1.bf16.msra.mxu0 %v7609
    %10533 = vmatprep.subr.bf16.mxu0 0
    %10534 = vmatpush1.bf16.msra.mxu0 %v7616
    %10535 = vmatprep.subr.bf16.mxu0 0
    %10536 = vmatpush1.bf16.msra.mxu0 %v7623
    %10537 = vmatprep.subr.bf16.mxu0 0
    %10538 = vmatpush1.bf16.msra.mxu0 %v7630
    %10539 = vmatprep.subr.bf16.mxu0 0
    %10540 = vmatpush1.bf16.msra.mxu0 %v7637
    %10541 = vmatprep.subr.bf16.mxu0 0
    %10542 = vmatpush1.bf16.msra.mxu0 %v7644
    %10543 = vmatprep.subr.bf16.mxu0 0
    %10544 = vmatpush1.bf16.msra.mxu0 %v7651
    %10545 = vmatprep.subr.bf16.mxu0 0
    %10546 = vmatpush1.bf16.msra.mxu0 %v7658
    %10547 = vmatprep.subr.bf16.mxu0 0
    %10548 = vmatpush1.bf16.msra.mxu0 %v7665
    %10549 = vmatprep.subr.bf16.mxu0 0
    %10550 = vmatpush1.bf16.msra.mxu0 %v7672
    %10551 = vmatprep.subr.bf16.mxu0 0
    %10552 = vmatpush1.bf16.msra.mxu0 %v7679
    %10553 = vmatprep.subr.bf16.mxu0 0
    %10554 = vmatpush1.bf16.msra.mxu0 %v7686
    %10555 = vmatprep.mubr.bf16.mxu0 %v7118
    %10556 = vmatmul.mubr.bf16.gmra.mrb[0].mxu0 %v7117
    %v10557 = vpop.f32.mrb[0].mxu0
    %v10558 = vadd.f32 %v10397, %v10557
    %v10559 = vpop.f32.mrb[0].mxu0
    %v10560 = vpop.f32.mrb[0].mxu0
    %v10561 = vadd.f32 %v10400, %v10560
    %v10562 = vpop.f32.mrb[0].mxu0
    %10563 = vmatprep.mubr.bf16.mxu0 %v7126
    %10564 = vmatmul.mubr.bf16.gmra.mrb[0].mxu0 %v7125
    %v10565 = vpop.f32.mrb[0].mxu0
    %v10566 = vadd.f32 %v10405, %v10565
    %v10567 = vpop.f32.mrb[0].mxu0
    %v10568 = vpop.f32.mrb[0].mxu0
    %v10569 = vadd.f32 %v10408, %v10568
    %v10570 = vpop.f32.mrb[0].mxu0
    %10571 = vmatprep.mubr.bf16.mxu0 %v7134
    %10572 = vmatmul.mubr.bf16.gmra.mrb[0].mxu0 %v7133
    %v10573 = vpop.f32.mrb[0].mxu0
    %v10574 = vadd.f32 %v10413, %v10573
    %v10575 = vpop.f32.mrb[0].mxu0
    %v10576 = vpop.f32.mrb[0].mxu0
    %v10577 = vadd.f32 %v10416, %v10576
    %v10578 = vpop.f32.mrb[0].mxu0
    %10579 = vmatprep.mubr.bf16.mxu0 %v7142
    %10580 = vmatmul.mubr.bf16.gmra.mrb[0].mxu0 %v7141
    %v10581 = vpop.f32.mrb[0].mxu0
    %v10582 = vadd.f32 %v10421, %v10581
    %v10583 = vpop.f32.mrb[0].mxu0
    %v10584 = vpop.f32.mrb[0].mxu0
    %v10585 = vadd.f32 %v10424, %v10584
    %v10586 = vpop.f32.mrb[0].mxu0
    %10587 = vmatprep.mubr.bf16.mxu0 %v7150
    %10588 = vmatmul.mubr.bf16.gmra.mrb[0].mxu0 %v7149
    %v10589 = vpop.f32.mrb[0].mxu0
    %v10590 = vadd.f32 %v10429, %v10589
    %v10591 = vpop.f32.mrb[0].mxu0
    %v10592 = vpop.f32.mrb[0].mxu0
    %v10593 = vadd.f32 %v10432, %v10592
    %v10594 = vpop.f32.mrb[0].mxu0
    %10595 = vmatprep.mubr.bf16.mxu0 %v7158
    %10596 = vmatmul.mubr.bf16.gmra.mrb[0].mxu0 %v7157
    %v10597 = vpop.f32.mrb[0].mxu0
    %v10598 = vadd.f32 %v10437, %v10597
    %v10599 = vpop.f32.mrb[0].mxu0
    %v10600 = vpop.f32.mrb[0].mxu0
    %v10601 = vadd.f32 %v10440, %v10600
    %v10602 = vpop.f32.mrb[0].mxu0
    %10603 = vmatprep.mubr.bf16.mxu0 %v7166
    %10604 = vmatmul.mubr.bf16.gmra.mrb[0].mxu0 %v7165
    %v10605 = vpop.f32.mrb[0].mxu0
    %v10606 = vadd.f32 %v10445, %v10605
    %v10607 = vpop.f32.mrb[0].mxu0
    %v10608 = vpop.f32.mrb[0].mxu0
    %v10609 = vadd.f32 %v10448, %v10608
    %v10610 = vpop.f32.mrb[0].mxu0
    %10611 = vmatprep.mubr.bf16.mxu0 %v7174
    %10612 = vmatmul.mubr.bf16.gmra.mrb[0].mxu0 %v7173
    %v10613 = vpop.f32.mrb[0].mxu0
    %v10614 = vadd.f32 %v10453, %v10613
    %v10615 = vpop.f32.mrb[0].mxu0
    %v10616 = vpop.f32.mrb[0].mxu0
    %v10617 = vadd.f32 %v10456, %v10616
    %v10618 = vpop.f32.mrb[0].mxu0
    %10619 = vmatprep.mubr.bf16.mxu0 %v7182
    %10620 = vmatmul.mubr.bf16.gmra.mrb[0].mxu0 %v7181
    %v10621 = vpop.f32.mrb[0].mxu0
    %v10622 = vadd.f32 %v10461, %v10621
    %v10623 = vpop.f32.mrb[0].mxu0
    %v10624 = vpop.f32.mrb[0].mxu0
    %v10625 = vadd.f32 %v10464, %v10624
    %v10626 = vpop.f32.mrb[0].mxu0
    %10627 = vmatprep.mubr.bf16.mxu0 %v7190
    %10628 = vmatmul.mubr.bf16.gmra.mrb[0].mxu0 %v7189
    %v10629 = vpop.f32.mrb[0].mxu0
    %v10630 = vadd.f32 %v10469, %v10629
    %v10631 = vpop.f32.mrb[0].mxu0
    %v10632 = vpop.f32.mrb[0].mxu0
    %v10633 = vadd.f32 %v10472, %v10632
    %v10634 = vpop.f32.mrb[0].mxu0
    %10635 = vmatprep.mubr.bf16.mxu0 %v7198
    %10636 = vmatmul.mubr.bf16.gmra.mrb[0].mxu0 %v7197
    %v10637 = vpop.f32.mrb[0].mxu0
    %v10638 = vadd.f32 %v10477, %v10637
    %v10639 = vpop.f32.mrb[0].mxu0
    %v10640 = vpop.f32.mrb[0].mxu0
    %v10641 = vadd.f32 %v10480, %v10640
    %v10642 = vpop.f32.mrb[0].mxu0
    %10643 = vmatprep.mubr.bf16.mxu0 %v7206
    %10644 = vmatmul.mubr.bf16.gmra.mrb[0].mxu0 %v7205
    %v10645 = vpop.f32.mrb[0].mxu0
    %v10646 = vadd.f32 %v10485, %v10645
    %v10647 = vpop.f32.mrb[0].mxu0
    %v10648 = vpop.f32.mrb[0].mxu0
    %v10649 = vadd.f32 %v10488, %v10648
    %v10650 = vpop.f32.mrb[0].mxu0
    %10651 = vmatprep.mubr.bf16.mxu0 %v7214
    %10652 = vmatmul.mubr.bf16.gmra.mrb[0].mxu0 %v7213
    %v10653 = vpop.f32.mrb[0].mxu0
    %v10654 = vadd.f32 %v10493, %v10653
    %v10655 = vpop.f32.mrb[0].mxu0
    %v10656 = vpop.f32.mrb[0].mxu0
    %v10657 = vadd.f32 %v10496, %v10656
    %v10658 = vpop.f32.mrb[0].mxu0
    %10659 = vmatprep.mubr.bf16.mxu0 %v7222
    %10660 = vmatmul.mubr.bf16.gmra.mrb[0].mxu0 %v7221
    %v10661 = vpop.f32.mrb[0].mxu0
    %v10662 = vadd.f32 %v10501, %v10661
    %v10663 = vpop.f32.mrb[0].mxu0
    %v10664 = vpop.f32.mrb[0].mxu0
    %v10665 = vadd.f32 %v10504, %v10664
    %v10666 = vpop.f32.mrb[0].mxu0
    %10667 = vmatprep.mubr.bf16.mxu0 %v7230
    %10668 = vmatmul.mubr.bf16.gmra.mrb[0].mxu0 %v7229
    %v10669 = vpop.f32.mrb[0].mxu0
    %v10670 = vadd.f32 %v10509, %v10669
    %v10671 = vpop.f32.mrb[0].mxu0
    %v10672 = vpop.f32.mrb[0].mxu0
    %v10673 = vadd.f32 %v10512, %v10672
    %v10674 = vpop.f32.mrb[0].mxu0
    %10675 = vmatprep.mubr.bf16.mxu0 %v7238
    %10676 = vmatmul.mubr.bf16.gmra.mrb[0].mxu0 %v7237
    %v10677 = vpop.f32.mrb[0].mxu0
    %v10678 = vadd.f32 %v10517, %v10677
    %v10679 = vpop.f32.mrb[0].mxu0
    %v10680 = vpop.f32.mrb[0].mxu0
    %v10681 = vadd.f32 %v10520, %v10680
    %v10682 = vpop.f32.mrb[0].mxu0
    %10683 = vdwg.mxu0
    %v10684 = vtanh.pop %v8338
    %v10685 = vtanh.pop %v8340
    %v10686 = vtanh.pop %v9110
    %v10687 = vtanh.pop %v9112
    %v10688 = vtanh.pop %v9882
    %v10689 = vtanh.pop %v9884
    %v10690 = vtanh.pop %v10558
    %v10691 = vtanh.pop %v8342
    %v10692 = vtanh.pop %v8344
    %v10693 = vtanh.pop %v9114
    %v10694 = vtanh.pop %v9116
    %v10695 = vtanh.pop %v9886
    %v10696 = vtanh.pop %v9888
    %v10697 = vtanh.pop %v10561
    %v10698 = vtanh.pop %v8348
    %v10699 = vtanh.pop %v8350
    %v10700 = vtanh.pop %v9120
    %v10701 = vtanh.pop %v9122
    %v10702 = vtanh.pop %v9892
    %v10703 = vtanh.pop %v9894
    %v10704 = vtanh.pop %v10566
    %v10705 = vtanh.pop %v8352
    %v10706 = vtanh.pop %v8354
    %v10707 = vtanh.pop %v9124
    %v10708 = vtanh.pop %v9126
    %v10709 = vtanh.pop %v9896
    %v10710 = vtanh.pop %v9898
    %v10711 = vtanh.pop %v10569
    %v10712 = vtanh.pop %v8358
    %v10713 = vtanh.pop %v8360
    %v10714 = vtanh.pop %v9130
    %v10715 = vtanh.pop %v9132
    %v10716 = vtanh.pop %v9902
    %v10717 = vtanh.pop %v9904
    %v10718 = vtanh.pop %v10574
    %v10719 = vtanh.pop %v8362
    %v10720 = vtanh.pop %v8364
    %v10721 = vtanh.pop %v9134
    %v10722 = vtanh.pop %v9136
    %v10723 = vtanh.pop %v9906
    %v10724 = vtanh.pop %v9908
    %v10725 = vtanh.pop %v10577
    %v10726 = vtanh.pop %v8368
    %v10727 = vtanh.pop %v8370
    %v10728 = vtanh.pop %v9140
    %v10729 = vtanh.pop %v9142
    %v10730 = vtanh.pop %v9912
    %v10731 = vtanh.pop %v9914
    %v10732 = vtanh.pop %v10582
    %v10733 = vtanh.pop %v8372
    %v10734 = vtanh.pop %v8374
    %v10735 = vtanh.pop %v9144
    %v10736 = vtanh.pop %v9146
    %v10737 = vtanh.pop %v9916
    %v10738 = vtanh.pop %v9918
    %v10739 = vtanh.pop %v10585
    %v10740 = vtanh.pop %v8378
    %v10741 = vtanh.pop %v8380
    %v10742 = vtanh.pop %v9150
    %v10743 = vtanh.pop %v9152
    %v10744 = vtanh.pop %v9922
    %v10745 = vtanh.pop %v9924
    %v10746 = vtanh.pop %v10590
    %v10747 = vtanh.pop %v8382
    %v10748 = vtanh.pop %v8384
    %v10749 = vtanh.pop %v9154
    %v10750 = vtanh.pop %v9156
    %v10751 = vtanh.pop %v9926
    %v10752 = vtanh.pop %v9928
    %v10753 = vtanh.pop %v10593
    %v10754 = vtanh.pop %v8388
    %v10755 = vtanh.pop %v8390
    %v10756 = vtanh.pop %v9160
    %v10757 = vtanh.pop %v9162
    %v10758 = vtanh.pop %v9932
    %v10759 = vtanh.pop %v9934
    %v10760 = vtanh.pop %v10598
    %v10761 = vtanh.pop %v8392
    %v10762 = vtanh.pop %v8394
    %v10763 = vtanh.pop %v9164
    %v10764 = vtanh.pop %v9166
    %v10765 = vtanh.pop %v9936
    %v10766 = vtanh.pop %v9938
    %v10767 = vtanh.pop %v10601
    %v10768 = vtanh.pop %v8398
    %v10769 = vtanh.pop %v8400
    %v10770 = vtanh.pop %v9170
    %v10771 = vtanh.pop %v9172
    %v10772 = vtanh.pop %v9942
    %v10773 = vtanh.pop %v9944
    %v10774 = vtanh.pop %v10606
    %v10775 = vtanh.pop %v8402
    %v10776 = vtanh.pop %v8404
    %v10777 = vtanh.pop %v9174
    %v10778 = vtanh.pop %v9176
    %v10779 = vtanh.pop %v9946
    %v10780 = vtanh.pop %v9948
    %v10781 = vtanh.pop %v10609
    %v10782 = vtanh.pop %v8408
    %v10783 = vtanh.pop %v8410
    %v10784 = vtanh.pop %v9180
    %v10785 = vtanh.pop %v9182
    %v10786 = vtanh.pop %v9952
    %v10787 = vtanh.pop %v9954
    %v10788 = vtanh.pop %v10614
    %v10789 = vtanh.pop %v8412
    %v10790 = vtanh.pop %v8414
    %v10791 = vtanh.pop %v9184
    %v10792 = vtanh.pop %v9186
    %v10793 = vtanh.pop %v9956
    %v10794 = vtanh.pop %v9958
    %v10795 = vtanh.pop %v10617
    %v10796 = vtanh.pop %v8418
    %v10797 = vtanh.pop %v8420
    %v10798 = vtanh.pop %v9190
    %v10799 = vtanh.pop %v9192
    %v10800 = vtanh.pop %v9962
    %v10801 = vtanh.pop %v9964
    %v10802 = vtanh.pop %v10622
    %v10803 = vtanh.pop %v8422
    %v10804 = vtanh.pop %v8424
    %v10805 = vtanh.pop %v9194
    %v10806 = vtanh.pop %v9196
    %v10807 = vtanh.pop %v9966
    %v10808 = vtanh.pop %v9968
    %v10809 = vtanh.pop %v10625
    %v10810 = vtanh.pop %v8428
    %v10811 = vtanh.pop %v8430
    %v10812 = vtanh.pop %v9200
    %v10813 = vtanh.pop %v9202
    %v10814 = vtanh.pop %v9972
    %v10815 = vtanh.pop %v9974
    %v10816 = vtanh.pop %v10630
    %v10817 = vtanh.pop %v8432
    %v10818 = vtanh.pop %v8434
    %v10819 = vtanh.pop %v9204
    %v10820 = vtanh.pop %v9206
    %v10821 = vtanh.pop %v9976
    %v10822 = vtanh.pop %v9978
    %v10823 = vtanh.pop %v10633
    %v10824 = vtanh.pop %v8438
    %v10825 = vtanh.pop %v8440
    %v10826 = vtanh.pop %v9210
    %v10827 = vtanh.pop %v9212
    %v10828 = vtanh.pop %v9982
    %v10829 = vtanh.pop %v9984
    %v10830 = vtanh.pop %v10638
    %v10831 = vtanh.pop %v8442
    %v10832 = vtanh.pop %v8444
    %v10833 = vtanh.pop %v9214
    %v10834 = vtanh.pop %v9216
    %v10835 = vtanh.pop %v9986
    %v10836 = vtanh.pop %v9988
    %v10837 = vtanh.pop %v10641
    %v10838 = vtanh.pop %v8448
    %v10839 = vtanh.pop %v8450
    %v10840 = vtanh.pop %v9220
    %v10841 = vtanh.pop %v9222
    %v10842 = vtanh.pop %v9992
    %v10843 = vtanh.pop %v9994
    %v10844 = vtanh.pop %v10646
    %v10845 = vtanh.pop %v8452
    %v10846 = vtanh.pop %v8454
    %v10847 = vtanh.pop %v9224
    %v10848 = vtanh.pop %v9226
    %v10849 = vtanh.pop %v9996
    %v10850 = vtanh.pop %v9998
    %v10851 = vtanh.pop %v10649
    %v10852 = vtanh.pop %v8458
    %v10853 = vtanh.pop %v8460
    %v10854 = vtanh.pop %v9230
    %v10855 = vtanh.pop %v9232
    %v10856 = vtanh.pop %v10002
    %v10857 = vtanh.pop %v10004
    %v10858 = vtanh.pop %v10654
    %v10859 = vtanh.pop %v8462
    %v10860 = vtanh.pop %v8464
    %v10861 = vtanh.pop %v9234
    %v10862 = vtanh.pop %v9236
    %v10863 = vtanh.pop %v10006
    %v10864 = vtanh.pop %v10008
    %v10865 = vtanh.pop %v10657
    %v10866 = vtanh.pop %v8468
    %v10867 = vtanh.pop %v8470
    %v10868 = vtanh.pop %v9240
    %v10869 = vtanh.pop %v9242
    %v10870 = vtanh.pop %v10012
    %v10871 = vtanh.pop %v10014
    %v10872 = vtanh.pop %v10662
    %v10873 = vtanh.pop %v8472
    %v10874 = vtanh.pop %v8474
    %v10875 = vtanh.pop %v9244
    %v10876 = vtanh.pop %v9246
    %v10877 = vtanh.pop %v10016
    %v10878 = vtanh.pop %v10018
    %v10879 = vtanh.pop %v10665
    %v10880 = vtanh.pop %v8478
    %v10881 = vtanh.pop %v8480
    %v10882 = vtanh.pop %v9250
    %v10883 = vtanh.pop %v9252
    %v10884 = vtanh.pop %v10022
    %v10885 = vtanh.pop %v10024
    %v10886 = vtanh.pop %v10670
    %v10887 = vtanh.pop %v8482
    %v10888 = vtanh.pop %v8484
    %v10889 = vtanh.pop %v9254
    %v10890 = vtanh.pop %v9256
    %v10891 = vtanh.pop %v10026
    %v10892 = vtanh.pop %v10028
    %v10893 = vtanh.pop %v10673
    %v10894 = vtanh.pop %v8488
    %v10895 = vtanh.pop %v8490
    %v10896 = vtanh.pop %v9260
    %v10897 = vtanh.pop %v9262
    %v10898 = vtanh.pop %v10032
    %v10899 = vtanh.pop %v10034
    %v10900 = vtanh.pop %v10678
    %v10901 = vtanh.pop %v8492
    %v10902 = vtanh.pop %v8494
    %v10903 = vtanh.pop %v9264
    %v10904 = vtanh.pop %v9266
    %v10905 = vtanh.pop %v10036
    %v10906 = vtanh.pop %v10038
    %v10907 = vtanh.pop %v10681
    %10908 = vst [vmem:[%s14] sm:$0xff] %v10684
    %10909 = vst [vmem:[%s14 + $0x8] sm:$0xff] %v10685
    %10910 = vst [vmem:[%s14 + $0x10] sm:$0xff] %v10686
    %10911 = vst [vmem:[%s14 + $0x18] sm:$0xff] %v10687
    %10912 = vst [vmem:[%s14 + $0x20] sm:$0xff] %v10688
    %10913 = vst [vmem:[%s14 + $0x28] sm:$0xff] %v10689
    %10914 = vst [vmem:[%s14 + $0x30] sm:$0xff] %v10690
    %10915 = vst [vmem:[%s14 + $0x38] sm:$0xff] %v10691
    %10916 = vst [vmem:[%s14 + $0x40] sm:$0xff] %v10692
    %10917 = vst [vmem:[%s14 + $0x48] sm:$0xff] %v10693
    %10918 = vst [vmem:[%s14 + $0x50] sm:$0xff] %v10694
    %10919 = vst [vmem:[%s14 + $0x58] sm:$0xff] %v10695
    %10920 = vst [vmem:[%s14 + $0x60] sm:$0xff] %v10696
    %10921 = vst [vmem:[%s14 + $0x68] sm:$0xff] %v10697
    %10922 = vst [vmem:[%s14 + $0x70] sm:$0xff] %v10698
    %10923 = vst [vmem:[%s14 + $0x78] sm:$0xff] %v10699
    %10924 = vst [vmem:[%s14 + $0x80] sm:$0xff] %v10700
    %10925 = vst [vmem:[%s14 + $0x88] sm:$0xff] %v10701
    %10926 = vst [vmem:[%s14 + $0x90] sm:$0xff] %v10702
    %10927 = vst [vmem:[%s14 + $0x98] sm:$0xff] %v10703
    %10928 = vst [vmem:[%s14 + $0xa0] sm:$0xff] %v10704
    %10929 = vst [vmem:[%s14 + $0xa8] sm:$0xff] %v10705
    %10930 = vst [vmem:[%s14 + $0xb0] sm:$0xff] %v10706
    %10931 = vst [vmem:[%s14 + $0xb8] sm:$0xff] %v10707
    %10932 = vst [vmem:[%s14 + $0xc0] sm:$0xff] %v10708
    %10933 = vst [vmem:[%s14 + $0xc8] sm:$0xff] %v10709
    %10934 = vst [vmem:[%s14 + $0xd0] sm:$0xff] %v10710
    %10935 = vst [vmem:[%s14 + $0xd8] sm:$0xff] %v10711
    %10936 = vst [vmem:[%s14 + $0xe0] sm:$0xff] %v10712
    %10937 = vst [vmem:[%s14 + $0xe8] sm:$0xff] %v10713
    %10938 = vst [vmem:[%s14 + $0xf0] sm:$0xff] %v10714
    %10939 = vst [vmem:[%s14 + $0xf8] sm:$0xff] %v10715
    %10940 = vst [vmem:[%s14 + $0x100] sm:$0xff] %v10716
    %10941 = vst [vmem:[%s14 + $0x108] sm:$0xff] %v10717
    %10942 = vst [vmem:[%s14 + $0x110] sm:$0xff] %v10718
    %10943 = vst [vmem:[%s14 + $0x118] sm:$0xff] %v10719
    %10944 = vst [vmem:[%s14 + $0x120] sm:$0xff] %v10720
    %10945 = vst [vmem:[%s14 + $0x128] sm:$0xff] %v10721
    %10946 = vst [vmem:[%s14 + $0x130] sm:$0xff] %v10722
    %10947 = vst [vmem:[%s14 + $0x138] sm:$0xff] %v10723
    %10948 = vst [vmem:[%s14 + $0x140] sm:$0xff] %v10724
    %10949 = vst [vmem:[%s14 + $0x148] sm:$0xff] %v10725
    %10950 = vst [vmem:[%s14 + $0x150] sm:$0xff] %v10726
    %10951 = vst [vmem:[%s14 + $0x158] sm:$0xff] %v10727
    %10952 = vst [vmem:[%s14 + $0x160] sm:$0xff] %v10728
    %10953 = vst [vmem:[%s14 + $0x168] sm:$0xff] %v10729
    %10954 = vst [vmem:[%s14 + $0x170] sm:$0xff] %v10730
    %10955 = vst [vmem:[%s14 + $0x178] sm:$0xff] %v10731
    %10956 = vst [vmem:[%s14 + $0x180] sm:$0xff] %v10732
    %10957 = vst [vmem:[%s14 + $0x188] sm:$0xff] %v10733
    %10958 = vst [vmem:[%s14 + $0x190] sm:$0xff] %v10734
    %10959 = vst [vmem:[%s14 + $0x198] sm:$0xff] %v10735
    %10960 = vst [vmem:[%s14 + $0x1a0] sm:$0xff] %v10736
    %10961 = vst [vmem:[%s14 + $0x1a8] sm:$0xff] %v10737
    %10962 = vst [vmem:[%s14 + $0x1b0] sm:$0xff] %v10738
    %10963 = vst [vmem:[%s14 + $0x1b8] sm:$0xff] %v10739
    %10964 = vst [vmem:[%s14 + $0x1c0] sm:$0xff] %v10740
    %10965 = vst [vmem:[%s14 + $0x1c8] sm:$0xff] %v10741
    %10966 = vst [vmem:[%s14 + $0x1d0] sm:$0xff] %v10742
    %10967 = vst [vmem:[%s14 + $0x1d8] sm:$0xff] %v10743
    %10968 = vst [vmem:[%s14 + $0x1e0] sm:$0xff] %v10744
    %10969 = vst [vmem:[%s14 + $0x1e8] sm:$0xff] %v10745
    %10970 = vst [vmem:[%s14 + $0x1f0] sm:$0xff] %v10746
    %10971 = vst [vmem:[%s14 + $0x1f8] sm:$0xff] %v10747
    %10972 = vst [vmem:[%s14 + $0x200] sm:$0xff] %v10748
    %10973 = vst [vmem:[%s14 + $0x208] sm:$0xff] %v10749
    %10974 = vst [vmem:[%s14 + $0x210] sm:$0xff] %v10750
    %10975 = vst [vmem:[%s14 + $0x218] sm:$0xff] %v10751
    %10976 = vst [vmem:[%s14 + $0x220] sm:$0xff] %v10752
    %10977 = vst [vmem:[%s14 + $0x228] sm:$0xff] %v10753
    %10978 = vst [vmem:[%s14 + $0x230] sm:$0xff] %v10754
    %10979 = vst [vmem:[%s14 + $0x238] sm:$0xff] %v10755
    %10980 = vst [vmem:[%s14 + $0x240] sm:$0xff] %v10756
    %10981 = vst [vmem:[%s14 + $0x248] sm:$0xff] %v10757
    %10982 = vst [vmem:[%s14 + $0x250] sm:$0xff] %v10758
    %10983 = vst [vmem:[%s14 + $0x258] sm:$0xff] %v10759
    %10984 = vst [vmem:[%s14 + $0x260] sm:$0xff] %v10760
    %10985 = vst [vmem:[%s14 + $0x268] sm:$0xff] %v10761
    %10986 = vst [vmem:[%s14 + $0x270] sm:$0xff] %v10762
    %10987 = vst [vmem:[%s14 + $0x278] sm:$0xff] %v10763
    %10988 = vst [vmem:[%s14 + $0x280] sm:$0xff] %v10764
    %10989 = vst [vmem:[%s14 + $0x288] sm:$0xff] %v10765
    %10990 = vst [vmem:[%s14 + $0x290] sm:$0xff] %v10766
    %10991 = vst [vmem:[%s14 + $0x298] sm:$0xff] %v10767
    %10992 = vst [vmem:[%s14 + $0x2a0] sm:$0xff] %v10768
    %10993 = vst [vmem:[%s14 + $0x2a8] sm:$0xff] %v10769
    %10994 = vst [vmem:[%s14 + $0x2b0] sm:$0xff] %v10770
    %10995 = vst [vmem:[%s14 + $0x2b8] sm:$0xff] %v10771
    %10996 = vst [vmem:[%s14 + $0x2c0] sm:$0xff] %v10772
    %10997 = vst [vmem:[%s14 + $0x2c8] sm:$0xff] %v10773
    %10998 = vst [vmem:[%s14 + $0x2d0] sm:$0xff] %v10774
    %10999 = vst [vmem:[%s14 + $0x2d8] sm:$0xff] %v10775
    %11000 = vst [vmem:[%s14 + $0x2e0] sm:$0xff] %v10776
    %11001 = vst [vmem:[%s14 + $0x2e8] sm:$0xff] %v10777
    %11002 = vst [vmem:[%s14 + $0x2f0] sm:$0xff] %v10778
    %11003 = vst [vmem:[%s14 + $0x2f8] sm:$0xff] %v10779
    %11004 = vst [vmem:[%s14 + $0x300] sm:$0xff] %v10780
    %11005 = vst [vmem:[%s14 + $0x308] sm:$0xff] %v10781
    %11006 = vst [vmem:[%s14 + $0x310] sm:$0xff] %v10782
    %11007 = vst [vmem:[%s14 + $0x318] sm:$0xff] %v10783
    %11008 = vst [vmem:[%s14 + $0x320] sm:$0xff] %v10784
    %11009 = vst [vmem:[%s14 + $0x328] sm:$0xff] %v10785
    %11010 = vst [vmem:[%s14 + $0x330] sm:$0xff] %v10786
    %11011 = vst [vmem:[%s14 + $0x338] sm:$0xff] %v10787
    %11012 = vst [vmem:[%s14 + $0x340] sm:$0xff] %v10788
    %11013 = vst [vmem:[%s14 + $0x348] sm:$0xff] %v10789
    %11014 = vst [vmem:[%s14 + $0x350] sm:$0xff] %v10790
    %11015 = vst [vmem:[%s14 + $0x358] sm:$0xff] %v10791
    %11016 = vst [vmem:[%s14 + $0x360] sm:$0xff] %v10792
    %11017 = vst [vmem:[%s14 + $0x368] sm:$0xff] %v10793
    %11018 = vst [vmem:[%s14 + $0x370] sm:$0xff] %v10794
    %11019 = vst [vmem:[%s14 + $0x378] sm:$0xff] %v10795
    %11020 = vst [vmem:[%s14 + $0x380] sm:$0xff] %v10796
    %11021 = vst [vmem:[%s14 + $0x388] sm:$0xff] %v10797
    %11022 = vst [vmem:[%s14 + $0x390] sm:$0xff] %v10798
    %11023 = vst [vmem:[%s14 + $0x398] sm:$0xff] %v10799
    %11024 = vst [vmem:[%s14 + $0x3a0] sm:$0xff] %v10800
    %11025 = vst [vmem:[%s14 + $0x3a8] sm:$0xff] %v10801
    %11026 = vst [vmem:[%s14 + $0x3b0] sm:$0xff] %v10802
    %11027 = vst [vmem:[%s14 + $0x3b8] sm:$0xff] %v10803
    %11028 = vst [vmem:[%s14 + $0x3c0] sm:$0xff] %v10804
    %11029 = vst [vmem:[%s14 + $0x3c8] sm:$0xff] %v10805
    %11030 = vst [vmem:[%s14 + $0x3d0] sm:$0xff] %v10806
    %11031 = vst [vmem:[%s14 + $0x3d8] sm:$0xff] %v10807
    %11032 = vst [vmem:[%s14 + $0x3e0] sm:$0xff] %v10808
    %11033 = vst [vmem:[%s14 + $0x3e8] sm:$0xff] %v10809
    %11034 = vst [vmem:[%s14 + $0x3f0] sm:$0xff] %v10810
    %11035 = vst [vmem:[%s14 + $0x3f8] sm:$0xff] %v10811
    %11036 = vst [vmem:[%s14 + $0x400] sm:$0xff] %v10812
    %11037 = vst [vmem:[%s14 + $0x408] sm:$0xff] %v10813
    %11038 = vst [vmem:[%s14 + $0x410] sm:$0xff] %v10814
    %11039 = vst [vmem:[%s14 + $0x418] sm:$0xff] %v10815
    %11040 = vst [vmem:[%s14 + $0x420] sm:$0xff] %v10816
    %11041 = vst [vmem:[%s14 + $0x428] sm:$0xff] %v10817
    %11042 = vst [vmem:[%s14 + $0x430] sm:$0xff] %v10818
    %11043 = vst [vmem:[%s14 + $0x438] sm:$0xff] %v10819
    %11044 = vst [vmem:[%s14 + $0x440] sm:$0xff] %v10820
    %11045 = vst [vmem:[%s14 + $0x448] sm:$0xff] %v10821
    %11046 = vst [vmem:[%s14 + $0x450] sm:$0xff] %v10822
    %11047 = vst [vmem:[%s14 + $0x458] sm:$0xff] %v10823
    %11048 = vst [vmem:[%s14 + $0x460] sm:$0xff] %v10824
    %11049 = vst [vmem:[%s14 + $0x468] sm:$0xff] %v10825
    %11050 = vst [vmem:[%s14 + $0x470] sm:$0xff] %v10826
    %11051 = vst [vmem:[%s14 + $0x478] sm:$0xff] %v10827
    %11052 = vst [vmem:[%s14 + $0x480] sm:$0xff] %v10828
    %11053 = vst [vmem:[%s14 + $0x488] sm:$0xff] %v10829
    %11054 = vst [vmem:[%s14 + $0x490] sm:$0xff] %v10830
    %11055 = vst [vmem:[%s14 + $0x498] sm:$0xff] %v10831
    %11056 = vst [vmem:[%s14 + $0x4a0] sm:$0xff] %v10832
    %11057 = vst [vmem:[%s14 + $0x4a8] sm:$0xff] %v10833
    %11058 = vst [vmem:[%s14 + $0x4b0] sm:$0xff] %v10834
    %11059 = vst [vmem:[%s14 + $0x4b8] sm:$0xff] %v10835
    %11060 = vst [vmem:[%s14 + $0x4c0] sm:$0xff] %v10836
    %11061 = vst [vmem:[%s14 + $0x4c8] sm:$0xff] %v10837
    %11062 = vst [vmem:[%s14 + $0x4d0] sm:$0xff] %v10838
    %11063 = vst [vmem:[%s14 + $0x4d8] sm:$0xff] %v10839
    %11064 = vst [vmem:[%s14 + $0x4e0] sm:$0xff] %v10840
    %11065 = vst [vmem:[%s14 + $0x4e8] sm:$0xff] %v10841
    %11066 = vst [vmem:[%s14 + $0x4f0] sm:$0xff] %v10842
    %11067 = vst [vmem:[%s14 + $0x4f8] sm:$0xff] %v10843
    %11068 = vst [vmem:[%s14 + $0x500] sm:$0xff] %v10844
    %11069 = vst [vmem:[%s14 + $0x508] sm:$0xff] %v10845
    %11070 = vst [vmem:[%s14 + $0x510] sm:$0xff] %v10846
    %11071 = vst [vmem:[%s14 + $0x518] sm:$0xff] %v10847
    %11072 = vst [vmem:[%s14 + $0x520] sm:$0xff] %v10848
    %11073 = vst [vmem:[%s14 + $0x528] sm:$0xff] %v10849
    %11074 = vst [vmem:[%s14 + $0x530] sm:$0xff] %v10850
    %11075 = vst [vmem:[%s14 + $0x538] sm:$0xff] %v10851
    %11076 = vst [vmem:[%s14 + $0x540] sm:$0xff] %v10852
    %11077 = vst [vmem:[%s14 + $0x548] sm:$0xff] %v10853
    %11078 = vst [vmem:[%s14 + $0x550] sm:$0xff] %v10854
    %11079 = vst [vmem:[%s14 + $0x558] sm:$0xff] %v10855
    %11080 = vst [vmem:[%s14 + $0x560] sm:$0xff] %v10856
    %11081 = vst [vmem:[%s14 + $0x568] sm:$0xff] %v10857
    %11082 = vst [vmem:[%s14 + $0x570] sm:$0xff] %v10858
    %11083 = vst [vmem:[%s14 + $0x578] sm:$0xff] %v10859
    %11084 = vst [vmem:[%s14 + $0x580] sm:$0xff] %v10860
    %11085 = vst [vmem:[%s14 + $0x588] sm:$0xff] %v10861
    %11086 = vst [vmem:[%s14 + $0x590] sm:$0xff] %v10862
    %11087 = vst [vmem:[%s14 + $0x598] sm:$0xff] %v10863
    %11088 = vst [vmem:[%s14 + $0x5a0] sm:$0xff] %v10864
    %11089 = vst [vmem:[%s14 + $0x5a8] sm:$0xff] %v10865
    %11090 = vst [vmem:[%s14 + $0x5b0] sm:$0xff] %v10866
    %11091 = vst [vmem:[%s14 + $0x5b8] sm:$0xff] %v10867
    %11092 = vst [vmem:[%s14 + $0x5c0] sm:$0xff] %v10868
    %11093 = vst [vmem:[%s14 + $0x5c8] sm:$0xff] %v10869
    %11094 = vst [vmem:[%s14 + $0x5d0] sm:$0xff] %v10870
    %11095 = vst [vmem:[%s14 + $0x5d8] sm:$0xff] %v10871
    %11096 = vst [vmem:[%s14 + $0x5e0] sm:$0xff] %v10872
    %11097 = vst [vmem:[%s14 + $0x5e8] sm:$0xff] %v10873
    %11098 = vst [vmem:[%s14 + $0x5f0] sm:$0xff] %v10874
    %11099 = vst [vmem:[%s14 + $0x5f8] sm:$0xff] %v10875
    %11100 = vst [vmem:[%s14 + $0x600] sm:$0xff] %v10876
    %11101 = vst [vmem:[%s14 + $0x608] sm:$0xff] %v10877
    %11102 = vst [vmem:[%s14 + $0x610] sm:$0xff] %v10878
    %11103 = vst [vmem:[%s14 + $0x618] sm:$0xff] %v10879
    %11104 = vst [vmem:[%s14 + $0x620] sm:$0xff] %v10880
    %11105 = vst [vmem:[%s14 + $0x628] sm:$0xff] %v10881
    %11106 = vst [vmem:[%s14 + $0x630] sm:$0xff] %v10882
    %11107 = vst [vmem:[%s14 + $0x638] sm:$0xff] %v10883
    %11108 = vst [vmem:[%s14 + $0x640] sm:$0xff] %v10884
    %11109 = vst [vmem:[%s14 + $0x648] sm:$0xff] %v10885
    %11110 = vst [vmem:[%s14 + $0x650] sm:$0xff] %v10886
    %11111 = vst [vmem:[%s14 + $0x658] sm:$0xff] %v10887
    %11112 = vst [vmem:[%s14 + $0x660] sm:$0xff] %v10888
    %11113 = vst [vmem:[%s14 + $0x668] sm:$0xff] %v10889
    %11114 = vst [vmem:[%s14 + $0x670] sm:$0xff] %v10890
    %11115 = vst [vmem:[%s14 + $0x678] sm:$0xff] %v10891
    %11116 = vst [vmem:[%s14 + $0x680] sm:$0xff] %v10892
    %11117 = vst [vmem:[%s14 + $0x688] sm:$0xff] %v10893
    %11118 = vst [vmem:[%s14 + $0x690] sm:$0xff] %v10894
    %11119 = vst [vmem:[%s14 + $0x698] sm:$0xff] %v10895
    %11120 = vst [vmem:[%s14 + $0x6a0] sm:$0xff] %v10896
    %11121 = vst [vmem:[%s14 + $0x6a8] sm:$0xff] %v10897
    %11122 = vst [vmem:[%s14 + $0x6b0] sm:$0xff] %v10898
    %11123 = vst [vmem:[%s14 + $0x6b8] sm:$0xff] %v10899
    %11124 = vst [vmem:[%s14 + $0x6c0] sm:$0xff] %v10900
    %11125 = vst [vmem:[%s14 + $0x6c8] sm:$0xff] %v10901
    %11126 = vst [vmem:[%s14 + $0x6d0] sm:$0xff] %v10902
    %11127 = vst [vmem:[%s14 + $0x6d8] sm:$0xff] %v10903
    %11128 = vst [vmem:[%s14 + $0x6e0] sm:$0xff] %v10904
    %11129 = vst [vmem:[%s14 + $0x6e8] sm:$0xff] %v10905
    %11130 = vst [vmem:[%s14 + $0x6f0] sm:$0xff] %v10906
    %11131 = vst [vmem:[%s14 + $0x6f8] sm:$0xff] %v10907
    // Predicated region
    $region86: #{generator_forward.1} parent=1 // pred_check
      _
    $region87: #{generator_forward.1} parent=1 // pred_check_branch
      %11133 = sbr.rel (0) target = $region89
    $region88: #{generator_forward.1} parent=1 // pred_region
      _
    $region89: #{generator_forward.1} parent=1 // pred_fallthru
      _
    // Predicated region
    $region90: #{generator_forward.1} parent=1 // pred_check
      _
    $region91: #{generator_forward.1} parent=1 // pred_check_branch
      %11135 = sbr.rel (0) target = $region93
    $region92: #{generator_forward.1} parent=1 // pred_region
      _
    $region93: #{generator_forward.1} parent=1 // pred_fallthru
      _
    %11136 = vsyncpa [#allocation7], 1
    %11137 = vsyncpa [#allocation9], 1
    %11138 = vsyncpa [#allocation12], 1
    %11139 = vsyncpa [#allocation15], 1
    %11140 = vsyncpa [#allocation18], 1
    %11141 = vsyncpa [#allocation21], 1
  %11142 = vsyncmov [#allocation5]
  %s11143 = vpop.sfrf %11142
  %p11144 = scmp.eq.s32.totalorder %s11143, 0
  %p11145 = pneg %p11144
  %11147 = shalt.err (%p11145)
  %s11148 = scalar_lea.sflag [#allocation5], 1
  %11149 = vsyncmov %s11148
  %s11150 = vpop.sfrf %11149
  %p11151 = scmp.eq.s32.totalorder %s11150, 0
  %p11152 = pneg %p11151
  %11154 = shalt.err (%p11152)
  %s11155 = scalar_lea.sflag [#allocation5], 2
  %11156 = vsyncmov %s11155
  %s11157 = vpop.sfrf %11156
  %p11158 = scmp.eq.s32.totalorder %s11157, 0
  %p11159 = pneg %p11158
  %11161 = shalt.err (%p11159)

</llo_original>
